<compile_context>
chip_gen: v5e
topology: v5e:2x2
jax: 0.10.0
libtpu: 0.0.40
codegen_flags: <defaults>
</compile_context>

<pallas_src>
import jax
import jax.numpy as jnp
from jax.experimental import pallas as pl
from jax.experimental.pallas import tpu as pltpu

LANE = 128      # lane width (last dim)
SUBLANE = 8     # f32 sublane width (second-to-last dim)


def _round_up(x, m):
    return (x + m - 1) // m * m


def _time_chunk(T, Bt, target_rows=256, max_chunk=64):
    """Pick the time chunk so the per-chunk input projection has >= target_rows
    MXU rows (tt*Bt >= 256 on v6e/v7x), capped to bound loop unrolling.  T is
    padded up to a multiple of the chunk; chunks are re-balanced so the padded
    tail (masked in-kernel) is < n_chunks steps even for odd/prime T."""
    tt = max(1, min(max_chunk, -(-target_rows // Bt)))
    n_chunks = max(1, -(-T // tt))
    tt = -(-T // n_chunks)
    return tt, n_chunks * tt


def _vmem_limit_bytes(footprint):
    """Generation-aware VMEM limit: ~75% of physical capacity (leaves headroom
    for compiler scratch), never below 32 MiB or 2x the static footprint."""
    cap = 64 * 2 ** 20                      # conservative default (v7x physical)
    try:
        cap = int(getattr(pltpu.get_tpu_info(), "vmem_capacity_bytes", cap))
    except Exception:
        pass
    cap = int(0.75 * cap)                   # ~48 MiB on v7x, ~96 MiB on v5e/v6e
    return int(min(max(2 * footprint, 32 * 2 ** 20), cap))


# ------------------------- parameter packing (glue) --------------------------
def _pack_weight(w, in_dim, in_pad, H, h_pad):
    """PyTorch (4H, in_dim) weight, gate order (i,f,g,o) -> padded bf16 kernel
    layout (in_pad, 4*h_pad), gate order (i,f,o,g)."""
    w = w.reshape(4, H, in_dim)[jnp.array([0, 1, 3, 2])]    # i,f,g,o -> i,f,o,g
    w = jnp.transpose(w, (2, 0, 1))                          # (in_dim, 4, H)
    w = jnp.pad(w, ((0, in_pad - in_dim), (0, 0), (0, h_pad - H)))
    return w.reshape(in_pad, 4 * h_pad).astype(jnp.bfloat16)


def _pack_bias(b, H, h_pad):
    """Combined bias (4H,), gate order (i,f,g,o) -> f32 (1, 4*h_pad), (i,f,o,g)."""
    b = b.reshape(4, H)[jnp.array([0, 1, 3, 2])]
    b = jnp.pad(b, ((0, 0), (0, h_pad - H)))
    return b.reshape(1, 4 * h_pad).astype(jnp.float32)


class EncoderParams:
    """Deterministic parameters mirroring the PyTorch module, pre-packed for the
    kernel (padded, bf16 weights stacked over layers, combined bias)."""

    def __init__(self, key, input_dim, emb_dim, hid_dim, n_layers):
        self.input_dim = input_dim
        self.emb_dim = emb_dim
        self.hid_dim = hid_dim
        self.n_layers = n_layers
        self.emb_pad = _round_up(emb_dim, LANE)
        self.hid_pad = _round_up(hid_dim, LANE)
        self.in_pad = max(self.emb_pad, self.hid_pad)   # shared padded input width

        keys = jax.random.split(key, 1 + 4 * n_layers)
        scale = 1.0 / float(hid_dim) ** 0.5

        # nn.Embedding(input_dim, emb_dim): N(0, 1).  Stored bf16 so the gather
        # streams half the HBM bytes (activations feed the MXU in bf16 anyway).
        emb = jax.random.normal(keys[0], (input_dim, emb_dim), jnp.float32)
        self.embedding = emb.astype(jnp.bfloat16)

        # nn.LSTM weights generated in PyTorch layout (4H, Din)/(4H, H), gate
        # order (i,f,g,o), U(-1/sqrt(H), 1/sqrt(H)); packed + stacked per layer.
        w_ih_l, w_hh_l, b_l = [], [], []
        for layer in range(n_layers):
            din = emb_dim if layer == 0 else hid_dim
            k_wih, k_whh, k_bih, k_bhh = keys[1 + 4 * layer: 5 + 4 * layer]
            w_ih = jax.random.uniform(k_wih, (4 * hid_dim, din), jnp.float32, -scale, scale)
            w_hh = jax.random.uniform(k_whh, (4 * hid_dim, hid_dim), jnp.float32, -scale, scale)
            b_ih = jax.random.uniform(k_bih, (4 * hid_dim,), jnp.float32, -scale, scale)
            b_hh = jax.random.uniform(k_bhh, (4 * hid_dim,), jnp.float32, -scale, scale)
            w_ih_l.append(_pack_weight(w_ih, din, self.in_pad, hid_dim, self.hid_pad))
            w_hh_l.append(_pack_weight(w_hh, hid_dim, self.hid_pad, hid_dim, self.hid_pad))
            b_l.append(_pack_bias(b_ih + b_hh, hid_dim, self.hid_pad))
        self.w_ih = jnp.stack(w_ih_l)    # (L, in_pad, 4*hid_pad) bf16
        self.w_hh = jnp.stack(w_hh_l)    # (L, hid_pad, 4*hid_pad) bf16
        self.b = jnp.stack(b_l)          # (L, 1, 4*hid_pad) f32


# ------------------------------ Pallas kernel --------------------------------
def _make_encoder_lstm_kernel(t_true, t_pad):
    """Kernel for grid = (batch_blocks, n_layers, time_chunks).

    x_ref     : (Tt, Bt, Dmax)      bf16 layer-0 input chunk (streamed)
    wih_ref   : (1, Dmax, 4*Hp)     bf16 input->gate weights of this layer
    whh_ref   : (1, Hp,   4*Hp)     bf16 hidden->gate weights of this layer
    b_ref     : (1, 1,    4*Hp)     f32 combined bias of this layer
    h_out_ref : (1, Bt, Hp)         f32 final hidden state (revisited over time)
    c_out_ref : (1, Bt, Hp)         f32 final cell state
    seq_sc    : (Tp, Bt, Dmax)      f32 inter-layer hidden sequence (VMEM)
    gx_sc     : (Tt, Bt, 4*Hp)      f32 chunk gate pre-activations (VMEM)
    h_sc/c_sc : (Bt, Hp)            f32 recurrent carries across time chunks
    """
    mask_tail = (t_pad != t_true)

    def kernel(x_ref, wih_ref, whh_ref, b_ref, h_out_ref, c_out_ref,
               seq_sc, gx_sc, h_sc, c_sc):
        layer = pl.program_id(1)
        tc = pl.program_id(2)
        Tt, Bt, Dmax = x_ref.shape
        Hp = whh_ref.shape[1]
        t0 = pl.multiple_of(tc * Tt, Tt)

        @pl.when(tc == 0)
        def _init_state():
            h_sc[...] = jnp.zeros_like(h_sc)
            c_sc[...] = jnp.zeros_like(c_sc)

        # Layer 0 streams its chunk from HBM; stage it in the sequence scratch
        # so every layer reads its input from the same VMEM buffer (deeper
        # layers read the previous layer's hidden states written below).
        @pl.when(layer == 0)
        def _stage_layer0_input():
            seq_sc[pl.ds(t0, Tt)] = x_ref[...].astype(jnp.float32)

        # Chunk-wide input projection: one big MXU matmul, bias folded.  Staged
        # in VMEM scratch so the unrolled recurrence doesn't blow the vreg file.
        x_chunk = seq_sc[pl.ds(t0, Tt)].reshape(Tt * Bt, Dmax).astype(jnp.bfloat16)
        gx = jnp.dot(x_chunk, wih_ref[0], preferred_element_type=jnp.float32)
        gx_sc[...] = gx.reshape(Tt, Bt, 4 * Hp) + b_ref[0]

        # Recurrence: only h @ W_hh per step; fully unrolled (small static Tt).
        # W_hh is read from its ref each step (no hoisted SSA live range).
        h = h_sc[...]
        c = c_sc[...]
        for t in range(Tt):
            gates = gx_sc[t] + jnp.dot(h.astype(jnp.bfloat16), whh_ref[0],
                                       preferred_element_type=jnp.float32)
            # Gate layout (i, f, o, g): sigmoid on one contiguous 3Hp slab,
            # tanh on the last Hp slab; all slices are lane-aligned.
            s = jax.nn.sigmoid(gates[:, :3 * Hp])
            g = jnp.tanh(gates[:, 3 * Hp:])
            c_new = s[:, Hp:2 * Hp] * c + s[:, :Hp] * g
            h_new = s[:, 2 * Hp:3 * Hp] * jnp.tanh(c_new)
            if mask_tail:
                valid = (t0 + t) < t_true     # masks the padded tail timesteps
                c = jnp.where(valid, c_new, c)
                h = jnp.where(valid, h_new, h)
            else:
                c, h = c_new, h_new
            # Stage this step's hidden state for the next layer (f32 -> full
            # (8,128) vreg stores, no sub-vreg masked bf16 stores).
            if Dmax == Hp:
                seq_sc[pl.ds(t0 + t, 1)] = h.reshape(1, Bt, Hp)
            else:
                seq_sc[pl.ds(t0 + t, 1), :, :Hp] = h.reshape(1, Bt, Hp)

        h_sc[...] = h
        c_sc[...] = c
        # Output blocks are revisited across the time axis; keep them current so
        # the writeback when (layer, batch-block) changes carries the final state.
        h_out_ref[0] = h
        c_out_ref[0] = c

    return kernel


def encoder_rnn(x, w_ih, w_hh, b, *, t_true, tt, bt):
    """Fused multi-layer LSTM.  x: (Tp, Bp, Dmax) bf16 padded layer-0 input."""
    Tp, Bp, Dmax = x.shape
    n_layers, Hp = w_hh.shape[0], w_hh.shape[1]
    nB, nT = Bp // bt, Tp // tt

    kernel = _make_encoder_lstm_kernel(t_true, Tp)

    grid_spec = pltpu.PrefetchScalarGridSpec(
        num_scalar_prefetch=0,
        grid=(nB, n_layers, nT),
        in_specs=[
            pl.BlockSpec((tt, bt, Dmax), lambda bb, l, t: (t, bb, 0)),   # x chunk
            pl.BlockSpec((1, Dmax, 4 * Hp), lambda bb, l, t: (l, 0, 0)), # W_ih[l]
            pl.BlockSpec((1, Hp, 4 * Hp), lambda bb, l, t: (l, 0, 0)),   # W_hh[l]
            pl.BlockSpec((1, 1, 4 * Hp), lambda bb, l, t: (l, 0, 0)),    # bias[l]
        ],
        out_specs=(
            pl.BlockSpec((1, bt, Hp), lambda bb, l, t: (l, bb, 0)),      # h_n
            pl.BlockSpec((1, bt, Hp), lambda bb, l, t: (l, bb, 0)),      # c_n
        ),
        scratch_shapes=[
            pltpu.VMEM((Tp, bt, Dmax), jnp.float32),     # inter-layer sequence
            pltpu.VMEM((tt, bt, 4 * Hp), jnp.float32),   # gate pre-activations
            pltpu.VMEM((bt, Hp), jnp.float32),           # h carry
            pltpu.VMEM((bt, Hp), jnp.float32),           # c carry
        ],
    )

    footprint = (
        2 * tt * bt * Dmax * 2                              # double-buffered x chunk
        + 2 * ((Dmax + Hp) * 4 * Hp * 2 + 4 * Hp * 4)       # double-buffered weights+bias
        + Tp * bt * Dmax * 4                                # inter-layer sequence scratch
        + tt * bt * 4 * Hp * 4                              # gx scratch
        + 8 * bt * Hp * 4                                   # h/c carries + out blocks
    )
    vmem_limit = _vmem_limit_bytes(footprint)
    # TODO(synk): for very long sequences, stream the inter-layer sequence
    # through HBM instead of a resident VMEM scratch.
    assert footprint <= vmem_limit, (
        f"VMEM footprint {footprint} B exceeds limit {vmem_limit} B; "
        "reduce the time chunk or sequence length.")

    cost = pl.CostEstimate(
        flops=2 * n_layers * Tp * Bp * (Dmax + Hp) * 4 * Hp,
        transcendentals=5 * n_layers * Tp * Bp * Hp,
        bytes_accessed=n_layers * Tp * Bp * Dmax * 2
        + nB * n_layers * ((Dmax + Hp) * 4 * Hp * 2 + 4 * Hp * 4)
        + 2 * n_layers * Bp * Hp * 4,
    )

    return pl.pallas_call(
        kernel,
        out_shape=(
            jax.ShapeDtypeStruct((n_layers, Bp, Hp), jnp.float32),
            jax.ShapeDtypeStruct((n_layers, Bp, Hp), jnp.float32),
        ),
        grid_spec=grid_spec,
        compiler_params=pltpu.CompilerParams(
            # batch blocks are independent (v7x megacore); layer & time carry state.
            dimension_semantics=("parallel", "arbitrary", "arbitrary"),
            vmem_limit_bytes=vmem_limit,
        ),
        cost_estimate=cost,
    )(x, w_ih, w_hh, b)


# -------------------------------- Encoder ------------------------------------
def encoder_forward(params: EncoderParams, src):
    """src: (T, B) int32 token ids -> (hidden, cell), each (n_layers, B, H) f32."""
    T, B = src.shape
    E, H = params.emb_dim, params.hid_dim
    Dmax, Hp = params.in_pad, params.hid_pad
    Bp = _round_up(max(B, SUBLANE), SUBLANE)
    Bt = Bp // 2 if Bp % 16 == 0 else Bp          # 2 batch blocks feed v7x's 2 TCs
    tt, Tp = _time_chunk(T, Bt)

    # Embedding lookup (XLA gather glue) directly in bf16, then a single fused
    # pad to the lane/sublane-dense kernel layout (time padding masked in-kernel).
    embedded = jnp.take(params.embedding, src, axis=0)            # (T, B, E) bf16
    # TODO(synk): train-mode dropout (after embedding + between LSTM layers) not
    # implemented; eval/inference semantics (identity).
    x = jnp.pad(embedded, ((0, Tp - T), (0, Bp - B), (0, Dmax - E)))

    hidden_p, cell_p = encoder_rnn(x, params.w_ih, params.w_hh, params.b,
                                   t_true=T, tt=tt, bt=Bt)
    hidden = hidden_p[:, :B, :H]
    cell = cell_p[:, :B, :H]
    return hidden, cell


# --------------------------- pure-JAX reference -------------------------------
def _reference_encoder(params: EncoderParams, src):
    """lax.scan reference using the same bf16 operand casts as the kernel."""
    T, B = src.shape
    H, Hp = params.hid_dim, params.hid_pad
    E, Dmax = params.emb_dim, params.in_pad
    x = jnp.take(params.embedding, src, axis=0).astype(jnp.float32)
    x = jnp.pad(x, ((0, 0), (0, 0), (0, Dmax - E)))                # (T, B, Dmax)
    hs, cs = [], []
    for l in range(params.n_layers):
        w_ih = params.w_ih[l].astype(jnp.float32)
        w_hh = params.w_hh[l].astype(jnp.float32)
        bias = params.b[l].astype(jnp.float32)

        def step(carry, x_t, w_ih=w_ih, w_hh=w_hh, bias=bias):
            h, c = carry
            gates = (x_t.astype(jnp.bfloat16).astype(jnp.float32) @ w_ih
                     + h.astype(jnp.bfloat16).astype(jnp.float32) @ w_hh + bias)
            i = jax.nn.sigmoid(gates[:, :Hp])
            f = jax.nn.sigmoid(gates[:, Hp:2 * Hp])
            o = jax.nn.sigmoid(gates[:, 2 * Hp:3 * Hp])
            g = jnp.tanh(gates[:, 3 * Hp:])
            c = f * c + i * g
            h = o * jnp.tanh(c)
            return (h, c), h

        init = (jnp.zeros((B, Hp), jnp.float32), jnp.zeros((B, Hp), jnp.float32))
        (h_fin, c_fin), out = jax.lax.scan(step, init, x)
        hs.append(h_fin[:, :H])
        cs.append(c_fin[:, :H])
        x = jnp.pad(out, ((0, 0), (0, 0), (0, Dmax - Hp)))
    return jnp.stack(hs), jnp.stack(cs)


# ---------------------------------- main --------------------------------------
if __name__ == "__main__":
    INPUT_DIM = 50    # vocab size
    EMB_DIM = 32
    HID_DIM = 32
    N_LAYERS = 2
    SEQ_LEN = 37      # not a multiple of the chunk -> exercises carry + tail mask
    BATCH = 4

    key = jax.random.PRNGKey(0)
    k_params, k_src = jax.random.split(key)

    params = EncoderParams(k_params, INPUT_DIM, EMB_DIM, HID_DIM, N_LAYERS)
    src = jax.random.randint(k_src, (SEQ_LEN, BATCH), 0, INPUT_DIM, jnp.int32)

    hidden, cell = encoder_forward(params, src)
    jax.block_until_ready((hidden, cell))

    assert hidden.shape == (N_LAYERS, BATCH, HID_DIM)
    assert cell.shape == (N_LAYERS, BATCH, HID_DIM)
    assert hidden.dtype == jnp.float32 and cell.dtype == jnp.float32
    assert bool(jnp.all(jnp.isfinite(hidden))) and bool(jnp.all(jnp.isfinite(cell)))

    h_ref, c_ref = _reference_encoder(params, src)
    err = max(float(jnp.max(jnp.abs(hidden - h_ref))),
              float(jnp.max(jnp.abs(cell - c_ref))))
    assert err < 5e-3, f"kernel/reference mismatch: max abs err {err}"

    print("KERNEL_OK")
</pallas_src>

<mosaic_0001>
module attributes {stable_mosaic.version = 11 : i64} {
  func.func @kernel(%arg0: i32, %arg1: i32, %arg2: i32, %arg3: memref<19x8x128xbf16, #tpu.memory_space<vmem>>, %arg4: memref<1x128x512xbf16, #tpu.memory_space<vmem>>, %arg5: memref<1x128x512xbf16, #tpu.memory_space<vmem>>, %arg6: memref<1x1x512xf32, #tpu.memory_space<vmem>>, %arg7: memref<1x8x128xf32, #tpu.memory_space<vmem>>, %arg8: memref<1x8x128xf32, #tpu.memory_space<vmem>>, %arg9: memref<38x8x128xf32, #tpu.memory_space<vmem>>, %arg10: memref<19x8x512xf32, #tpu.memory_space<vmem>>, %arg11: memref<8x128xf32, #tpu.memory_space<vmem>>, %arg12: memref<8x128xf32, #tpu.memory_space<vmem>>) attributes {dimension_semantics = [#tpu.dimension_semantics<parallel>, #tpu.dimension_semantics<arbitrary>, #tpu.dimension_semantics<arbitrary>], iteration_bounds = array<i64: 1, 2, 2>, scalar_prefetch = 0 : i64, scratch_operands = 4 : i64, tpu.core_type = #tpu.core_type<tc>, window_params = [{transform_indices = @transform_0, window_bounds = array<i64: 19, 8, 128>}, {transform_indices = @transform_1, window_bounds = array<i64: 1, 128, 512>}, {transform_indices = @transform_2, window_bounds = array<i64: 1, 128, 512>}, {transform_indices = @transform_3, window_bounds = array<i64: 1, 1, 512>}, {transform_indices = @transform_4, window_bounds = array<i64: 1, 8, 128>}, {transform_indices = @transform_5, window_bounds = array<i64: 1, 8, 128>}]} {
    %c19_i32 = arith.constant 19 : i32
    %0 = arith.muli %arg2, %c19_i32 : i32
    %1 = tpu.assume_multiple %0, 19 : i32
    %c0_i32 = arith.constant 0 : i32
    %2 = arith.cmpi eq, %arg2, %c0_i32 : i32
    %3 = arith.extui %2 : i1 to i32
    %c0_i32_0 = arith.constant 0 : i32
    %4 = arith.cmpi ne, %3, %c0_i32_0 : i32
    scf.if %4 {
      %cst_237 = arith.constant 0.000000e+00 : f32
      %621 = vector.broadcast %cst_237 : f32 to vector<8x128xf32>
      %c0_238 = arith.constant 0 : index
      %c0_239 = arith.constant 0 : index
      %622 = vector.load %arg11[%c0_238, %c0_239] : memref<8x128xf32, #tpu.memory_space<vmem>>, vector<8x128xf32>
      tpu.vector_store %arg11[%c0_238, %c0_239], %621 {strides = array<i32>} : memref<8x128xf32, #tpu.memory_space<vmem>>, vector<8x128xf32>,
      %cst_240 = arith.constant 0.000000e+00 : f32
      %623 = vector.broadcast %cst_240 : f32 to vector<8x128xf32>
      %c0_241 = arith.constant 0 : index
      %c0_242 = arith.constant 0 : index
      %624 = vector.load %arg12[%c0_241, %c0_242] : memref<8x128xf32, #tpu.memory_space<vmem>>, vector<8x128xf32>
      tpu.vector_store %arg12[%c0_241, %c0_242], %623 {strides = array<i32>} : memref<8x128xf32, #tpu.memory_space<vmem>>, vector<8x128xf32>,
    } else {
    }
    %c0_i32_1 = arith.constant 0 : i32
    %5 = arith.cmpi eq, %arg1, %c0_i32_1 : i32
    %6 = arith.extui %5 : i1 to i32
    %c0_i32_2 = arith.constant 0 : i32
    %7 = arith.cmpi ne, %6, %c0_i32_2 : i32
    scf.if %7 {
      %c0_237 = arith.constant 0 : index
      %c0_238 = arith.constant 0 : index
      %c0_239 = arith.constant 0 : index
      %621 = vector.load %arg3[%c0_237, %c0_238, %c0_239] : memref<19x8x128xbf16, #tpu.memory_space<vmem>>, vector<19x8x128xbf16>
      %622 = arith.extf %621 : vector<19x8x128xbf16> to vector<19x8x128xf32>
      %623 = arith.index_cast %1 : i32 to index
      %c0_240 = arith.constant 0 : index
      %c0_241 = arith.constant 0 : index
      %624 = vector.load %arg9[%623, %c0_240, %c0_241] : memref<38x8x128xf32, #tpu.memory_space<vmem>>, vector<19x8x128xf32>
      tpu.vector_store %arg9[%623, %c0_240, %c0_241], %622 {strides = array<i32>} : memref<38x8x128xf32, #tpu.memory_space<vmem>>, vector<19x8x128xf32>,
    } else {
    }
    %8 = arith.index_cast %1 : i32 to index
    %c0 = arith.constant 0 : index
    %c0_3 = arith.constant 0 : index
    %9 = vector.load %arg9[%8, %c0, %c0_3] : memref<38x8x128xf32, #tpu.memory_space<vmem>>, vector<19x8x128xf32>
    %10 = vector.shape_cast %9 : vector<19x8x128xf32> to vector<152x128xf32>
    %11 = arith.truncf %10 : vector<152x128xf32> to vector<152x128xbf16>
    %c0_4 = arith.constant 0 : index
    %c0_5 = arith.constant 0 : index
    %c0_6 = arith.constant 0 : index
    %12 = vector.load %arg4[%c0_4, %c0_5, %c0_6] : memref<1x128x512xbf16, #tpu.memory_space<vmem>>, vector<1x128x512xbf16>
    %13 = vector.shape_cast %12 : vector<1x128x512xbf16> to vector<128x512xbf16>
    %cst = arith.constant dense<0.000000e+00> : vector<152x512xf32>
    %14 = tpu.matmul %11, %13, %cst {dimension_numbers = #tpu.dot_dimension_numbers<[1], [0], [0], [1], [0, 0, 1, 1], [], []>} : vector<152x128xbf16>, vector<128x512xbf16>, vector<152x512xf32> -> vector<152x512xf32>
    %15 = vector.shape_cast %14 : vector<152x512xf32> to vector<19x8x512xf32>
    %c0_7 = arith.constant 0 : index
    %c0_8 = arith.constant 0 : index
    %c0_9 = arith.constant 0 : index
    %16 = vector.load %arg6[%c0_7, %c0_8, %c0_9] : memref<1x1x512xf32, #tpu.memory_space<vmem>>, vector<1x1x512xf32>
    %17 = vector.shape_cast %16 : vector<1x1x512xf32> to vector<1x512xf32>
    %18 = vector.shape_cast %17 : vector<1x512xf32> to vector<1x1x512xf32>
    %19 = vector.broadcast %18 : vector<1x1x512xf32> to vector<19x8x512xf32>
    %20 = arith.addf %15, %19 : vector<19x8x512xf32>
    %c0_10 = arith.constant 0 : index
    %c0_11 = arith.constant 0 : index
    %c0_12 = arith.constant 0 : index
    %21 = vector.load %arg10[%c0_10, %c0_11, %c0_12] : memref<19x8x512xf32, #tpu.memory_space<vmem>>, vector<19x8x512xf32>
    tpu.vector_store %arg10[%c0_10, %c0_11, %c0_12], %20 {strides = array<i32>} : memref<19x8x512xf32, #tpu.memory_space<vmem>>, vector<19x8x512xf32>,
    %c0_13 = arith.constant 0 : index
    %c0_14 = arith.constant 0 : index
    %22 = vector.load %arg11[%c0_13, %c0_14] : memref<8x128xf32, #tpu.memory_space<vmem>>, vector<8x128xf32>
    %c0_15 = arith.constant 0 : index
    %c0_16 = arith.constant 0 : index
    %23 = vector.load %arg12[%c0_15, %c0_16] : memref<8x128xf32, #tpu.memory_space<vmem>>, vector<8x128xf32>
    %c0_17 = arith.constant 0 : index
    %c0_18 = arith.constant 0 : index
    %c0_19 = arith.constant 0 : index
    %24 = vector.load %arg10[%c0_17, %c0_18, %c0_19] : memref<19x8x512xf32, #tpu.memory_space<vmem>>, vector<1x8x512xf32>
    %25 = vector.shape_cast %24 : vector<1x8x512xf32> to vector<8x512xf32>
    %26 = arith.truncf %22 : vector<8x128xf32> to vector<8x128xbf16>
    %c0_20 = arith.constant 0 : index
    %c0_21 = arith.constant 0 : index
    %c0_22 = arith.constant 0 : index
    %27 = vector.load %arg5[%c0_20, %c0_21, %c0_22] : memref<1x128x512xbf16, #tpu.memory_space<vmem>>, vector<1x128x512xbf16>
    %28 = vector.shape_cast %27 : vector<1x128x512xbf16> to vector<128x512xbf16>
    %cst_23 = arith.constant dense<0.000000e+00> : vector<8x512xf32>
    %29 = tpu.matmul %26, %28, %cst_23 {dimension_numbers = #tpu.dot_dimension_numbers<[1], [0], [0], [1], [0, 0, 1, 1], [], []>} : vector<8x128xbf16>, vector<128x512xbf16>, vector<8x512xf32> -> vector<8x512xf32>
    %30 = arith.addf %25, %29 : vector<8x512xf32>
    %31 = vector.extract_strided_slice %30 {offsets = [0, 0], sizes = [8, 384], strides = [1, 1]} : vector<8x512xf32> to vector<8x384xf32>
    %32 = arith.negf %31 : vector<8x384xf32>
    %33 = math.exp %32 : vector<8x384xf32>
    %cst_24 = arith.constant 1.000000e+00 : f32
    %34 = vector.broadcast %cst_24 : f32 to vector<8x384xf32>
    %35 = arith.addf %34, %33 : vector<8x384xf32>
    %36 = arith.divf %34, %35 : vector<8x384xf32>
    %37 = vector.extract_strided_slice %30 {offsets = [0, 384], sizes = [8, 128], strides = [1, 1]} : vector<8x512xf32> to vector<8x128xf32>
    %38 = math.tanh %37 : vector<8x128xf32>
    %39 = vector.extract_strided_slice %36 {offsets = [0, 128], sizes = [8, 128], strides = [1, 1]} : vector<8x384xf32> to vector<8x128xf32>
    %40 = arith.mulf %39, %23 : vector<8x128xf32>
    %41 = vector.extract_strided_slice %36 {offsets = [0, 0], sizes = [8, 128], strides = [1, 1]} : vector<8x384xf32> to vector<8x128xf32>
    %42 = arith.mulf %41, %38 : vector<8x128xf32>
    %43 = arith.addf %40, %42 : vector<8x128xf32>
    %44 = vector.extract_strided_slice %36 {offsets = [0, 256], sizes = [8, 128], strides = [1, 1]} : vector<8x384xf32> to vector<8x128xf32>
    %45 = math.tanh %43 : vector<8x128xf32>
    %46 = arith.mulf %44, %45 : vector<8x128xf32>
    %c0_i32_25 = arith.constant 0 : i32
    %47 = arith.addi %1, %c0_i32_25 : i32
    %c37_i32 = arith.constant 37 : i32
    %48 = arith.cmpi slt, %47, %c37_i32 : i32
    %49 = arith.select %48, %43, %23 : vector<8x128xf32>
    %50 = arith.select %48, %46, %22 : vector<8x128xf32>
    %51 = vector.shape_cast %50 : vector<8x128xf32> to vector<1x8x128xf32>
    %c0_i32_26 = arith.constant 0 : i32
    %52 = arith.addi %1, %c0_i32_26 : i32
    %53 = arith.index_cast %52 : i32 to index
    %c0_27 = arith.constant 0 : index
    %c0_28 = arith.constant 0 : index
    %54 = vector.load %arg9[%53, %c0_27, %c0_28] : memref<38x8x128xf32, #tpu.memory_space<vmem>>, vector<1x8x128xf32>
    tpu.vector_store %arg9[%53, %c0_27, %c0_28], %51 {strides = array<i32>} : memref<38x8x128xf32, #tpu.memory_space<vmem>>, vector<1x8x128xf32>,
    %c1 = arith.constant 1 : index
    %c0_29 = arith.constant 0 : index
    %c0_30 = arith.constant 0 : index
    %55 = vector.load %arg10[%c1, %c0_29, %c0_30] : memref<19x8x512xf32, #tpu.memory_space<vmem>>, vector<1x8x512xf32>
    %56 = vector.shape_cast %55 : vector<1x8x512xf32> to vector<8x512xf32>
    %57 = arith.truncf %50 : vector<8x128xf32> to vector<8x128xbf16>
    %c0_31 = arith.constant 0 : index
    %c0_32 = arith.constant 0 : index
    %c0_33 = arith.constant 0 : index
    %58 = vector.load %arg5[%c0_31, %c0_32, %c0_33] : memref<1x128x512xbf16, #tpu.memory_space<vmem>>, vector<1x128x512xbf16>
    %59 = vector.shape_cast %58 : vector<1x128x512xbf16> to vector<128x512xbf16>
    %cst_34 = arith.constant dense<0.000000e+00> : vector<8x512xf32>
    %60 = tpu.matmul %57, %59, %cst_34 {dimension_numbers = #tpu.dot_dimension_numbers<[1], [0], [0], [1], [0, 0, 1, 1], [], []>} : vector<8x128xbf16>, vector<128x512xbf16>, vector<8x512xf32> -> vector<8x512xf32>
    %61 = arith.addf %56, %60 : vector<8x512xf32>
    %62 = vector.extract_strided_slice %61 {offsets = [0, 0], sizes = [8, 384], strides = [1, 1]} : vector<8x512xf32> to vector<8x384xf32>
    %63 = arith.negf %62 : vector<8x384xf32>
    %64 = math.exp %63 : vector<8x384xf32>
    %cst_35 = arith.constant 1.000000e+00 : f32
    %65 = vector.broadcast %cst_35 : f32 to vector<8x384xf32>
    %66 = arith.addf %65, %64 : vector<8x384xf32>
    %67 = arith.divf %65, %66 : vector<8x384xf32>
    %68 = vector.extract_strided_slice %61 {offsets = [0, 384], sizes = [8, 128], strides = [1, 1]} : vector<8x512xf32> to vector<8x128xf32>
    %69 = math.tanh %68 : vector<8x128xf32>
    %70 = vector.extract_strided_slice %67 {offsets = [0, 128], sizes = [8, 128], strides = [1, 1]} : vector<8x384xf32> to vector<8x128xf32>
    %71 = arith.mulf %70, %49 : vector<8x128xf32>
    %72 = vector.extract_strided_slice %67 {offsets = [0, 0], sizes = [8, 128], strides = [1, 1]} : vector<8x384xf32> to vector<8x128xf32>
    %73 = arith.mulf %72, %69 : vector<8x128xf32>
    %74 = arith.addf %71, %73 : vector<8x128xf32>
    %75 = vector.extract_strided_slice %67 {offsets = [0, 256], sizes = [8, 128], strides = [1, 1]} : vector<8x384xf32> to vector<8x128xf32>
    %76 = math.tanh %74 : vector<8x128xf32>
    %77 = arith.mulf %75, %76 : vector<8x128xf32>
    %c1_i32 = arith.constant 1 : i32
    %78 = arith.addi %1, %c1_i32 : i32
    %c37_i32_36 = arith.constant 37 : i32
    %79 = arith.cmpi slt, %78, %c37_i32_36 : i32
    %80 = arith.select %79, %74, %49 : vector<8x128xf32>
    %81 = arith.select %79, %77, %50 : vector<8x128xf32>
    %82 = vector.shape_cast %81 : vector<8x128xf32> to vector<1x8x128xf32>
    %c1_i32_37 = arith.constant 1 : i32
    %83 = arith.addi %1, %c1_i32_37 : i32
    %84 = arith.index_cast %83 : i32 to index
    %c0_38 = arith.constant 0 : index
    %c0_39 = arith.constant 0 : index
    %85 = vector.load %arg9[%84, %c0_38, %c0_39] : memref<38x8x128xf32, #tpu.memory_space<vmem>>, vector<1x8x128xf32>
    tpu.vector_store %arg9[%84, %c0_38, %c0_39], %82 {strides = array<i32>} : memref<38x8x128xf32, #tpu.memory_space<vmem>>, vector<1x8x128xf32>,
    %c2 = arith.constant 2 : index
    %c0_40 = arith.constant 0 : index
    %c0_41 = arith.constant 0 : index
    %86 = vector.load %arg10[%c2, %c0_40, %c0_41] : memref<19x8x512xf32, #tpu.memory_space<vmem>>, vector<1x8x512xf32>
    %87 = vector.shape_cast %86 : vector<1x8x512xf32> to vector<8x512xf32>
    %88 = arith.truncf %81 : vector<8x128xf32> to vector<8x128xbf16>
    %c0_42 = arith.constant 0 : index
    %c0_43 = arith.constant 0 : index
    %c0_44 = arith.constant 0 : index
    %89 = vector.load %arg5[%c0_42, %c0_43, %c0_44] : memref<1x128x512xbf16, #tpu.memory_space<vmem>>, vector<1x128x512xbf16>
    %90 = vector.shape_cast %89 : vector<1x128x512xbf16> to vector<128x512xbf16>
    %cst_45 = arith.constant dense<0.000000e+00> : vector<8x512xf32>
    %91 = tpu.matmul %88, %90, %cst_45 {dimension_numbers = #tpu.dot_dimension_numbers<[1], [0], [0], [1], [0, 0, 1, 1], [], []>} : vector<8x128xbf16>, vector<128x512xbf16>, vector<8x512xf32> -> vector<8x512xf32>
    %92 = arith.addf %87, %91 : vector<8x512xf32>
    %93 = vector.extract_strided_slice %92 {offsets = [0, 0], sizes = [8, 384], strides = [1, 1]} : vector<8x512xf32> to vector<8x384xf32>
    %94 = arith.negf %93 : vector<8x384xf32>
    %95 = math.exp %94 : vector<8x384xf32>
    %cst_46 = arith.constant 1.000000e+00 : f32
    %96 = vector.broadcast %cst_46 : f32 to vector<8x384xf32>
    %97 = arith.addf %96, %95 : vector<8x384xf32>
    %98 = arith.divf %96, %97 : vector<8x384xf32>
    %99 = vector.extract_strided_slice %92 {offsets = [0, 384], sizes = [8, 128], strides = [1, 1]} : vector<8x512xf32> to vector<8x128xf32>
    %100 = math.tanh %99 : vector<8x128xf32>
    %101 = vector.extract_strided_slice %98 {offsets = [0, 128], sizes = [8, 128], strides = [1, 1]} : vector<8x384xf32> to vector<8x128xf32>
    %102 = arith.mulf %101, %80 : vector<8x128xf32>
    %103 = vector.extract_strided_slice %98 {offsets = [0, 0], sizes = [8, 128], strides = [1, 1]} : vector<8x384xf32> to vector<8x128xf32>
    %104 = arith.mulf %103, %100 : vector<8x128xf32>
    %105 = arith.addf %102, %104 : vector<8x128xf32>
    %106 = vector.extract_strided_slice %98 {offsets = [0, 256], sizes = [8, 128], strides = [1, 1]} : vector<8x384xf32> to vector<8x128xf32>
    %107 = math.tanh %105 : vector<8x128xf32>
    %108 = arith.mulf %106, %107 : vector<8x128xf32>
    %c2_i32 = arith.constant 2 : i32
    %109 = arith.addi %1, %c2_i32 : i32
    %c37_i32_47 = arith.constant 37 : i32
    %110 = arith.cmpi slt, %109, %c37_i32_47 : i32
    %111 = arith.select %110, %105, %80 : vector<8x128xf32>
    %112 = arith.select %110, %108, %81 : vector<8x128xf32>
    %113 = vector.shape_cast %112 : vector<8x128xf32> to vector<1x8x128xf32>
    %c2_i32_48 = arith.constant 2 : i32
    %114 = arith.addi %1, %c2_i32_48 : i32
    %115 = arith.index_cast %114 : i32 to index
    %c0_49 = arith.constant 0 : index
    %c0_50 = arith.constant 0 : index
    %116 = vector.load %arg9[%115, %c0_49, %c0_50] : memref<38x8x128xf32, #tpu.memory_space<vmem>>, vector<1x8x128xf32>
    tpu.vector_store %arg9[%115, %c0_49, %c0_50], %113 {strides = array<i32>} : memref<38x8x128xf32, #tpu.memory_space<vmem>>, vector<1x8x128xf32>,
    %c3 = arith.constant 3 : index
    %c0_51 = arith.constant 0 : index
    %c0_52 = arith.constant 0 : index
    %117 = vector.load %arg10[%c3, %c0_51, %c0_52] : memref<19x8x512xf32, #tpu.memory_space<vmem>>, vector<1x8x512xf32>
    %118 = vector.shape_cast %117 : vector<1x8x512xf32> to vector<8x512xf32>
    %119 = arith.truncf %112 : vector<8x128xf32> to vector<8x128xbf16>
    %c0_53 = arith.constant 0 : index
    %c0_54 = arith.constant 0 : index
    %c0_55 = arith.constant 0 : index
    %120 = vector.load %arg5[%c0_53, %c0_54, %c0_55] : memref<1x128x512xbf16, #tpu.memory_space<vmem>>, vector<1x128x512xbf16>
    %121 = vector.shape_cast %120 : vector<1x128x512xbf16> to vector<128x512xbf16>
    %cst_56 = arith.constant dense<0.000000e+00> : vector<8x512xf32>
    %122 = tpu.matmul %119, %121, %cst_56 {dimension_numbers = #tpu.dot_dimension_numbers<[1], [0], [0], [1], [0, 0, 1, 1], [], []>} : vector<8x128xbf16>, vector<128x512xbf16>, vector<8x512xf32> -> vector<8x512xf32>
    %123 = arith.addf %118, %122 : vector<8x512xf32>
    %124 = vector.extract_strided_slice %123 {offsets = [0, 0], sizes = [8, 384], strides = [1, 1]} : vector<8x512xf32> to vector<8x384xf32>
    %125 = arith.negf %124 : vector<8x384xf32>
    %126 = math.exp %125 : vector<8x384xf32>
    %cst_57 = arith.constant 1.000000e+00 : f32
    %127 = vector.broadcast %cst_57 : f32 to vector<8x384xf32>
    %128 = arith.addf %127, %126 : vector<8x384xf32>
    %129 = arith.divf %127, %128 : vector<8x384xf32>
    %130 = vector.extract_strided_slice %123 {offsets = [0, 384], sizes = [8, 128], strides = [1, 1]} : vector<8x512xf32> to vector<8x128xf32>
    %131 = math.tanh %130 : vector<8x128xf32>
    %132 = vector.extract_strided_slice %129 {offsets = [0, 128], sizes = [8, 128], strides = [1, 1]} : vector<8x384xf32> to vector<8x128xf32>
    %133 = arith.mulf %132, %111 : vector<8x128xf32>
    %134 = vector.extract_strided_slice %129 {offsets = [0, 0], sizes = [8, 128], strides = [1, 1]} : vector<8x384xf32> to vector<8x128xf32>
    %135 = arith.mulf %134, %131 : vector<8x128xf32>
    %136 = arith.addf %133, %135 : vector<8x128xf32>
    %137 = vector.extract_strided_slice %129 {offsets = [0, 256], sizes = [8, 128], strides = [1, 1]} : vector<8x384xf32> to vector<8x128xf32>
    %138 = math.tanh %136 : vector<8x128xf32>
    %139 = arith.mulf %137, %138 : vector<8x128xf32>
    %c3_i32 = arith.constant 3 : i32
    %140 = arith.addi %1, %c3_i32 : i32
    %c37_i32_58 = arith.constant 37 : i32
    %141 = arith.cmpi slt, %140, %c37_i32_58 : i32
    %142 = arith.select %141, %136, %111 : vector<8x128xf32>
    %143 = arith.select %141, %139, %112 : vector<8x128xf32>
    %144 = vector.shape_cast %143 : vector<8x128xf32> to vector<1x8x128xf32>
    %c3_i32_59 = arith.constant 3 : i32
    %145 = arith.addi %1, %c3_i32_59 : i32
    %146 = arith.index_cast %145 : i32 to index
    %c0_60 = arith.constant 0 : index
    %c0_61 = arith.constant 0 : index
    %147 = vector.load %arg9[%146, %c0_60, %c0_61] : memref<38x8x128xf32, #tpu.memory_space<vmem>>, vector<1x8x128xf32>
    tpu.vector_store %arg9[%146, %c0_60, %c0_61], %144 {strides = array<i32>} : memref<38x8x128xf32, #tpu.memory_space<vmem>>, vector<1x8x128xf32>,
    %c4 = arith.constant 4 : index
    %c0_62 = arith.constant 0 : index
    %c0_63 = arith.constant 0 : index
    %148 = vector.load %arg10[%c4, %c0_62, %c0_63] : memref<19x8x512xf32, #tpu.memory_space<vmem>>, vector<1x8x512xf32>
    %149 = vector.shape_cast %148 : vector<1x8x512xf32> to vector<8x512xf32>
    %150 = arith.truncf %143 : vector<8x128xf32> to vector<8x128xbf16>
    %c0_64 = arith.constant 0 : index
    %c0_65 = arith.constant 0 : index
    %c0_66 = arith.constant 0 : index
    %151 = vector.load %arg5[%c0_64, %c0_65, %c0_66] : memref<1x128x512xbf16, #tpu.memory_space<vmem>>, vector<1x128x512xbf16>
    %152 = vector.shape_cast %151 : vector<1x128x512xbf16> to vector<128x512xbf16>
    %cst_67 = arith.constant dense<0.000000e+00> : vector<8x512xf32>
    %153 = tpu.matmul %150, %152, %cst_67 {dimension_numbers = #tpu.dot_dimension_numbers<[1], [0], [0], [1], [0, 0, 1, 1], [], []>} : vector<8x128xbf16>, vector<128x512xbf16>, vector<8x512xf32> -> vector<8x512xf32>
    %154 = arith.addf %149, %153 : vector<8x512xf32>
    %155 = vector.extract_strided_slice %154 {offsets = [0, 0], sizes = [8, 384], strides = [1, 1]} : vector<8x512xf32> to vector<8x384xf32>
    %156 = arith.negf %155 : vector<8x384xf32>
    %157 = math.exp %156 : vector<8x384xf32>
    %cst_68 = arith.constant 1.000000e+00 : f32
    %158 = vector.broadcast %cst_68 : f32 to vector<8x384xf32>
    %159 = arith.addf %158, %157 : vector<8x384xf32>
    %160 = arith.divf %158, %159 : vector<8x384xf32>
    %161 = vector.extract_strided_slice %154 {offsets = [0, 384], sizes = [8, 128], strides = [1, 1]} : vector<8x512xf32> to vector<8x128xf32>
    %162 = math.tanh %161 : vector<8x128xf32>
    %163 = vector.extract_strided_slice %160 {offsets = [0, 128], sizes = [8, 128], strides = [1, 1]} : vector<8x384xf32> to vector<8x128xf32>
    %164 = arith.mulf %163, %142 : vector<8x128xf32>
    %165 = vector.extract_strided_slice %160 {offsets = [0, 0], sizes = [8, 128], strides = [1, 1]} : vector<8x384xf32> to vector<8x128xf32>
    %166 = arith.mulf %165, %162 : vector<8x128xf32>
    %167 = arith.addf %164, %166 : vector<8x128xf32>
    %168 = vector.extract_strided_slice %160 {offsets = [0, 256], sizes = [8, 128], strides = [1, 1]} : vector<8x384xf32> to vector<8x128xf32>
    %169 = math.tanh %167 : vector<8x128xf32>
    %170 = arith.mulf %168, %169 : vector<8x128xf32>
    %c4_i32 = arith.constant 4 : i32
    %171 = arith.addi %1, %c4_i32 : i32
    %c37_i32_69 = arith.constant 37 : i32
    %172 = arith.cmpi slt, %171, %c37_i32_69 : i32
    %173 = arith.select %172, %167, %142 : vector<8x128xf32>
    %174 = arith.select %172, %170, %143 : vector<8x128xf32>
    %175 = vector.shape_cast %174 : vector<8x128xf32> to vector<1x8x128xf32>
    %c4_i32_70 = arith.constant 4 : i32
    %176 = arith.addi %1, %c4_i32_70 : i32
    %177 = arith.index_cast %176 : i32 to index
    %c0_71 = arith.constant 0 : index
    %c0_72 = arith.constant 0 : index
    %178 = vector.load %arg9[%177, %c0_71, %c0_72] : memref<38x8x128xf32, #tpu.memory_space<vmem>>, vector<1x8x128xf32>
    tpu.vector_store %arg9[%177, %c0_71, %c0_72], %175 {strides = array<i32>} : memref<38x8x128xf32, #tpu.memory_space<vmem>>, vector<1x8x128xf32>,
    %c5 = arith.constant 5 : index
    %c0_73 = arith.constant 0 : index
    %c0_74 = arith.constant 0 : index
    %179 = vector.load %arg10[%c5, %c0_73, %c0_74] : memref<19x8x512xf32, #tpu.memory_space<vmem>>, vector<1x8x512xf32>
    %180 = vector.shape_cast %179 : vector<1x8x512xf32> to vector<8x512xf32>
    %181 = arith.truncf %174 : vector<8x128xf32> to vector<8x128xbf16>
    %c0_75 = arith.constant 0 : index
    %c0_76 = arith.constant 0 : index
    %c0_77 = arith.constant 0 : index
    %182 = vector.load %arg5[%c0_75, %c0_76, %c0_77] : memref<1x128x512xbf16, #tpu.memory_space<vmem>>, vector<1x128x512xbf16>
    %183 = vector.shape_cast %182 : vector<1x128x512xbf16> to vector<128x512xbf16>
    %cst_78 = arith.constant dense<0.000000e+00> : vector<8x512xf32>
    %184 = tpu.matmul %181, %183, %cst_78 {dimension_numbers = #tpu.dot_dimension_numbers<[1], [0], [0], [1], [0, 0, 1, 1], [], []>} : vector<8x128xbf16>, vector<128x512xbf16>, vector<8x512xf32> -> vector<8x512xf32>
    %185 = arith.addf %180, %184 : vector<8x512xf32>
    %186 = vector.extract_strided_slice %185 {offsets = [0, 0], sizes = [8, 384], strides = [1, 1]} : vector<8x512xf32> to vector<8x384xf32>
    %187 = arith.negf %186 : vector<8x384xf32>
    %188 = math.exp %187 : vector<8x384xf32>
    %cst_79 = arith.constant 1.000000e+00 : f32
    %189 = vector.broadcast %cst_79 : f32 to vector<8x384xf32>
    %190 = arith.addf %189, %188 : vector<8x384xf32>
    %191 = arith.divf %189, %190 : vector<8x384xf32>
    %192 = vector.extract_strided_slice %185 {offsets = [0, 384], sizes = [8, 128], strides = [1, 1]} : vector<8x512xf32> to vector<8x128xf32>
    %193 = math.tanh %192 : vector<8x128xf32>
    %194 = vector.extract_strided_slice %191 {offsets = [0, 128], sizes = [8, 128], strides = [1, 1]} : vector<8x384xf32> to vector<8x128xf32>
    %195 = arith.mulf %194, %173 : vector<8x128xf32>
    %196 = vector.extract_strided_slice %191 {offsets = [0, 0], sizes = [8, 128], strides = [1, 1]} : vector<8x384xf32> to vector<8x128xf32>
    %197 = arith.mulf %196, %193 : vector<8x128xf32>
    %198 = arith.addf %195, %197 : vector<8x128xf32>
    %199 = vector.extract_strided_slice %191 {offsets = [0, 256], sizes = [8, 128], strides = [1, 1]} : vector<8x384xf32> to vector<8x128xf32>
    %200 = math.tanh %198 : vector<8x128xf32>
    %201 = arith.mulf %199, %200 : vector<8x128xf32>
    %c5_i32 = arith.constant 5 : i32
    %202 = arith.addi %1, %c5_i32 : i32
    %c37_i32_80 = arith.constant 37 : i32
    %203 = arith.cmpi slt, %202, %c37_i32_80 : i32
    %204 = arith.select %203, %198, %173 : vector<8x128xf32>
    %205 = arith.select %203, %201, %174 : vector<8x128xf32>
    %206 = vector.shape_cast %205 : vector<8x128xf32> to vector<1x8x128xf32>
    %c5_i32_81 = arith.constant 5 : i32
    %207 = arith.addi %1, %c5_i32_81 : i32
    %208 = arith.index_cast %207 : i32 to index
    %c0_82 = arith.constant 0 : index
    %c0_83 = arith.constant 0 : index
    %209 = vector.load %arg9[%208, %c0_82, %c0_83] : memref<38x8x128xf32, #tpu.memory_space<vmem>>, vector<1x8x128xf32>
    tpu.vector_store %arg9[%208, %c0_82, %c0_83], %206 {strides = array<i32>} : memref<38x8x128xf32, #tpu.memory_space<vmem>>, vector<1x8x128xf32>,
    %c6 = arith.constant 6 : index
    %c0_84 = arith.constant 0 : index
    %c0_85 = arith.constant 0 : index
    %210 = vector.load %arg10[%c6, %c0_84, %c0_85] : memref<19x8x512xf32, #tpu.memory_space<vmem>>, vector<1x8x512xf32>
    %211 = vector.shape_cast %210 : vector<1x8x512xf32> to vector<8x512xf32>
    %212 = arith.truncf %205 : vector<8x128xf32> to vector<8x128xbf16>
    %c0_86 = arith.constant 0 : index
    %c0_87 = arith.constant 0 : index
    %c0_88 = arith.constant 0 : index
    %213 = vector.load %arg5[%c0_86, %c0_87, %c0_88] : memref<1x128x512xbf16, #tpu.memory_space<vmem>>, vector<1x128x512xbf16>
    %214 = vector.shape_cast %213 : vector<1x128x512xbf16> to vector<128x512xbf16>
    %cst_89 = arith.constant dense<0.000000e+00> : vector<8x512xf32>
    %215 = tpu.matmul %212, %214, %cst_89 {dimension_numbers = #tpu.dot_dimension_numbers<[1], [0], [0], [1], [0, 0, 1, 1], [], []>} : vector<8x128xbf16>, vector<128x512xbf16>, vector<8x512xf32> -> vector<8x512xf32>
    %216 = arith.addf %211, %215 : vector<8x512xf32>
    %217 = vector.extract_strided_slice %216 {offsets = [0, 0], sizes = [8, 384], strides = [1, 1]} : vector<8x512xf32> to vector<8x384xf32>
    %218 = arith.negf %217 : vector<8x384xf32>
    %219 = math.exp %218 : vector<8x384xf32>
    %cst_90 = arith.constant 1.000000e+00 : f32
    %220 = vector.broadcast %cst_90 : f32 to vector<8x384xf32>
    %221 = arith.addf %220, %219 : vector<8x384xf32>
    %222 = arith.divf %220, %221 : vector<8x384xf32>
    %223 = vector.extract_strided_slice %216 {offsets = [0, 384], sizes = [8, 128], strides = [1, 1]} : vector<8x512xf32> to vector<8x128xf32>
    %224 = math.tanh %223 : vector<8x128xf32>
    %225 = vector.extract_strided_slice %222 {offsets = [0, 128], sizes = [8, 128], strides = [1, 1]} : vector<8x384xf32> to vector<8x128xf32>
    %226 = arith.mulf %225, %204 : vector<8x128xf32>
    %227 = vector.extract_strided_slice %222 {offsets = [0, 0], sizes = [8, 128], strides = [1, 1]} : vector<8x384xf32> to vector<8x128xf32>
    %228 = arith.mulf %227, %224 : vector<8x128xf32>
    %229 = arith.addf %226, %228 : vector<8x128xf32>
    %230 = vector.extract_strided_slice %222 {offsets = [0, 256], sizes = [8, 128], strides = [1, 1]} : vector<8x384xf32> to vector<8x128xf32>
    %231 = math.tanh %229 : vector<8x128xf32>
    %232 = arith.mulf %230, %231 : vector<8x128xf32>
    %c6_i32 = arith.constant 6 : i32
    %233 = arith.addi %1, %c6_i32 : i32
    %c37_i32_91 = arith.constant 37 : i32
    %234 = arith.cmpi slt, %233, %c37_i32_91 : i32
    %235 = arith.select %234, %229, %204 : vector<8x128xf32>
    %236 = arith.select %234, %232, %205 : vector<8x128xf32>
    %237 = vector.shape_cast %236 : vector<8x128xf32> to vector<1x8x128xf32>
    %c6_i32_92 = arith.constant 6 : i32
    %238 = arith.addi %1, %c6_i32_92 : i32
    %239 = arith.index_cast %238 : i32 to index
    %c0_93 = arith.constant 0 : index
    %c0_94 = arith.constant 0 : index
    %240 = vector.load %arg9[%239, %c0_93, %c0_94] : memref<38x8x128xf32, #tpu.memory_space<vmem>>, vector<1x8x128xf32>
    tpu.vector_store %arg9[%239, %c0_93, %c0_94], %237 {strides = array<i32>} : memref<38x8x128xf32, #tpu.memory_space<vmem>>, vector<1x8x128xf32>,
    %c7 = arith.constant 7 : index
    %c0_95 = arith.constant 0 : index
    %c0_96 = arith.constant 0 : index
    %241 = vector.load %arg10[%c7, %c0_95, %c0_96] : memref<19x8x512xf32, #tpu.memory_space<vmem>>, vector<1x8x512xf32>
    %242 = vector.shape_cast %241 : vector<1x8x512xf32> to vector<8x512xf32>
    %243 = arith.truncf %236 : vector<8x128xf32> to vector<8x128xbf16>
    %c0_97 = arith.constant 0 : index
    %c0_98 = arith.constant 0 : index
    %c0_99 = arith.constant 0 : index
    %244 = vector.load %arg5[%c0_97, %c0_98, %c0_99] : memref<1x128x512xbf16, #tpu.memory_space<vmem>>, vector<1x128x512xbf16>
    %245 = vector.shape_cast %244 : vector<1x128x512xbf16> to vector<128x512xbf16>
    %cst_100 = arith.constant dense<0.000000e+00> : vector<8x512xf32>
    %246 = tpu.matmul %243, %245, %cst_100 {dimension_numbers = #tpu.dot_dimension_numbers<[1], [0], [0], [1], [0, 0, 1, 1], [], []>} : vector<8x128xbf16>, vector<128x512xbf16>, vector<8x512xf32> -> vector<8x512xf32>
    %247 = arith.addf %242, %246 : vector<8x512xf32>
    %248 = vector.extract_strided_slice %247 {offsets = [0, 0], sizes = [8, 384], strides = [1, 1]} : vector<8x512xf32> to vector<8x384xf32>
    %249 = arith.negf %248 : vector<8x384xf32>
    %250 = math.exp %249 : vector<8x384xf32>
    %cst_101 = arith.constant 1.000000e+00 : f32
    %251 = vector.broadcast %cst_101 : f32 to vector<8x384xf32>
    %252 = arith.addf %251, %250 : vector<8x384xf32>
    %253 = arith.divf %251, %252 : vector<8x384xf32>
    %254 = vector.extract_strided_slice %247 {offsets = [0, 384], sizes = [8, 128], strides = [1, 1]} : vector<8x512xf32> to vector<8x128xf32>
    %255 = math.tanh %254 : vector<8x128xf32>
    %256 = vector.extract_strided_slice %253 {offsets = [0, 128], sizes = [8, 128], strides = [1, 1]} : vector<8x384xf32> to vector<8x128xf32>
    %257 = arith.mulf %256, %235 : vector<8x128xf32>
    %258 = vector.extract_strided_slice %253 {offsets = [0, 0], sizes = [8, 128], strides = [1, 1]} : vector<8x384xf32> to vector<8x128xf32>
    %259 = arith.mulf %258, %255 : vector<8x128xf32>
    %260 = arith.addf %257, %259 : vector<8x128xf32>
    %261 = vector.extract_strided_slice %253 {offsets = [0, 256], sizes = [8, 128], strides = [1, 1]} : vector<8x384xf32> to vector<8x128xf32>
    %262 = math.tanh %260 : vector<8x128xf32>
    %263 = arith.mulf %261, %262 : vector<8x128xf32>
    %c7_i32 = arith.constant 7 : i32
    %264 = arith.addi %1, %c7_i32 : i32
    %c37_i32_102 = arith.constant 37 : i32
    %265 = arith.cmpi slt, %264, %c37_i32_102 : i32
    %266 = arith.select %265, %260, %235 : vector<8x128xf32>
    %267 = arith.select %265, %263, %236 : vector<8x128xf32>
    %268 = vector.shape_cast %267 : vector<8x128xf32> to vector<1x8x128xf32>
    %c7_i32_103 = arith.constant 7 : i32
    %269 = arith.addi %1, %c7_i32_103 : i32
    %270 = arith.index_cast %269 : i32 to index
    %c0_104 = arith.constant 0 : index
    %c0_105 = arith.constant 0 : index
    %271 = vector.load %arg9[%270, %c0_104, %c0_105] : memref<38x8x128xf32, #tpu.memory_space<vmem>>, vector<1x8x128xf32>
    tpu.vector_store %arg9[%270, %c0_104, %c0_105], %268 {strides = array<i32>} : memref<38x8x128xf32, #tpu.memory_space<vmem>>, vector<1x8x128xf32>,
    %c8 = arith.constant 8 : index
    %c0_106 = arith.constant 0 : index
    %c0_107 = arith.constant 0 : index
    %272 = vector.load %arg10[%c8, %c0_106, %c0_107] : memref<19x8x512xf32, #tpu.memory_space<vmem>>, vector<1x8x512xf32>
    %273 = vector.shape_cast %272 : vector<1x8x512xf32> to vector<8x512xf32>
    %274 = arith.truncf %267 : vector<8x128xf32> to vector<8x128xbf16>
    %c0_108 = arith.constant 0 : index
    %c0_109 = arith.constant 0 : index
    %c0_110 = arith.constant 0 : index
    %275 = vector.load %arg5[%c0_108, %c0_109, %c0_110] : memref<1x128x512xbf16, #tpu.memory_space<vmem>>, vector<1x128x512xbf16>
    %276 = vector.shape_cast %275 : vector<1x128x512xbf16> to vector<128x512xbf16>
    %cst_111 = arith.constant dense<0.000000e+00> : vector<8x512xf32>
    %277 = tpu.matmul %274, %276, %cst_111 {dimension_numbers = #tpu.dot_dimension_numbers<[1], [0], [0], [1], [0, 0, 1, 1], [], []>} : vector<8x128xbf16>, vector<128x512xbf16>, vector<8x512xf32> -> vector<8x512xf32>
    %278 = arith.addf %273, %277 : vector<8x512xf32>
    %279 = vector.extract_strided_slice %278 {offsets = [0, 0], sizes = [8, 384], strides = [1, 1]} : vector<8x512xf32> to vector<8x384xf32>
    %280 = arith.negf %279 : vector<8x384xf32>
    %281 = math.exp %280 : vector<8x384xf32>
    %cst_112 = arith.constant 1.000000e+00 : f32
    %282 = vector.broadcast %cst_112 : f32 to vector<8x384xf32>
    %283 = arith.addf %282, %281 : vector<8x384xf32>
    %284 = arith.divf %282, %283 : vector<8x384xf32>
    %285 = vector.extract_strided_slice %278 {offsets = [0, 384], sizes = [8, 128], strides = [1, 1]} : vector<8x512xf32> to vector<8x128xf32>
    %286 = math.tanh %285 : vector<8x128xf32>
    %287 = vector.extract_strided_slice %284 {offsets = [0, 128], sizes = [8, 128], strides = [1, 1]} : vector<8x384xf32> to vector<8x128xf32>
    %288 = arith.mulf %287, %266 : vector<8x128xf32>
    %289 = vector.extract_strided_slice %284 {offsets = [0, 0], sizes = [8, 128], strides = [1, 1]} : vector<8x384xf32> to vector<8x128xf32>
    %290 = arith.mulf %289, %286 : vector<8x128xf32>
    %291 = arith.addf %288, %290 : vector<8x128xf32>
    %292 = vector.extract_strided_slice %284 {offsets = [0, 256], sizes = [8, 128], strides = [1, 1]} : vector<8x384xf32> to vector<8x128xf32>
    %293 = math.tanh %291 : vector<8x128xf32>
    %294 = arith.mulf %292, %293 : vector<8x128xf32>
    %c8_i32 = arith.constant 8 : i32
    %295 = arith.addi %1, %c8_i32 : i32
    %c37_i32_113 = arith.constant 37 : i32
    %296 = arith.cmpi slt, %295, %c37_i32_113 : i32
    %297 = arith.select %296, %291, %266 : vector<8x128xf32>
    %298 = arith.select %296, %294, %267 : vector<8x128xf32>
    %299 = vector.shape_cast %298 : vector<8x128xf32> to vector<1x8x128xf32>
    %c8_i32_114 = arith.constant 8 : i32
    %300 = arith.addi %1, %c8_i32_114 : i32
    %301 = arith.index_cast %300 : i32 to index
    %c0_115 = arith.constant 0 : index
    %c0_116 = arith.constant 0 : index
    %302 = vector.load %arg9[%301, %c0_115, %c0_116] : memref<38x8x128xf32, #tpu.memory_space<vmem>>, vector<1x8x128xf32>
    tpu.vector_store %arg9[%301, %c0_115, %c0_116], %299 {strides = array<i32>} : memref<38x8x128xf32, #tpu.memory_space<vmem>>, vector<1x8x128xf32>,
    %c9 = arith.constant 9 : index
    %c0_117 = arith.constant 0 : index
    %c0_118 = arith.constant 0 : index
    %303 = vector.load %arg10[%c9, %c0_117, %c0_118] : memref<19x8x512xf32, #tpu.memory_space<vmem>>, vector<1x8x512xf32>
    %304 = vector.shape_cast %303 : vector<1x8x512xf32> to vector<8x512xf32>
    %305 = arith.truncf %298 : vector<8x128xf32> to vector<8x128xbf16>
    %c0_119 = arith.constant 0 : index
    %c0_120 = arith.constant 0 : index
    %c0_121 = arith.constant 0 : index
    %306 = vector.load %arg5[%c0_119, %c0_120, %c0_121] : memref<1x128x512xbf16, #tpu.memory_space<vmem>>, vector<1x128x512xbf16>
    %307 = vector.shape_cast %306 : vector<1x128x512xbf16> to vector<128x512xbf16>
    %cst_122 = arith.constant dense<0.000000e+00> : vector<8x512xf32>
    %308 = tpu.matmul %305, %307, %cst_122 {dimension_numbers = #tpu.dot_dimension_numbers<[1], [0], [0], [1], [0, 0, 1, 1], [], []>} : vector<8x128xbf16>, vector<128x512xbf16>, vector<8x512xf32> -> vector<8x512xf32>
    %309 = arith.addf %304, %308 : vector<8x512xf32>
    %310 = vector.extract_strided_slice %309 {offsets = [0, 0], sizes = [8, 384], strides = [1, 1]} : vector<8x512xf32> to vector<8x384xf32>
    %311 = arith.negf %310 : vector<8x384xf32>
    %312 = math.exp %311 : vector<8x384xf32>
    %cst_123 = arith.constant 1.000000e+00 : f32
    %313 = vector.broadcast %cst_123 : f32 to vector<8x384xf32>
    %314 = arith.addf %313, %312 : vector<8x384xf32>
    %315 = arith.divf %313, %314 : vector<8x384xf32>
    %316 = vector.extract_strided_slice %309 {offsets = [0, 384], sizes = [8, 128], strides = [1, 1]} : vector<8x512xf32> to vector<8x128xf32>
    %317 = math.tanh %316 : vector<8x128xf32>
    %318 = vector.extract_strided_slice %315 {offsets = [0, 128], sizes = [8, 128], strides = [1, 1]} : vector<8x384xf32> to vector<8x128xf32>
    %319 = arith.mulf %318, %297 : vector<8x128xf32>
    %320 = vector.extract_strided_slice %315 {offsets = [0, 0], sizes = [8, 128], strides = [1, 1]} : vector<8x384xf32> to vector<8x128xf32>
    %321 = arith.mulf %320, %317 : vector<8x128xf32>
    %322 = arith.addf %319, %321 : vector<8x128xf32>
    %323 = vector.extract_strided_slice %315 {offsets = [0, 256], sizes = [8, 128], strides = [1, 1]} : vector<8x384xf32> to vector<8x128xf32>
    %324 = math.tanh %322 : vector<8x128xf32>
    %325 = arith.mulf %323, %324 : vector<8x128xf32>
    %c9_i32 = arith.constant 9 : i32
    %326 = arith.addi %1, %c9_i32 : i32
    %c37_i32_124 = arith.constant 37 : i32
    %327 = arith.cmpi slt, %326, %c37_i32_124 : i32
    %328 = arith.select %327, %322, %297 : vector<8x128xf32>
    %329 = arith.select %327, %325, %298 : vector<8x128xf32>
    %330 = vector.shape_cast %329 : vector<8x128xf32> to vector<1x8x128xf32>
    %c9_i32_125 = arith.constant 9 : i32
    %331 = arith.addi %1, %c9_i32_125 : i32
    %332 = arith.index_cast %331 : i32 to index
    %c0_126 = arith.constant 0 : index
    %c0_127 = arith.constant 0 : index
    %333 = vector.load %arg9[%332, %c0_126, %c0_127] : memref<38x8x128xf32, #tpu.memory_space<vmem>>, vector<1x8x128xf32>
    tpu.vector_store %arg9[%332, %c0_126, %c0_127], %330 {strides = array<i32>} : memref<38x8x128xf32, #tpu.memory_space<vmem>>, vector<1x8x128xf32>,
    %c10 = arith.constant 10 : index
    %c0_128 = arith.constant 0 : index
    %c0_129 = arith.constant 0 : index
    %334 = vector.load %arg10[%c10, %c0_128, %c0_129] : memref<19x8x512xf32, #tpu.memory_space<vmem>>, vector<1x8x512xf32>
    %335 = vector.shape_cast %334 : vector<1x8x512xf32> to vector<8x512xf32>
    %336 = arith.truncf %329 : vector<8x128xf32> to vector<8x128xbf16>
    %c0_130 = arith.constant 0 : index
    %c0_131 = arith.constant 0 : index
    %c0_132 = arith.constant 0 : index
    %337 = vector.load %arg5[%c0_130, %c0_131, %c0_132] : memref<1x128x512xbf16, #tpu.memory_space<vmem>>, vector<1x128x512xbf16>
    %338 = vector.shape_cast %337 : vector<1x128x512xbf16> to vector<128x512xbf16>
    %cst_133 = arith.constant dense<0.000000e+00> : vector<8x512xf32>
    %339 = tpu.matmul %336, %338, %cst_133 {dimension_numbers = #tpu.dot_dimension_numbers<[1], [0], [0], [1], [0, 0, 1, 1], [], []>} : vector<8x128xbf16>, vector<128x512xbf16>, vector<8x512xf32> -> vector<8x512xf32>
    %340 = arith.addf %335, %339 : vector<8x512xf32>
    %341 = vector.extract_strided_slice %340 {offsets = [0, 0], sizes = [8, 384], strides = [1, 1]} : vector<8x512xf32> to vector<8x384xf32>
    %342 = arith.negf %341 : vector<8x384xf32>
    %343 = math.exp %342 : vector<8x384xf32>
    %cst_134 = arith.constant 1.000000e+00 : f32
    %344 = vector.broadcast %cst_134 : f32 to vector<8x384xf32>
    %345 = arith.addf %344, %343 : vector<8x384xf32>
    %346 = arith.divf %344, %345 : vector<8x384xf32>
    %347 = vector.extract_strided_slice %340 {offsets = [0, 384], sizes = [8, 128], strides = [1, 1]} : vector<8x512xf32> to vector<8x128xf32>
    %348 = math.tanh %347 : vector<8x128xf32>
    %349 = vector.extract_strided_slice %346 {offsets = [0, 128], sizes = [8, 128], strides = [1, 1]} : vector<8x384xf32> to vector<8x128xf32>
    %350 = arith.mulf %349, %328 : vector<8x128xf32>
    %351 = vector.extract_strided_slice %346 {offsets = [0, 0], sizes = [8, 128], strides = [1, 1]} : vector<8x384xf32> to vector<8x128xf32>
    %352 = arith.mulf %351, %348 : vector<8x128xf32>
    %353 = arith.addf %350, %352 : vector<8x128xf32>
    %354 = vector.extract_strided_slice %346 {offsets = [0, 256], sizes = [8, 128], strides = [1, 1]} : vector<8x384xf32> to vector<8x128xf32>
    %355 = math.tanh %353 : vector<8x128xf32>
    %356 = arith.mulf %354, %355 : vector<8x128xf32>
    %c10_i32 = arith.constant 10 : i32
    %357 = arith.addi %1, %c10_i32 : i32
    %c37_i32_135 = arith.constant 37 : i32
    %358 = arith.cmpi slt, %357, %c37_i32_135 : i32
    %359 = arith.select %358, %353, %328 : vector<8x128xf32>
    %360 = arith.select %358, %356, %329 : vector<8x128xf32>
    %361 = vector.shape_cast %360 : vector<8x128xf32> to vector<1x8x128xf32>
    %c10_i32_136 = arith.constant 10 : i32
    %362 = arith.addi %1, %c10_i32_136 : i32
    %363 = arith.index_cast %362 : i32 to index
    %c0_137 = arith.constant 0 : index
    %c0_138 = arith.constant 0 : index
    %364 = vector.load %arg9[%363, %c0_137, %c0_138] : memref<38x8x128xf32, #tpu.memory_space<vmem>>, vector<1x8x128xf32>
    tpu.vector_store %arg9[%363, %c0_137, %c0_138], %361 {strides = array<i32>} : memref<38x8x128xf32, #tpu.memory_space<vmem>>, vector<1x8x128xf32>,
    %c11 = arith.constant 11 : index
    %c0_139 = arith.constant 0 : index
    %c0_140 = arith.constant 0 : index
    %365 = vector.load %arg10[%c11, %c0_139, %c0_140] : memref<19x8x512xf32, #tpu.memory_space<vmem>>, vector<1x8x512xf32>
    %366 = vector.shape_cast %365 : vector<1x8x512xf32> to vector<8x512xf32>
    %367 = arith.truncf %360 : vector<8x128xf32> to vector<8x128xbf16>
    %c0_141 = arith.constant 0 : index
    %c0_142 = arith.constant 0 : index
    %c0_143 = arith.constant 0 : index
    %368 = vector.load %arg5[%c0_141, %c0_142, %c0_143] : memref<1x128x512xbf16, #tpu.memory_space<vmem>>, vector<1x128x512xbf16>
    %369 = vector.shape_cast %368 : vector<1x128x512xbf16> to vector<128x512xbf16>
    %cst_144 = arith.constant dense<0.000000e+00> : vector<8x512xf32>
    %370 = tpu.matmul %367, %369, %cst_144 {dimension_numbers = #tpu.dot_dimension_numbers<[1], [0], [0], [1], [0, 0, 1, 1], [], []>} : vector<8x128xbf16>, vector<128x512xbf16>, vector<8x512xf32> -> vector<8x512xf32>
    %371 = arith.addf %366, %370 : vector<8x512xf32>
    %372 = vector.extract_strided_slice %371 {offsets = [0, 0], sizes = [8, 384], strides = [1, 1]} : vector<8x512xf32> to vector<8x384xf32>
    %373 = arith.negf %372 : vector<8x384xf32>
    %374 = math.exp %373 : vector<8x384xf32>
    %cst_145 = arith.constant 1.000000e+00 : f32
    %375 = vector.broadcast %cst_145 : f32 to vector<8x384xf32>
    %376 = arith.addf %375, %374 : vector<8x384xf32>
    %377 = arith.divf %375, %376 : vector<8x384xf32>
    %378 = vector.extract_strided_slice %371 {offsets = [0, 384], sizes = [8, 128], strides = [1, 1]} : vector<8x512xf32> to vector<8x128xf32>
    %379 = math.tanh %378 : vector<8x128xf32>
    %380 = vector.extract_strided_slice %377 {offsets = [0, 128], sizes = [8, 128], strides = [1, 1]} : vector<8x384xf32> to vector<8x128xf32>
    %381 = arith.mulf %380, %359 : vector<8x128xf32>
    %382 = vector.extract_strided_slice %377 {offsets = [0, 0], sizes = [8, 128], strides = [1, 1]} : vector<8x384xf32> to vector<8x128xf32>
    %383 = arith.mulf %382, %379 : vector<8x128xf32>
    %384 = arith.addf %381, %383 : vector<8x128xf32>
    %385 = vector.extract_strided_slice %377 {offsets = [0, 256], sizes = [8, 128], strides = [1, 1]} : vector<8x384xf32> to vector<8x128xf32>
    %386 = math.tanh %384 : vector<8x128xf32>
    %387 = arith.mulf %385, %386 : vector<8x128xf32>
    %c11_i32 = arith.constant 11 : i32
    %388 = arith.addi %1, %c11_i32 : i32
    %c37_i32_146 = arith.constant 37 : i32
    %389 = arith.cmpi slt, %388, %c37_i32_146 : i32
    %390 = arith.select %389, %384, %359 : vector<8x128xf32>
    %391 = arith.select %389, %387, %360 : vector<8x128xf32>
    %392 = vector.shape_cast %391 : vector<8x128xf32> to vector<1x8x128xf32>
    %c11_i32_147 = arith.constant 11 : i32
    %393 = arith.addi %1, %c11_i32_147 : i32
    %394 = arith.index_cast %393 : i32 to index
    %c0_148 = arith.constant 0 : index
    %c0_149 = arith.constant 0 : index
    %395 = vector.load %arg9[%394, %c0_148, %c0_149] : memref<38x8x128xf32, #tpu.memory_space<vmem>>, vector<1x8x128xf32>
    tpu.vector_store %arg9[%394, %c0_148, %c0_149], %392 {strides = array<i32>} : memref<38x8x128xf32, #tpu.memory_space<vmem>>, vector<1x8x128xf32>,
    %c12 = arith.constant 12 : index
    %c0_150 = arith.constant 0 : index
    %c0_151 = arith.constant 0 : index
    %396 = vector.load %arg10[%c12, %c0_150, %c0_151] : memref<19x8x512xf32, #tpu.memory_space<vmem>>, vector<1x8x512xf32>
    %397 = vector.shape_cast %396 : vector<1x8x512xf32> to vector<8x512xf32>
    %398 = arith.truncf %391 : vector<8x128xf32> to vector<8x128xbf16>
    %c0_152 = arith.constant 0 : index
    %c0_153 = arith.constant 0 : index
    %c0_154 = arith.constant 0 : index
    %399 = vector.load %arg5[%c0_152, %c0_153, %c0_154] : memref<1x128x512xbf16, #tpu.memory_space<vmem>>, vector<1x128x512xbf16>
    %400 = vector.shape_cast %399 : vector<1x128x512xbf16> to vector<128x512xbf16>
    %cst_155 = arith.constant dense<0.000000e+00> : vector<8x512xf32>
    %401 = tpu.matmul %398, %400, %cst_155 {dimension_numbers = #tpu.dot_dimension_numbers<[1], [0], [0], [1], [0, 0, 1, 1], [], []>} : vector<8x128xbf16>, vector<128x512xbf16>, vector<8x512xf32> -> vector<8x512xf32>
    %402 = arith.addf %397, %401 : vector<8x512xf32>
    %403 = vector.extract_strided_slice %402 {offsets = [0, 0], sizes = [8, 384], strides = [1, 1]} : vector<8x512xf32> to vector<8x384xf32>
    %404 = arith.negf %403 : vector<8x384xf32>
    %405 = math.exp %404 : vector<8x384xf32>
    %cst_156 = arith.constant 1.000000e+00 : f32
    %406 = vector.broadcast %cst_156 : f32 to vector<8x384xf32>
    %407 = arith.addf %406, %405 : vector<8x384xf32>
    %408 = arith.divf %406, %407 : vector<8x384xf32>
    %409 = vector.extract_strided_slice %402 {offsets = [0, 384], sizes = [8, 128], strides = [1, 1]} : vector<8x512xf32> to vector<8x128xf32>
    %410 = math.tanh %409 : vector<8x128xf32>
    %411 = vector.extract_strided_slice %408 {offsets = [0, 128], sizes = [8, 128], strides = [1, 1]} : vector<8x384xf32> to vector<8x128xf32>
    %412 = arith.mulf %411, %390 : vector<8x128xf32>
    %413 = vector.extract_strided_slice %408 {offsets = [0, 0], sizes = [8, 128], strides = [1, 1]} : vector<8x384xf32> to vector<8x128xf32>
    %414 = arith.mulf %413, %410 : vector<8x128xf32>
    %415 = arith.addf %412, %414 : vector<8x128xf32>
    %416 = vector.extract_strided_slice %408 {offsets = [0, 256], sizes = [8, 128], strides = [1, 1]} : vector<8x384xf32> to vector<8x128xf32>
    %417 = math.tanh %415 : vector<8x128xf32>
    %418 = arith.mulf %416, %417 : vector<8x128xf32>
    %c12_i32 = arith.constant 12 : i32
    %419 = arith.addi %1, %c12_i32 : i32
    %c37_i32_157 = arith.constant 37 : i32
    %420 = arith.cmpi slt, %419, %c37_i32_157 : i32
    %421 = arith.select %420, %415, %390 : vector<8x128xf32>
    %422 = arith.select %420, %418, %391 : vector<8x128xf32>
    %423 = vector.shape_cast %422 : vector<8x128xf32> to vector<1x8x128xf32>
    %c12_i32_158 = arith.constant 12 : i32
    %424 = arith.addi %1, %c12_i32_158 : i32
    %425 = arith.index_cast %424 : i32 to index
    %c0_159 = arith.constant 0 : index
    %c0_160 = arith.constant 0 : index
    %426 = vector.load %arg9[%425, %c0_159, %c0_160] : memref<38x8x128xf32, #tpu.memory_space<vmem>>, vector<1x8x128xf32>
    tpu.vector_store %arg9[%425, %c0_159, %c0_160], %423 {strides = array<i32>} : memref<38x8x128xf32, #tpu.memory_space<vmem>>, vector<1x8x128xf32>,
    %c13 = arith.constant 13 : index
    %c0_161 = arith.constant 0 : index
    %c0_162 = arith.constant 0 : index
    %427 = vector.load %arg10[%c13, %c0_161, %c0_162] : memref<19x8x512xf32, #tpu.memory_space<vmem>>, vector<1x8x512xf32>
    %428 = vector.shape_cast %427 : vector<1x8x512xf32> to vector<8x512xf32>
    %429 = arith.truncf %422 : vector<8x128xf32> to vector<8x128xbf16>
    %c0_163 = arith.constant 0 : index
    %c0_164 = arith.constant 0 : index
    %c0_165 = arith.constant 0 : index
    %430 = vector.load %arg5[%c0_163, %c0_164, %c0_165] : memref<1x128x512xbf16, #tpu.memory_space<vmem>>, vector<1x128x512xbf16>
    %431 = vector.shape_cast %430 : vector<1x128x512xbf16> to vector<128x512xbf16>
    %cst_166 = arith.constant dense<0.000000e+00> : vector<8x512xf32>
    %432 = tpu.matmul %429, %431, %cst_166 {dimension_numbers = #tpu.dot_dimension_numbers<[1], [0], [0], [1], [0, 0, 1, 1], [], []>} : vector<8x128xbf16>, vector<128x512xbf16>, vector<8x512xf32> -> vector<8x512xf32>
    %433 = arith.addf %428, %432 : vector<8x512xf32>
    %434 = vector.extract_strided_slice %433 {offsets = [0, 0], sizes = [8, 384], strides = [1, 1]} : vector<8x512xf32> to vector<8x384xf32>
    %435 = arith.negf %434 : vector<8x384xf32>
    %436 = math.exp %435 : vector<8x384xf32>
    %cst_167 = arith.constant 1.000000e+00 : f32
    %437 = vector.broadcast %cst_167 : f32 to vector<8x384xf32>
    %438 = arith.addf %437, %436 : vector<8x384xf32>
    %439 = arith.divf %437, %438 : vector<8x384xf32>
    %440 = vector.extract_strided_slice %433 {offsets = [0, 384], sizes = [8, 128], strides = [1, 1]} : vector<8x512xf32> to vector<8x128xf32>
    %441 = math.tanh %440 : vector<8x128xf32>
    %442 = vector.extract_strided_slice %439 {offsets = [0, 128], sizes = [8, 128], strides = [1, 1]} : vector<8x384xf32> to vector<8x128xf32>
    %443 = arith.mulf %442, %421 : vector<8x128xf32>
    %444 = vector.extract_strided_slice %439 {offsets = [0, 0], sizes = [8, 128], strides = [1, 1]} : vector<8x384xf32> to vector<8x128xf32>
    %445 = arith.mulf %444, %441 : vector<8x128xf32>
    %446 = arith.addf %443, %445 : vector<8x128xf32>
    %447 = vector.extract_strided_slice %439 {offsets = [0, 256], sizes = [8, 128], strides = [1, 1]} : vector<8x384xf32> to vector<8x128xf32>
    %448 = math.tanh %446 : vector<8x128xf32>
    %449 = arith.mulf %447, %448 : vector<8x128xf32>
    %c13_i32 = arith.constant 13 : i32
    %450 = arith.addi %1, %c13_i32 : i32
    %c37_i32_168 = arith.constant 37 : i32
    %451 = arith.cmpi slt, %450, %c37_i32_168 : i32
    %452 = arith.select %451, %446, %421 : vector<8x128xf32>
    %453 = arith.select %451, %449, %422 : vector<8x128xf32>
    %454 = vector.shape_cast %453 : vector<8x128xf32> to vector<1x8x128xf32>
    %c13_i32_169 = arith.constant 13 : i32
    %455 = arith.addi %1, %c13_i32_169 : i32
    %456 = arith.index_cast %455 : i32 to index
    %c0_170 = arith.constant 0 : index
    %c0_171 = arith.constant 0 : index
    %457 = vector.load %arg9[%456, %c0_170, %c0_171] : memref<38x8x128xf32, #tpu.memory_space<vmem>>, vector<1x8x128xf32>
    tpu.vector_store %arg9[%456, %c0_170, %c0_171], %454 {strides = array<i32>} : memref<38x8x128xf32, #tpu.memory_space<vmem>>, vector<1x8x128xf32>,
    %c14 = arith.constant 14 : index
    %c0_172 = arith.constant 0 : index
    %c0_173 = arith.constant 0 : index
    %458 = vector.load %arg10[%c14, %c0_172, %c0_173] : memref<19x8x512xf32, #tpu.memory_space<vmem>>, vector<1x8x512xf32>
    %459 = vector.shape_cast %458 : vector<1x8x512xf32> to vector<8x512xf32>
    %460 = arith.truncf %453 : vector<8x128xf32> to vector<8x128xbf16>
    %c0_174 = arith.constant 0 : index
    %c0_175 = arith.constant 0 : index
    %c0_176 = arith.constant 0 : index
    %461 = vector.load %arg5[%c0_174, %c0_175, %c0_176] : memref<1x128x512xbf16, #tpu.memory_space<vmem>>, vector<1x128x512xbf16>
    %462 = vector.shape_cast %461 : vector<1x128x512xbf16> to vector<128x512xbf16>
    %cst_177 = arith.constant dense<0.000000e+00> : vector<8x512xf32>
    %463 = tpu.matmul %460, %462, %cst_177 {dimension_numbers = #tpu.dot_dimension_numbers<[1], [0], [0], [1], [0, 0, 1, 1], [], []>} : vector<8x128xbf16>, vector<128x512xbf16>, vector<8x512xf32> -> vector<8x512xf32>
    %464 = arith.addf %459, %463 : vector<8x512xf32>
    %465 = vector.extract_strided_slice %464 {offsets = [0, 0], sizes = [8, 384], strides = [1, 1]} : vector<8x512xf32> to vector<8x384xf32>
    %466 = arith.negf %465 : vector<8x384xf32>
    %467 = math.exp %466 : vector<8x384xf32>
    %cst_178 = arith.constant 1.000000e+00 : f32
    %468 = vector.broadcast %cst_178 : f32 to vector<8x384xf32>
    %469 = arith.addf %468, %467 : vector<8x384xf32>
    %470 = arith.divf %468, %469 : vector<8x384xf32>
    %471 = vector.extract_strided_slice %464 {offsets = [0, 384], sizes = [8, 128], strides = [1, 1]} : vector<8x512xf32> to vector<8x128xf32>
    %472 = math.tanh %471 : vector<8x128xf32>
    %473 = vector.extract_strided_slice %470 {offsets = [0, 128], sizes = [8, 128], strides = [1, 1]} : vector<8x384xf32> to vector<8x128xf32>
    %474 = arith.mulf %473, %452 : vector<8x128xf32>
    %475 = vector.extract_strided_slice %470 {offsets = [0, 0], sizes = [8, 128], strides = [1, 1]} : vector<8x384xf32> to vector<8x128xf32>
    %476 = arith.mulf %475, %472 : vector<8x128xf32>
    %477 = arith.addf %474, %476 : vector<8x128xf32>
    %478 = vector.extract_strided_slice %470 {offsets = [0, 256], sizes = [8, 128], strides = [1, 1]} : vector<8x384xf32> to vector<8x128xf32>
    %479 = math.tanh %477 : vector<8x128xf32>
    %480 = arith.mulf %478, %479 : vector<8x128xf32>
    %c14_i32 = arith.constant 14 : i32
    %481 = arith.addi %1, %c14_i32 : i32
    %c37_i32_179 = arith.constant 37 : i32
    %482 = arith.cmpi slt, %481, %c37_i32_179 : i32
    %483 = arith.select %482, %477, %452 : vector<8x128xf32>
    %484 = arith.select %482, %480, %453 : vector<8x128xf32>
    %485 = vector.shape_cast %484 : vector<8x128xf32> to vector<1x8x128xf32>
    %c14_i32_180 = arith.constant 14 : i32
    %486 = arith.addi %1, %c14_i32_180 : i32
    %487 = arith.index_cast %486 : i32 to index
    %c0_181 = arith.constant 0 : index
    %c0_182 = arith.constant 0 : index
    %488 = vector.load %arg9[%487, %c0_181, %c0_182] : memref<38x8x128xf32, #tpu.memory_space<vmem>>, vector<1x8x128xf32>
    tpu.vector_store %arg9[%487, %c0_181, %c0_182], %485 {strides = array<i32>} : memref<38x8x128xf32, #tpu.memory_space<vmem>>, vector<1x8x128xf32>,
    %c15 = arith.constant 15 : index
    %c0_183 = arith.constant 0 : index
    %c0_184 = arith.constant 0 : index
    %489 = vector.load %arg10[%c15, %c0_183, %c0_184] : memref<19x8x512xf32, #tpu.memory_space<vmem>>, vector<1x8x512xf32>
    %490 = vector.shape_cast %489 : vector<1x8x512xf32> to vector<8x512xf32>
    %491 = arith.truncf %484 : vector<8x128xf32> to vector<8x128xbf16>
    %c0_185 = arith.constant 0 : index
    %c0_186 = arith.constant 0 : index
    %c0_187 = arith.constant 0 : index
    %492 = vector.load %arg5[%c0_185, %c0_186, %c0_187] : memref<1x128x512xbf16, #tpu.memory_space<vmem>>, vector<1x128x512xbf16>
    %493 = vector.shape_cast %492 : vector<1x128x512xbf16> to vector<128x512xbf16>
    %cst_188 = arith.constant dense<0.000000e+00> : vector<8x512xf32>
    %494 = tpu.matmul %491, %493, %cst_188 {dimension_numbers = #tpu.dot_dimension_numbers<[1], [0], [0], [1], [0, 0, 1, 1], [], []>} : vector<8x128xbf16>, vector<128x512xbf16>, vector<8x512xf32> -> vector<8x512xf32>
    %495 = arith.addf %490, %494 : vector<8x512xf32>
    %496 = vector.extract_strided_slice %495 {offsets = [0, 0], sizes = [8, 384], strides = [1, 1]} : vector<8x512xf32> to vector<8x384xf32>
    %497 = arith.negf %496 : vector<8x384xf32>
    %498 = math.exp %497 : vector<8x384xf32>
    %cst_189 = arith.constant 1.000000e+00 : f32
    %499 = vector.broadcast %cst_189 : f32 to vector<8x384xf32>
    %500 = arith.addf %499, %498 : vector<8x384xf32>
    %501 = arith.divf %499, %500 : vector<8x384xf32>
    %502 = vector.extract_strided_slice %495 {offsets = [0, 384], sizes = [8, 128], strides = [1, 1]} : vector<8x512xf32> to vector<8x128xf32>
    %503 = math.tanh %502 : vector<8x128xf32>
    %504 = vector.extract_strided_slice %501 {offsets = [0, 128], sizes = [8, 128], strides = [1, 1]} : vector<8x384xf32> to vector<8x128xf32>
    %505 = arith.mulf %504, %483 : vector<8x128xf32>
    %506 = vector.extract_strided_slice %501 {offsets = [0, 0], sizes = [8, 128], strides = [1, 1]} : vector<8x384xf32> to vector<8x128xf32>
    %507 = arith.mulf %506, %503 : vector<8x128xf32>
    %508 = arith.addf %505, %507 : vector<8x128xf32>
    %509 = vector.extract_strided_slice %501 {offsets = [0, 256], sizes = [8, 128], strides = [1, 1]} : vector<8x384xf32> to vector<8x128xf32>
    %510 = math.tanh %508 : vector<8x128xf32>
    %511 = arith.mulf %509, %510 : vector<8x128xf32>
    %c15_i32 = arith.constant 15 : i32
    %512 = arith.addi %1, %c15_i32 : i32
    %c37_i32_190 = arith.constant 37 : i32
    %513 = arith.cmpi slt, %512, %c37_i32_190 : i32
    %514 = arith.select %513, %508, %483 : vector<8x128xf32>
    %515 = arith.select %513, %511, %484 : vector<8x128xf32>
    %516 = vector.shape_cast %515 : vector<8x128xf32> to vector<1x8x128xf32>
    %c15_i32_191 = arith.constant 15 : i32
    %517 = arith.addi %1, %c15_i32_191 : i32
    %518 = arith.index_cast %517 : i32 to index
    %c0_192 = arith.constant 0 : index
    %c0_193 = arith.constant 0 : index
    %519 = vector.load %arg9[%518, %c0_192, %c0_193] : memref<38x8x128xf32, #tpu.memory_space<vmem>>, vector<1x8x128xf32>
    tpu.vector_store %arg9[%518, %c0_192, %c0_193], %516 {strides = array<i32>} : memref<38x8x128xf32, #tpu.memory_space<vmem>>, vector<1x8x128xf32>,
    %c16 = arith.constant 16 : index
    %c0_194 = arith.constant 0 : index
    %c0_195 = arith.constant 0 : index
    %520 = vector.load %arg10[%c16, %c0_194, %c0_195] : memref<19x8x512xf32, #tpu.memory_space<vmem>>, vector<1x8x512xf32>
    %521 = vector.shape_cast %520 : vector<1x8x512xf32> to vector<8x512xf32>
    %522 = arith.truncf %515 : vector<8x128xf32> to vector<8x128xbf16>
    %c0_196 = arith.constant 0 : index
    %c0_197 = arith.constant 0 : index
    %c0_198 = arith.constant 0 : index
    %523 = vector.load %arg5[%c0_196, %c0_197, %c0_198] : memref<1x128x512xbf16, #tpu.memory_space<vmem>>, vector<1x128x512xbf16>
    %524 = vector.shape_cast %523 : vector<1x128x512xbf16> to vector<128x512xbf16>
    %cst_199 = arith.constant dense<0.000000e+00> : vector<8x512xf32>
    %525 = tpu.matmul %522, %524, %cst_199 {dimension_numbers = #tpu.dot_dimension_numbers<[1], [0], [0], [1], [0, 0, 1, 1], [], []>} : vector<8x128xbf16>, vector<128x512xbf16>, vector<8x512xf32> -> vector<8x512xf32>
    %526 = arith.addf %521, %525 : vector<8x512xf32>
    %527 = vector.extract_strided_slice %526 {offsets = [0, 0], sizes = [8, 384], strides = [1, 1]} : vector<8x512xf32> to vector<8x384xf32>
    %528 = arith.negf %527 : vector<8x384xf32>
    %529 = math.exp %528 : vector<8x384xf32>
    %cst_200 = arith.constant 1.000000e+00 : f32
    %530 = vector.broadcast %cst_200 : f32 to vector<8x384xf32>
    %531 = arith.addf %530, %529 : vector<8x384xf32>
    %532 = arith.divf %530, %531 : vector<8x384xf32>
    %533 = vector.extract_strided_slice %526 {offsets = [0, 384], sizes = [8, 128], strides = [1, 1]} : vector<8x512xf32> to vector<8x128xf32>
    %534 = math.tanh %533 : vector<8x128xf32>
    %535 = vector.extract_strided_slice %532 {offsets = [0, 128], sizes = [8, 128], strides = [1, 1]} : vector<8x384xf32> to vector<8x128xf32>
    %536 = arith.mulf %535, %514 : vector<8x128xf32>
    %537 = vector.extract_strided_slice %532 {offsets = [0, 0], sizes = [8, 128], strides = [1, 1]} : vector<8x384xf32> to vector<8x128xf32>
    %538 = arith.mulf %537, %534 : vector<8x128xf32>
    %539 = arith.addf %536, %538 : vector<8x128xf32>
    %540 = vector.extract_strided_slice %532 {offsets = [0, 256], sizes = [8, 128], strides = [1, 1]} : vector<8x384xf32> to vector<8x128xf32>
    %541 = math.tanh %539 : vector<8x128xf32>
    %542 = arith.mulf %540, %541 : vector<8x128xf32>
    %c16_i32 = arith.constant 16 : i32
    %543 = arith.addi %1, %c16_i32 : i32
    %c37_i32_201 = arith.constant 37 : i32
    %544 = arith.cmpi slt, %543, %c37_i32_201 : i32
    %545 = arith.select %544, %539, %514 : vector<8x128xf32>
    %546 = arith.select %544, %542, %515 : vector<8x128xf32>
    %547 = vector.shape_cast %546 : vector<8x128xf32> to vector<1x8x128xf32>
    %c16_i32_202 = arith.constant 16 : i32
    %548 = arith.addi %1, %c16_i32_202 : i32
    %549 = arith.index_cast %548 : i32 to index
    %c0_203 = arith.constant 0 : index
    %c0_204 = arith.constant 0 : index
    %550 = vector.load %arg9[%549, %c0_203, %c0_204] : memref<38x8x128xf32, #tpu.memory_space<vmem>>, vector<1x8x128xf32>
    tpu.vector_store %arg9[%549, %c0_203, %c0_204], %547 {strides = array<i32>} : memref<38x8x128xf32, #tpu.memory_space<vmem>>, vector<1x8x128xf32>,
    %c17 = arith.constant 17 : index
    %c0_205 = arith.constant 0 : index
    %c0_206 = arith.constant 0 : index
    %551 = vector.load %arg10[%c17, %c0_205, %c0_206] : memref<19x8x512xf32, #tpu.memory_space<vmem>>, vector<1x8x512xf32>
    %552 = vector.shape_cast %551 : vector<1x8x512xf32> to vector<8x512xf32>
    %553 = arith.truncf %546 : vector<8x128xf32> to vector<8x128xbf16>
    %c0_207 = arith.constant 0 : index
    %c0_208 = arith.constant 0 : index
    %c0_209 = arith.constant 0 : index
    %554 = vector.load %arg5[%c0_207, %c0_208, %c0_209] : memref<1x128x512xbf16, #tpu.memory_space<vmem>>, vector<1x128x512xbf16>
    %555 = vector.shape_cast %554 : vector<1x128x512xbf16> to vector<128x512xbf16>
    %cst_210 = arith.constant dense<0.000000e+00> : vector<8x512xf32>
    %556 = tpu.matmul %553, %555, %cst_210 {dimension_numbers = #tpu.dot_dimension_numbers<[1], [0], [0], [1], [0, 0, 1, 1], [], []>} : vector<8x128xbf16>, vector<128x512xbf16>, vector<8x512xf32> -> vector<8x512xf32>
    %557 = arith.addf %552, %556 : vector<8x512xf32>
    %558 = vector.extract_strided_slice %557 {offsets = [0, 0], sizes = [8, 384], strides = [1, 1]} : vector<8x512xf32> to vector<8x384xf32>
    %559 = arith.negf %558 : vector<8x384xf32>
    %560 = math.exp %559 : vector<8x384xf32>
    %cst_211 = arith.constant 1.000000e+00 : f32
    %561 = vector.broadcast %cst_211 : f32 to vector<8x384xf32>
    %562 = arith.addf %561, %560 : vector<8x384xf32>
    %563 = arith.divf %561, %562 : vector<8x384xf32>
    %564 = vector.extract_strided_slice %557 {offsets = [0, 384], sizes = [8, 128], strides = [1, 1]} : vector<8x512xf32> to vector<8x128xf32>
    %565 = math.tanh %564 : vector<8x128xf32>
    %566 = vector.extract_strided_slice %563 {offsets = [0, 128], sizes = [8, 128], strides = [1, 1]} : vector<8x384xf32> to vector<8x128xf32>
    %567 = arith.mulf %566, %545 : vector<8x128xf32>
    %568 = vector.extract_strided_slice %563 {offsets = [0, 0], sizes = [8, 128], strides = [1, 1]} : vector<8x384xf32> to vector<8x128xf32>
    %569 = arith.mulf %568, %565 : vector<8x128xf32>
    %570 = arith.addf %567, %569 : vector<8x128xf32>
    %571 = vector.extract_strided_slice %563 {offsets = [0, 256], sizes = [8, 128], strides = [1, 1]} : vector<8x384xf32> to vector<8x128xf32>
    %572 = math.tanh %570 : vector<8x128xf32>
    %573 = arith.mulf %571, %572 : vector<8x128xf32>
    %c17_i32 = arith.constant 17 : i32
    %574 = arith.addi %1, %c17_i32 : i32
    %c37_i32_212 = arith.constant 37 : i32
    %575 = arith.cmpi slt, %574, %c37_i32_212 : i32
    %576 = arith.select %575, %570, %545 : vector<8x128xf32>
    %577 = arith.select %575, %573, %546 : vector<8x128xf32>
    %578 = vector.shape_cast %577 : vector<8x128xf32> to vector<1x8x128xf32>
    %c17_i32_213 = arith.constant 17 : i32
    %579 = arith.addi %1, %c17_i32_213 : i32
    %580 = arith.index_cast %579 : i32 to index
    %c0_214 = arith.constant 0 : index
    %c0_215 = arith.constant 0 : index
    %581 = vector.load %arg9[%580, %c0_214, %c0_215] : memref<38x8x128xf32, #tpu.memory_space<vmem>>, vector<1x8x128xf32>
    tpu.vector_store %arg9[%580, %c0_214, %c0_215], %578 {strides = array<i32>} : memref<38x8x128xf32, #tpu.memory_space<vmem>>, vector<1x8x128xf32>,
    %c18 = arith.constant 18 : index
    %c0_216 = arith.constant 0 : index
    %c0_217 = arith.constant 0 : index
    %582 = vector.load %arg10[%c18, %c0_216, %c0_217] : memref<19x8x512xf32, #tpu.memory_space<vmem>>, vector<1x8x512xf32>
    %583 = vector.shape_cast %582 : vector<1x8x512xf32> to vector<8x512xf32>
    %584 = arith.truncf %577 : vector<8x128xf32> to vector<8x128xbf16>
    %c0_218 = arith.constant 0 : index
    %c0_219 = arith.constant 0 : index
    %c0_220 = arith.constant 0 : index
    %585 = vector.load %arg5[%c0_218, %c0_219, %c0_220] : memref<1x128x512xbf16, #tpu.memory_space<vmem>>, vector<1x128x512xbf16>
    %586 = vector.shape_cast %585 : vector<1x128x512xbf16> to vector<128x512xbf16>
    %cst_221 = arith.constant dense<0.000000e+00> : vector<8x512xf32>
    %587 = tpu.matmul %584, %586, %cst_221 {dimension_numbers = #tpu.dot_dimension_numbers<[1], [0], [0], [1], [0, 0, 1, 1], [], []>} : vector<8x128xbf16>, vector<128x512xbf16>, vector<8x512xf32> -> vector<8x512xf32>
    %588 = arith.addf %583, %587 : vector<8x512xf32>
    %589 = vector.extract_strided_slice %588 {offsets = [0, 0], sizes = [8, 384], strides = [1, 1]} : vector<8x512xf32> to vector<8x384xf32>
    %590 = arith.negf %589 : vector<8x384xf32>
    %591 = math.exp %590 : vector<8x384xf32>
    %cst_222 = arith.constant 1.000000e+00 : f32
    %592 = vector.broadcast %cst_222 : f32 to vector<8x384xf32>
    %593 = arith.addf %592, %591 : vector<8x384xf32>
    %594 = arith.divf %592, %593 : vector<8x384xf32>
    %595 = vector.extract_strided_slice %588 {offsets = [0, 384], sizes = [8, 128], strides = [1, 1]} : vector<8x512xf32> to vector<8x128xf32>
    %596 = math.tanh %595 : vector<8x128xf32>
    %597 = vector.extract_strided_slice %594 {offsets = [0, 128], sizes = [8, 128], strides = [1, 1]} : vector<8x384xf32> to vector<8x128xf32>
    %598 = arith.mulf %597, %576 : vector<8x128xf32>
    %599 = vector.extract_strided_slice %594 {offsets = [0, 0], sizes = [8, 128], strides = [1, 1]} : vector<8x384xf32> to vector<8x128xf32>
    %600 = arith.mulf %599, %596 : vector<8x128xf32>
    %601 = arith.addf %598, %600 : vector<8x128xf32>
    %602 = vector.extract_strided_slice %594 {offsets = [0, 256], sizes = [8, 128], strides = [1, 1]} : vector<8x384xf32> to vector<8x128xf32>
    %603 = math.tanh %601 : vector<8x128xf32>
    %604 = arith.mulf %602, %603 : vector<8x128xf32>
    %c18_i32 = arith.constant 18 : i32
    %605 = arith.addi %1, %c18_i32 : i32
    %c37_i32_223 = arith.constant 37 : i32
    %606 = arith.cmpi slt, %605, %c37_i32_223 : i32
    %607 = arith.select %606, %601, %576 : vector<8x128xf32>
    %608 = arith.select %606, %604, %577 : vector<8x128xf32>
    %609 = vector.shape_cast %608 : vector<8x128xf32> to vector<1x8x128xf32>
    %c18_i32_224 = arith.constant 18 : i32
    %610 = arith.addi %1, %c18_i32_224 : i32
    %611 = arith.index_cast %610 : i32 to index
    %c0_225 = arith.constant 0 : index
    %c0_226 = arith.constant 0 : index
    %612 = vector.load %arg9[%611, %c0_225, %c0_226] : memref<38x8x128xf32, #tpu.memory_space<vmem>>, vector<1x8x128xf32>
    tpu.vector_store %arg9[%611, %c0_225, %c0_226], %609 {strides = array<i32>} : memref<38x8x128xf32, #tpu.memory_space<vmem>>, vector<1x8x128xf32>,
    %c0_227 = arith.constant 0 : index
    %c0_228 = arith.constant 0 : index
    %613 = vector.load %arg11[%c0_227, %c0_228] : memref<8x128xf32, #tpu.memory_space<vmem>>, vector<8x128xf32>
    tpu.vector_store %arg11[%c0_227, %c0_228], %608 {strides = array<i32>} : memref<8x128xf32, #tpu.memory_space<vmem>>, vector<8x128xf32>,
    %c0_229 = arith.constant 0 : index
    %c0_230 = arith.constant 0 : index
    %614 = vector.load %arg12[%c0_229, %c0_230] : memref<8x128xf32, #tpu.memory_space<vmem>>, vector<8x128xf32>
    tpu.vector_store %arg12[%c0_229, %c0_230], %607 {strides = array<i32>} : memref<8x128xf32, #tpu.memory_space<vmem>>, vector<8x128xf32>,
    %c0_231 = arith.constant 0 : index
    %c0_232 = arith.constant 0 : index
    %c0_233 = arith.constant 0 : index
    %615 = vector.load %arg7[%c0_231, %c0_232, %c0_233] : memref<1x8x128xf32, #tpu.memory_space<vmem>>, vector<1x8x128xf32>
    %616 = vector.shape_cast %615 : vector<1x8x128xf32> to vector<8x128xf32>
    %617 = vector.shape_cast %608 : vector<8x128xf32> to vector<1x8x128xf32>
    tpu.vector_store %arg7[%c0_231, %c0_232, %c0_233], %617 {strides = array<i32>} : memref<1x8x128xf32, #tpu.memory_space<vmem>>, vector<1x8x128xf32>,
    %c0_234 = arith.constant 0 : index
    %c0_235 = arith.constant 0 : index
    %c0_236 = arith.constant 0 : index
    %618 = vector.load %arg8[%c0_234, %c0_235, %c0_236] : memref<1x8x128xf32, #tpu.memory_space<vmem>>, vector<1x8x128xf32>
    %619 = vector.shape_cast %618 : vector<1x8x128xf32> to vector<8x128xf32>
    %620 = vector.shape_cast %607 : vector<8x128xf32> to vector<1x8x128xf32>
    tpu.vector_store %arg8[%c0_234, %c0_235, %c0_236], %620 {strides = array<i32>} : memref<1x8x128xf32, #tpu.memory_space<vmem>>, vector<1x8x128xf32>,
    return
  }
  func.func @transform_0(%arg0: i32, %arg1: i32, %arg2: i32) -> (i32, i32, i32) {
    %c0_i32 = arith.constant 0 : i32
    %c0_i32_0 = arith.constant 0 : i32
    return %arg2, %arg0, %c0_i32 : i32, i32, i32
  }
  func.func @transform_1(%arg0: i32, %arg1: i32, %arg2: i32) -> (i32, i32, i32) {
    %c0_i32 = arith.constant 0 : i32
    %c0_i32_0 = arith.constant 0 : i32
    %c0_i32_1 = arith.constant 0 : i32
    return %arg1, %c0_i32, %c0_i32_0 : i32, i32, i32
  }
  func.func @transform_2(%arg0: i32, %arg1: i32, %arg2: i32) -> (i32, i32, i32) {
    %c0_i32 = arith.constant 0 : i32
    %c0_i32_0 = arith.constant 0 : i32
    %c0_i32_1 = arith.constant 0 : i32
    return %arg1, %c0_i32, %c0_i32_0 : i32, i32, i32
  }
  func.func @transform_3(%arg0: i32, %arg1: i32, %arg2: i32) -> (i32, i32, i32) {
    %c0_i32 = arith.constant 0 : i32
    %c0_i32_0 = arith.constant 0 : i32
    %c0_i32_1 = arith.constant 0 : i32
    return %arg1, %c0_i32, %c0_i32_0 : i32, i32, i32
  }
  func.func @transform_4(%arg0: i32, %arg1: i32, %arg2: i32) -> (i32, i32, i32) {
    %c0_i32 = arith.constant 0 : i32
    %c0_i32_0 = arith.constant 0 : i32
    return %arg1, %arg0, %c0_i32 : i32, i32, i32
  }
  func.func @transform_5(%arg0: i32, %arg1: i32, %arg2: i32) -> (i32, i32, i32) {
    %c0_i32 = arith.constant 0 : i32
    %c0_i32_0 = arith.constant 0 : i32
    return %arg1, %arg0, %c0_i32 : i32, i32, i32
  }
}

</mosaic_0001>

<llo_original>
// kernel: tpu_custom_call.1
$region0: #{tpu_custom_call.1}
  #allocation0 [shape = 'u32[]', space=smem, size = 0x4, offset = 0x4, fixed_abs, tag = 'smem constant byte address 0x4 - core index']
  #allocation1 [shape = 'u32[72,128]{1,0:T(1,128)}', space=vmem, size = 0x9000, scoped, tag = 'internal scratch']
  #allocation2 [shape = 'f32[38,8,128]{2,1,0:T(8,128)}', space=vmem, size = 0x26000, scoped, tag = 'scratch operand']
  #allocation3 [shape = 'f32[19,8,512]{2,1,0:T(8,128)}', space=vmem, size = 0x4c000, scoped, tag = 'scratch operand']
  #allocation4 [shape = 'f32[8,128]{1,0:T(8,128)}', space=vmem, size = 0x1000, scoped, tag = 'scratch operand']
  #allocation5 [shape = 'f32[8,128]{1,0:T(8,128)}', space=vmem, size = 0x1000, scoped, tag = 'scratch operand']
  %s0 = inlined_call_operand.hbm [shape: bf16[38,8,128], index: 0, kind: input, shape index: {}]
  %s1 = inlined_call_operand.hbm [shape: bf16[2,128,512], index: 1, kind: input, shape index: {}]
  %s2 = inlined_call_operand.hbm [shape: bf16[2,128,512], index: 2, kind: input, shape index: {}]
  %s3 = inlined_call_operand.hbm [shape: f32[2,1,512], index: 3, kind: input, shape index: {}]
  %s4 = inlined_call_operand.hbm [shape: f32[2,8,128], index: 4, kind: output, shape index: {0}]
  %s5 = inlined_call_operand.hbm [shape: f32[2,8,128], index: 5, kind: output, shape index: {1}]
  %6 = xla_tuple %s4, %s5
  %s7 = sld [smem:[#allocation0]]
  $region81: #{tpu_custom_call.1} parent=0
    _
  %s9 = ssub.s32 1, %s7
  %s10 = scalar_select 0, %s9, %s7
  $region1: #{tpu_custom_call.1} parent=0
    #allocation6 [shape = 'u8[77824]{0}', space=vmem, size = 0x13000, scoped, tag = 'input window, operand 0']
    #allocation7 [shape = 's32[2]{0}', space=sflag, size = 0x8, scoped, tag = 'scoped memory for tpu_custom_call.1']
    #allocation8 [shape = 's32[2]{0}', space=sflag, size = 0x8, scoped, tag = 'scoped memory for tpu_custom_call.1']
    #allocation9 [shape = 'u8[262144]{0}', space=vmem, size = 0x40000, scoped, tag = 'input window, operand 1']
    #allocation10 [shape = 's32[2]{0}', space=sflag, size = 0x8, scoped, tag = 'scoped memory for tpu_custom_call.1']
    #allocation11 [shape = 'u8[262144]{0}', space=vmem, size = 0x40000, scoped, tag = 'input window, operand 2']
    #allocation12 [shape = 'u8[4096]{0}', space=vmem, size = 0x1000, scoped, tag = 'input window, operand 3']
    #allocation13 [shape = 's32[2]{0}', space=sflag, size = 0x8, scoped, tag = 'scoped memory for tpu_custom_call.1']
    #allocation14 [shape = 'u8[8192]{0}', space=vmem, size = 0x2000, scoped, tag = 'output window, operand 0']
    #allocation15 [shape = 'u8[8192]{0}', space=vmem, size = 0x2000, scoped, tag = 'output window, operand 1']
    #allocation16 [shape = 's32[2]{0}', space=sflag, size = 0x8, scoped, tag = 'scoped memory for tpu_custom_call.1']
    %11 = vsyncpa [#allocation7], 0
    %s12 = scalar_lea.sflag [#allocation7], 1
    %13 = vsyncpa %s12, 0
    %14 = vsyncpa [#allocation10], 0
    %s15 = scalar_lea.sflag [#allocation10], 1
    %16 = vsyncpa %s15, 0
    %17 = vsyncpa [#allocation13], 0
    %s18 = scalar_lea.sflag [#allocation13], 1
    %19 = vsyncpa %s18, 0
    %20 = vsyncpa [#allocation8], 0
    %s21 = scalar_lea.sflag [#allocation8], 1
    %22 = vsyncpa %s21, 0
    %23 = vsyncpa [#allocation16], 0
    %s24 = scalar_lea.sflag [#allocation16], 1
    %25 = vsyncpa %s24, 0
    loop: start=0, step=1, limit=6
    $region2: #{tpu_custom_call.1} parent=1 // loop_pre_header
      _
    $region3: #{tpu_custom_call.1} parent=1 // loop_header
      %s27 = sphi 0, %s31
      %p28 = scmp.ge.s32.totalorder %s27, 6
      %s34 = sphi 0, %s53
      %s35 = sphi 0, %s49
      %s36 = sphi 0, %s45
      %s37 = sphi 0, %s34
      %s38 = sphi 0, %s35
      %s39 = sphi 0, %s36
      %s40 = sphi 0, %s37
      %s41 = sphi 0, %s38
      %s42 = sphi 0, %s39
      %s58 = sphi 0, %s60
      %s61 = sphi 0, %s58
      %s62 = sphi 0, %s61
      %s78 = sphi 0, %s62
      %s84 = sphi 0, %s86
      %s87 = sphi 0, %s84
      %s88 = sphi 0, %s87
      %s104 = sphi 0, %s88
      %s110 = sphi 0, %s112
      %s113 = sphi 0, %s110
      %s114 = sphi 0, %s113
      %s130 = sphi 0, %s114
      %s136 = sphi 0, %s138
      %s139 = sphi 0, %s136
      %s140 = sphi 0, %s139
      %s156 = sphi 0, %s140
      %s164 = sphi 0, %s166
      %s167 = sphi 0, %s164
      %s168 = sphi 0, %s167
      %s184 = sphi 0, %s168
      %s192 = sphi 0, %s194
      %s195 = sphi 0, %s192
      %s196 = sphi 0, %s195
      %s212 = sphi 0, %s196
    $region4: #{tpu_custom_call.1} parent=1 // loop_header_branch
      %30 = sbr.rel (%p28) target = $region8
    $region5: #{tpu_custom_call.1} parent=1 // loop_body
      %s32 = ssub.s32 %s27, 1
      %s33 = ssub.s32 %s27, 2
      %s43 = sadd.s32 1, %s36
      %p44 = scmp.ge.s32.totalorder %s43, 2
      %s45 = scalar_select %p44, 0, %s43
      %s46 = sadd.s32 1, %s35
      %s47 = scalar_select %p44, %s46, %s35
      %p48 = scmp.ge.s32.totalorder %s47, 2
      %s49 = scalar_select %p48, 0, %s47
      %s50 = sadd.s32 1, %s34
      %s51 = scalar_select %p48, %s50, %s34
      %p52 = scmp.ge.s32.totalorder %s51, 1
      %s53 = scalar_select %p52, 0, %s51
      %s54 = ssub.s32 %s36, %s45
      %s55 = ssub.s32 %s34, %s53
      %s56 = sor.u32 %s54, %s55
      %p57 = scmp.eq.s32.totalorder %s56, 0
      %s59 = sadd.s32 %s58, 1
      %s60 = scalar_select %p57, %s58, %s59
      %p63 = pneg %p57
      %p64 = scmp.eq.s32.totalorder %s27, 3
      %p65 = por %p63, %p64
      %p66 = scmp.ne.s32.totalorder %s58, %s61
      %p67 = scmp.eq.s32.totalorder %s27, 0
      %p68 = por %p66, %p67
      %p69 = scmp.ne.s32.totalorder %s58, %s61
      %p70 = scmp.eq.s32.totalorder %s32, 3
      %p71 = por %p69, %p70
      %p72 = scmp.ne.s32.totalorder %s61, %s62
      %p73 = scmp.eq.s32.totalorder %s32, 0
      %p74 = por %p72, %p73
      %p75 = scmp.ne.s32.totalorder %s61, %s62
      %p76 = scmp.eq.s32.totalorder %s33, 3
      %p77 = por %p75, %p76
      %p79 = scmp.ne.s32.totalorder %s62, %s78
      %p80 = scmp.eq.s32.totalorder %s33, 0
      %p81 = por %p79, %p80
      %s82 = ssub.s32 %s35, %s49
      %p83 = scmp.eq.s32.totalorder %s82, 0
      %s85 = sadd.s32 %s84, 1
      %s86 = scalar_select %p83, %s84, %s85
      %p89 = pneg %p83
      %p90 = scmp.eq.s32.totalorder %s27, 3
      %p91 = por %p89, %p90
      %p92 = scmp.ne.s32.totalorder %s84, %s87
      %p93 = scmp.eq.s32.totalorder %s27, 0
      %p94 = por %p92, %p93
      %p95 = scmp.ne.s32.totalorder %s84, %s87
      %p96 = scmp.eq.s32.totalorder %s32, 3
      %p97 = por %p95, %p96
      %p98 = scmp.ne.s32.totalorder %s87, %s88
      %p99 = scmp.eq.s32.totalorder %s32, 0
      %p100 = por %p98, %p99
      %p101 = scmp.ne.s32.totalorder %s87, %s88
      %p102 = scmp.eq.s32.totalorder %s33, 3
      %p103 = por %p101, %p102
      %p105 = scmp.ne.s32.totalorder %s88, %s104
      %p106 = scmp.eq.s32.totalorder %s33, 0
      %p107 = por %p105, %p106
      %s108 = ssub.s32 %s35, %s49
      %p109 = scmp.eq.s32.totalorder %s108, 0
      %s111 = sadd.s32 %s110, 1
      %s112 = scalar_select %p109, %s110, %s111
      %p115 = pneg %p109
      %p116 = scmp.eq.s32.totalorder %s27, 3
      %p117 = por %p115, %p116
      %p118 = scmp.ne.s32.totalorder %s110, %s113
      %p119 = scmp.eq.s32.totalorder %s27, 0
      %p120 = por %p118, %p119
      %p121 = scmp.ne.s32.totalorder %s110, %s113
      %p122 = scmp.eq.s32.totalorder %s32, 3
      %p123 = por %p121, %p122
      %p124 = scmp.ne.s32.totalorder %s113, %s114
      %p125 = scmp.eq.s32.totalorder %s32, 0
      %p126 = por %p124, %p125
      %p127 = scmp.ne.s32.totalorder %s113, %s114
      %p128 = scmp.eq.s32.totalorder %s33, 3
      %p129 = por %p127, %p128
      %p131 = scmp.ne.s32.totalorder %s114, %s130
      %p132 = scmp.eq.s32.totalorder %s33, 0
      %p133 = por %p131, %p132
      %s134 = ssub.s32 %s35, %s49
      %p135 = scmp.eq.s32.totalorder %s134, 0
      %s137 = sadd.s32 %s136, 1
      %s138 = scalar_select %p135, %s136, %s137
      %p141 = pneg %p135
      %p142 = scmp.eq.s32.totalorder %s27, 3
      %p143 = por %p141, %p142
      %p144 = scmp.ne.s32.totalorder %s136, %s139
      %p145 = scmp.eq.s32.totalorder %s27, 0
      %p146 = por %p144, %p145
      %p147 = scmp.ne.s32.totalorder %s136, %s139
      %p148 = scmp.eq.s32.totalorder %s32, 3
      %p149 = por %p147, %p148
      %p150 = scmp.ne.s32.totalorder %s139, %s140
      %p151 = scmp.eq.s32.totalorder %s32, 0
      %p152 = por %p150, %p151
      %p153 = scmp.ne.s32.totalorder %s139, %s140
      %p154 = scmp.eq.s32.totalorder %s33, 3
      %p155 = por %p153, %p154
      %p157 = scmp.ne.s32.totalorder %s140, %s156
      %p158 = scmp.eq.s32.totalorder %s33, 0
      %p159 = por %p157, %p158
      %s160 = ssub.s32 %s35, %s49
      %s161 = ssub.s32 %s34, %s53
      %s162 = sor.u32 %s160, %s161
      %p163 = scmp.eq.s32.totalorder %s162, 0
      %s165 = sadd.s32 %s164, 1
      %s166 = scalar_select %p163, %s164, %s165
      %p169 = pneg %p163
      %p170 = scmp.eq.s32.totalorder %s27, 3
      %p171 = por %p169, %p170
      %p172 = scmp.ne.s32.totalorder %s164, %s167
      %p173 = scmp.eq.s32.totalorder %s27, 0
      %p174 = por %p172, %p173
      %p175 = scmp.ne.s32.totalorder %s164, %s167
      %p176 = scmp.eq.s32.totalorder %s32, 3
      %p177 = por %p175, %p176
      %p178 = scmp.ne.s32.totalorder %s167, %s168
      %p179 = scmp.eq.s32.totalorder %s32, 0
      %p180 = por %p178, %p179
      %p181 = scmp.ne.s32.totalorder %s167, %s168
      %p182 = scmp.eq.s32.totalorder %s33, 3
      %p183 = por %p181, %p182
      %p185 = scmp.ne.s32.totalorder %s168, %s184
      %p186 = scmp.eq.s32.totalorder %s33, 0
      %p187 = por %p185, %p186
      %s188 = ssub.s32 %s35, %s49
      %s189 = ssub.s32 %s34, %s53
      %s190 = sor.u32 %s188, %s189
      %p191 = scmp.eq.s32.totalorder %s190, 0
      %s193 = sadd.s32 %s192, 1
      %s194 = scalar_select %p191, %s192, %s193
      %p197 = pneg %p191
      %p198 = scmp.eq.s32.totalorder %s27, 3
      %p199 = por %p197, %p198
      %p200 = scmp.ne.s32.totalorder %s192, %s195
      %p201 = scmp.eq.s32.totalorder %s27, 0
      %p202 = por %p200, %p201
      %p203 = scmp.ne.s32.totalorder %s192, %s195
      %p204 = scmp.eq.s32.totalorder %s32, 3
      %p205 = por %p203, %p204
      %p206 = scmp.ne.s32.totalorder %s195, %s196
      %p207 = scmp.eq.s32.totalorder %s32, 0
      %p208 = por %p206, %p207
      %p209 = scmp.ne.s32.totalorder %s195, %s196
      %p210 = scmp.eq.s32.totalorder %s33, 3
      %p211 = por %p209, %p210
      %p213 = scmp.ne.s32.totalorder %s196, %s212
      %p214 = scmp.eq.s32.totalorder %s33, 0
      %p215 = por %p213, %p214
      %p216 = scmp.le.s32.totalorder 1, %s27
      %p217 = scmp.lt.s32.totalorder %s27, 5
      %p218 = pnand %p216, %p217
      %p219 = pneg %p218
      // Predicated region
      $region9: #{tpu_custom_call.1} parent=5 // pred_check
        _
      $region10: #{tpu_custom_call.1} parent=5 // pred_check_branch
        %221 = sbr.rel (%p218) target = $region12
      $region11: #{tpu_custom_call.1} parent=5 // pred_region
        %s222 = ssub.s32 %s27, 1
      $region12: #{tpu_custom_call.1} parent=5 // pred_fallthru
        _
      %p223 = scmp.lt.s32.totalorder %s27, 4
      // Predicated region
      $region13: #{tpu_custom_call.1} parent=5 // pred_check
        %p224 = pneg %p223
      $region14: #{tpu_custom_call.1} parent=5 // pred_check_branch
        %226 = sbr.rel (%p224) target = $region16
      $region15: #{tpu_custom_call.1} parent=5 // pred_region
        // Predicated region
        $region17: #{tpu_custom_call.1} parent=15 // pred_check
          %p227 = pneg %p68
        $region18: #{tpu_custom_call.1} parent=15 // pred_check_branch
          %229 = sbr.rel (%p227) target = $region20
        $region19: #{tpu_custom_call.1} parent=15 // pred_region
          %s230 = sand.u32 %s58, 1
          %s231 = scalar_lea.sflag [#allocation7], %s230
          %s232 = sand.u32 %s58, 1
          %s233 = smul.addr %s232, 76
          %s234 = scalar_lea.vmem [#allocation6], %s233
          %s235 = smul.u32 19, %s36
          %237 = vsyncadd %s231, 0
          %s238 = sadd.s32 %s34, %s235
          %s239 = smul.addr %s238, 4
          %s240 = scalar_lea.hbm %s0, %s239
          %s241 = sshll.u32 %s240, 4
          %s242 = int_to_ptr.hbm [resolvable:$true] %s241
          %s243 = sshll.u32 %s234, 4
          %s244 = int_to_ptr.vmem [resolvable:$true] %s243
          %249 = dma.hbm_to_vmem [thread:$0]  %s242, 1216, %s244, %s231, 64, 64, 4
        $region20: #{tpu_custom_call.1} parent=15 // pred_fallthru
          _
        // Predicated region
        $region21: #{tpu_custom_call.1} parent=15 // pred_check
          %p250 = pneg %p94
        $region22: #{tpu_custom_call.1} parent=15 // pred_check_branch
          %252 = sbr.rel (%p250) target = $region24
        $region23: #{tpu_custom_call.1} parent=15 // pred_region
          %s253 = sand.u32 %s27, 1
          %s254 = scalar_lea.sflag [#allocation10], %s253
          %s255 = sand.u32 %s84, 1
          %s256 = smul.addr %s255, 256
          %s257 = scalar_lea.vmem [#allocation9], %s256
          %259 = vsyncadd %s254, 0
          %s260 = smul.addr %s35, 64
          %s261 = smul.addr %s260, 4
          %s262 = scalar_lea.hbm %s1, %s261
          %s263 = sshll.u32 %s262, 4
          %s264 = int_to_ptr.hbm [resolvable:$true] %s263
          %s265 = sshll.u32 %s257, 4
          %s266 = int_to_ptr.vmem [resolvable:$true] %s265
          %271 = dma.hbm_to_vmem [thread:$0]  %s264, 4096, %s266, %s254, 256, 256, 16
        $region24: #{tpu_custom_call.1} parent=15 // pred_fallthru
          _
        // Predicated region
        $region25: #{tpu_custom_call.1} parent=15 // pred_check
          %p272 = pneg %p120
        $region26: #{tpu_custom_call.1} parent=15 // pred_check_branch
          %274 = sbr.rel (%p272) target = $region28
        $region27: #{tpu_custom_call.1} parent=15 // pred_region
          %s275 = sand.u32 %s27, 1
          %s276 = scalar_lea.sflag [#allocation10], %s275
          %s277 = sand.u32 %s110, 1
          %s278 = smul.addr %s277, 256
          %s279 = scalar_lea.vmem [#allocation11], %s278
          %281 = vsyncadd %s276, 0
          %s282 = smul.addr %s35, 64
          %s283 = smul.addr %s282, 4
          %s284 = scalar_lea.hbm %s2, %s283
          %s285 = sshll.u32 %s284, 4
          %s286 = int_to_ptr.hbm [resolvable:$true] %s285
          %s287 = sshll.u32 %s279, 4
          %s288 = int_to_ptr.vmem [resolvable:$true] %s287
          %293 = dma.hbm_to_vmem [thread:$0]  %s286, 4096, %s288, %s276, 256, 256, 16
        $region28: #{tpu_custom_call.1} parent=15 // pred_fallthru
          _
        // Predicated region
        $region29: #{tpu_custom_call.1} parent=15 // pred_check
          %p294 = pneg %p146
        $region30: #{tpu_custom_call.1} parent=15 // pred_check_branch
          %296 = sbr.rel (%p294) target = $region32
        $region31: #{tpu_custom_call.1} parent=15 // pred_region
          %s297 = sand.u32 %s136, 1
          %s298 = scalar_lea.sflag [#allocation13], %s297
          %s299 = sand.u32 %s136, 1
          %s300 = smul.addr %s299, 4
          %s301 = scalar_lea.vmem [#allocation12], %s300
          %303 = vsyncadd %s298, 0
          %s304 = smul.addr %s35, 4
          %s305 = scalar_lea.hbm %s3, %s304
          %s307 = sshll.u32 %s305, 4
          %s308 = int_to_ptr.hbm [resolvable:$true] %s307
          %s309 = sshll.u32 %s301, 4
          %s310 = int_to_ptr.vmem [resolvable:$true] %s309
          %312 = dma.hbm_to_vmem [thread:$0]  %s308, 64, %s310, %s298
        $region32: #{tpu_custom_call.1} parent=15 // pred_fallthru
          _
      $region16: #{tpu_custom_call.1} parent=5 // pred_fallthru
        _
      %p313 = scmp.le.s32.totalorder 1, %s27
      %p314 = scmp.lt.s32.totalorder %s27, 5
      %p315 = pnand %p313, %p314
      %p316 = pneg %p315
      // Predicated region
      $region33: #{tpu_custom_call.1} parent=5 // pred_check
        _
      $region34: #{tpu_custom_call.1} parent=5 // pred_check_branch
        %318 = sbr.rel (%p315) target = $region36
      $region35: #{tpu_custom_call.1} parent=5 // pred_region
        %s319 = ssub.s32 %s27, 1
        %s320 = sand.u32 %s61, 1
        %s321 = scalar_lea.sflag [#allocation7], %s320
        %s322 = sand.u32 %s61, 1
        %s323 = smul.addr %s322, 76
        %s324 = scalar_lea.vmem [#allocation6], %s323
        // Predicated region
        $region37: #{tpu_custom_call.1} parent=35 // pred_check
          %p325 = pneg %p74
        $region38: #{tpu_custom_call.1} parent=35 // pred_check_branch
          %327 = sbr.rel (%p325) target = $region40
        $region39: #{tpu_custom_call.1} parent=35 // pred_region
          %329 = dma.done %s321, 1216
        $region40: #{tpu_custom_call.1} parent=35 // pred_fallthru
          _
        %s330 = sand.u32 %s32, 1
        %s331 = scalar_lea.sflag [#allocation10], %s330
        %s332 = sand.u32 %s87, 1
        %s333 = smul.addr %s332, 256
        %s334 = scalar_lea.vmem [#allocation9], %s333
        // Predicated region
        $region41: #{tpu_custom_call.1} parent=35 // pred_check
          %p335 = pneg %p100
        $region42: #{tpu_custom_call.1} parent=35 // pred_check_branch
          %337 = sbr.rel (%p335) target = $region44
        $region43: #{tpu_custom_call.1} parent=35 // pred_region
          %339 = dma.done %s331, 4096
        $region44: #{tpu_custom_call.1} parent=35 // pred_fallthru
          _
        %s340 = sand.u32 %s32, 1
        %s341 = scalar_lea.sflag [#allocation10], %s340
        %s342 = sand.u32 %s113, 1
        %s343 = smul.addr %s342, 256
        %s344 = scalar_lea.vmem [#allocation11], %s343
        // Predicated region
        $region45: #{tpu_custom_call.1} parent=35 // pred_check
          %p345 = pneg %p126
        $region46: #{tpu_custom_call.1} parent=35 // pred_check_branch
          %347 = sbr.rel (%p345) target = $region48
        $region47: #{tpu_custom_call.1} parent=35 // pred_region
          %349 = dma.done %s341, 4096
        $region48: #{tpu_custom_call.1} parent=35 // pred_fallthru
          _
        %s350 = sand.u32 %s139, 1
        %s351 = scalar_lea.sflag [#allocation13], %s350
        %s352 = sand.u32 %s139, 1
        %s353 = smul.addr %s352, 4
        %s354 = scalar_lea.vmem [#allocation12], %s353
        // Predicated region
        $region49: #{tpu_custom_call.1} parent=35 // pred_check
          %p355 = pneg %p152
        $region50: #{tpu_custom_call.1} parent=35 // pred_check_branch
          %357 = sbr.rel (%p355) target = $region52
        $region51: #{tpu_custom_call.1} parent=35 // pred_region
          %359 = dma.done %s351, 64
        $region52: #{tpu_custom_call.1} parent=35 // pred_fallthru
          _
        %s360 = sand.u32 %s61, 1
        %s361 = scalar_lea.sflag [#allocation7], %s360
        %s362 = sand.u32 %s61, 1
        %s363 = smul.addr %s362, 76
        %s364 = scalar_lea.vmem [#allocation6], %s363
        %p365 = pneg %p74
        %p366 = pneg %p71
        %s367 = sand.u32 %s32, 1
        %s368 = scalar_lea.sflag [#allocation10], %s367
        %s369 = sand.u32 %s87, 1
        %s370 = smul.addr %s369, 256
        %s371 = scalar_lea.vmem [#allocation9], %s370
        %p372 = pneg %p100
        %p373 = pneg %p97
        %s374 = sand.u32 %s32, 1
        %s375 = scalar_lea.sflag [#allocation10], %s374
        %s376 = sand.u32 %s113, 1
        %s377 = smul.addr %s376, 256
        %s378 = scalar_lea.vmem [#allocation11], %s377
        %p379 = pneg %p126
        %p380 = pneg %p123
        %s381 = sand.u32 %s139, 1
        %s382 = scalar_lea.sflag [#allocation13], %s381
        %s383 = sand.u32 %s139, 1
        %s384 = smul.addr %s383, 4
        %s385 = scalar_lea.vmem [#allocation12], %s384
        %p386 = pneg %p152
        %p387 = pneg %p149
        %p388 = pneg %p180
        %p389 = pneg %p177
        %s390 = sand.u32 %s167, 1
        %s391 = scalar_lea.sflag [#allocation8], %s390
        %s392 = sand.u32 %s167, 1
        %s393 = smul.addr %s392, 8
        %s394 = scalar_lea.vmem [#allocation14], %s393
        %p395 = pneg %p208
        %p396 = pneg %p205
        %s397 = sand.u32 %s195, 1
        %s398 = scalar_lea.sflag [#allocation16], %s397
        %s399 = sand.u32 %s195, 1
        %s400 = smul.addr %s399, 8
        %s401 = scalar_lea.vmem [#allocation15], %s400
        %s402 = smul.u32 19, %s39
        %s403 = smul.u32 %s39, 19
        %p404 = scmp.eq.s32.totalorder %s39, 0
        // Predicated region
        $region53: #{tpu_custom_call.1} parent=35 // pred_check
          %p405 = pneg %p404
        $region54: #{tpu_custom_call.1} parent=35 // pred_check_branch
          %407 = sbr.rel (%p405) target = $region56
        $region55: #{tpu_custom_call.1} parent=35 // pred_region
          %408 = vst [vmem:[#allocation4] sm:$0xff] 0.0
          %409 = vst [vmem:[#allocation5] sm:$0xff] 0.0
        $region56: #{tpu_custom_call.1} parent=35 // pred_fallthru
          _
        %p410 = scmp.eq.s32.totalorder %s38, 0
        // Predicated region
        $region57: #{tpu_custom_call.1} parent=35 // pred_check
          %p411 = pneg %p410
        $region58: #{tpu_custom_call.1} parent=35 // pred_check_branch
          %413 = sbr.rel (%p411) target = $region60
        $region59: #{tpu_custom_call.1} parent=35 // pred_region
          %v414 = vld [vmem:[%s324] sm:$0xf]
          %v415 = vld [vmem:[%s324 + $0x4] sm:$0xf]
          %v416 = vld [vmem:[%s324 + $0x8] sm:$0xf]
          %v417 = vld [vmem:[%s324 + $0xc] sm:$0xf]
          %v418 = vld [vmem:[%s324 + $0x10] sm:$0xf]
          %v419 = vld [vmem:[%s324 + $0x14] sm:$0xf]
          %v420 = vld [vmem:[%s324 + $0x18] sm:$0xf]
          %v421 = vld [vmem:[%s324 + $0x1c] sm:$0xf]
          %v422 = vld [vmem:[%s324 + $0x20] sm:$0xf]
          %v423 = vld [vmem:[%s324 + $0x24] sm:$0xf]
          %v424 = vld [vmem:[%s324 + $0x28] sm:$0xf]
          %v425 = vld [vmem:[%s324 + $0x2c] sm:$0xf]
          %v426 = vld [vmem:[%s324 + $0x30] sm:$0xf]
          %v427 = vld [vmem:[%s324 + $0x34] sm:$0xf]
          %v428 = vld [vmem:[%s324 + $0x38] sm:$0xf]
          %v429 = vld [vmem:[%s324 + $0x3c] sm:$0xf]
          %v430 = vld [vmem:[%s324 + $0x40] sm:$0xf]
          %v431 = vld [vmem:[%s324 + $0x44] sm:$0xf]
          %v432 = vld [vmem:[%s324 + $0x48] sm:$0xf]
          %v433 = vunpack.c.l.bf16 %v414
          %v434 = vunpack.c.l.bf16 %v415
          %v435 = vunpack.c.l.bf16 %v416
          %v436 = vunpack.c.l.bf16 %v417
          %v437 = vunpack.c.l.bf16 %v418
          %v438 = vunpack.c.l.bf16 %v419
          %v439 = vunpack.c.l.bf16 %v420
          %v440 = vunpack.c.l.bf16 %v421
          %v441 = vunpack.c.l.bf16 %v422
          %v442 = vunpack.c.l.bf16 %v423
          %v443 = vunpack.c.l.bf16 %v424
          %v444 = vunpack.c.l.bf16 %v425
          %v445 = vunpack.c.l.bf16 %v426
          %v446 = vunpack.c.l.bf16 %v427
          %v447 = vunpack.c.l.bf16 %v428
          %v448 = vunpack.c.l.bf16 %v429
          %v449 = vunpack.c.l.bf16 %v430
          %v450 = vunpack.c.l.bf16 %v431
          %v451 = vunpack.c.l.bf16 %v432
          %s452 = smul.u32 %s403, 8
          %s453 = scalar_lea.vmem [#allocation2], %s452
          %454 = vst [vmem:[%s453] sm:$0xff] %v433
          %455 = vst [vmem:[%s453 + $0x8] sm:$0xff] %v434
          %456 = vst [vmem:[%s453 + $0x10] sm:$0xff] %v435
          %457 = vst [vmem:[%s453 + $0x18] sm:$0xff] %v436
          %458 = vst [vmem:[%s453 + $0x20] sm:$0xff] %v437
          %459 = vst [vmem:[%s453 + $0x28] sm:$0xff] %v438
          %460 = vst [vmem:[%s453 + $0x30] sm:$0xff] %v439
          %461 = vst [vmem:[%s453 + $0x38] sm:$0xff] %v440
          %462 = vst [vmem:[%s453 + $0x40] sm:$0xff] %v441
          %463 = vst [vmem:[%s453 + $0x48] sm:$0xff] %v442
          %464 = vst [vmem:[%s453 + $0x50] sm:$0xff] %v443
          %465 = vst [vmem:[%s453 + $0x58] sm:$0xff] %v444
          %466 = vst [vmem:[%s453 + $0x60] sm:$0xff] %v445
          %467 = vst [vmem:[%s453 + $0x68] sm:$0xff] %v446
          %468 = vst [vmem:[%s453 + $0x70] sm:$0xff] %v447
          %469 = vst [vmem:[%s453 + $0x78] sm:$0xff] %v448
          %470 = vst [vmem:[%s453 + $0x80] sm:$0xff] %v449
          %471 = vst [vmem:[%s453 + $0x88] sm:$0xff] %v450
          %472 = vst [vmem:[%s453 + $0x90] sm:$0xff] %v451
        $region60: #{tpu_custom_call.1} parent=35 // pred_fallthru
          _
        %s473 = smul.u32 %s403, 8
        %s474 = scalar_lea.vmem [#allocation2], %s473
        %v475 = vld [vmem:[%s474] sm:$0xff]
        %v476 = vld [vmem:[%s474 + $0x8] sm:$0xff]
        %v477 = vld [vmem:[%s474 + $0x10] sm:$0xff]
        %v478 = vld [vmem:[%s474 + $0x18] sm:$0xff]
        %v479 = vld [vmem:[%s474 + $0x20] sm:$0xff]
        %v480 = vld [vmem:[%s474 + $0x28] sm:$0xff]
        %v481 = vld [vmem:[%s474 + $0x30] sm:$0xff]
        %v482 = vld [vmem:[%s474 + $0x38] sm:$0xff]
        %v483 = vld [vmem:[%s474 + $0x40] sm:$0xff]
        %v484 = vld [vmem:[%s474 + $0x48] sm:$0xff]
        %v485 = vld [vmem:[%s474 + $0x50] sm:$0xff]
        %v486 = vld [vmem:[%s474 + $0x58] sm:$0xff]
        %v487 = vld [vmem:[%s474 + $0x60] sm:$0xff]
        %v488 = vld [vmem:[%s474 + $0x68] sm:$0xff]
        %v489 = vld [vmem:[%s474 + $0x70] sm:$0xff]
        %v490 = vld [vmem:[%s474 + $0x78] sm:$0xff]
        %v491 = vld [vmem:[%s474 + $0x80] sm:$0xff]
        %v492 = vld [vmem:[%s474 + $0x88] sm:$0xff]
        %v493 = vld [vmem:[%s474 + $0x90] sm:$0xff]
        %v494 = vpack.c.bf16 %v476, %v475
        %v495 = vpack.c.bf16 %v478, %v477
        %v496 = vpack.c.bf16 %v480, %v479
        %v497 = vpack.c.bf16 %v482, %v481
        %v498 = vpack.c.bf16 %v484, %v483
        %v499 = vpack.c.bf16 %v486, %v485
        %v500 = vpack.c.bf16 %v488, %v487
        %v501 = vpack.c.bf16 %v490, %v489
        %v502 = vpack.c.bf16 %v492, %v491
        %v503 = vpack.c.bf16 %v493, %v493
        %v504 = vld [vmem:[%s334] sm:$0xff]
        %v505 = vld [vmem:[%s334 + $0x8] sm:$0xff]
        %v506 = vld [vmem:[%s334 + $0x10] sm:$0xff]
        %v507 = vld [vmem:[%s334 + $0x18] sm:$0xff]
        %v508 = vld [vmem:[%s334 + $0x20] sm:$0xff]
        %v509 = vld [vmem:[%s334 + $0x28] sm:$0xff]
        %v510 = vld [vmem:[%s334 + $0x30] sm:$0xff]
        %v511 = vld [vmem:[%s334 + $0x38] sm:$0xff]
        %v512 = vld [vmem:[%s334 + $0x40] sm:$0xff]
        %v513 = vld [vmem:[%s334 + $0x48] sm:$0xff]
        %v514 = vld [vmem:[%s334 + $0x50] sm:$0xff]
        %v515 = vld [vmem:[%s334 + $0x58] sm:$0xff]
        %v516 = vld [vmem:[%s334 + $0x60] sm:$0xff]
        %v517 = vld [vmem:[%s334 + $0x68] sm:$0xff]
        %v518 = vld [vmem:[%s334 + $0x70] sm:$0xff]
        %v519 = vld [vmem:[%s334 + $0x78] sm:$0xff]
        %v520 = vld [vmem:[%s334 + $0x80] sm:$0xff]
        %v521 = vld [vmem:[%s334 + $0x88] sm:$0xff]
        %v522 = vld [vmem:[%s334 + $0x90] sm:$0xff]
        %v523 = vld [vmem:[%s334 + $0x98] sm:$0xff]
        %v524 = vld [vmem:[%s334 + $0xa0] sm:$0xff]
        %v525 = vld [vmem:[%s334 + $0xa8] sm:$0xff]
        %v526 = vld [vmem:[%s334 + $0xb0] sm:$0xff]
        %v527 = vld [vmem:[%s334 + $0xb8] sm:$0xff]
        %v528 = vld [vmem:[%s334 + $0xc0] sm:$0xff]
        %v529 = vld [vmem:[%s334 + $0xc8] sm:$0xff]
        %v530 = vld [vmem:[%s334 + $0xd0] sm:$0xff]
        %v531 = vld [vmem:[%s334 + $0xd8] sm:$0xff]
        %v532 = vld [vmem:[%s334 + $0xe0] sm:$0xff]
        %v533 = vld [vmem:[%s334 + $0xe8] sm:$0xff]
        %v534 = vld [vmem:[%s334 + $0xf0] sm:$0xff]
        %v535 = vld [vmem:[%s334 + $0xf8] sm:$0xff]
        %v568 = vunpack.c.l.b16 %v504
        %v569 = vunpack.c.h.b16 %v504
        %v570 = vunpack.c.l.b16 %v505
        %v571 = vunpack.c.h.b16 %v505
        %v572 = vunpack.c.l.b16 %v506
        %v573 = vunpack.c.h.b16 %v506
        %v574 = vunpack.c.l.b16 %v507
        %v575 = vunpack.c.h.b16 %v507
        %v576 = vunpack.c.l.b16 %v508
        %v577 = vunpack.c.h.b16 %v508
        %v578 = vunpack.c.l.b16 %v509
        %v579 = vunpack.c.h.b16 %v509
        %v580 = vunpack.c.l.b16 %v510
        %v581 = vunpack.c.h.b16 %v510
        %v582 = vunpack.c.l.b16 %v511
        %v583 = vunpack.c.h.b16 %v511
        %v584 = vunpack.c.l.b16 %v512
        %v585 = vunpack.c.h.b16 %v512
        %v586 = vunpack.c.l.b16 %v513
        %v587 = vunpack.c.h.b16 %v513
        %v588 = vunpack.c.l.b16 %v514
        %v589 = vunpack.c.h.b16 %v514
        %v590 = vunpack.c.l.b16 %v515
        %v591 = vunpack.c.h.b16 %v515
        %v592 = vunpack.c.l.b16 %v516
        %v593 = vunpack.c.h.b16 %v516
        %v594 = vunpack.c.l.b16 %v517
        %v595 = vunpack.c.h.b16 %v517
        %v596 = vunpack.c.l.b16 %v518
        %v597 = vunpack.c.h.b16 %v518
        %v598 = vunpack.c.l.b16 %v519
        %v599 = vunpack.c.h.b16 %v519
        %v600 = vunpack.c.l.b16 %v520
        %v601 = vunpack.c.h.b16 %v520
        %v602 = vunpack.c.l.b16 %v521
        %v603 = vunpack.c.h.b16 %v521
        %v604 = vunpack.c.l.b16 %v522
        %v605 = vunpack.c.h.b16 %v522
        %v606 = vunpack.c.l.b16 %v523
        %v607 = vunpack.c.h.b16 %v523
        %v608 = vunpack.c.l.b16 %v524
        %v609 = vunpack.c.h.b16 %v524
        %v610 = vunpack.c.l.b16 %v525
        %v611 = vunpack.c.h.b16 %v525
        %v612 = vunpack.c.l.b16 %v526
        %v613 = vunpack.c.h.b16 %v526
        %v614 = vunpack.c.l.b16 %v527
        %v615 = vunpack.c.h.b16 %v527
        %v616 = vunpack.c.l.b16 %v528
        %v617 = vunpack.c.h.b16 %v528
        %v618 = vunpack.c.l.b16 %v529
        %v619 = vunpack.c.h.b16 %v529
        %v620 = vunpack.c.l.b16 %v530
        %v621 = vunpack.c.h.b16 %v530
        %v622 = vunpack.c.l.b16 %v531
        %v623 = vunpack.c.h.b16 %v531
        %v624 = vunpack.c.l.b16 %v532
        %v625 = vunpack.c.h.b16 %v532
        %v626 = vunpack.c.l.b16 %v533
        %v627 = vunpack.c.h.b16 %v533
        %v628 = vunpack.c.l.b16 %v534
        %v629 = vunpack.c.h.b16 %v534
        %v630 = vunpack.c.l.b16 %v535
        %v631 = vunpack.c.h.b16 %v535
        %v632 = vpack.c.b16 %v572, %v568
        %v633 = vpack.c.b16 %v573, %v569
        %v634 = vpack.c.b16 %v574, %v570
        %v635 = vpack.c.b16 %v575, %v571
        %v636 = vpack.c.b16 %v580, %v576
        %v637 = vpack.c.b16 %v581, %v577
        %v638 = vpack.c.b16 %v582, %v578
        %v639 = vpack.c.b16 %v583, %v579
        %v640 = vpack.c.b16 %v588, %v584
        %v641 = vpack.c.b16 %v589, %v585
        %v642 = vpack.c.b16 %v590, %v586
        %v643 = vpack.c.b16 %v591, %v587
        %v644 = vpack.c.b16 %v596, %v592
        %v645 = vpack.c.b16 %v597, %v593
        %v646 = vpack.c.b16 %v598, %v594
        %v647 = vpack.c.b16 %v599, %v595
        %v648 = vpack.c.b16 %v604, %v600
        %v649 = vpack.c.b16 %v605, %v601
        %v650 = vpack.c.b16 %v606, %v602
        %v651 = vpack.c.b16 %v607, %v603
        %v652 = vpack.c.b16 %v612, %v608
        %v653 = vpack.c.b16 %v613, %v609
        %v654 = vpack.c.b16 %v614, %v610
        %v655 = vpack.c.b16 %v615, %v611
        %v656 = vpack.c.b16 %v620, %v616
        %v657 = vpack.c.b16 %v621, %v617
        %v658 = vpack.c.b16 %v622, %v618
        %v659 = vpack.c.b16 %v623, %v619
        %v660 = vpack.c.b16 %v628, %v624
        %v661 = vpack.c.b16 %v629, %v625
        %v662 = vpack.c.b16 %v630, %v626
        %v663 = vpack.c.b16 %v631, %v627
        %696 = vmatpush.bf16.msra.mxu0 %v660
        %697 = vmatpush.bf16.msra.mxu0 %v656
        %698 = vmatpush.bf16.msra.mxu0 %v652
        %699 = vmatpush.bf16.msra.mxu0 %v648
        %700 = vmatpush.bf16.msra.mxu0 %v644
        %701 = vmatpush.bf16.msra.mxu0 %v640
        %702 = vmatpush.bf16.msra.mxu0 %v636
        %703 = vmatpush.bf16.msra.mxu0 %v632
        %704 = vmatmul.bf16.gmra.mxu0 %v494
        %v705 = vpop.f32.mrf.mxu0
        %v706 = vadd.f32 0.0, %v705
        %v707 = vpop.f32.mrf.mxu0
        %v708 = vadd.f32 0.0, %v707
        %709 = vmatmul.bf16.gmra.mxu0 %v495
        %v710 = vpop.f32.mrf.mxu0
        %v711 = vadd.f32 0.0, %v710
        %v712 = vpop.f32.mrf.mxu0
        %v713 = vadd.f32 0.0, %v712
        %714 = vmatmul.bf16.gmra.mxu0 %v496
        %v715 = vpop.f32.mrf.mxu0
        %v716 = vadd.f32 0.0, %v715
        %v717 = vpop.f32.mrf.mxu0
        %v718 = vadd.f32 0.0, %v717
        %719 = vmatmul.bf16.gmra.mxu0 %v497
        %v720 = vpop.f32.mrf.mxu0
        %v721 = vadd.f32 0.0, %v720
        %v722 = vpop.f32.mrf.mxu0
        %v723 = vadd.f32 0.0, %v722
        %724 = vmatmul.bf16.gmra.mxu0 %v498
        %v725 = vpop.f32.mrf.mxu0
        %v726 = vadd.f32 0.0, %v725
        %v727 = vpop.f32.mrf.mxu0
        %v728 = vadd.f32 0.0, %v727
        %729 = vmatmul.bf16.gmra.mxu0 %v499
        %v730 = vpop.f32.mrf.mxu0
        %v731 = vadd.f32 0.0, %v730
        %v732 = vpop.f32.mrf.mxu0
        %v733 = vadd.f32 0.0, %v732
        %734 = vmatmul.bf16.gmra.mxu0 %v500
        %v735 = vpop.f32.mrf.mxu0
        %v736 = vadd.f32 0.0, %v735
        %v737 = vpop.f32.mrf.mxu0
        %v738 = vadd.f32 0.0, %v737
        %739 = vmatmul.bf16.gmra.mxu0 %v501
        %v740 = vpop.f32.mrf.mxu0
        %v741 = vadd.f32 0.0, %v740
        %v742 = vpop.f32.mrf.mxu0
        %v743 = vadd.f32 0.0, %v742
        %744 = vmatmul.bf16.gmra.mxu0 %v502
        %v745 = vpop.f32.mrf.mxu0
        %v746 = vadd.f32 0.0, %v745
        %v747 = vpop.f32.mrf.mxu0
        %v748 = vadd.f32 0.0, %v747
        %749 = vmatmul.bf16.gmra.mxu0 %v503
        %v750 = vpop.f32.mrf.mxu0
        %v751 = vadd.f32 0.0, %v750
        %v752 = vpop.f32.mrf.mxu0
        %753 = vdwg.mxu0
        %754 = vmatpush.bf16.msra.mxu0 %v661
        %755 = vmatpush.bf16.msra.mxu0 %v657
        %756 = vmatpush.bf16.msra.mxu0 %v653
        %757 = vmatpush.bf16.msra.mxu0 %v649
        %758 = vmatpush.bf16.msra.mxu0 %v645
        %759 = vmatpush.bf16.msra.mxu0 %v641
        %760 = vmatpush.bf16.msra.mxu0 %v637
        %761 = vmatpush.bf16.msra.mxu0 %v633
        %762 = vmatmul.bf16.gmra.mxu0 %v494
        %v763 = vpop.f32.mrf.mxu0
        %v764 = vadd.f32 0.0, %v763
        %v765 = vpop.f32.mrf.mxu0
        %v766 = vadd.f32 0.0, %v765
        %767 = vmatmul.bf16.gmra.mxu0 %v495
        %v768 = vpop.f32.mrf.mxu0
        %v769 = vadd.f32 0.0, %v768
        %v770 = vpop.f32.mrf.mxu0
        %v771 = vadd.f32 0.0, %v770
        %772 = vmatmul.bf16.gmra.mxu0 %v496
        %v773 = vpop.f32.mrf.mxu0
        %v774 = vadd.f32 0.0, %v773
        %v775 = vpop.f32.mrf.mxu0
        %v776 = vadd.f32 0.0, %v775
        %777 = vmatmul.bf16.gmra.mxu0 %v497
        %v778 = vpop.f32.mrf.mxu0
        %v779 = vadd.f32 0.0, %v778
        %v780 = vpop.f32.mrf.mxu0
        %v781 = vadd.f32 0.0, %v780
        %782 = vmatmul.bf16.gmra.mxu0 %v498
        %v783 = vpop.f32.mrf.mxu0
        %v784 = vadd.f32 0.0, %v783
        %v785 = vpop.f32.mrf.mxu0
        %v786 = vadd.f32 0.0, %v785
        %787 = vmatmul.bf16.gmra.mxu0 %v499
        %v788 = vpop.f32.mrf.mxu0
        %v789 = vadd.f32 0.0, %v788
        %v790 = vpop.f32.mrf.mxu0
        %v791 = vadd.f32 0.0, %v790
        %792 = vmatmul.bf16.gmra.mxu0 %v500
        %v793 = vpop.f32.mrf.mxu0
        %v794 = vadd.f32 0.0, %v793
        %v795 = vpop.f32.mrf.mxu0
        %v796 = vadd.f32 0.0, %v795
        %797 = vmatmul.bf16.gmra.mxu0 %v501
        %v798 = vpop.f32.mrf.mxu0
        %v799 = vadd.f32 0.0, %v798
        %v800 = vpop.f32.mrf.mxu0
        %v801 = vadd.f32 0.0, %v800
        %802 = vmatmul.bf16.gmra.mxu0 %v502
        %v803 = vpop.f32.mrf.mxu0
        %v804 = vadd.f32 0.0, %v803
        %v805 = vpop.f32.mrf.mxu0
        %v806 = vadd.f32 0.0, %v805
        %807 = vmatmul.bf16.gmra.mxu0 %v503
        %v808 = vpop.f32.mrf.mxu0
        %v809 = vadd.f32 0.0, %v808
        %v810 = vpop.f32.mrf.mxu0
        %811 = vdwg.mxu0
        %812 = vmatpush.bf16.msra.mxu0 %v662
        %813 = vmatpush.bf16.msra.mxu0 %v658
        %814 = vmatpush.bf16.msra.mxu0 %v654
        %815 = vmatpush.bf16.msra.mxu0 %v650
        %816 = vmatpush.bf16.msra.mxu0 %v646
        %817 = vmatpush.bf16.msra.mxu0 %v642
        %818 = vmatpush.bf16.msra.mxu0 %v638
        %819 = vmatpush.bf16.msra.mxu0 %v634
        %820 = vmatmul.bf16.gmra.mxu0 %v494
        %v821 = vpop.f32.mrf.mxu0
        %v822 = vadd.f32 0.0, %v821
        %v823 = vpop.f32.mrf.mxu0
        %v824 = vadd.f32 0.0, %v823
        %825 = vmatmul.bf16.gmra.mxu0 %v495
        %v826 = vpop.f32.mrf.mxu0
        %v827 = vadd.f32 0.0, %v826
        %v828 = vpop.f32.mrf.mxu0
        %v829 = vadd.f32 0.0, %v828
        %830 = vmatmul.bf16.gmra.mxu0 %v496
        %v831 = vpop.f32.mrf.mxu0
        %v832 = vadd.f32 0.0, %v831
        %v833 = vpop.f32.mrf.mxu0
        %v834 = vadd.f32 0.0, %v833
        %835 = vmatmul.bf16.gmra.mxu0 %v497
        %v836 = vpop.f32.mrf.mxu0
        %v837 = vadd.f32 0.0, %v836
        %v838 = vpop.f32.mrf.mxu0
        %v839 = vadd.f32 0.0, %v838
        %840 = vmatmul.bf16.gmra.mxu0 %v498
        %v841 = vpop.f32.mrf.mxu0
        %v842 = vadd.f32 0.0, %v841
        %v843 = vpop.f32.mrf.mxu0
        %v844 = vadd.f32 0.0, %v843
        %845 = vmatmul.bf16.gmra.mxu0 %v499
        %v846 = vpop.f32.mrf.mxu0
        %v847 = vadd.f32 0.0, %v846
        %v848 = vpop.f32.mrf.mxu0
        %v849 = vadd.f32 0.0, %v848
        %850 = vmatmul.bf16.gmra.mxu0 %v500
        %v851 = vpop.f32.mrf.mxu0
        %v852 = vadd.f32 0.0, %v851
        %v853 = vpop.f32.mrf.mxu0
        %v854 = vadd.f32 0.0, %v853
        %855 = vmatmul.bf16.gmra.mxu0 %v501
        %v856 = vpop.f32.mrf.mxu0
        %v857 = vadd.f32 0.0, %v856
        %v858 = vpop.f32.mrf.mxu0
        %v859 = vadd.f32 0.0, %v858
        %860 = vmatmul.bf16.gmra.mxu0 %v502
        %v861 = vpop.f32.mrf.mxu0
        %v862 = vadd.f32 0.0, %v861
        %v863 = vpop.f32.mrf.mxu0
        %v864 = vadd.f32 0.0, %v863
        %865 = vmatmul.bf16.gmra.mxu0 %v503
        %v866 = vpop.f32.mrf.mxu0
        %v867 = vadd.f32 0.0, %v866
        %v868 = vpop.f32.mrf.mxu0
        %869 = vdwg.mxu0
        %870 = vmatpush.bf16.msra.mxu0 %v663
        %871 = vmatpush.bf16.msra.mxu0 %v659
        %872 = vmatpush.bf16.msra.mxu0 %v655
        %873 = vmatpush.bf16.msra.mxu0 %v651
        %874 = vmatpush.bf16.msra.mxu0 %v647
        %875 = vmatpush.bf16.msra.mxu0 %v643
        %876 = vmatpush.bf16.msra.mxu0 %v639
        %877 = vmatpush.bf16.msra.mxu0 %v635
        %878 = vmatmul.bf16.gmra.mxu0 %v494
        %v879 = vpop.f32.mrf.mxu0
        %v880 = vadd.f32 0.0, %v879
        %v881 = vpop.f32.mrf.mxu0
        %v882 = vadd.f32 0.0, %v881
        %883 = vmatmul.bf16.gmra.mxu0 %v495
        %v884 = vpop.f32.mrf.mxu0
        %v885 = vadd.f32 0.0, %v884
        %v886 = vpop.f32.mrf.mxu0
        %v887 = vadd.f32 0.0, %v886
        %888 = vmatmul.bf16.gmra.mxu0 %v496
        %v889 = vpop.f32.mrf.mxu0
        %v890 = vadd.f32 0.0, %v889
        %v891 = vpop.f32.mrf.mxu0
        %v892 = vadd.f32 0.0, %v891
        %893 = vmatmul.bf16.gmra.mxu0 %v497
        %v894 = vpop.f32.mrf.mxu0
        %v895 = vadd.f32 0.0, %v894
        %v896 = vpop.f32.mrf.mxu0
        %v897 = vadd.f32 0.0, %v896
        %898 = vmatmul.bf16.gmra.mxu0 %v498
        %v899 = vpop.f32.mrf.mxu0
        %v900 = vadd.f32 0.0, %v899
        %v901 = vpop.f32.mrf.mxu0
        %v902 = vadd.f32 0.0, %v901
        %903 = vmatmul.bf16.gmra.mxu0 %v499
        %v904 = vpop.f32.mrf.mxu0
        %v905 = vadd.f32 0.0, %v904
        %v906 = vpop.f32.mrf.mxu0
        %v907 = vadd.f32 0.0, %v906
        %908 = vmatmul.bf16.gmra.mxu0 %v500
        %v909 = vpop.f32.mrf.mxu0
        %v910 = vadd.f32 0.0, %v909
        %v911 = vpop.f32.mrf.mxu0
        %v912 = vadd.f32 0.0, %v911
        %913 = vmatmul.bf16.gmra.mxu0 %v501
        %v914 = vpop.f32.mrf.mxu0
        %v915 = vadd.f32 0.0, %v914
        %v916 = vpop.f32.mrf.mxu0
        %v917 = vadd.f32 0.0, %v916
        %918 = vmatmul.bf16.gmra.mxu0 %v502
        %v919 = vpop.f32.mrf.mxu0
        %v920 = vadd.f32 0.0, %v919
        %v921 = vpop.f32.mrf.mxu0
        %v922 = vadd.f32 0.0, %v921
        %923 = vmatmul.bf16.gmra.mxu0 %v503
        %v924 = vpop.f32.mrf.mxu0
        %v925 = vadd.f32 0.0, %v924
        %v926 = vpop.f32.mrf.mxu0
        %927 = vdwg.mxu0
        %v928 = vld [vmem:[%s354] sm:$0xf]
        %v930 = vperm.slane %v928, 0
        %v931 = vperm.slane %v928, 1
        %v932 = vperm.slane %v928, 2
        %v933 = vperm.slane %v928, 3
        %v938 = vadd.f32 %v706, %v930
        %v939 = vadd.f32 %v764, %v931
        %v940 = vadd.f32 %v822, %v932
        %v941 = vadd.f32 %v880, %v933
        %v942 = vadd.f32 %v708, %v930
        %v943 = vadd.f32 %v766, %v931
        %v944 = vadd.f32 %v824, %v932
        %v945 = vadd.f32 %v882, %v933
        %v946 = vadd.f32 %v711, %v930
        %v947 = vadd.f32 %v769, %v931
        %v948 = vadd.f32 %v827, %v932
        %v949 = vadd.f32 %v885, %v933
        %v950 = vadd.f32 %v713, %v930
        %v951 = vadd.f32 %v771, %v931
        %v952 = vadd.f32 %v829, %v932
        %v953 = vadd.f32 %v887, %v933
        %v954 = vadd.f32 %v716, %v930
        %v955 = vadd.f32 %v774, %v931
        %v956 = vadd.f32 %v832, %v932
        %v957 = vadd.f32 %v890, %v933
        %v958 = vadd.f32 %v718, %v930
        %v959 = vadd.f32 %v776, %v931
        %v960 = vadd.f32 %v834, %v932
        %v961 = vadd.f32 %v892, %v933
        %v962 = vadd.f32 %v721, %v930
        %v963 = vadd.f32 %v779, %v931
        %v964 = vadd.f32 %v837, %v932
        %v965 = vadd.f32 %v895, %v933
        %v966 = vadd.f32 %v723, %v930
        %v967 = vadd.f32 %v781, %v931
        %v968 = vadd.f32 %v839, %v932
        %v969 = vadd.f32 %v897, %v933
        %v970 = vadd.f32 %v726, %v930
        %v971 = vadd.f32 %v784, %v931
        %v972 = vadd.f32 %v842, %v932
        %v973 = vadd.f32 %v900, %v933
        %v974 = vadd.f32 %v728, %v930
        %v975 = vadd.f32 %v786, %v931
        %v976 = vadd.f32 %v844, %v932
        %v977 = vadd.f32 %v902, %v933
        %v978 = vadd.f32 %v731, %v930
        %v979 = vadd.f32 %v789, %v931
        %v980 = vadd.f32 %v847, %v932
        %v981 = vadd.f32 %v905, %v933
        %v982 = vadd.f32 %v733, %v930
        %v983 = vadd.f32 %v791, %v931
        %v984 = vadd.f32 %v849, %v932
        %v985 = vadd.f32 %v907, %v933
        %v986 = vadd.f32 %v736, %v930
        %v987 = vadd.f32 %v794, %v931
        %v988 = vadd.f32 %v852, %v932
        %v989 = vadd.f32 %v910, %v933
        %v990 = vadd.f32 %v738, %v930
        %v991 = vadd.f32 %v796, %v931
        %v992 = vadd.f32 %v854, %v932
        %v993 = vadd.f32 %v912, %v933
        %v994 = vadd.f32 %v741, %v930
        %v995 = vadd.f32 %v799, %v931
        %v996 = vadd.f32 %v857, %v932
        %v997 = vadd.f32 %v915, %v933
        %v998 = vadd.f32 %v743, %v930
        %v999 = vadd.f32 %v801, %v931
        %v1000 = vadd.f32 %v859, %v932
        %v1001 = vadd.f32 %v917, %v933
        %v1002 = vadd.f32 %v746, %v930
        %v1003 = vadd.f32 %v804, %v931
        %v1004 = vadd.f32 %v862, %v932
        %v1005 = vadd.f32 %v920, %v933
        %v1006 = vadd.f32 %v748, %v930
        %v1007 = vadd.f32 %v806, %v931
        %v1008 = vadd.f32 %v864, %v932
        %v1009 = vadd.f32 %v922, %v933
        %v1010 = vadd.f32 %v751, %v930
        %v1011 = vadd.f32 %v809, %v931
        %v1012 = vadd.f32 %v867, %v932
        %v1013 = vadd.f32 %v925, %v933
        %1014 = vst [vmem:[#allocation3] sm:$0xff] %v938
        %1015 = vst [vmem:[#allocation3 + $0x8] sm:$0xff] %v939
        %1016 = vst [vmem:[#allocation3 + $0x10] sm:$0xff] %v940
        %1017 = vst [vmem:[#allocation3 + $0x18] sm:$0xff] %v941
        %1018 = vst [vmem:[#allocation3 + $0x20] sm:$0xff] %v942
        %1019 = vst [vmem:[#allocation3 + $0x28] sm:$0xff] %v943
        %1020 = vst [vmem:[#allocation3 + $0x30] sm:$0xff] %v944
        %1021 = vst [vmem:[#allocation3 + $0x38] sm:$0xff] %v945
        %1022 = vst [vmem:[#allocation3 + $0x40] sm:$0xff] %v946
        %1023 = vst [vmem:[#allocation3 + $0x48] sm:$0xff] %v947
        %1024 = vst [vmem:[#allocation3 + $0x50] sm:$0xff] %v948
        %1025 = vst [vmem:[#allocation3 + $0x58] sm:$0xff] %v949
        %1026 = vst [vmem:[#allocation3 + $0x60] sm:$0xff] %v950
        %1027 = vst [vmem:[#allocation3 + $0x68] sm:$0xff] %v951
        %1028 = vst [vmem:[#allocation3 + $0x70] sm:$0xff] %v952
        %1029 = vst [vmem:[#allocation3 + $0x78] sm:$0xff] %v953
        %1030 = vst [vmem:[#allocation3 + $0x80] sm:$0xff] %v954
        %1031 = vst [vmem:[#allocation3 + $0x88] sm:$0xff] %v955
        %1032 = vst [vmem:[#allocation3 + $0x90] sm:$0xff] %v956
        %1033 = vst [vmem:[#allocation3 + $0x98] sm:$0xff] %v957
        %1034 = vst [vmem:[#allocation3 + $0xa0] sm:$0xff] %v958
        %1035 = vst [vmem:[#allocation3 + $0xa8] sm:$0xff] %v959
        %1036 = vst [vmem:[#allocation3 + $0xb0] sm:$0xff] %v960
        %1037 = vst [vmem:[#allocation3 + $0xb8] sm:$0xff] %v961
        %1038 = vst [vmem:[#allocation3 + $0xc0] sm:$0xff] %v962
        %1039 = vst [vmem:[#allocation3 + $0xc8] sm:$0xff] %v963
        %1040 = vst [vmem:[#allocation3 + $0xd0] sm:$0xff] %v964
        %1041 = vst [vmem:[#allocation3 + $0xd8] sm:$0xff] %v965
        %1042 = vst [vmem:[#allocation3 + $0xe0] sm:$0xff] %v966
        %1043 = vst [vmem:[#allocation3 + $0xe8] sm:$0xff] %v967
        %1044 = vst [vmem:[#allocation3 + $0xf0] sm:$0xff] %v968
        %1045 = vst [vmem:[#allocation3 + $0xf8] sm:$0xff] %v969
        %1046 = vst [vmem:[#allocation3 + $0x100] sm:$0xff] %v970
        %1047 = vst [vmem:[#allocation3 + $0x108] sm:$0xff] %v971
        %1048 = vst [vmem:[#allocation3 + $0x110] sm:$0xff] %v972
        %1049 = vst [vmem:[#allocation3 + $0x118] sm:$0xff] %v973
        %1050 = vst [vmem:[#allocation3 + $0x120] sm:$0xff] %v974
        %1051 = vst [vmem:[#allocation3 + $0x128] sm:$0xff] %v975
        %1052 = vst [vmem:[#allocation3 + $0x130] sm:$0xff] %v976
        %1053 = vst [vmem:[#allocation3 + $0x138] sm:$0xff] %v977
        %1054 = vst [vmem:[#allocation3 + $0x140] sm:$0xff] %v978
        %1055 = vst [vmem:[#allocation3 + $0x148] sm:$0xff] %v979
        %1056 = vst [vmem:[#allocation3 + $0x150] sm:$0xff] %v980
        %1057 = vst [vmem:[#allocation3 + $0x158] sm:$0xff] %v981
        %1058 = vst [vmem:[#allocation3 + $0x160] sm:$0xff] %v982
        %1059 = vst [vmem:[#allocation3 + $0x168] sm:$0xff] %v983
        %1060 = vst [vmem:[#allocation3 + $0x170] sm:$0xff] %v984
        %1061 = vst [vmem:[#allocation3 + $0x178] sm:$0xff] %v985
        %1062 = vst [vmem:[#allocation3 + $0x180] sm:$0xff] %v986
        %1063 = vst [vmem:[#allocation3 + $0x188] sm:$0xff] %v987
        %1064 = vst [vmem:[#allocation3 + $0x190] sm:$0xff] %v988
        %1065 = vst [vmem:[#allocation3 + $0x198] sm:$0xff] %v989
        %1066 = vst [vmem:[#allocation3 + $0x1a0] sm:$0xff] %v990
        %1067 = vst [vmem:[#allocation3 + $0x1a8] sm:$0xff] %v991
        %1068 = vst [vmem:[#allocation3 + $0x1b0] sm:$0xff] %v992
        %1069 = vst [vmem:[#allocation3 + $0x1b8] sm:$0xff] %v993
        %1070 = vst [vmem:[#allocation3 + $0x1c0] sm:$0xff] %v994
        %1071 = vst [vmem:[#allocation3 + $0x1c8] sm:$0xff] %v995
        %1072 = vst [vmem:[#allocation3 + $0x1d0] sm:$0xff] %v996
        %1073 = vst [vmem:[#allocation3 + $0x1d8] sm:$0xff] %v997
        %1074 = vst [vmem:[#allocation3 + $0x1e0] sm:$0xff] %v998
        %1075 = vst [vmem:[#allocation3 + $0x1e8] sm:$0xff] %v999
        %1076 = vst [vmem:[#allocation3 + $0x1f0] sm:$0xff] %v1000
        %1077 = vst [vmem:[#allocation3 + $0x1f8] sm:$0xff] %v1001
        %1078 = vst [vmem:[#allocation3 + $0x200] sm:$0xff] %v1002
        %1079 = vst [vmem:[#allocation3 + $0x208] sm:$0xff] %v1003
        %1080 = vst [vmem:[#allocation3 + $0x210] sm:$0xff] %v1004
        %1081 = vst [vmem:[#allocation3 + $0x218] sm:$0xff] %v1005
        %1082 = vst [vmem:[#allocation3 + $0x220] sm:$0xff] %v1006
        %1083 = vst [vmem:[#allocation3 + $0x228] sm:$0xff] %v1007
        %1084 = vst [vmem:[#allocation3 + $0x230] sm:$0xff] %v1008
        %1085 = vst [vmem:[#allocation3 + $0x238] sm:$0xff] %v1009
        %1086 = vst [vmem:[#allocation3 + $0x240] sm:$0xff] %v1010
        %1087 = vst [vmem:[#allocation3 + $0x248] sm:$0xff] %v1011
        %1088 = vst [vmem:[#allocation3 + $0x250] sm:$0xff] %v1012
        %1089 = vst [vmem:[#allocation3 + $0x258] sm:$0xff] %v1013
        %v1090 = vld [vmem:[#allocation4] sm:$0xff]
        %v1091 = vld [vmem:[#allocation5] sm:$0xff]
        %v1092 = vld [vmem:[#allocation3] sm:$0xff]
        %v1093 = vld [vmem:[#allocation3 + $0x8] sm:$0xff]
        %v1094 = vld [vmem:[#allocation3 + $0x10] sm:$0xff]
        %v1095 = vld [vmem:[#allocation3 + $0x18] sm:$0xff]
        %v1096 = vpack.c.bf16 %v1090, %v1090
        %v1097 = vld [vmem:[%s344] sm:$0xff]
        %v1098 = vld [vmem:[%s344 + $0x8] sm:$0xff]
        %v1099 = vld [vmem:[%s344 + $0x10] sm:$0xff]
        %v1100 = vld [vmem:[%s344 + $0x18] sm:$0xff]
        %v1101 = vld [vmem:[%s344 + $0x20] sm:$0xff]
        %v1102 = vld [vmem:[%s344 + $0x28] sm:$0xff]
        %v1103 = vld [vmem:[%s344 + $0x30] sm:$0xff]
        %v1104 = vld [vmem:[%s344 + $0x38] sm:$0xff]
        %v1105 = vld [vmem:[%s344 + $0x40] sm:$0xff]
        %v1106 = vld [vmem:[%s344 + $0x48] sm:$0xff]
        %v1107 = vld [vmem:[%s344 + $0x50] sm:$0xff]
        %v1108 = vld [vmem:[%s344 + $0x58] sm:$0xff]
        %v1109 = vld [vmem:[%s344 + $0x60] sm:$0xff]
        %v1110 = vld [vmem:[%s344 + $0x68] sm:$0xff]
        %v1111 = vld [vmem:[%s344 + $0x70] sm:$0xff]
        %v1112 = vld [vmem:[%s344 + $0x78] sm:$0xff]
        %v1113 = vld [vmem:[%s344 + $0x80] sm:$0xff]
        %v1114 = vld [vmem:[%s344 + $0x88] sm:$0xff]
        %v1115 = vld [vmem:[%s344 + $0x90] sm:$0xff]
        %v1116 = vld [vmem:[%s344 + $0x98] sm:$0xff]
        %v1117 = vld [vmem:[%s344 + $0xa0] sm:$0xff]
        %v1118 = vld [vmem:[%s344 + $0xa8] sm:$0xff]
        %v1119 = vld [vmem:[%s344 + $0xb0] sm:$0xff]
        %v1120 = vld [vmem:[%s344 + $0xb8] sm:$0xff]
        %v1121 = vld [vmem:[%s344 + $0xc0] sm:$0xff]
        %v1122 = vld [vmem:[%s344 + $0xc8] sm:$0xff]
        %v1123 = vld [vmem:[%s344 + $0xd0] sm:$0xff]
        %v1124 = vld [vmem:[%s344 + $0xd8] sm:$0xff]
        %v1125 = vld [vmem:[%s344 + $0xe0] sm:$0xff]
        %v1126 = vld [vmem:[%s344 + $0xe8] sm:$0xff]
        %v1127 = vld [vmem:[%s344 + $0xf0] sm:$0xff]
        %v1128 = vld [vmem:[%s344 + $0xf8] sm:$0xff]
        %v1161 = vunpack.c.l.b16 %v1097
        %v1162 = vunpack.c.h.b16 %v1097
        %v1163 = vunpack.c.l.b16 %v1098
        %v1164 = vunpack.c.h.b16 %v1098
        %v1165 = vunpack.c.l.b16 %v1099
        %v1166 = vunpack.c.h.b16 %v1099
        %v1167 = vunpack.c.l.b16 %v1100
        %v1168 = vunpack.c.h.b16 %v1100
        %v1169 = vunpack.c.l.b16 %v1101
        %v1170 = vunpack.c.h.b16 %v1101
        %v1171 = vunpack.c.l.b16 %v1102
        %v1172 = vunpack.c.h.b16 %v1102
        %v1173 = vunpack.c.l.b16 %v1103
        %v1174 = vunpack.c.h.b16 %v1103
        %v1175 = vunpack.c.l.b16 %v1104
        %v1176 = vunpack.c.h.b16 %v1104
        %v1177 = vunpack.c.l.b16 %v1105
        %v1178 = vunpack.c.h.b16 %v1105
        %v1179 = vunpack.c.l.b16 %v1106
        %v1180 = vunpack.c.h.b16 %v1106
        %v1181 = vunpack.c.l.b16 %v1107
        %v1182 = vunpack.c.h.b16 %v1107
        %v1183 = vunpack.c.l.b16 %v1108
        %v1184 = vunpack.c.h.b16 %v1108
        %v1185 = vunpack.c.l.b16 %v1109
        %v1186 = vunpack.c.h.b16 %v1109
        %v1187 = vunpack.c.l.b16 %v1110
        %v1188 = vunpack.c.h.b16 %v1110
        %v1189 = vunpack.c.l.b16 %v1111
        %v1190 = vunpack.c.h.b16 %v1111
        %v1191 = vunpack.c.l.b16 %v1112
        %v1192 = vunpack.c.h.b16 %v1112
        %v1193 = vunpack.c.l.b16 %v1113
        %v1194 = vunpack.c.h.b16 %v1113
        %v1195 = vunpack.c.l.b16 %v1114
        %v1196 = vunpack.c.h.b16 %v1114
        %v1197 = vunpack.c.l.b16 %v1115
        %v1198 = vunpack.c.h.b16 %v1115
        %v1199 = vunpack.c.l.b16 %v1116
        %v1200 = vunpack.c.h.b16 %v1116
        %v1201 = vunpack.c.l.b16 %v1117
        %v1202 = vunpack.c.h.b16 %v1117
        %v1203 = vunpack.c.l.b16 %v1118
        %v1204 = vunpack.c.h.b16 %v1118
        %v1205 = vunpack.c.l.b16 %v1119
        %v1206 = vunpack.c.h.b16 %v1119
        %v1207 = vunpack.c.l.b16 %v1120
        %v1208 = vunpack.c.h.b16 %v1120
        %v1209 = vunpack.c.l.b16 %v1121
        %v1210 = vunpack.c.h.b16 %v1121
        %v1211 = vunpack.c.l.b16 %v1122
        %v1212 = vunpack.c.h.b16 %v1122
        %v1213 = vunpack.c.l.b16 %v1123
        %v1214 = vunpack.c.h.b16 %v1123
        %v1215 = vunpack.c.l.b16 %v1124
        %v1216 = vunpack.c.h.b16 %v1124
        %v1217 = vunpack.c.l.b16 %v1125
        %v1218 = vunpack.c.h.b16 %v1125
        %v1219 = vunpack.c.l.b16 %v1126
        %v1220 = vunpack.c.h.b16 %v1126
        %v1221 = vunpack.c.l.b16 %v1127
        %v1222 = vunpack.c.h.b16 %v1127
        %v1223 = vunpack.c.l.b16 %v1128
        %v1224 = vunpack.c.h.b16 %v1128
        %v1225 = vpack.c.b16 %v1165, %v1161
        %v1226 = vpack.c.b16 %v1166, %v1162
        %v1227 = vpack.c.b16 %v1167, %v1163
        %v1228 = vpack.c.b16 %v1168, %v1164
        %v1229 = vpack.c.b16 %v1173, %v1169
        %v1230 = vpack.c.b16 %v1174, %v1170
        %v1231 = vpack.c.b16 %v1175, %v1171
        %v1232 = vpack.c.b16 %v1176, %v1172
        %v1233 = vpack.c.b16 %v1181, %v1177
        %v1234 = vpack.c.b16 %v1182, %v1178
        %v1235 = vpack.c.b16 %v1183, %v1179
        %v1236 = vpack.c.b16 %v1184, %v1180
        %v1237 = vpack.c.b16 %v1189, %v1185
        %v1238 = vpack.c.b16 %v1190, %v1186
        %v1239 = vpack.c.b16 %v1191, %v1187
        %v1240 = vpack.c.b16 %v1192, %v1188
        %v1241 = vpack.c.b16 %v1197, %v1193
        %v1242 = vpack.c.b16 %v1198, %v1194
        %v1243 = vpack.c.b16 %v1199, %v1195
        %v1244 = vpack.c.b16 %v1200, %v1196
        %v1245 = vpack.c.b16 %v1205, %v1201
        %v1246 = vpack.c.b16 %v1206, %v1202
        %v1247 = vpack.c.b16 %v1207, %v1203
        %v1248 = vpack.c.b16 %v1208, %v1204
        %v1249 = vpack.c.b16 %v1213, %v1209
        %v1250 = vpack.c.b16 %v1214, %v1210
        %v1251 = vpack.c.b16 %v1215, %v1211
        %v1252 = vpack.c.b16 %v1216, %v1212
        %v1253 = vpack.c.b16 %v1221, %v1217
        %v1254 = vpack.c.b16 %v1222, %v1218
        %v1255 = vpack.c.b16 %v1223, %v1219
        %v1256 = vpack.c.b16 %v1224, %v1220
        %1289 = vmatpush.bf16.msra.mxu0 %v1253
        %1290 = vmatpush.bf16.msra.mxu0 %v1249
        %1291 = vmatpush.bf16.msra.mxu0 %v1245
        %1292 = vmatpush.bf16.msra.mxu0 %v1241
        %1293 = vmatpush.bf16.msra.mxu0 %v1237
        %1294 = vmatpush.bf16.msra.mxu0 %v1233
        %1295 = vmatpush.bf16.msra.mxu0 %v1229
        %1296 = vmatpush.bf16.msra.mxu0 %v1225
        %1297 = vmatmul.bf16.gmra.mxu0 %v1096
        %v1298 = vpop.f32.mrf.mxu0
        %v1299 = vadd.f32 0.0, %v1298
        %v1300 = vpop.f32.mrf.mxu0
        %1301 = vdwg.mxu0
        %1302 = vmatpush.bf16.msra.mxu0 %v1254
        %1303 = vmatpush.bf16.msra.mxu0 %v1250
        %1304 = vmatpush.bf16.msra.mxu0 %v1246
        %1305 = vmatpush.bf16.msra.mxu0 %v1242
        %1306 = vmatpush.bf16.msra.mxu0 %v1238
        %1307 = vmatpush.bf16.msra.mxu0 %v1234
        %1308 = vmatpush.bf16.msra.mxu0 %v1230
        %1309 = vmatpush.bf16.msra.mxu0 %v1226
        %1310 = vmatmul.bf16.gmra.mxu0 %v1096
        %v1311 = vpop.f32.mrf.mxu0
        %v1312 = vadd.f32 0.0, %v1311
        %v1313 = vpop.f32.mrf.mxu0
        %1314 = vdwg.mxu0
        %1315 = vmatpush.bf16.msra.mxu0 %v1255
        %1316 = vmatpush.bf16.msra.mxu0 %v1251
        %1317 = vmatpush.bf16.msra.mxu0 %v1247
        %1318 = vmatpush.bf16.msra.mxu0 %v1243
        %1319 = vmatpush.bf16.msra.mxu0 %v1239
        %1320 = vmatpush.bf16.msra.mxu0 %v1235
        %1321 = vmatpush.bf16.msra.mxu0 %v1231
        %1322 = vmatpush.bf16.msra.mxu0 %v1227
        %1323 = vmatmul.bf16.gmra.mxu0 %v1096
        %v1324 = vpop.f32.mrf.mxu0
        %v1325 = vadd.f32 0.0, %v1324
        %v1326 = vpop.f32.mrf.mxu0
        %1327 = vdwg.mxu0
        %1328 = vmatpush.bf16.msra.mxu0 %v1256
        %1329 = vmatpush.bf16.msra.mxu0 %v1252
        %1330 = vmatpush.bf16.msra.mxu0 %v1248
        %1331 = vmatpush.bf16.msra.mxu0 %v1244
        %1332 = vmatpush.bf16.msra.mxu0 %v1240
        %1333 = vmatpush.bf16.msra.mxu0 %v1236
        %1334 = vmatpush.bf16.msra.mxu0 %v1232
        %1335 = vmatpush.bf16.msra.mxu0 %v1228
        %1336 = vmatmul.bf16.gmra.mxu0 %v1096
        %v1337 = vpop.f32.mrf.mxu0
        %v1338 = vadd.f32 0.0, %v1337
        %v1339 = vpop.f32.mrf.mxu0
        %1340 = vdwg.mxu0
        %v1341 = vadd.f32 %v1092, %v1299
        %v1342 = vadd.f32 %v1093, %v1312
        %v1343 = vadd.f32 %v1094, %v1325
        %v1344 = vadd.f32 %v1095, %v1338
        %v1345 = vxor.u32 %v1341, 2147483648
        %v1346 = vxor.u32 %v1342, 2147483648
        %v1347 = vxor.u32 %v1343, 2147483648
        %v1348 = vmul.f32 %v1345, 1.442695
        %v1349 = vpow.pop %v1348
        %v1350 = vmul.f32 %v1346, 1.442695
        %v1351 = vpow.pop %v1350
        %v1352 = vmul.f32 %v1347, 1.442695
        %v1353 = vpow.pop %v1352
        %v1354 = vadd.f32 %v1349, 1.0
        %v1355 = vadd.f32 %v1351, 1.0
        %v1356 = vadd.f32 %v1353, 1.0
        %v1357 = vrcp.pop %v1354
        %v1358 = vmul.f32 %v1354, %v1357
        %v1359 = vsub.f32 1.0, %v1358
        %v1360 = vmul.f32 %v1357, %v1359
        %v1361 = vadd.f32 %v1357, %v1360
        %vm1362 = vweird.f32 %v1354
        %vm1363 = vweird.f32 %v1357
        %vm1364 = vmor %vm1362, %vm1363
        %v1365 = vsel %vm1364, %v1357, %v1361
        %v1366 = vand.u32 2147483647, %v1354
        %vm1367 = vcmp.eq.f32.partialorder %v1366, 8.507059e+37
        %v1368 = vand.u32 %v1354, 2147483648
        %v1369 = vor.u32 1.1754944e-38, %v1368
        %v1370 = vsel %vm1367, %v1369, %v1365
        %v1371 = vmul.f32 1.0, %v1370
        %v1372 = vrcp.pop %v1355
        %v1373 = vmul.f32 %v1355, %v1372
        %v1374 = vsub.f32 1.0, %v1373
        %v1375 = vmul.f32 %v1372, %v1374
        %v1376 = vadd.f32 %v1372, %v1375
        %vm1377 = vweird.f32 %v1355
        %vm1378 = vweird.f32 %v1372
        %vm1379 = vmor %vm1377, %vm1378
        %v1380 = vsel %vm1379, %v1372, %v1376
        %v1381 = vand.u32 2147483647, %v1355
        %vm1382 = vcmp.eq.f32.partialorder %v1381, 8.507059e+37
        %v1383 = vand.u32 %v1355, 2147483648
        %v1384 = vor.u32 1.1754944e-38, %v1383
        %v1385 = vsel %vm1382, %v1384, %v1380
        %v1386 = vmul.f32 1.0, %v1385
        %v1387 = vrcp.pop %v1356
        %v1388 = vmul.f32 %v1356, %v1387
        %v1389 = vsub.f32 1.0, %v1388
        %v1390 = vmul.f32 %v1387, %v1389
        %v1391 = vadd.f32 %v1387, %v1390
        %vm1392 = vweird.f32 %v1356
        %vm1393 = vweird.f32 %v1387
        %vm1394 = vmor %vm1392, %vm1393
        %v1395 = vsel %vm1394, %v1387, %v1391
        %v1396 = vand.u32 2147483647, %v1356
        %vm1397 = vcmp.eq.f32.partialorder %v1396, 8.507059e+37
        %v1398 = vand.u32 %v1356, 2147483648
        %v1399 = vor.u32 1.1754944e-38, %v1398
        %v1400 = vsel %vm1397, %v1399, %v1395
        %v1401 = vmul.f32 1.0, %v1400
        %v1402 = vtanh.pop %v1344
        %v1403 = vmul.f32 %v1386, %v1091
        %v1404 = vmul.f32 %v1371, %v1402
        %v1405 = vadd.f32 %v1403, %v1404
        %v1406 = vtanh.pop %v1405
        %v1407 = vmul.f32 %v1401, %v1406
        %p1408 = scmp.lt.s32.totalorder %s403, 37
        %s1409 = scalar_select %p1408, 1, 0
        %v1410 = vstv %s1409
        %vm1411 = vcmp.eq.s32.totalorder %v1410, 1
        %v1412 = vsel %vm1411, %v1405, %v1091
        %v1413 = vsel %vm1411, %v1407, %v1090
        %1414 = vst [vmem:[%s474] sm:$0xff] %v1413
        %s1415 = scalar_lea.vmem [#allocation3], 32
        %v1416 = vld [vmem:[%s1415] sm:$0xff]
        %v1417 = vld [vmem:[%s1415 + $0x8] sm:$0xff]
        %v1418 = vld [vmem:[%s1415 + $0x10] sm:$0xff]
        %v1419 = vld [vmem:[%s1415 + $0x18] sm:$0xff]
        %v1420 = vpack.c.bf16 %v1413, %v1413
        %v1421 = vld [vmem:[%s344] sm:$0xff]
        %v1422 = vld [vmem:[%s344 + $0x8] sm:$0xff]
        %v1423 = vld [vmem:[%s344 + $0x10] sm:$0xff]
        %v1424 = vld [vmem:[%s344 + $0x18] sm:$0xff]
        %v1425 = vld [vmem:[%s344 + $0x20] sm:$0xff]
        %v1426 = vld [vmem:[%s344 + $0x28] sm:$0xff]
        %v1427 = vld [vmem:[%s344 + $0x30] sm:$0xff]
        %v1428 = vld [vmem:[%s344 + $0x38] sm:$0xff]
        %v1429 = vld [vmem:[%s344 + $0x40] sm:$0xff]
        %v1430 = vld [vmem:[%s344 + $0x48] sm:$0xff]
        %v1431 = vld [vmem:[%s344 + $0x50] sm:$0xff]
        %v1432 = vld [vmem:[%s344 + $0x58] sm:$0xff]
        %v1433 = vld [vmem:[%s344 + $0x60] sm:$0xff]
        %v1434 = vld [vmem:[%s344 + $0x68] sm:$0xff]
        %v1435 = vld [vmem:[%s344 + $0x70] sm:$0xff]
        %v1436 = vld [vmem:[%s344 + $0x78] sm:$0xff]
        %v1437 = vld [vmem:[%s344 + $0x80] sm:$0xff]
        %v1438 = vld [vmem:[%s344 + $0x88] sm:$0xff]
        %v1439 = vld [vmem:[%s344 + $0x90] sm:$0xff]
        %v1440 = vld [vmem:[%s344 + $0x98] sm:$0xff]
        %v1441 = vld [vmem:[%s344 + $0xa0] sm:$0xff]
        %v1442 = vld [vmem:[%s344 + $0xa8] sm:$0xff]
        %v1443 = vld [vmem:[%s344 + $0xb0] sm:$0xff]
        %v1444 = vld [vmem:[%s344 + $0xb8] sm:$0xff]
        %v1445 = vld [vmem:[%s344 + $0xc0] sm:$0xff]
        %v1446 = vld [vmem:[%s344 + $0xc8] sm:$0xff]
        %v1447 = vld [vmem:[%s344 + $0xd0] sm:$0xff]
        %v1448 = vld [vmem:[%s344 + $0xd8] sm:$0xff]
        %v1449 = vld [vmem:[%s344 + $0xe0] sm:$0xff]
        %v1450 = vld [vmem:[%s344 + $0xe8] sm:$0xff]
        %v1451 = vld [vmem:[%s344 + $0xf0] sm:$0xff]
        %v1452 = vld [vmem:[%s344 + $0xf8] sm:$0xff]
        %v1485 = vunpack.c.l.b16 %v1421
        %v1486 = vunpack.c.h.b16 %v1421
        %v1487 = vunpack.c.l.b16 %v1422
        %v1488 = vunpack.c.h.b16 %v1422
        %v1489 = vunpack.c.l.b16 %v1423
        %v1490 = vunpack.c.h.b16 %v1423
        %v1491 = vunpack.c.l.b16 %v1424
        %v1492 = vunpack.c.h.b16 %v1424
        %v1493 = vunpack.c.l.b16 %v1425
        %v1494 = vunpack.c.h.b16 %v1425
        %v1495 = vunpack.c.l.b16 %v1426
        %v1496 = vunpack.c.h.b16 %v1426
        %v1497 = vunpack.c.l.b16 %v1427
        %v1498 = vunpack.c.h.b16 %v1427
        %v1499 = vunpack.c.l.b16 %v1428
        %v1500 = vunpack.c.h.b16 %v1428
        %v1501 = vunpack.c.l.b16 %v1429
        %v1502 = vunpack.c.h.b16 %v1429
        %v1503 = vunpack.c.l.b16 %v1430
        %v1504 = vunpack.c.h.b16 %v1430
        %v1505 = vunpack.c.l.b16 %v1431
        %v1506 = vunpack.c.h.b16 %v1431
        %v1507 = vunpack.c.l.b16 %v1432
        %v1508 = vunpack.c.h.b16 %v1432
        %v1509 = vunpack.c.l.b16 %v1433
        %v1510 = vunpack.c.h.b16 %v1433
        %v1511 = vunpack.c.l.b16 %v1434
        %v1512 = vunpack.c.h.b16 %v1434
        %v1513 = vunpack.c.l.b16 %v1435
        %v1514 = vunpack.c.h.b16 %v1435
        %v1515 = vunpack.c.l.b16 %v1436
        %v1516 = vunpack.c.h.b16 %v1436
        %v1517 = vunpack.c.l.b16 %v1437
        %v1518 = vunpack.c.h.b16 %v1437
        %v1519 = vunpack.c.l.b16 %v1438
        %v1520 = vunpack.c.h.b16 %v1438
        %v1521 = vunpack.c.l.b16 %v1439
        %v1522 = vunpack.c.h.b16 %v1439
        %v1523 = vunpack.c.l.b16 %v1440
        %v1524 = vunpack.c.h.b16 %v1440
        %v1525 = vunpack.c.l.b16 %v1441
        %v1526 = vunpack.c.h.b16 %v1441
        %v1527 = vunpack.c.l.b16 %v1442
        %v1528 = vunpack.c.h.b16 %v1442
        %v1529 = vunpack.c.l.b16 %v1443
        %v1530 = vunpack.c.h.b16 %v1443
        %v1531 = vunpack.c.l.b16 %v1444
        %v1532 = vunpack.c.h.b16 %v1444
        %v1533 = vunpack.c.l.b16 %v1445
        %v1534 = vunpack.c.h.b16 %v1445
        %v1535 = vunpack.c.l.b16 %v1446
        %v1536 = vunpack.c.h.b16 %v1446
        %v1537 = vunpack.c.l.b16 %v1447
        %v1538 = vunpack.c.h.b16 %v1447
        %v1539 = vunpack.c.l.b16 %v1448
        %v1540 = vunpack.c.h.b16 %v1448
        %v1541 = vunpack.c.l.b16 %v1449
        %v1542 = vunpack.c.h.b16 %v1449
        %v1543 = vunpack.c.l.b16 %v1450
        %v1544 = vunpack.c.h.b16 %v1450
        %v1545 = vunpack.c.l.b16 %v1451
        %v1546 = vunpack.c.h.b16 %v1451
        %v1547 = vunpack.c.l.b16 %v1452
        %v1548 = vunpack.c.h.b16 %v1452
        %v1549 = vpack.c.b16 %v1489, %v1485
        %v1550 = vpack.c.b16 %v1490, %v1486
        %v1551 = vpack.c.b16 %v1491, %v1487
        %v1552 = vpack.c.b16 %v1492, %v1488
        %v1553 = vpack.c.b16 %v1497, %v1493
        %v1554 = vpack.c.b16 %v1498, %v1494
        %v1555 = vpack.c.b16 %v1499, %v1495
        %v1556 = vpack.c.b16 %v1500, %v1496
        %v1557 = vpack.c.b16 %v1505, %v1501
        %v1558 = vpack.c.b16 %v1506, %v1502
        %v1559 = vpack.c.b16 %v1507, %v1503
        %v1560 = vpack.c.b16 %v1508, %v1504
        %v1561 = vpack.c.b16 %v1513, %v1509
        %v1562 = vpack.c.b16 %v1514, %v1510
        %v1563 = vpack.c.b16 %v1515, %v1511
        %v1564 = vpack.c.b16 %v1516, %v1512
        %v1565 = vpack.c.b16 %v1521, %v1517
        %v1566 = vpack.c.b16 %v1522, %v1518
        %v1567 = vpack.c.b16 %v1523, %v1519
        %v1568 = vpack.c.b16 %v1524, %v1520
        %v1569 = vpack.c.b16 %v1529, %v1525
        %v1570 = vpack.c.b16 %v1530, %v1526
        %v1571 = vpack.c.b16 %v1531, %v1527
        %v1572 = vpack.c.b16 %v1532, %v1528
        %v1573 = vpack.c.b16 %v1537, %v1533
        %v1574 = vpack.c.b16 %v1538, %v1534
        %v1575 = vpack.c.b16 %v1539, %v1535
        %v1576 = vpack.c.b16 %v1540, %v1536
        %v1577 = vpack.c.b16 %v1545, %v1541
        %v1578 = vpack.c.b16 %v1546, %v1542
        %v1579 = vpack.c.b16 %v1547, %v1543
        %v1580 = vpack.c.b16 %v1548, %v1544
        %1613 = vmatpush.bf16.msra.mxu0 %v1577
        %1614 = vmatpush.bf16.msra.mxu0 %v1573
        %1615 = vmatpush.bf16.msra.mxu0 %v1569
        %1616 = vmatpush.bf16.msra.mxu0 %v1565
        %1617 = vmatpush.bf16.msra.mxu0 %v1561
        %1618 = vmatpush.bf16.msra.mxu0 %v1557
        %1619 = vmatpush.bf16.msra.mxu0 %v1553
        %1620 = vmatpush.bf16.msra.mxu0 %v1549
        %1621 = vmatmul.bf16.gmra.mxu0 %v1420
        %v1622 = vpop.f32.mrf.mxu0
        %v1623 = vadd.f32 0.0, %v1622
        %v1624 = vpop.f32.mrf.mxu0
        %1625 = vdwg.mxu0
        %1626 = vmatpush.bf16.msra.mxu0 %v1578
        %1627 = vmatpush.bf16.msra.mxu0 %v1574
        %1628 = vmatpush.bf16.msra.mxu0 %v1570
        %1629 = vmatpush.bf16.msra.mxu0 %v1566
        %1630 = vmatpush.bf16.msra.mxu0 %v1562
        %1631 = vmatpush.bf16.msra.mxu0 %v1558
        %1632 = vmatpush.bf16.msra.mxu0 %v1554
        %1633 = vmatpush.bf16.msra.mxu0 %v1550
        %1634 = vmatmul.bf16.gmra.mxu0 %v1420
        %v1635 = vpop.f32.mrf.mxu0
        %v1636 = vadd.f32 0.0, %v1635
        %v1637 = vpop.f32.mrf.mxu0
        %1638 = vdwg.mxu0
        %1639 = vmatpush.bf16.msra.mxu0 %v1579
        %1640 = vmatpush.bf16.msra.mxu0 %v1575
        %1641 = vmatpush.bf16.msra.mxu0 %v1571
        %1642 = vmatpush.bf16.msra.mxu0 %v1567
        %1643 = vmatpush.bf16.msra.mxu0 %v1563
        %1644 = vmatpush.bf16.msra.mxu0 %v1559
        %1645 = vmatpush.bf16.msra.mxu0 %v1555
        %1646 = vmatpush.bf16.msra.mxu0 %v1551
        %1647 = vmatmul.bf16.gmra.mxu0 %v1420
        %v1648 = vpop.f32.mrf.mxu0
        %v1649 = vadd.f32 0.0, %v1648
        %v1650 = vpop.f32.mrf.mxu0
        %1651 = vdwg.mxu0
        %1652 = vmatpush.bf16.msra.mxu0 %v1580
        %1653 = vmatpush.bf16.msra.mxu0 %v1576
        %1654 = vmatpush.bf16.msra.mxu0 %v1572
        %1655 = vmatpush.bf16.msra.mxu0 %v1568
        %1656 = vmatpush.bf16.msra.mxu0 %v1564
        %1657 = vmatpush.bf16.msra.mxu0 %v1560
        %1658 = vmatpush.bf16.msra.mxu0 %v1556
        %1659 = vmatpush.bf16.msra.mxu0 %v1552
        %1660 = vmatmul.bf16.gmra.mxu0 %v1420
        %v1661 = vpop.f32.mrf.mxu0
        %v1662 = vadd.f32 0.0, %v1661
        %v1663 = vpop.f32.mrf.mxu0
        %1664 = vdwg.mxu0
        %v1665 = vadd.f32 %v1416, %v1623
        %v1666 = vadd.f32 %v1417, %v1636
        %v1667 = vadd.f32 %v1418, %v1649
        %v1668 = vadd.f32 %v1419, %v1662
        %v1669 = vxor.u32 %v1665, 2147483648
        %v1670 = vxor.u32 %v1666, 2147483648
        %v1671 = vxor.u32 %v1667, 2147483648
        %v1672 = vmul.f32 %v1669, 1.442695
        %v1673 = vpow.pop %v1672
        %v1674 = vmul.f32 %v1670, 1.442695
        %v1675 = vpow.pop %v1674
        %v1676 = vmul.f32 %v1671, 1.442695
        %v1677 = vpow.pop %v1676
        %v1678 = vadd.f32 %v1673, 1.0
        %v1679 = vadd.f32 %v1675, 1.0
        %v1680 = vadd.f32 %v1677, 1.0
        %v1681 = vrcp.pop %v1678
        %v1682 = vmul.f32 %v1678, %v1681
        %v1683 = vsub.f32 1.0, %v1682
        %v1684 = vmul.f32 %v1681, %v1683
        %v1685 = vadd.f32 %v1681, %v1684
        %vm1686 = vweird.f32 %v1678
        %vm1687 = vweird.f32 %v1681
        %vm1688 = vmor %vm1686, %vm1687
        %v1689 = vsel %vm1688, %v1681, %v1685
        %v1690 = vand.u32 2147483647, %v1678
        %vm1691 = vcmp.eq.f32.partialorder %v1690, 8.507059e+37
        %v1692 = vand.u32 %v1678, 2147483648
        %v1693 = vor.u32 1.1754944e-38, %v1692
        %v1694 = vsel %vm1691, %v1693, %v1689
        %v1695 = vmul.f32 1.0, %v1694
        %v1696 = vrcp.pop %v1679
        %v1697 = vmul.f32 %v1679, %v1696
        %v1698 = vsub.f32 1.0, %v1697
        %v1699 = vmul.f32 %v1696, %v1698
        %v1700 = vadd.f32 %v1696, %v1699
        %vm1701 = vweird.f32 %v1679
        %vm1702 = vweird.f32 %v1696
        %vm1703 = vmor %vm1701, %vm1702
        %v1704 = vsel %vm1703, %v1696, %v1700
        %v1705 = vand.u32 2147483647, %v1679
        %vm1706 = vcmp.eq.f32.partialorder %v1705, 8.507059e+37
        %v1707 = vand.u32 %v1679, 2147483648
        %v1708 = vor.u32 1.1754944e-38, %v1707
        %v1709 = vsel %vm1706, %v1708, %v1704
        %v1710 = vmul.f32 1.0, %v1709
        %v1711 = vrcp.pop %v1680
        %v1712 = vmul.f32 %v1680, %v1711
        %v1713 = vsub.f32 1.0, %v1712
        %v1714 = vmul.f32 %v1711, %v1713
        %v1715 = vadd.f32 %v1711, %v1714
        %vm1716 = vweird.f32 %v1680
        %vm1717 = vweird.f32 %v1711
        %vm1718 = vmor %vm1716, %vm1717
        %v1719 = vsel %vm1718, %v1711, %v1715
        %v1720 = vand.u32 2147483647, %v1680
        %vm1721 = vcmp.eq.f32.partialorder %v1720, 8.507059e+37
        %v1722 = vand.u32 %v1680, 2147483648
        %v1723 = vor.u32 1.1754944e-38, %v1722
        %v1724 = vsel %vm1721, %v1723, %v1719
        %v1725 = vmul.f32 1.0, %v1724
        %v1726 = vtanh.pop %v1668
        %v1727 = vmul.f32 %v1710, %v1412
        %v1728 = vmul.f32 %v1695, %v1726
        %v1729 = vadd.f32 %v1727, %v1728
        %v1730 = vtanh.pop %v1729
        %v1731 = vmul.f32 %v1725, %v1730
        %s1732 = sadd.s32 %s403, 1
        %p1733 = scmp.lt.s32.totalorder %s1732, 37
        %s1734 = scalar_select %p1733, 1, 0
        %v1735 = vstv %s1734
        %vm1736 = vcmp.eq.s32.totalorder %v1735, 1
        %v1737 = vsel %vm1736, %v1729, %v1412
        %v1738 = vsel %vm1736, %v1731, %v1413
        %s1739 = smul.u32 %s1732, 8
        %s1740 = scalar_lea.vmem [#allocation2], %s1739
        %1741 = vst [vmem:[%s1740] sm:$0xff] %v1738
        %s1742 = scalar_lea.vmem [#allocation3], 64
        %v1743 = vld [vmem:[%s1742] sm:$0xff]
        %v1744 = vld [vmem:[%s1742 + $0x8] sm:$0xff]
        %v1745 = vld [vmem:[%s1742 + $0x10] sm:$0xff]
        %v1746 = vld [vmem:[%s1742 + $0x18] sm:$0xff]
        %v1747 = vpack.c.bf16 %v1738, %v1738
        %v1748 = vld [vmem:[%s344] sm:$0xff]
        %v1749 = vld [vmem:[%s344 + $0x8] sm:$0xff]
        %v1750 = vld [vmem:[%s344 + $0x10] sm:$0xff]
        %v1751 = vld [vmem:[%s344 + $0x18] sm:$0xff]
        %v1752 = vld [vmem:[%s344 + $0x20] sm:$0xff]
        %v1753 = vld [vmem:[%s344 + $0x28] sm:$0xff]
        %v1754 = vld [vmem:[%s344 + $0x30] sm:$0xff]
        %v1755 = vld [vmem:[%s344 + $0x38] sm:$0xff]
        %v1756 = vld [vmem:[%s344 + $0x40] sm:$0xff]
        %v1757 = vld [vmem:[%s344 + $0x48] sm:$0xff]
        %v1758 = vld [vmem:[%s344 + $0x50] sm:$0xff]
        %v1759 = vld [vmem:[%s344 + $0x58] sm:$0xff]
        %v1760 = vld [vmem:[%s344 + $0x60] sm:$0xff]
        %v1761 = vld [vmem:[%s344 + $0x68] sm:$0xff]
        %v1762 = vld [vmem:[%s344 + $0x70] sm:$0xff]
        %v1763 = vld [vmem:[%s344 + $0x78] sm:$0xff]
        %v1764 = vld [vmem:[%s344 + $0x80] sm:$0xff]
        %v1765 = vld [vmem:[%s344 + $0x88] sm:$0xff]
        %v1766 = vld [vmem:[%s344 + $0x90] sm:$0xff]
        %v1767 = vld [vmem:[%s344 + $0x98] sm:$0xff]
        %v1768 = vld [vmem:[%s344 + $0xa0] sm:$0xff]
        %v1769 = vld [vmem:[%s344 + $0xa8] sm:$0xff]
        %v1770 = vld [vmem:[%s344 + $0xb0] sm:$0xff]
        %v1771 = vld [vmem:[%s344 + $0xb8] sm:$0xff]
        %v1772 = vld [vmem:[%s344 + $0xc0] sm:$0xff]
        %v1773 = vld [vmem:[%s344 + $0xc8] sm:$0xff]
        %v1774 = vld [vmem:[%s344 + $0xd0] sm:$0xff]
        %v1775 = vld [vmem:[%s344 + $0xd8] sm:$0xff]
        %v1776 = vld [vmem:[%s344 + $0xe0] sm:$0xff]
        %v1777 = vld [vmem:[%s344 + $0xe8] sm:$0xff]
        %v1778 = vld [vmem:[%s344 + $0xf0] sm:$0xff]
        %v1779 = vld [vmem:[%s344 + $0xf8] sm:$0xff]
        %v1812 = vunpack.c.l.b16 %v1748
        %v1813 = vunpack.c.h.b16 %v1748
        %v1814 = vunpack.c.l.b16 %v1749
        %v1815 = vunpack.c.h.b16 %v1749
        %v1816 = vunpack.c.l.b16 %v1750
        %v1817 = vunpack.c.h.b16 %v1750
        %v1818 = vunpack.c.l.b16 %v1751
        %v1819 = vunpack.c.h.b16 %v1751
        %v1820 = vunpack.c.l.b16 %v1752
        %v1821 = vunpack.c.h.b16 %v1752
        %v1822 = vunpack.c.l.b16 %v1753
        %v1823 = vunpack.c.h.b16 %v1753
        %v1824 = vunpack.c.l.b16 %v1754
        %v1825 = vunpack.c.h.b16 %v1754
        %v1826 = vunpack.c.l.b16 %v1755
        %v1827 = vunpack.c.h.b16 %v1755
        %v1828 = vunpack.c.l.b16 %v1756
        %v1829 = vunpack.c.h.b16 %v1756
        %v1830 = vunpack.c.l.b16 %v1757
        %v1831 = vunpack.c.h.b16 %v1757
        %v1832 = vunpack.c.l.b16 %v1758
        %v1833 = vunpack.c.h.b16 %v1758
        %v1834 = vunpack.c.l.b16 %v1759
        %v1835 = vunpack.c.h.b16 %v1759
        %v1836 = vunpack.c.l.b16 %v1760
        %v1837 = vunpack.c.h.b16 %v1760
        %v1838 = vunpack.c.l.b16 %v1761
        %v1839 = vunpack.c.h.b16 %v1761
        %v1840 = vunpack.c.l.b16 %v1762
        %v1841 = vunpack.c.h.b16 %v1762
        %v1842 = vunpack.c.l.b16 %v1763
        %v1843 = vunpack.c.h.b16 %v1763
        %v1844 = vunpack.c.l.b16 %v1764
        %v1845 = vunpack.c.h.b16 %v1764
        %v1846 = vunpack.c.l.b16 %v1765
        %v1847 = vunpack.c.h.b16 %v1765
        %v1848 = vunpack.c.l.b16 %v1766
        %v1849 = vunpack.c.h.b16 %v1766
        %v1850 = vunpack.c.l.b16 %v1767
        %v1851 = vunpack.c.h.b16 %v1767
        %v1852 = vunpack.c.l.b16 %v1768
        %v1853 = vunpack.c.h.b16 %v1768
        %v1854 = vunpack.c.l.b16 %v1769
        %v1855 = vunpack.c.h.b16 %v1769
        %v1856 = vunpack.c.l.b16 %v1770
        %v1857 = vunpack.c.h.b16 %v1770
        %v1858 = vunpack.c.l.b16 %v1771
        %v1859 = vunpack.c.h.b16 %v1771
        %v1860 = vunpack.c.l.b16 %v1772
        %v1861 = vunpack.c.h.b16 %v1772
        %v1862 = vunpack.c.l.b16 %v1773
        %v1863 = vunpack.c.h.b16 %v1773
        %v1864 = vunpack.c.l.b16 %v1774
        %v1865 = vunpack.c.h.b16 %v1774
        %v1866 = vunpack.c.l.b16 %v1775
        %v1867 = vunpack.c.h.b16 %v1775
        %v1868 = vunpack.c.l.b16 %v1776
        %v1869 = vunpack.c.h.b16 %v1776
        %v1870 = vunpack.c.l.b16 %v1777
        %v1871 = vunpack.c.h.b16 %v1777
        %v1872 = vunpack.c.l.b16 %v1778
        %v1873 = vunpack.c.h.b16 %v1778
        %v1874 = vunpack.c.l.b16 %v1779
        %v1875 = vunpack.c.h.b16 %v1779
        %v1876 = vpack.c.b16 %v1816, %v1812
        %v1877 = vpack.c.b16 %v1817, %v1813
        %v1878 = vpack.c.b16 %v1818, %v1814
        %v1879 = vpack.c.b16 %v1819, %v1815
        %v1880 = vpack.c.b16 %v1824, %v1820
        %v1881 = vpack.c.b16 %v1825, %v1821
        %v1882 = vpack.c.b16 %v1826, %v1822
        %v1883 = vpack.c.b16 %v1827, %v1823
        %v1884 = vpack.c.b16 %v1832, %v1828
        %v1885 = vpack.c.b16 %v1833, %v1829
        %v1886 = vpack.c.b16 %v1834, %v1830
        %v1887 = vpack.c.b16 %v1835, %v1831
        %v1888 = vpack.c.b16 %v1840, %v1836
        %v1889 = vpack.c.b16 %v1841, %v1837
        %v1890 = vpack.c.b16 %v1842, %v1838
        %v1891 = vpack.c.b16 %v1843, %v1839
        %v1892 = vpack.c.b16 %v1848, %v1844
        %v1893 = vpack.c.b16 %v1849, %v1845
        %v1894 = vpack.c.b16 %v1850, %v1846
        %v1895 = vpack.c.b16 %v1851, %v1847
        %v1896 = vpack.c.b16 %v1856, %v1852
        %v1897 = vpack.c.b16 %v1857, %v1853
        %v1898 = vpack.c.b16 %v1858, %v1854
        %v1899 = vpack.c.b16 %v1859, %v1855
        %v1900 = vpack.c.b16 %v1864, %v1860
        %v1901 = vpack.c.b16 %v1865, %v1861
        %v1902 = vpack.c.b16 %v1866, %v1862
        %v1903 = vpack.c.b16 %v1867, %v1863
        %v1904 = vpack.c.b16 %v1872, %v1868
        %v1905 = vpack.c.b16 %v1873, %v1869
        %v1906 = vpack.c.b16 %v1874, %v1870
        %v1907 = vpack.c.b16 %v1875, %v1871
        %1940 = vmatpush.bf16.msra.mxu0 %v1904
        %1941 = vmatpush.bf16.msra.mxu0 %v1900
        %1942 = vmatpush.bf16.msra.mxu0 %v1896
        %1943 = vmatpush.bf16.msra.mxu0 %v1892
        %1944 = vmatpush.bf16.msra.mxu0 %v1888
        %1945 = vmatpush.bf16.msra.mxu0 %v1884
        %1946 = vmatpush.bf16.msra.mxu0 %v1880
        %1947 = vmatpush.bf16.msra.mxu0 %v1876
        %1948 = vmatmul.bf16.gmra.mxu0 %v1747
        %v1949 = vpop.f32.mrf.mxu0
        %v1950 = vadd.f32 0.0, %v1949
        %v1951 = vpop.f32.mrf.mxu0
        %1952 = vdwg.mxu0
        %1953 = vmatpush.bf16.msra.mxu0 %v1905
        %1954 = vmatpush.bf16.msra.mxu0 %v1901
        %1955 = vmatpush.bf16.msra.mxu0 %v1897
        %1956 = vmatpush.bf16.msra.mxu0 %v1893
        %1957 = vmatpush.bf16.msra.mxu0 %v1889
        %1958 = vmatpush.bf16.msra.mxu0 %v1885
        %1959 = vmatpush.bf16.msra.mxu0 %v1881
        %1960 = vmatpush.bf16.msra.mxu0 %v1877
        %1961 = vmatmul.bf16.gmra.mxu0 %v1747
        %v1962 = vpop.f32.mrf.mxu0
        %v1963 = vadd.f32 0.0, %v1962
        %v1964 = vpop.f32.mrf.mxu0
        %1965 = vdwg.mxu0
        %1966 = vmatpush.bf16.msra.mxu0 %v1906
        %1967 = vmatpush.bf16.msra.mxu0 %v1902
        %1968 = vmatpush.bf16.msra.mxu0 %v1898
        %1969 = vmatpush.bf16.msra.mxu0 %v1894
        %1970 = vmatpush.bf16.msra.mxu0 %v1890
        %1971 = vmatpush.bf16.msra.mxu0 %v1886
        %1972 = vmatpush.bf16.msra.mxu0 %v1882
        %1973 = vmatpush.bf16.msra.mxu0 %v1878
        %1974 = vmatmul.bf16.gmra.mxu0 %v1747
        %v1975 = vpop.f32.mrf.mxu0
        %v1976 = vadd.f32 0.0, %v1975
        %v1977 = vpop.f32.mrf.mxu0
        %1978 = vdwg.mxu0
        %1979 = vmatpush.bf16.msra.mxu0 %v1907
        %1980 = vmatpush.bf16.msra.mxu0 %v1903
        %1981 = vmatpush.bf16.msra.mxu0 %v1899
        %1982 = vmatpush.bf16.msra.mxu0 %v1895
        %1983 = vmatpush.bf16.msra.mxu0 %v1891
        %1984 = vmatpush.bf16.msra.mxu0 %v1887
        %1985 = vmatpush.bf16.msra.mxu0 %v1883
        %1986 = vmatpush.bf16.msra.mxu0 %v1879
        %1987 = vmatmul.bf16.gmra.mxu0 %v1747
        %v1988 = vpop.f32.mrf.mxu0
        %v1989 = vadd.f32 0.0, %v1988
        %v1990 = vpop.f32.mrf.mxu0
        %1991 = vdwg.mxu0
        %v1992 = vadd.f32 %v1743, %v1950
        %v1993 = vadd.f32 %v1744, %v1963
        %v1994 = vadd.f32 %v1745, %v1976
        %v1995 = vadd.f32 %v1746, %v1989
        %v1996 = vxor.u32 %v1992, 2147483648
        %v1997 = vxor.u32 %v1993, 2147483648
        %v1998 = vxor.u32 %v1994, 2147483648
        %v1999 = vmul.f32 %v1996, 1.442695
        %v2000 = vpow.pop %v1999
        %v2001 = vmul.f32 %v1997, 1.442695
        %v2002 = vpow.pop %v2001
        %v2003 = vmul.f32 %v1998, 1.442695
        %v2004 = vpow.pop %v2003
        %v2005 = vadd.f32 %v2000, 1.0
        %v2006 = vadd.f32 %v2002, 1.0
        %v2007 = vadd.f32 %v2004, 1.0
        %v2008 = vrcp.pop %v2005
        %v2009 = vmul.f32 %v2005, %v2008
        %v2010 = vsub.f32 1.0, %v2009
        %v2011 = vmul.f32 %v2008, %v2010
        %v2012 = vadd.f32 %v2008, %v2011
        %vm2013 = vweird.f32 %v2005
        %vm2014 = vweird.f32 %v2008
        %vm2015 = vmor %vm2013, %vm2014
        %v2016 = vsel %vm2015, %v2008, %v2012
        %v2017 = vand.u32 2147483647, %v2005
        %vm2018 = vcmp.eq.f32.partialorder %v2017, 8.507059e+37
        %v2019 = vand.u32 %v2005, 2147483648
        %v2020 = vor.u32 1.1754944e-38, %v2019
        %v2021 = vsel %vm2018, %v2020, %v2016
        %v2022 = vmul.f32 1.0, %v2021
        %v2023 = vrcp.pop %v2006
        %v2024 = vmul.f32 %v2006, %v2023
        %v2025 = vsub.f32 1.0, %v2024
        %v2026 = vmul.f32 %v2023, %v2025
        %v2027 = vadd.f32 %v2023, %v2026
        %vm2028 = vweird.f32 %v2006
        %vm2029 = vweird.f32 %v2023
        %vm2030 = vmor %vm2028, %vm2029
        %v2031 = vsel %vm2030, %v2023, %v2027
        %v2032 = vand.u32 2147483647, %v2006
        %vm2033 = vcmp.eq.f32.partialorder %v2032, 8.507059e+37
        %v2034 = vand.u32 %v2006, 2147483648
        %v2035 = vor.u32 1.1754944e-38, %v2034
        %v2036 = vsel %vm2033, %v2035, %v2031
        %v2037 = vmul.f32 1.0, %v2036
        %v2038 = vrcp.pop %v2007
        %v2039 = vmul.f32 %v2007, %v2038
        %v2040 = vsub.f32 1.0, %v2039
        %v2041 = vmul.f32 %v2038, %v2040
        %v2042 = vadd.f32 %v2038, %v2041
        %vm2043 = vweird.f32 %v2007
        %vm2044 = vweird.f32 %v2038
        %vm2045 = vmor %vm2043, %vm2044
        %v2046 = vsel %vm2045, %v2038, %v2042
        %v2047 = vand.u32 2147483647, %v2007
        %vm2048 = vcmp.eq.f32.partialorder %v2047, 8.507059e+37
        %v2049 = vand.u32 %v2007, 2147483648
        %v2050 = vor.u32 1.1754944e-38, %v2049
        %v2051 = vsel %vm2048, %v2050, %v2046
        %v2052 = vmul.f32 1.0, %v2051
        %v2053 = vtanh.pop %v1995
        %v2054 = vmul.f32 %v2037, %v1737
        %v2055 = vmul.f32 %v2022, %v2053
        %v2056 = vadd.f32 %v2054, %v2055
        %v2057 = vtanh.pop %v2056
        %v2058 = vmul.f32 %v2052, %v2057
        %s2059 = sadd.s32 %s403, 2
        %p2060 = scmp.lt.s32.totalorder %s2059, 37
        %s2061 = scalar_select %p2060, 1, 0
        %v2062 = vstv %s2061
        %vm2063 = vcmp.eq.s32.totalorder %v2062, 1
        %v2064 = vsel %vm2063, %v2056, %v1737
        %v2065 = vsel %vm2063, %v2058, %v1738
        %s2066 = smul.u32 %s2059, 8
        %s2067 = scalar_lea.vmem [#allocation2], %s2066
        %2068 = vst [vmem:[%s2067] sm:$0xff] %v2065
        %s2069 = scalar_lea.vmem [#allocation3], 96
        %v2070 = vld [vmem:[%s2069] sm:$0xff]
        %v2071 = vld [vmem:[%s2069 + $0x8] sm:$0xff]
        %v2072 = vld [vmem:[%s2069 + $0x10] sm:$0xff]
        %v2073 = vld [vmem:[%s2069 + $0x18] sm:$0xff]
        %v2074 = vpack.c.bf16 %v2065, %v2065
        %v2075 = vld [vmem:[%s344] sm:$0xff]
        %v2076 = vld [vmem:[%s344 + $0x8] sm:$0xff]
        %v2077 = vld [vmem:[%s344 + $0x10] sm:$0xff]
        %v2078 = vld [vmem:[%s344 + $0x18] sm:$0xff]
        %v2079 = vld [vmem:[%s344 + $0x20] sm:$0xff]
        %v2080 = vld [vmem:[%s344 + $0x28] sm:$0xff]
        %v2081 = vld [vmem:[%s344 + $0x30] sm:$0xff]
        %v2082 = vld [vmem:[%s344 + $0x38] sm:$0xff]
        %v2083 = vld [vmem:[%s344 + $0x40] sm:$0xff]
        %v2084 = vld [vmem:[%s344 + $0x48] sm:$0xff]
        %v2085 = vld [vmem:[%s344 + $0x50] sm:$0xff]
        %v2086 = vld [vmem:[%s344 + $0x58] sm:$0xff]
        %v2087 = vld [vmem:[%s344 + $0x60] sm:$0xff]
        %v2088 = vld [vmem:[%s344 + $0x68] sm:$0xff]
        %v2089 = vld [vmem:[%s344 + $0x70] sm:$0xff]
        %v2090 = vld [vmem:[%s344 + $0x78] sm:$0xff]
        %v2091 = vld [vmem:[%s344 + $0x80] sm:$0xff]
        %v2092 = vld [vmem:[%s344 + $0x88] sm:$0xff]
        %v2093 = vld [vmem:[%s344 + $0x90] sm:$0xff]
        %v2094 = vld [vmem:[%s344 + $0x98] sm:$0xff]
        %v2095 = vld [vmem:[%s344 + $0xa0] sm:$0xff]
        %v2096 = vld [vmem:[%s344 + $0xa8] sm:$0xff]
        %v2097 = vld [vmem:[%s344 + $0xb0] sm:$0xff]
        %v2098 = vld [vmem:[%s344 + $0xb8] sm:$0xff]
        %v2099 = vld [vmem:[%s344 + $0xc0] sm:$0xff]
        %v2100 = vld [vmem:[%s344 + $0xc8] sm:$0xff]
        %v2101 = vld [vmem:[%s344 + $0xd0] sm:$0xff]
        %v2102 = vld [vmem:[%s344 + $0xd8] sm:$0xff]
        %v2103 = vld [vmem:[%s344 + $0xe0] sm:$0xff]
        %v2104 = vld [vmem:[%s344 + $0xe8] sm:$0xff]
        %v2105 = vld [vmem:[%s344 + $0xf0] sm:$0xff]
        %v2106 = vld [vmem:[%s344 + $0xf8] sm:$0xff]
        %v2139 = vunpack.c.l.b16 %v2075
        %v2140 = vunpack.c.h.b16 %v2075
        %v2141 = vunpack.c.l.b16 %v2076
        %v2142 = vunpack.c.h.b16 %v2076
        %v2143 = vunpack.c.l.b16 %v2077
        %v2144 = vunpack.c.h.b16 %v2077
        %v2145 = vunpack.c.l.b16 %v2078
        %v2146 = vunpack.c.h.b16 %v2078
        %v2147 = vunpack.c.l.b16 %v2079
        %v2148 = vunpack.c.h.b16 %v2079
        %v2149 = vunpack.c.l.b16 %v2080
        %v2150 = vunpack.c.h.b16 %v2080
        %v2151 = vunpack.c.l.b16 %v2081
        %v2152 = vunpack.c.h.b16 %v2081
        %v2153 = vunpack.c.l.b16 %v2082
        %v2154 = vunpack.c.h.b16 %v2082
        %v2155 = vunpack.c.l.b16 %v2083
        %v2156 = vunpack.c.h.b16 %v2083
        %v2157 = vunpack.c.l.b16 %v2084
        %v2158 = vunpack.c.h.b16 %v2084
        %v2159 = vunpack.c.l.b16 %v2085
        %v2160 = vunpack.c.h.b16 %v2085
        %v2161 = vunpack.c.l.b16 %v2086
        %v2162 = vunpack.c.h.b16 %v2086
        %v2163 = vunpack.c.l.b16 %v2087
        %v2164 = vunpack.c.h.b16 %v2087
        %v2165 = vunpack.c.l.b16 %v2088
        %v2166 = vunpack.c.h.b16 %v2088
        %v2167 = vunpack.c.l.b16 %v2089
        %v2168 = vunpack.c.h.b16 %v2089
        %v2169 = vunpack.c.l.b16 %v2090
        %v2170 = vunpack.c.h.b16 %v2090
        %v2171 = vunpack.c.l.b16 %v2091
        %v2172 = vunpack.c.h.b16 %v2091
        %v2173 = vunpack.c.l.b16 %v2092
        %v2174 = vunpack.c.h.b16 %v2092
        %v2175 = vunpack.c.l.b16 %v2093
        %v2176 = vunpack.c.h.b16 %v2093
        %v2177 = vunpack.c.l.b16 %v2094
        %v2178 = vunpack.c.h.b16 %v2094
        %v2179 = vunpack.c.l.b16 %v2095
        %v2180 = vunpack.c.h.b16 %v2095
        %v2181 = vunpack.c.l.b16 %v2096
        %v2182 = vunpack.c.h.b16 %v2096
        %v2183 = vunpack.c.l.b16 %v2097
        %v2184 = vunpack.c.h.b16 %v2097
        %v2185 = vunpack.c.l.b16 %v2098
        %v2186 = vunpack.c.h.b16 %v2098
        %v2187 = vunpack.c.l.b16 %v2099
        %v2188 = vunpack.c.h.b16 %v2099
        %v2189 = vunpack.c.l.b16 %v2100
        %v2190 = vunpack.c.h.b16 %v2100
        %v2191 = vunpack.c.l.b16 %v2101
        %v2192 = vunpack.c.h.b16 %v2101
        %v2193 = vunpack.c.l.b16 %v2102
        %v2194 = vunpack.c.h.b16 %v2102
        %v2195 = vunpack.c.l.b16 %v2103
        %v2196 = vunpack.c.h.b16 %v2103
        %v2197 = vunpack.c.l.b16 %v2104
        %v2198 = vunpack.c.h.b16 %v2104
        %v2199 = vunpack.c.l.b16 %v2105
        %v2200 = vunpack.c.h.b16 %v2105
        %v2201 = vunpack.c.l.b16 %v2106
        %v2202 = vunpack.c.h.b16 %v2106
        %v2203 = vpack.c.b16 %v2143, %v2139
        %v2204 = vpack.c.b16 %v2144, %v2140
        %v2205 = vpack.c.b16 %v2145, %v2141
        %v2206 = vpack.c.b16 %v2146, %v2142
        %v2207 = vpack.c.b16 %v2151, %v2147
        %v2208 = vpack.c.b16 %v2152, %v2148
        %v2209 = vpack.c.b16 %v2153, %v2149
        %v2210 = vpack.c.b16 %v2154, %v2150
        %v2211 = vpack.c.b16 %v2159, %v2155
        %v2212 = vpack.c.b16 %v2160, %v2156
        %v2213 = vpack.c.b16 %v2161, %v2157
        %v2214 = vpack.c.b16 %v2162, %v2158
        %v2215 = vpack.c.b16 %v2167, %v2163
        %v2216 = vpack.c.b16 %v2168, %v2164
        %v2217 = vpack.c.b16 %v2169, %v2165
        %v2218 = vpack.c.b16 %v2170, %v2166
        %v2219 = vpack.c.b16 %v2175, %v2171
        %v2220 = vpack.c.b16 %v2176, %v2172
        %v2221 = vpack.c.b16 %v2177, %v2173
        %v2222 = vpack.c.b16 %v2178, %v2174
        %v2223 = vpack.c.b16 %v2183, %v2179
        %v2224 = vpack.c.b16 %v2184, %v2180
        %v2225 = vpack.c.b16 %v2185, %v2181
        %v2226 = vpack.c.b16 %v2186, %v2182
        %v2227 = vpack.c.b16 %v2191, %v2187
        %v2228 = vpack.c.b16 %v2192, %v2188
        %v2229 = vpack.c.b16 %v2193, %v2189
        %v2230 = vpack.c.b16 %v2194, %v2190
        %v2231 = vpack.c.b16 %v2199, %v2195
        %v2232 = vpack.c.b16 %v2200, %v2196
        %v2233 = vpack.c.b16 %v2201, %v2197
        %v2234 = vpack.c.b16 %v2202, %v2198
        %2267 = vmatpush.bf16.msra.mxu0 %v2231
        %2268 = vmatpush.bf16.msra.mxu0 %v2227
        %2269 = vmatpush.bf16.msra.mxu0 %v2223
        %2270 = vmatpush.bf16.msra.mxu0 %v2219
        %2271 = vmatpush.bf16.msra.mxu0 %v2215
        %2272 = vmatpush.bf16.msra.mxu0 %v2211
        %2273 = vmatpush.bf16.msra.mxu0 %v2207
        %2274 = vmatpush.bf16.msra.mxu0 %v2203
        %2275 = vmatmul.bf16.gmra.mxu0 %v2074
        %v2276 = vpop.f32.mrf.mxu0
        %v2277 = vadd.f32 0.0, %v2276
        %v2278 = vpop.f32.mrf.mxu0
        %2279 = vdwg.mxu0
        %2280 = vmatpush.bf16.msra.mxu0 %v2232
        %2281 = vmatpush.bf16.msra.mxu0 %v2228
        %2282 = vmatpush.bf16.msra.mxu0 %v2224
        %2283 = vmatpush.bf16.msra.mxu0 %v2220
        %2284 = vmatpush.bf16.msra.mxu0 %v2216
        %2285 = vmatpush.bf16.msra.mxu0 %v2212
        %2286 = vmatpush.bf16.msra.mxu0 %v2208
        %2287 = vmatpush.bf16.msra.mxu0 %v2204
        %2288 = vmatmul.bf16.gmra.mxu0 %v2074
        %v2289 = vpop.f32.mrf.mxu0
        %v2290 = vadd.f32 0.0, %v2289
        %v2291 = vpop.f32.mrf.mxu0
        %2292 = vdwg.mxu0
        %2293 = vmatpush.bf16.msra.mxu0 %v2233
        %2294 = vmatpush.bf16.msra.mxu0 %v2229
        %2295 = vmatpush.bf16.msra.mxu0 %v2225
        %2296 = vmatpush.bf16.msra.mxu0 %v2221
        %2297 = vmatpush.bf16.msra.mxu0 %v2217
        %2298 = vmatpush.bf16.msra.mxu0 %v2213
        %2299 = vmatpush.bf16.msra.mxu0 %v2209
        %2300 = vmatpush.bf16.msra.mxu0 %v2205
        %2301 = vmatmul.bf16.gmra.mxu0 %v2074
        %v2302 = vpop.f32.mrf.mxu0
        %v2303 = vadd.f32 0.0, %v2302
        %v2304 = vpop.f32.mrf.mxu0
        %2305 = vdwg.mxu0
        %2306 = vmatpush.bf16.msra.mxu0 %v2234
        %2307 = vmatpush.bf16.msra.mxu0 %v2230
        %2308 = vmatpush.bf16.msra.mxu0 %v2226
        %2309 = vmatpush.bf16.msra.mxu0 %v2222
        %2310 = vmatpush.bf16.msra.mxu0 %v2218
        %2311 = vmatpush.bf16.msra.mxu0 %v2214
        %2312 = vmatpush.bf16.msra.mxu0 %v2210
        %2313 = vmatpush.bf16.msra.mxu0 %v2206
        %2314 = vmatmul.bf16.gmra.mxu0 %v2074
        %v2315 = vpop.f32.mrf.mxu0
        %v2316 = vadd.f32 0.0, %v2315
        %v2317 = vpop.f32.mrf.mxu0
        %2318 = vdwg.mxu0
        %v2319 = vadd.f32 %v2070, %v2277
        %v2320 = vadd.f32 %v2071, %v2290
        %v2321 = vadd.f32 %v2072, %v2303
        %v2322 = vadd.f32 %v2073, %v2316
        %v2323 = vxor.u32 %v2319, 2147483648
        %v2324 = vxor.u32 %v2320, 2147483648
        %v2325 = vxor.u32 %v2321, 2147483648
        %v2326 = vmul.f32 %v2323, 1.442695
        %v2327 = vpow.pop %v2326
        %v2328 = vmul.f32 %v2324, 1.442695
        %v2329 = vpow.pop %v2328
        %v2330 = vmul.f32 %v2325, 1.442695
        %v2331 = vpow.pop %v2330
        %v2332 = vadd.f32 %v2327, 1.0
        %v2333 = vadd.f32 %v2329, 1.0
        %v2334 = vadd.f32 %v2331, 1.0
        %v2335 = vrcp.pop %v2332
        %v2336 = vmul.f32 %v2332, %v2335
        %v2337 = vsub.f32 1.0, %v2336
        %v2338 = vmul.f32 %v2335, %v2337
        %v2339 = vadd.f32 %v2335, %v2338
        %vm2340 = vweird.f32 %v2332
        %vm2341 = vweird.f32 %v2335
        %vm2342 = vmor %vm2340, %vm2341
        %v2343 = vsel %vm2342, %v2335, %v2339
        %v2344 = vand.u32 2147483647, %v2332
        %vm2345 = vcmp.eq.f32.partialorder %v2344, 8.507059e+37
        %v2346 = vand.u32 %v2332, 2147483648
        %v2347 = vor.u32 1.1754944e-38, %v2346
        %v2348 = vsel %vm2345, %v2347, %v2343
        %v2349 = vmul.f32 1.0, %v2348
        %v2350 = vrcp.pop %v2333
        %v2351 = vmul.f32 %v2333, %v2350
        %v2352 = vsub.f32 1.0, %v2351
        %v2353 = vmul.f32 %v2350, %v2352
        %v2354 = vadd.f32 %v2350, %v2353
        %vm2355 = vweird.f32 %v2333
        %vm2356 = vweird.f32 %v2350
        %vm2357 = vmor %vm2355, %vm2356
        %v2358 = vsel %vm2357, %v2350, %v2354
        %v2359 = vand.u32 2147483647, %v2333
        %vm2360 = vcmp.eq.f32.partialorder %v2359, 8.507059e+37
        %v2361 = vand.u32 %v2333, 2147483648
        %v2362 = vor.u32 1.1754944e-38, %v2361
        %v2363 = vsel %vm2360, %v2362, %v2358
        %v2364 = vmul.f32 1.0, %v2363
        %v2365 = vrcp.pop %v2334
        %v2366 = vmul.f32 %v2334, %v2365
        %v2367 = vsub.f32 1.0, %v2366
        %v2368 = vmul.f32 %v2365, %v2367
        %v2369 = vadd.f32 %v2365, %v2368
        %vm2370 = vweird.f32 %v2334
        %vm2371 = vweird.f32 %v2365
        %vm2372 = vmor %vm2370, %vm2371
        %v2373 = vsel %vm2372, %v2365, %v2369
        %v2374 = vand.u32 2147483647, %v2334
        %vm2375 = vcmp.eq.f32.partialorder %v2374, 8.507059e+37
        %v2376 = vand.u32 %v2334, 2147483648
        %v2377 = vor.u32 1.1754944e-38, %v2376
        %v2378 = vsel %vm2375, %v2377, %v2373
        %v2379 = vmul.f32 1.0, %v2378
        %v2380 = vtanh.pop %v2322
        %v2381 = vmul.f32 %v2364, %v2064
        %v2382 = vmul.f32 %v2349, %v2380
        %v2383 = vadd.f32 %v2381, %v2382
        %v2384 = vtanh.pop %v2383
        %v2385 = vmul.f32 %v2379, %v2384
        %s2386 = sadd.s32 %s403, 3
        %p2387 = scmp.lt.s32.totalorder %s2386, 37
        %s2388 = scalar_select %p2387, 1, 0
        %v2389 = vstv %s2388
        %vm2390 = vcmp.eq.s32.totalorder %v2389, 1
        %v2391 = vsel %vm2390, %v2383, %v2064
        %v2392 = vsel %vm2390, %v2385, %v2065
        %s2393 = smul.u32 %s2386, 8
        %s2394 = scalar_lea.vmem [#allocation2], %s2393
        %2395 = vst [vmem:[%s2394] sm:$0xff] %v2392
        %s2396 = scalar_lea.vmem [#allocation3], 128
        %v2397 = vld [vmem:[%s2396] sm:$0xff]
        %v2398 = vld [vmem:[%s2396 + $0x8] sm:$0xff]
        %v2399 = vld [vmem:[%s2396 + $0x10] sm:$0xff]
        %v2400 = vld [vmem:[%s2396 + $0x18] sm:$0xff]
        %v2401 = vpack.c.bf16 %v2392, %v2392
        %v2402 = vld [vmem:[%s344] sm:$0xff]
        %v2403 = vld [vmem:[%s344 + $0x8] sm:$0xff]
        %v2404 = vld [vmem:[%s344 + $0x10] sm:$0xff]
        %v2405 = vld [vmem:[%s344 + $0x18] sm:$0xff]
        %v2406 = vld [vmem:[%s344 + $0x20] sm:$0xff]
        %v2407 = vld [vmem:[%s344 + $0x28] sm:$0xff]
        %v2408 = vld [vmem:[%s344 + $0x30] sm:$0xff]
        %v2409 = vld [vmem:[%s344 + $0x38] sm:$0xff]
        %v2410 = vld [vmem:[%s344 + $0x40] sm:$0xff]
        %v2411 = vld [vmem:[%s344 + $0x48] sm:$0xff]
        %v2412 = vld [vmem:[%s344 + $0x50] sm:$0xff]
        %v2413 = vld [vmem:[%s344 + $0x58] sm:$0xff]
        %v2414 = vld [vmem:[%s344 + $0x60] sm:$0xff]
        %v2415 = vld [vmem:[%s344 + $0x68] sm:$0xff]
        %v2416 = vld [vmem:[%s344 + $0x70] sm:$0xff]
        %v2417 = vld [vmem:[%s344 + $0x78] sm:$0xff]
        %v2418 = vld [vmem:[%s344 + $0x80] sm:$0xff]
        %v2419 = vld [vmem:[%s344 + $0x88] sm:$0xff]
        %v2420 = vld [vmem:[%s344 + $0x90] sm:$0xff]
        %v2421 = vld [vmem:[%s344 + $0x98] sm:$0xff]
        %v2422 = vld [vmem:[%s344 + $0xa0] sm:$0xff]
        %v2423 = vld [vmem:[%s344 + $0xa8] sm:$0xff]
        %v2424 = vld [vmem:[%s344 + $0xb0] sm:$0xff]
        %v2425 = vld [vmem:[%s344 + $0xb8] sm:$0xff]
        %v2426 = vld [vmem:[%s344 + $0xc0] sm:$0xff]
        %v2427 = vld [vmem:[%s344 + $0xc8] sm:$0xff]
        %v2428 = vld [vmem:[%s344 + $0xd0] sm:$0xff]
        %v2429 = vld [vmem:[%s344 + $0xd8] sm:$0xff]
        %v2430 = vld [vmem:[%s344 + $0xe0] sm:$0xff]
        %v2431 = vld [vmem:[%s344 + $0xe8] sm:$0xff]
        %v2432 = vld [vmem:[%s344 + $0xf0] sm:$0xff]
        %v2433 = vld [vmem:[%s344 + $0xf8] sm:$0xff]
        %v2466 = vunpack.c.l.b16 %v2402
        %v2467 = vunpack.c.h.b16 %v2402
        %v2468 = vunpack.c.l.b16 %v2403
        %v2469 = vunpack.c.h.b16 %v2403
        %v2470 = vunpack.c.l.b16 %v2404
        %v2471 = vunpack.c.h.b16 %v2404
        %v2472 = vunpack.c.l.b16 %v2405
        %v2473 = vunpack.c.h.b16 %v2405
        %v2474 = vunpack.c.l.b16 %v2406
        %v2475 = vunpack.c.h.b16 %v2406
        %v2476 = vunpack.c.l.b16 %v2407
        %v2477 = vunpack.c.h.b16 %v2407
        %v2478 = vunpack.c.l.b16 %v2408
        %v2479 = vunpack.c.h.b16 %v2408
        %v2480 = vunpack.c.l.b16 %v2409
        %v2481 = vunpack.c.h.b16 %v2409
        %v2482 = vunpack.c.l.b16 %v2410
        %v2483 = vunpack.c.h.b16 %v2410
        %v2484 = vunpack.c.l.b16 %v2411
        %v2485 = vunpack.c.h.b16 %v2411
        %v2486 = vunpack.c.l.b16 %v2412
        %v2487 = vunpack.c.h.b16 %v2412
        %v2488 = vunpack.c.l.b16 %v2413
        %v2489 = vunpack.c.h.b16 %v2413
        %v2490 = vunpack.c.l.b16 %v2414
        %v2491 = vunpack.c.h.b16 %v2414
        %v2492 = vunpack.c.l.b16 %v2415
        %v2493 = vunpack.c.h.b16 %v2415
        %v2494 = vunpack.c.l.b16 %v2416
        %v2495 = vunpack.c.h.b16 %v2416
        %v2496 = vunpack.c.l.b16 %v2417
        %v2497 = vunpack.c.h.b16 %v2417
        %v2498 = vunpack.c.l.b16 %v2418
        %v2499 = vunpack.c.h.b16 %v2418
        %v2500 = vunpack.c.l.b16 %v2419
        %v2501 = vunpack.c.h.b16 %v2419
        %v2502 = vunpack.c.l.b16 %v2420
        %v2503 = vunpack.c.h.b16 %v2420
        %v2504 = vunpack.c.l.b16 %v2421
        %v2505 = vunpack.c.h.b16 %v2421
        %v2506 = vunpack.c.l.b16 %v2422
        %v2507 = vunpack.c.h.b16 %v2422
        %v2508 = vunpack.c.l.b16 %v2423
        %v2509 = vunpack.c.h.b16 %v2423
        %v2510 = vunpack.c.l.b16 %v2424
        %v2511 = vunpack.c.h.b16 %v2424
        %v2512 = vunpack.c.l.b16 %v2425
        %v2513 = vunpack.c.h.b16 %v2425
        %v2514 = vunpack.c.l.b16 %v2426
        %v2515 = vunpack.c.h.b16 %v2426
        %v2516 = vunpack.c.l.b16 %v2427
        %v2517 = vunpack.c.h.b16 %v2427
        %v2518 = vunpack.c.l.b16 %v2428
        %v2519 = vunpack.c.h.b16 %v2428
        %v2520 = vunpack.c.l.b16 %v2429
        %v2521 = vunpack.c.h.b16 %v2429
        %v2522 = vunpack.c.l.b16 %v2430
        %v2523 = vunpack.c.h.b16 %v2430
        %v2524 = vunpack.c.l.b16 %v2431
        %v2525 = vunpack.c.h.b16 %v2431
        %v2526 = vunpack.c.l.b16 %v2432
        %v2527 = vunpack.c.h.b16 %v2432
        %v2528 = vunpack.c.l.b16 %v2433
        %v2529 = vunpack.c.h.b16 %v2433
        %v2530 = vpack.c.b16 %v2470, %v2466
        %v2531 = vpack.c.b16 %v2471, %v2467
        %v2532 = vpack.c.b16 %v2472, %v2468
        %v2533 = vpack.c.b16 %v2473, %v2469
        %v2534 = vpack.c.b16 %v2478, %v2474
        %v2535 = vpack.c.b16 %v2479, %v2475
        %v2536 = vpack.c.b16 %v2480, %v2476
        %v2537 = vpack.c.b16 %v2481, %v2477
        %v2538 = vpack.c.b16 %v2486, %v2482
        %v2539 = vpack.c.b16 %v2487, %v2483
        %v2540 = vpack.c.b16 %v2488, %v2484
        %v2541 = vpack.c.b16 %v2489, %v2485
        %v2542 = vpack.c.b16 %v2494, %v2490
        %v2543 = vpack.c.b16 %v2495, %v2491
        %v2544 = vpack.c.b16 %v2496, %v2492
        %v2545 = vpack.c.b16 %v2497, %v2493
        %v2546 = vpack.c.b16 %v2502, %v2498
        %v2547 = vpack.c.b16 %v2503, %v2499
        %v2548 = vpack.c.b16 %v2504, %v2500
        %v2549 = vpack.c.b16 %v2505, %v2501
        %v2550 = vpack.c.b16 %v2510, %v2506
        %v2551 = vpack.c.b16 %v2511, %v2507
        %v2552 = vpack.c.b16 %v2512, %v2508
        %v2553 = vpack.c.b16 %v2513, %v2509
        %v2554 = vpack.c.b16 %v2518, %v2514
        %v2555 = vpack.c.b16 %v2519, %v2515
        %v2556 = vpack.c.b16 %v2520, %v2516
        %v2557 = vpack.c.b16 %v2521, %v2517
        %v2558 = vpack.c.b16 %v2526, %v2522
        %v2559 = vpack.c.b16 %v2527, %v2523
        %v2560 = vpack.c.b16 %v2528, %v2524
        %v2561 = vpack.c.b16 %v2529, %v2525
        %2594 = vmatpush.bf16.msra.mxu0 %v2558
        %2595 = vmatpush.bf16.msra.mxu0 %v2554
        %2596 = vmatpush.bf16.msra.mxu0 %v2550
        %2597 = vmatpush.bf16.msra.mxu0 %v2546
        %2598 = vmatpush.bf16.msra.mxu0 %v2542
        %2599 = vmatpush.bf16.msra.mxu0 %v2538
        %2600 = vmatpush.bf16.msra.mxu0 %v2534
        %2601 = vmatpush.bf16.msra.mxu0 %v2530
        %2602 = vmatmul.bf16.gmra.mxu0 %v2401
        %v2603 = vpop.f32.mrf.mxu0
        %v2604 = vadd.f32 0.0, %v2603
        %v2605 = vpop.f32.mrf.mxu0
        %2606 = vdwg.mxu0
        %2607 = vmatpush.bf16.msra.mxu0 %v2559
        %2608 = vmatpush.bf16.msra.mxu0 %v2555
        %2609 = vmatpush.bf16.msra.mxu0 %v2551
        %2610 = vmatpush.bf16.msra.mxu0 %v2547
        %2611 = vmatpush.bf16.msra.mxu0 %v2543
        %2612 = vmatpush.bf16.msra.mxu0 %v2539
        %2613 = vmatpush.bf16.msra.mxu0 %v2535
        %2614 = vmatpush.bf16.msra.mxu0 %v2531
        %2615 = vmatmul.bf16.gmra.mxu0 %v2401
        %v2616 = vpop.f32.mrf.mxu0
        %v2617 = vadd.f32 0.0, %v2616
        %v2618 = vpop.f32.mrf.mxu0
        %2619 = vdwg.mxu0
        %2620 = vmatpush.bf16.msra.mxu0 %v2560
        %2621 = vmatpush.bf16.msra.mxu0 %v2556
        %2622 = vmatpush.bf16.msra.mxu0 %v2552
        %2623 = vmatpush.bf16.msra.mxu0 %v2548
        %2624 = vmatpush.bf16.msra.mxu0 %v2544
        %2625 = vmatpush.bf16.msra.mxu0 %v2540
        %2626 = vmatpush.bf16.msra.mxu0 %v2536
        %2627 = vmatpush.bf16.msra.mxu0 %v2532
        %2628 = vmatmul.bf16.gmra.mxu0 %v2401
        %v2629 = vpop.f32.mrf.mxu0
        %v2630 = vadd.f32 0.0, %v2629
        %v2631 = vpop.f32.mrf.mxu0
        %2632 = vdwg.mxu0
        %2633 = vmatpush.bf16.msra.mxu0 %v2561
        %2634 = vmatpush.bf16.msra.mxu0 %v2557
        %2635 = vmatpush.bf16.msra.mxu0 %v2553
        %2636 = vmatpush.bf16.msra.mxu0 %v2549
        %2637 = vmatpush.bf16.msra.mxu0 %v2545
        %2638 = vmatpush.bf16.msra.mxu0 %v2541
        %2639 = vmatpush.bf16.msra.mxu0 %v2537
        %2640 = vmatpush.bf16.msra.mxu0 %v2533
        %2641 = vmatmul.bf16.gmra.mxu0 %v2401
        %v2642 = vpop.f32.mrf.mxu0
        %v2643 = vadd.f32 0.0, %v2642
        %v2644 = vpop.f32.mrf.mxu0
        %2645 = vdwg.mxu0
        %v2646 = vadd.f32 %v2397, %v2604
        %v2647 = vadd.f32 %v2398, %v2617
        %v2648 = vadd.f32 %v2399, %v2630
        %v2649 = vadd.f32 %v2400, %v2643
        %v2650 = vxor.u32 %v2646, 2147483648
        %v2651 = vxor.u32 %v2647, 2147483648
        %v2652 = vxor.u32 %v2648, 2147483648
        %v2653 = vmul.f32 %v2650, 1.442695
        %v2654 = vpow.pop %v2653
        %v2655 = vmul.f32 %v2651, 1.442695
        %v2656 = vpow.pop %v2655
        %v2657 = vmul.f32 %v2652, 1.442695
        %v2658 = vpow.pop %v2657
        %v2659 = vadd.f32 %v2654, 1.0
        %v2660 = vadd.f32 %v2656, 1.0
        %v2661 = vadd.f32 %v2658, 1.0
        %v2662 = vrcp.pop %v2659
        %v2663 = vmul.f32 %v2659, %v2662
        %v2664 = vsub.f32 1.0, %v2663
        %v2665 = vmul.f32 %v2662, %v2664
        %v2666 = vadd.f32 %v2662, %v2665
        %vm2667 = vweird.f32 %v2659
        %vm2668 = vweird.f32 %v2662
        %vm2669 = vmor %vm2667, %vm2668
        %v2670 = vsel %vm2669, %v2662, %v2666
        %v2671 = vand.u32 2147483647, %v2659
        %vm2672 = vcmp.eq.f32.partialorder %v2671, 8.507059e+37
        %v2673 = vand.u32 %v2659, 2147483648
        %v2674 = vor.u32 1.1754944e-38, %v2673
        %v2675 = vsel %vm2672, %v2674, %v2670
        %v2676 = vmul.f32 1.0, %v2675
        %v2677 = vrcp.pop %v2660
        %v2678 = vmul.f32 %v2660, %v2677
        %v2679 = vsub.f32 1.0, %v2678
        %v2680 = vmul.f32 %v2677, %v2679
        %v2681 = vadd.f32 %v2677, %v2680
        %vm2682 = vweird.f32 %v2660
        %vm2683 = vweird.f32 %v2677
        %vm2684 = vmor %vm2682, %vm2683
        %v2685 = vsel %vm2684, %v2677, %v2681
        %v2686 = vand.u32 2147483647, %v2660
        %vm2687 = vcmp.eq.f32.partialorder %v2686, 8.507059e+37
        %v2688 = vand.u32 %v2660, 2147483648
        %v2689 = vor.u32 1.1754944e-38, %v2688
        %v2690 = vsel %vm2687, %v2689, %v2685
        %v2691 = vmul.f32 1.0, %v2690
        %v2692 = vrcp.pop %v2661
        %v2693 = vmul.f32 %v2661, %v2692
        %v2694 = vsub.f32 1.0, %v2693
        %v2695 = vmul.f32 %v2692, %v2694
        %v2696 = vadd.f32 %v2692, %v2695
        %vm2697 = vweird.f32 %v2661
        %vm2698 = vweird.f32 %v2692
        %vm2699 = vmor %vm2697, %vm2698
        %v2700 = vsel %vm2699, %v2692, %v2696
        %v2701 = vand.u32 2147483647, %v2661
        %vm2702 = vcmp.eq.f32.partialorder %v2701, 8.507059e+37
        %v2703 = vand.u32 %v2661, 2147483648
        %v2704 = vor.u32 1.1754944e-38, %v2703
        %v2705 = vsel %vm2702, %v2704, %v2700
        %v2706 = vmul.f32 1.0, %v2705
        %v2707 = vtanh.pop %v2649
        %v2708 = vmul.f32 %v2691, %v2391
        %v2709 = vmul.f32 %v2676, %v2707
        %v2710 = vadd.f32 %v2708, %v2709
        %v2711 = vtanh.pop %v2710
        %v2712 = vmul.f32 %v2706, %v2711
        %s2713 = sadd.s32 %s403, 4
        %p2714 = scmp.lt.s32.totalorder %s2713, 37
        %s2715 = scalar_select %p2714, 1, 0
        %v2716 = vstv %s2715
        %vm2717 = vcmp.eq.s32.totalorder %v2716, 1
        %v2718 = vsel %vm2717, %v2710, %v2391
        %v2719 = vsel %vm2717, %v2712, %v2392
        %s2720 = smul.u32 %s2713, 8
        %s2721 = scalar_lea.vmem [#allocation2], %s2720
        %2722 = vst [vmem:[%s2721] sm:$0xff] %v2719
        %s2723 = scalar_lea.vmem [#allocation3], 160
        %v2724 = vld [vmem:[%s2723] sm:$0xff]
        %v2725 = vld [vmem:[%s2723 + $0x8] sm:$0xff]
        %v2726 = vld [vmem:[%s2723 + $0x10] sm:$0xff]
        %v2727 = vld [vmem:[%s2723 + $0x18] sm:$0xff]
        %v2728 = vpack.c.bf16 %v2719, %v2719
        %v2729 = vld [vmem:[%s344] sm:$0xff]
        %v2730 = vld [vmem:[%s344 + $0x8] sm:$0xff]
        %v2731 = vld [vmem:[%s344 + $0x10] sm:$0xff]
        %v2732 = vld [vmem:[%s344 + $0x18] sm:$0xff]
        %v2733 = vld [vmem:[%s344 + $0x20] sm:$0xff]
        %v2734 = vld [vmem:[%s344 + $0x28] sm:$0xff]
        %v2735 = vld [vmem:[%s344 + $0x30] sm:$0xff]
        %v2736 = vld [vmem:[%s344 + $0x38] sm:$0xff]
        %v2737 = vld [vmem:[%s344 + $0x40] sm:$0xff]
        %v2738 = vld [vmem:[%s344 + $0x48] sm:$0xff]
        %v2739 = vld [vmem:[%s344 + $0x50] sm:$0xff]
        %v2740 = vld [vmem:[%s344 + $0x58] sm:$0xff]
        %v2741 = vld [vmem:[%s344 + $0x60] sm:$0xff]
        %v2742 = vld [vmem:[%s344 + $0x68] sm:$0xff]
        %v2743 = vld [vmem:[%s344 + $0x70] sm:$0xff]
        %v2744 = vld [vmem:[%s344 + $0x78] sm:$0xff]
        %v2745 = vld [vmem:[%s344 + $0x80] sm:$0xff]
        %v2746 = vld [vmem:[%s344 + $0x88] sm:$0xff]
        %v2747 = vld [vmem:[%s344 + $0x90] sm:$0xff]
        %v2748 = vld [vmem:[%s344 + $0x98] sm:$0xff]
        %v2749 = vld [vmem:[%s344 + $0xa0] sm:$0xff]
        %v2750 = vld [vmem:[%s344 + $0xa8] sm:$0xff]
        %v2751 = vld [vmem:[%s344 + $0xb0] sm:$0xff]
        %v2752 = vld [vmem:[%s344 + $0xb8] sm:$0xff]
        %v2753 = vld [vmem:[%s344 + $0xc0] sm:$0xff]
        %v2754 = vld [vmem:[%s344 + $0xc8] sm:$0xff]
        %v2755 = vld [vmem:[%s344 + $0xd0] sm:$0xff]
        %v2756 = vld [vmem:[%s344 + $0xd8] sm:$0xff]
        %v2757 = vld [vmem:[%s344 + $0xe0] sm:$0xff]
        %v2758 = vld [vmem:[%s344 + $0xe8] sm:$0xff]
        %v2759 = vld [vmem:[%s344 + $0xf0] sm:$0xff]
        %v2760 = vld [vmem:[%s344 + $0xf8] sm:$0xff]
        %v2793 = vunpack.c.l.b16 %v2729
        %v2794 = vunpack.c.h.b16 %v2729
        %v2795 = vunpack.c.l.b16 %v2730
        %v2796 = vunpack.c.h.b16 %v2730
        %v2797 = vunpack.c.l.b16 %v2731
        %v2798 = vunpack.c.h.b16 %v2731
        %v2799 = vunpack.c.l.b16 %v2732
        %v2800 = vunpack.c.h.b16 %v2732
        %v2801 = vunpack.c.l.b16 %v2733
        %v2802 = vunpack.c.h.b16 %v2733
        %v2803 = vunpack.c.l.b16 %v2734
        %v2804 = vunpack.c.h.b16 %v2734
        %v2805 = vunpack.c.l.b16 %v2735
        %v2806 = vunpack.c.h.b16 %v2735
        %v2807 = vunpack.c.l.b16 %v2736
        %v2808 = vunpack.c.h.b16 %v2736
        %v2809 = vunpack.c.l.b16 %v2737
        %v2810 = vunpack.c.h.b16 %v2737
        %v2811 = vunpack.c.l.b16 %v2738
        %v2812 = vunpack.c.h.b16 %v2738
        %v2813 = vunpack.c.l.b16 %v2739
        %v2814 = vunpack.c.h.b16 %v2739
        %v2815 = vunpack.c.l.b16 %v2740
        %v2816 = vunpack.c.h.b16 %v2740
        %v2817 = vunpack.c.l.b16 %v2741
        %v2818 = vunpack.c.h.b16 %v2741
        %v2819 = vunpack.c.l.b16 %v2742
        %v2820 = vunpack.c.h.b16 %v2742
        %v2821 = vunpack.c.l.b16 %v2743
        %v2822 = vunpack.c.h.b16 %v2743
        %v2823 = vunpack.c.l.b16 %v2744
        %v2824 = vunpack.c.h.b16 %v2744
        %v2825 = vunpack.c.l.b16 %v2745
        %v2826 = vunpack.c.h.b16 %v2745
        %v2827 = vunpack.c.l.b16 %v2746
        %v2828 = vunpack.c.h.b16 %v2746
        %v2829 = vunpack.c.l.b16 %v2747
        %v2830 = vunpack.c.h.b16 %v2747
        %v2831 = vunpack.c.l.b16 %v2748
        %v2832 = vunpack.c.h.b16 %v2748
        %v2833 = vunpack.c.l.b16 %v2749
        %v2834 = vunpack.c.h.b16 %v2749
        %v2835 = vunpack.c.l.b16 %v2750
        %v2836 = vunpack.c.h.b16 %v2750
        %v2837 = vunpack.c.l.b16 %v2751
        %v2838 = vunpack.c.h.b16 %v2751
        %v2839 = vunpack.c.l.b16 %v2752
        %v2840 = vunpack.c.h.b16 %v2752
        %v2841 = vunpack.c.l.b16 %v2753
        %v2842 = vunpack.c.h.b16 %v2753
        %v2843 = vunpack.c.l.b16 %v2754
        %v2844 = vunpack.c.h.b16 %v2754
        %v2845 = vunpack.c.l.b16 %v2755
        %v2846 = vunpack.c.h.b16 %v2755
        %v2847 = vunpack.c.l.b16 %v2756
        %v2848 = vunpack.c.h.b16 %v2756
        %v2849 = vunpack.c.l.b16 %v2757
        %v2850 = vunpack.c.h.b16 %v2757
        %v2851 = vunpack.c.l.b16 %v2758
        %v2852 = vunpack.c.h.b16 %v2758
        %v2853 = vunpack.c.l.b16 %v2759
        %v2854 = vunpack.c.h.b16 %v2759
        %v2855 = vunpack.c.l.b16 %v2760
        %v2856 = vunpack.c.h.b16 %v2760
        %v2857 = vpack.c.b16 %v2797, %v2793
        %v2858 = vpack.c.b16 %v2798, %v2794
        %v2859 = vpack.c.b16 %v2799, %v2795
        %v2860 = vpack.c.b16 %v2800, %v2796
        %v2861 = vpack.c.b16 %v2805, %v2801
        %v2862 = vpack.c.b16 %v2806, %v2802
        %v2863 = vpack.c.b16 %v2807, %v2803
        %v2864 = vpack.c.b16 %v2808, %v2804
        %v2865 = vpack.c.b16 %v2813, %v2809
        %v2866 = vpack.c.b16 %v2814, %v2810
        %v2867 = vpack.c.b16 %v2815, %v2811
        %v2868 = vpack.c.b16 %v2816, %v2812
        %v2869 = vpack.c.b16 %v2821, %v2817
        %v2870 = vpack.c.b16 %v2822, %v2818
        %v2871 = vpack.c.b16 %v2823, %v2819
        %v2872 = vpack.c.b16 %v2824, %v2820
        %v2873 = vpack.c.b16 %v2829, %v2825
        %v2874 = vpack.c.b16 %v2830, %v2826
        %v2875 = vpack.c.b16 %v2831, %v2827
        %v2876 = vpack.c.b16 %v2832, %v2828
        %v2877 = vpack.c.b16 %v2837, %v2833
        %v2878 = vpack.c.b16 %v2838, %v2834
        %v2879 = vpack.c.b16 %v2839, %v2835
        %v2880 = vpack.c.b16 %v2840, %v2836
        %v2881 = vpack.c.b16 %v2845, %v2841
        %v2882 = vpack.c.b16 %v2846, %v2842
        %v2883 = vpack.c.b16 %v2847, %v2843
        %v2884 = vpack.c.b16 %v2848, %v2844
        %v2885 = vpack.c.b16 %v2853, %v2849
        %v2886 = vpack.c.b16 %v2854, %v2850
        %v2887 = vpack.c.b16 %v2855, %v2851
        %v2888 = vpack.c.b16 %v2856, %v2852
        %2921 = vmatpush.bf16.msra.mxu0 %v2885
        %2922 = vmatpush.bf16.msra.mxu0 %v2881
        %2923 = vmatpush.bf16.msra.mxu0 %v2877
        %2924 = vmatpush.bf16.msra.mxu0 %v2873
        %2925 = vmatpush.bf16.msra.mxu0 %v2869
        %2926 = vmatpush.bf16.msra.mxu0 %v2865
        %2927 = vmatpush.bf16.msra.mxu0 %v2861
        %2928 = vmatpush.bf16.msra.mxu0 %v2857
        %2929 = vmatmul.bf16.gmra.mxu0 %v2728
        %v2930 = vpop.f32.mrf.mxu0
        %v2931 = vadd.f32 0.0, %v2930
        %v2932 = vpop.f32.mrf.mxu0
        %2933 = vdwg.mxu0
        %2934 = vmatpush.bf16.msra.mxu0 %v2886
        %2935 = vmatpush.bf16.msra.mxu0 %v2882
        %2936 = vmatpush.bf16.msra.mxu0 %v2878
        %2937 = vmatpush.bf16.msra.mxu0 %v2874
        %2938 = vmatpush.bf16.msra.mxu0 %v2870
        %2939 = vmatpush.bf16.msra.mxu0 %v2866
        %2940 = vmatpush.bf16.msra.mxu0 %v2862
        %2941 = vmatpush.bf16.msra.mxu0 %v2858
        %2942 = vmatmul.bf16.gmra.mxu0 %v2728
        %v2943 = vpop.f32.mrf.mxu0
        %v2944 = vadd.f32 0.0, %v2943
        %v2945 = vpop.f32.mrf.mxu0
        %2946 = vdwg.mxu0
        %2947 = vmatpush.bf16.msra.mxu0 %v2887
        %2948 = vmatpush.bf16.msra.mxu0 %v2883
        %2949 = vmatpush.bf16.msra.mxu0 %v2879
        %2950 = vmatpush.bf16.msra.mxu0 %v2875
        %2951 = vmatpush.bf16.msra.mxu0 %v2871
        %2952 = vmatpush.bf16.msra.mxu0 %v2867
        %2953 = vmatpush.bf16.msra.mxu0 %v2863
        %2954 = vmatpush.bf16.msra.mxu0 %v2859
        %2955 = vmatmul.bf16.gmra.mxu0 %v2728
        %v2956 = vpop.f32.mrf.mxu0
        %v2957 = vadd.f32 0.0, %v2956
        %v2958 = vpop.f32.mrf.mxu0
        %2959 = vdwg.mxu0
        %2960 = vmatpush.bf16.msra.mxu0 %v2888
        %2961 = vmatpush.bf16.msra.mxu0 %v2884
        %2962 = vmatpush.bf16.msra.mxu0 %v2880
        %2963 = vmatpush.bf16.msra.mxu0 %v2876
        %2964 = vmatpush.bf16.msra.mxu0 %v2872
        %2965 = vmatpush.bf16.msra.mxu0 %v2868
        %2966 = vmatpush.bf16.msra.mxu0 %v2864
        %2967 = vmatpush.bf16.msra.mxu0 %v2860
        %2968 = vmatmul.bf16.gmra.mxu0 %v2728
        %v2969 = vpop.f32.mrf.mxu0
        %v2970 = vadd.f32 0.0, %v2969
        %v2971 = vpop.f32.mrf.mxu0
        %2972 = vdwg.mxu0
        %v2973 = vadd.f32 %v2724, %v2931
        %v2974 = vadd.f32 %v2725, %v2944
        %v2975 = vadd.f32 %v2726, %v2957
        %v2976 = vadd.f32 %v2727, %v2970
        %v2977 = vxor.u32 %v2973, 2147483648
        %v2978 = vxor.u32 %v2974, 2147483648
        %v2979 = vxor.u32 %v2975, 2147483648
        %v2980 = vmul.f32 %v2977, 1.442695
        %v2981 = vpow.pop %v2980
        %v2982 = vmul.f32 %v2978, 1.442695
        %v2983 = vpow.pop %v2982
        %v2984 = vmul.f32 %v2979, 1.442695
        %v2985 = vpow.pop %v2984
        %v2986 = vadd.f32 %v2981, 1.0
        %v2987 = vadd.f32 %v2983, 1.0
        %v2988 = vadd.f32 %v2985, 1.0
        %v2989 = vrcp.pop %v2986
        %v2990 = vmul.f32 %v2986, %v2989
        %v2991 = vsub.f32 1.0, %v2990
        %v2992 = vmul.f32 %v2989, %v2991
        %v2993 = vadd.f32 %v2989, %v2992
        %vm2994 = vweird.f32 %v2986
        %vm2995 = vweird.f32 %v2989
        %vm2996 = vmor %vm2994, %vm2995
        %v2997 = vsel %vm2996, %v2989, %v2993
        %v2998 = vand.u32 2147483647, %v2986
        %vm2999 = vcmp.eq.f32.partialorder %v2998, 8.507059e+37
        %v3000 = vand.u32 %v2986, 2147483648
        %v3001 = vor.u32 1.1754944e-38, %v3000
        %v3002 = vsel %vm2999, %v3001, %v2997
        %v3003 = vmul.f32 1.0, %v3002
        %v3004 = vrcp.pop %v2987
        %v3005 = vmul.f32 %v2987, %v3004
        %v3006 = vsub.f32 1.0, %v3005
        %v3007 = vmul.f32 %v3004, %v3006
        %v3008 = vadd.f32 %v3004, %v3007
        %vm3009 = vweird.f32 %v2987
        %vm3010 = vweird.f32 %v3004
        %vm3011 = vmor %vm3009, %vm3010
        %v3012 = vsel %vm3011, %v3004, %v3008
        %v3013 = vand.u32 2147483647, %v2987
        %vm3014 = vcmp.eq.f32.partialorder %v3013, 8.507059e+37
        %v3015 = vand.u32 %v2987, 2147483648
        %v3016 = vor.u32 1.1754944e-38, %v3015
        %v3017 = vsel %vm3014, %v3016, %v3012
        %v3018 = vmul.f32 1.0, %v3017
        %v3019 = vrcp.pop %v2988
        %v3020 = vmul.f32 %v2988, %v3019
        %v3021 = vsub.f32 1.0, %v3020
        %v3022 = vmul.f32 %v3019, %v3021
        %v3023 = vadd.f32 %v3019, %v3022
        %vm3024 = vweird.f32 %v2988
        %vm3025 = vweird.f32 %v3019
        %vm3026 = vmor %vm3024, %vm3025
        %v3027 = vsel %vm3026, %v3019, %v3023
        %v3028 = vand.u32 2147483647, %v2988
        %vm3029 = vcmp.eq.f32.partialorder %v3028, 8.507059e+37
        %v3030 = vand.u32 %v2988, 2147483648
        %v3031 = vor.u32 1.1754944e-38, %v3030
        %v3032 = vsel %vm3029, %v3031, %v3027
        %v3033 = vmul.f32 1.0, %v3032
        %v3034 = vtanh.pop %v2976
        %v3035 = vmul.f32 %v3018, %v2718
        %v3036 = vmul.f32 %v3003, %v3034
        %v3037 = vadd.f32 %v3035, %v3036
        %v3038 = vtanh.pop %v3037
        %v3039 = vmul.f32 %v3033, %v3038
        %s3040 = sadd.s32 %s403, 5
        %p3041 = scmp.lt.s32.totalorder %s3040, 37
        %s3042 = scalar_select %p3041, 1, 0
        %v3043 = vstv %s3042
        %vm3044 = vcmp.eq.s32.totalorder %v3043, 1
        %v3045 = vsel %vm3044, %v3037, %v2718
        %v3046 = vsel %vm3044, %v3039, %v2719
        %s3047 = smul.u32 %s3040, 8
        %s3048 = scalar_lea.vmem [#allocation2], %s3047
        %3049 = vst [vmem:[%s3048] sm:$0xff] %v3046
        %s3050 = scalar_lea.vmem [#allocation3], 192
        %v3051 = vld [vmem:[%s3050] sm:$0xff]
        %v3052 = vld [vmem:[%s3050 + $0x8] sm:$0xff]
        %v3053 = vld [vmem:[%s3050 + $0x10] sm:$0xff]
        %v3054 = vld [vmem:[%s3050 + $0x18] sm:$0xff]
        %v3055 = vpack.c.bf16 %v3046, %v3046
        %v3056 = vld [vmem:[%s344] sm:$0xff]
        %v3057 = vld [vmem:[%s344 + $0x8] sm:$0xff]
        %v3058 = vld [vmem:[%s344 + $0x10] sm:$0xff]
        %v3059 = vld [vmem:[%s344 + $0x18] sm:$0xff]
        %v3060 = vld [vmem:[%s344 + $0x20] sm:$0xff]
        %v3061 = vld [vmem:[%s344 + $0x28] sm:$0xff]
        %v3062 = vld [vmem:[%s344 + $0x30] sm:$0xff]
        %v3063 = vld [vmem:[%s344 + $0x38] sm:$0xff]
        %v3064 = vld [vmem:[%s344 + $0x40] sm:$0xff]
        %v3065 = vld [vmem:[%s344 + $0x48] sm:$0xff]
        %v3066 = vld [vmem:[%s344 + $0x50] sm:$0xff]
        %v3067 = vld [vmem:[%s344 + $0x58] sm:$0xff]
        %v3068 = vld [vmem:[%s344 + $0x60] sm:$0xff]
        %v3069 = vld [vmem:[%s344 + $0x68] sm:$0xff]
        %v3070 = vld [vmem:[%s344 + $0x70] sm:$0xff]
        %v3071 = vld [vmem:[%s344 + $0x78] sm:$0xff]
        %v3072 = vld [vmem:[%s344 + $0x80] sm:$0xff]
        %v3073 = vld [vmem:[%s344 + $0x88] sm:$0xff]
        %v3074 = vld [vmem:[%s344 + $0x90] sm:$0xff]
        %v3075 = vld [vmem:[%s344 + $0x98] sm:$0xff]
        %v3076 = vld [vmem:[%s344 + $0xa0] sm:$0xff]
        %v3077 = vld [vmem:[%s344 + $0xa8] sm:$0xff]
        %v3078 = vld [vmem:[%s344 + $0xb0] sm:$0xff]
        %v3079 = vld [vmem:[%s344 + $0xb8] sm:$0xff]
        %v3080 = vld [vmem:[%s344 + $0xc0] sm:$0xff]
        %v3081 = vld [vmem:[%s344 + $0xc8] sm:$0xff]
        %v3082 = vld [vmem:[%s344 + $0xd0] sm:$0xff]
        %v3083 = vld [vmem:[%s344 + $0xd8] sm:$0xff]
        %v3084 = vld [vmem:[%s344 + $0xe0] sm:$0xff]
        %v3085 = vld [vmem:[%s344 + $0xe8] sm:$0xff]
        %v3086 = vld [vmem:[%s344 + $0xf0] sm:$0xff]
        %v3087 = vld [vmem:[%s344 + $0xf8] sm:$0xff]
        %v3120 = vunpack.c.l.b16 %v3056
        %v3121 = vunpack.c.h.b16 %v3056
        %v3122 = vunpack.c.l.b16 %v3057
        %v3123 = vunpack.c.h.b16 %v3057
        %v3124 = vunpack.c.l.b16 %v3058
        %v3125 = vunpack.c.h.b16 %v3058
        %v3126 = vunpack.c.l.b16 %v3059
        %v3127 = vunpack.c.h.b16 %v3059
        %v3128 = vunpack.c.l.b16 %v3060
        %v3129 = vunpack.c.h.b16 %v3060
        %v3130 = vunpack.c.l.b16 %v3061
        %v3131 = vunpack.c.h.b16 %v3061
        %v3132 = vunpack.c.l.b16 %v3062
        %v3133 = vunpack.c.h.b16 %v3062
        %v3134 = vunpack.c.l.b16 %v3063
        %v3135 = vunpack.c.h.b16 %v3063
        %v3136 = vunpack.c.l.b16 %v3064
        %v3137 = vunpack.c.h.b16 %v3064
        %v3138 = vunpack.c.l.b16 %v3065
        %v3139 = vunpack.c.h.b16 %v3065
        %v3140 = vunpack.c.l.b16 %v3066
        %v3141 = vunpack.c.h.b16 %v3066
        %v3142 = vunpack.c.l.b16 %v3067
        %v3143 = vunpack.c.h.b16 %v3067
        %v3144 = vunpack.c.l.b16 %v3068
        %v3145 = vunpack.c.h.b16 %v3068
        %v3146 = vunpack.c.l.b16 %v3069
        %v3147 = vunpack.c.h.b16 %v3069
        %v3148 = vunpack.c.l.b16 %v3070
        %v3149 = vunpack.c.h.b16 %v3070
        %v3150 = vunpack.c.l.b16 %v3071
        %v3151 = vunpack.c.h.b16 %v3071
        %v3152 = vunpack.c.l.b16 %v3072
        %v3153 = vunpack.c.h.b16 %v3072
        %v3154 = vunpack.c.l.b16 %v3073
        %v3155 = vunpack.c.h.b16 %v3073
        %v3156 = vunpack.c.l.b16 %v3074
        %v3157 = vunpack.c.h.b16 %v3074
        %v3158 = vunpack.c.l.b16 %v3075
        %v3159 = vunpack.c.h.b16 %v3075
        %v3160 = vunpack.c.l.b16 %v3076
        %v3161 = vunpack.c.h.b16 %v3076
        %v3162 = vunpack.c.l.b16 %v3077
        %v3163 = vunpack.c.h.b16 %v3077
        %v3164 = vunpack.c.l.b16 %v3078
        %v3165 = vunpack.c.h.b16 %v3078
        %v3166 = vunpack.c.l.b16 %v3079
        %v3167 = vunpack.c.h.b16 %v3079
        %v3168 = vunpack.c.l.b16 %v3080
        %v3169 = vunpack.c.h.b16 %v3080
        %v3170 = vunpack.c.l.b16 %v3081
        %v3171 = vunpack.c.h.b16 %v3081
        %v3172 = vunpack.c.l.b16 %v3082
        %v3173 = vunpack.c.h.b16 %v3082
        %v3174 = vunpack.c.l.b16 %v3083
        %v3175 = vunpack.c.h.b16 %v3083
        %v3176 = vunpack.c.l.b16 %v3084
        %v3177 = vunpack.c.h.b16 %v3084
        %v3178 = vunpack.c.l.b16 %v3085
        %v3179 = vunpack.c.h.b16 %v3085
        %v3180 = vunpack.c.l.b16 %v3086
        %v3181 = vunpack.c.h.b16 %v3086
        %v3182 = vunpack.c.l.b16 %v3087
        %v3183 = vunpack.c.h.b16 %v3087
        %v3184 = vpack.c.b16 %v3124, %v3120
        %v3185 = vpack.c.b16 %v3125, %v3121
        %v3186 = vpack.c.b16 %v3126, %v3122
        %v3187 = vpack.c.b16 %v3127, %v3123
        %v3188 = vpack.c.b16 %v3132, %v3128
        %v3189 = vpack.c.b16 %v3133, %v3129
        %v3190 = vpack.c.b16 %v3134, %v3130
        %v3191 = vpack.c.b16 %v3135, %v3131
        %v3192 = vpack.c.b16 %v3140, %v3136
        %v3193 = vpack.c.b16 %v3141, %v3137
        %v3194 = vpack.c.b16 %v3142, %v3138
        %v3195 = vpack.c.b16 %v3143, %v3139
        %v3196 = vpack.c.b16 %v3148, %v3144
        %v3197 = vpack.c.b16 %v3149, %v3145
        %v3198 = vpack.c.b16 %v3150, %v3146
        %v3199 = vpack.c.b16 %v3151, %v3147
        %v3200 = vpack.c.b16 %v3156, %v3152
        %v3201 = vpack.c.b16 %v3157, %v3153
        %v3202 = vpack.c.b16 %v3158, %v3154
        %v3203 = vpack.c.b16 %v3159, %v3155
        %v3204 = vpack.c.b16 %v3164, %v3160
        %v3205 = vpack.c.b16 %v3165, %v3161
        %v3206 = vpack.c.b16 %v3166, %v3162
        %v3207 = vpack.c.b16 %v3167, %v3163
        %v3208 = vpack.c.b16 %v3172, %v3168
        %v3209 = vpack.c.b16 %v3173, %v3169
        %v3210 = vpack.c.b16 %v3174, %v3170
        %v3211 = vpack.c.b16 %v3175, %v3171
        %v3212 = vpack.c.b16 %v3180, %v3176
        %v3213 = vpack.c.b16 %v3181, %v3177
        %v3214 = vpack.c.b16 %v3182, %v3178
        %v3215 = vpack.c.b16 %v3183, %v3179
        %3248 = vmatpush.bf16.msra.mxu0 %v3212
        %3249 = vmatpush.bf16.msra.mxu0 %v3208
        %3250 = vmatpush.bf16.msra.mxu0 %v3204
        %3251 = vmatpush.bf16.msra.mxu0 %v3200
        %3252 = vmatpush.bf16.msra.mxu0 %v3196
        %3253 = vmatpush.bf16.msra.mxu0 %v3192
        %3254 = vmatpush.bf16.msra.mxu0 %v3188
        %3255 = vmatpush.bf16.msra.mxu0 %v3184
        %3256 = vmatmul.bf16.gmra.mxu0 %v3055
        %v3257 = vpop.f32.mrf.mxu0
        %v3258 = vadd.f32 0.0, %v3257
        %v3259 = vpop.f32.mrf.mxu0
        %3260 = vdwg.mxu0
        %3261 = vmatpush.bf16.msra.mxu0 %v3213
        %3262 = vmatpush.bf16.msra.mxu0 %v3209
        %3263 = vmatpush.bf16.msra.mxu0 %v3205
        %3264 = vmatpush.bf16.msra.mxu0 %v3201
        %3265 = vmatpush.bf16.msra.mxu0 %v3197
        %3266 = vmatpush.bf16.msra.mxu0 %v3193
        %3267 = vmatpush.bf16.msra.mxu0 %v3189
        %3268 = vmatpush.bf16.msra.mxu0 %v3185
        %3269 = vmatmul.bf16.gmra.mxu0 %v3055
        %v3270 = vpop.f32.mrf.mxu0
        %v3271 = vadd.f32 0.0, %v3270
        %v3272 = vpop.f32.mrf.mxu0
        %3273 = vdwg.mxu0
        %3274 = vmatpush.bf16.msra.mxu0 %v3214
        %3275 = vmatpush.bf16.msra.mxu0 %v3210
        %3276 = vmatpush.bf16.msra.mxu0 %v3206
        %3277 = vmatpush.bf16.msra.mxu0 %v3202
        %3278 = vmatpush.bf16.msra.mxu0 %v3198
        %3279 = vmatpush.bf16.msra.mxu0 %v3194
        %3280 = vmatpush.bf16.msra.mxu0 %v3190
        %3281 = vmatpush.bf16.msra.mxu0 %v3186
        %3282 = vmatmul.bf16.gmra.mxu0 %v3055
        %v3283 = vpop.f32.mrf.mxu0
        %v3284 = vadd.f32 0.0, %v3283
        %v3285 = vpop.f32.mrf.mxu0
        %3286 = vdwg.mxu0
        %3287 = vmatpush.bf16.msra.mxu0 %v3215
        %3288 = vmatpush.bf16.msra.mxu0 %v3211
        %3289 = vmatpush.bf16.msra.mxu0 %v3207
        %3290 = vmatpush.bf16.msra.mxu0 %v3203
        %3291 = vmatpush.bf16.msra.mxu0 %v3199
        %3292 = vmatpush.bf16.msra.mxu0 %v3195
        %3293 = vmatpush.bf16.msra.mxu0 %v3191
        %3294 = vmatpush.bf16.msra.mxu0 %v3187
        %3295 = vmatmul.bf16.gmra.mxu0 %v3055
        %v3296 = vpop.f32.mrf.mxu0
        %v3297 = vadd.f32 0.0, %v3296
        %v3298 = vpop.f32.mrf.mxu0
        %3299 = vdwg.mxu0
        %v3300 = vadd.f32 %v3051, %v3258
        %v3301 = vadd.f32 %v3052, %v3271
        %v3302 = vadd.f32 %v3053, %v3284
        %v3303 = vadd.f32 %v3054, %v3297
        %v3304 = vxor.u32 %v3300, 2147483648
        %v3305 = vxor.u32 %v3301, 2147483648
        %v3306 = vxor.u32 %v3302, 2147483648
        %v3307 = vmul.f32 %v3304, 1.442695
        %v3308 = vpow.pop %v3307
        %v3309 = vmul.f32 %v3305, 1.442695
        %v3310 = vpow.pop %v3309
        %v3311 = vmul.f32 %v3306, 1.442695
        %v3312 = vpow.pop %v3311
        %v3313 = vadd.f32 %v3308, 1.0
        %v3314 = vadd.f32 %v3310, 1.0
        %v3315 = vadd.f32 %v3312, 1.0
        %v3316 = vrcp.pop %v3313
        %v3317 = vmul.f32 %v3313, %v3316
        %v3318 = vsub.f32 1.0, %v3317
        %v3319 = vmul.f32 %v3316, %v3318
        %v3320 = vadd.f32 %v3316, %v3319
        %vm3321 = vweird.f32 %v3313
        %vm3322 = vweird.f32 %v3316
        %vm3323 = vmor %vm3321, %vm3322
        %v3324 = vsel %vm3323, %v3316, %v3320
        %v3325 = vand.u32 2147483647, %v3313
        %vm3326 = vcmp.eq.f32.partialorder %v3325, 8.507059e+37
        %v3327 = vand.u32 %v3313, 2147483648
        %v3328 = vor.u32 1.1754944e-38, %v3327
        %v3329 = vsel %vm3326, %v3328, %v3324
        %v3330 = vmul.f32 1.0, %v3329
        %v3331 = vrcp.pop %v3314
        %v3332 = vmul.f32 %v3314, %v3331
        %v3333 = vsub.f32 1.0, %v3332
        %v3334 = vmul.f32 %v3331, %v3333
        %v3335 = vadd.f32 %v3331, %v3334
        %vm3336 = vweird.f32 %v3314
        %vm3337 = vweird.f32 %v3331
        %vm3338 = vmor %vm3336, %vm3337
        %v3339 = vsel %vm3338, %v3331, %v3335
        %v3340 = vand.u32 2147483647, %v3314
        %vm3341 = vcmp.eq.f32.partialorder %v3340, 8.507059e+37
        %v3342 = vand.u32 %v3314, 2147483648
        %v3343 = vor.u32 1.1754944e-38, %v3342
        %v3344 = vsel %vm3341, %v3343, %v3339
        %v3345 = vmul.f32 1.0, %v3344
        %v3346 = vrcp.pop %v3315
        %v3347 = vmul.f32 %v3315, %v3346
        %v3348 = vsub.f32 1.0, %v3347
        %v3349 = vmul.f32 %v3346, %v3348
        %v3350 = vadd.f32 %v3346, %v3349
        %vm3351 = vweird.f32 %v3315
        %vm3352 = vweird.f32 %v3346
        %vm3353 = vmor %vm3351, %vm3352
        %v3354 = vsel %vm3353, %v3346, %v3350
        %v3355 = vand.u32 2147483647, %v3315
        %vm3356 = vcmp.eq.f32.partialorder %v3355, 8.507059e+37
        %v3357 = vand.u32 %v3315, 2147483648
        %v3358 = vor.u32 1.1754944e-38, %v3357
        %v3359 = vsel %vm3356, %v3358, %v3354
        %v3360 = vmul.f32 1.0, %v3359
        %v3361 = vtanh.pop %v3303
        %v3362 = vmul.f32 %v3345, %v3045
        %v3363 = vmul.f32 %v3330, %v3361
        %v3364 = vadd.f32 %v3362, %v3363
        %v3365 = vtanh.pop %v3364
        %v3366 = vmul.f32 %v3360, %v3365
        %s3367 = sadd.s32 %s403, 6
        %p3368 = scmp.lt.s32.totalorder %s3367, 37
        %s3369 = scalar_select %p3368, 1, 0
        %v3370 = vstv %s3369
        %vm3371 = vcmp.eq.s32.totalorder %v3370, 1
        %v3372 = vsel %vm3371, %v3364, %v3045
        %v3373 = vsel %vm3371, %v3366, %v3046
        %s3374 = smul.u32 %s3367, 8
        %s3375 = scalar_lea.vmem [#allocation2], %s3374
        %3376 = vst [vmem:[%s3375] sm:$0xff] %v3373
        %s3377 = scalar_lea.vmem [#allocation3], 224
        %v3378 = vld [vmem:[%s3377] sm:$0xff]
        %v3379 = vld [vmem:[%s3377 + $0x8] sm:$0xff]
        %v3380 = vld [vmem:[%s3377 + $0x10] sm:$0xff]
        %v3381 = vld [vmem:[%s3377 + $0x18] sm:$0xff]
        %v3382 = vpack.c.bf16 %v3373, %v3373
        %v3383 = vld [vmem:[%s344] sm:$0xff]
        %v3384 = vld [vmem:[%s344 + $0x8] sm:$0xff]
        %v3385 = vld [vmem:[%s344 + $0x10] sm:$0xff]
        %v3386 = vld [vmem:[%s344 + $0x18] sm:$0xff]
        %v3387 = vld [vmem:[%s344 + $0x20] sm:$0xff]
        %v3388 = vld [vmem:[%s344 + $0x28] sm:$0xff]
        %v3389 = vld [vmem:[%s344 + $0x30] sm:$0xff]
        %v3390 = vld [vmem:[%s344 + $0x38] sm:$0xff]
        %v3391 = vld [vmem:[%s344 + $0x40] sm:$0xff]
        %v3392 = vld [vmem:[%s344 + $0x48] sm:$0xff]
        %v3393 = vld [vmem:[%s344 + $0x50] sm:$0xff]
        %v3394 = vld [vmem:[%s344 + $0x58] sm:$0xff]
        %v3395 = vld [vmem:[%s344 + $0x60] sm:$0xff]
        %v3396 = vld [vmem:[%s344 + $0x68] sm:$0xff]
        %v3397 = vld [vmem:[%s344 + $0x70] sm:$0xff]
        %v3398 = vld [vmem:[%s344 + $0x78] sm:$0xff]
        %v3399 = vld [vmem:[%s344 + $0x80] sm:$0xff]
        %v3400 = vld [vmem:[%s344 + $0x88] sm:$0xff]
        %v3401 = vld [vmem:[%s344 + $0x90] sm:$0xff]
        %v3402 = vld [vmem:[%s344 + $0x98] sm:$0xff]
        %v3403 = vld [vmem:[%s344 + $0xa0] sm:$0xff]
        %v3404 = vld [vmem:[%s344 + $0xa8] sm:$0xff]
        %v3405 = vld [vmem:[%s344 + $0xb0] sm:$0xff]
        %v3406 = vld [vmem:[%s344 + $0xb8] sm:$0xff]
        %v3407 = vld [vmem:[%s344 + $0xc0] sm:$0xff]
        %v3408 = vld [vmem:[%s344 + $0xc8] sm:$0xff]
        %v3409 = vld [vmem:[%s344 + $0xd0] sm:$0xff]
        %v3410 = vld [vmem:[%s344 + $0xd8] sm:$0xff]
        %v3411 = vld [vmem:[%s344 + $0xe0] sm:$0xff]
        %v3412 = vld [vmem:[%s344 + $0xe8] sm:$0xff]
        %v3413 = vld [vmem:[%s344 + $0xf0] sm:$0xff]
        %v3414 = vld [vmem:[%s344 + $0xf8] sm:$0xff]
        %v3447 = vunpack.c.l.b16 %v3383
        %v3448 = vunpack.c.h.b16 %v3383
        %v3449 = vunpack.c.l.b16 %v3384
        %v3450 = vunpack.c.h.b16 %v3384
        %v3451 = vunpack.c.l.b16 %v3385
        %v3452 = vunpack.c.h.b16 %v3385
        %v3453 = vunpack.c.l.b16 %v3386
        %v3454 = vunpack.c.h.b16 %v3386
        %v3455 = vunpack.c.l.b16 %v3387
        %v3456 = vunpack.c.h.b16 %v3387
        %v3457 = vunpack.c.l.b16 %v3388
        %v3458 = vunpack.c.h.b16 %v3388
        %v3459 = vunpack.c.l.b16 %v3389
        %v3460 = vunpack.c.h.b16 %v3389
        %v3461 = vunpack.c.l.b16 %v3390
        %v3462 = vunpack.c.h.b16 %v3390
        %v3463 = vunpack.c.l.b16 %v3391
        %v3464 = vunpack.c.h.b16 %v3391
        %v3465 = vunpack.c.l.b16 %v3392
        %v3466 = vunpack.c.h.b16 %v3392
        %v3467 = vunpack.c.l.b16 %v3393
        %v3468 = vunpack.c.h.b16 %v3393
        %v3469 = vunpack.c.l.b16 %v3394
        %v3470 = vunpack.c.h.b16 %v3394
        %v3471 = vunpack.c.l.b16 %v3395
        %v3472 = vunpack.c.h.b16 %v3395
        %v3473 = vunpack.c.l.b16 %v3396
        %v3474 = vunpack.c.h.b16 %v3396
        %v3475 = vunpack.c.l.b16 %v3397
        %v3476 = vunpack.c.h.b16 %v3397
        %v3477 = vunpack.c.l.b16 %v3398
        %v3478 = vunpack.c.h.b16 %v3398
        %v3479 = vunpack.c.l.b16 %v3399
        %v3480 = vunpack.c.h.b16 %v3399
        %v3481 = vunpack.c.l.b16 %v3400
        %v3482 = vunpack.c.h.b16 %v3400
        %v3483 = vunpack.c.l.b16 %v3401
        %v3484 = vunpack.c.h.b16 %v3401
        %v3485 = vunpack.c.l.b16 %v3402
        %v3486 = vunpack.c.h.b16 %v3402
        %v3487 = vunpack.c.l.b16 %v3403
        %v3488 = vunpack.c.h.b16 %v3403
        %v3489 = vunpack.c.l.b16 %v3404
        %v3490 = vunpack.c.h.b16 %v3404
        %v3491 = vunpack.c.l.b16 %v3405
        %v3492 = vunpack.c.h.b16 %v3405
        %v3493 = vunpack.c.l.b16 %v3406
        %v3494 = vunpack.c.h.b16 %v3406
        %v3495 = vunpack.c.l.b16 %v3407
        %v3496 = vunpack.c.h.b16 %v3407
        %v3497 = vunpack.c.l.b16 %v3408
        %v3498 = vunpack.c.h.b16 %v3408
        %v3499 = vunpack.c.l.b16 %v3409
        %v3500 = vunpack.c.h.b16 %v3409
        %v3501 = vunpack.c.l.b16 %v3410
        %v3502 = vunpack.c.h.b16 %v3410
        %v3503 = vunpack.c.l.b16 %v3411
        %v3504 = vunpack.c.h.b16 %v3411
        %v3505 = vunpack.c.l.b16 %v3412
        %v3506 = vunpack.c.h.b16 %v3412
        %v3507 = vunpack.c.l.b16 %v3413
        %v3508 = vunpack.c.h.b16 %v3413
        %v3509 = vunpack.c.l.b16 %v3414
        %v3510 = vunpack.c.h.b16 %v3414
        %v3511 = vpack.c.b16 %v3451, %v3447
        %v3512 = vpack.c.b16 %v3452, %v3448
        %v3513 = vpack.c.b16 %v3453, %v3449
        %v3514 = vpack.c.b16 %v3454, %v3450
        %v3515 = vpack.c.b16 %v3459, %v3455
        %v3516 = vpack.c.b16 %v3460, %v3456
        %v3517 = vpack.c.b16 %v3461, %v3457
        %v3518 = vpack.c.b16 %v3462, %v3458
        %v3519 = vpack.c.b16 %v3467, %v3463
        %v3520 = vpack.c.b16 %v3468, %v3464
        %v3521 = vpack.c.b16 %v3469, %v3465
        %v3522 = vpack.c.b16 %v3470, %v3466
        %v3523 = vpack.c.b16 %v3475, %v3471
        %v3524 = vpack.c.b16 %v3476, %v3472
        %v3525 = vpack.c.b16 %v3477, %v3473
        %v3526 = vpack.c.b16 %v3478, %v3474
        %v3527 = vpack.c.b16 %v3483, %v3479
        %v3528 = vpack.c.b16 %v3484, %v3480
        %v3529 = vpack.c.b16 %v3485, %v3481
        %v3530 = vpack.c.b16 %v3486, %v3482
        %v3531 = vpack.c.b16 %v3491, %v3487
        %v3532 = vpack.c.b16 %v3492, %v3488
        %v3533 = vpack.c.b16 %v3493, %v3489
        %v3534 = vpack.c.b16 %v3494, %v3490
        %v3535 = vpack.c.b16 %v3499, %v3495
        %v3536 = vpack.c.b16 %v3500, %v3496
        %v3537 = vpack.c.b16 %v3501, %v3497
        %v3538 = vpack.c.b16 %v3502, %v3498
        %v3539 = vpack.c.b16 %v3507, %v3503
        %v3540 = vpack.c.b16 %v3508, %v3504
        %v3541 = vpack.c.b16 %v3509, %v3505
        %v3542 = vpack.c.b16 %v3510, %v3506
        %3575 = vmatpush.bf16.msra.mxu0 %v3539
        %3576 = vmatpush.bf16.msra.mxu0 %v3535
        %3577 = vmatpush.bf16.msra.mxu0 %v3531
        %3578 = vmatpush.bf16.msra.mxu0 %v3527
        %3579 = vmatpush.bf16.msra.mxu0 %v3523
        %3580 = vmatpush.bf16.msra.mxu0 %v3519
        %3581 = vmatpush.bf16.msra.mxu0 %v3515
        %3582 = vmatpush.bf16.msra.mxu0 %v3511
        %3583 = vmatmul.bf16.gmra.mxu0 %v3382
        %v3584 = vpop.f32.mrf.mxu0
        %v3585 = vadd.f32 0.0, %v3584
        %v3586 = vpop.f32.mrf.mxu0
        %3587 = vdwg.mxu0
        %3588 = vmatpush.bf16.msra.mxu0 %v3540
        %3589 = vmatpush.bf16.msra.mxu0 %v3536
        %3590 = vmatpush.bf16.msra.mxu0 %v3532
        %3591 = vmatpush.bf16.msra.mxu0 %v3528
        %3592 = vmatpush.bf16.msra.mxu0 %v3524
        %3593 = vmatpush.bf16.msra.mxu0 %v3520
        %3594 = vmatpush.bf16.msra.mxu0 %v3516
        %3595 = vmatpush.bf16.msra.mxu0 %v3512
        %3596 = vmatmul.bf16.gmra.mxu0 %v3382
        %v3597 = vpop.f32.mrf.mxu0
        %v3598 = vadd.f32 0.0, %v3597
        %v3599 = vpop.f32.mrf.mxu0
        %3600 = vdwg.mxu0
        %3601 = vmatpush.bf16.msra.mxu0 %v3541
        %3602 = vmatpush.bf16.msra.mxu0 %v3537
        %3603 = vmatpush.bf16.msra.mxu0 %v3533
        %3604 = vmatpush.bf16.msra.mxu0 %v3529
        %3605 = vmatpush.bf16.msra.mxu0 %v3525
        %3606 = vmatpush.bf16.msra.mxu0 %v3521
        %3607 = vmatpush.bf16.msra.mxu0 %v3517
        %3608 = vmatpush.bf16.msra.mxu0 %v3513
        %3609 = vmatmul.bf16.gmra.mxu0 %v3382
        %v3610 = vpop.f32.mrf.mxu0
        %v3611 = vadd.f32 0.0, %v3610
        %v3612 = vpop.f32.mrf.mxu0
        %3613 = vdwg.mxu0
        %3614 = vmatpush.bf16.msra.mxu0 %v3542
        %3615 = vmatpush.bf16.msra.mxu0 %v3538
        %3616 = vmatpush.bf16.msra.mxu0 %v3534
        %3617 = vmatpush.bf16.msra.mxu0 %v3530
        %3618 = vmatpush.bf16.msra.mxu0 %v3526
        %3619 = vmatpush.bf16.msra.mxu0 %v3522
        %3620 = vmatpush.bf16.msra.mxu0 %v3518
        %3621 = vmatpush.bf16.msra.mxu0 %v3514
        %3622 = vmatmul.bf16.gmra.mxu0 %v3382
        %v3623 = vpop.f32.mrf.mxu0
        %v3624 = vadd.f32 0.0, %v3623
        %v3625 = vpop.f32.mrf.mxu0
        %3626 = vdwg.mxu0
        %v3627 = vadd.f32 %v3378, %v3585
        %v3628 = vadd.f32 %v3379, %v3598
        %v3629 = vadd.f32 %v3380, %v3611
        %v3630 = vadd.f32 %v3381, %v3624
        %v3631 = vxor.u32 %v3627, 2147483648
        %v3632 = vxor.u32 %v3628, 2147483648
        %v3633 = vxor.u32 %v3629, 2147483648
        %v3634 = vmul.f32 %v3631, 1.442695
        %v3635 = vpow.pop %v3634
        %v3636 = vmul.f32 %v3632, 1.442695
        %v3637 = vpow.pop %v3636
        %v3638 = vmul.f32 %v3633, 1.442695
        %v3639 = vpow.pop %v3638
        %v3640 = vadd.f32 %v3635, 1.0
        %v3641 = vadd.f32 %v3637, 1.0
        %v3642 = vadd.f32 %v3639, 1.0
        %v3643 = vrcp.pop %v3640
        %v3644 = vmul.f32 %v3640, %v3643
        %v3645 = vsub.f32 1.0, %v3644
        %v3646 = vmul.f32 %v3643, %v3645
        %v3647 = vadd.f32 %v3643, %v3646
        %vm3648 = vweird.f32 %v3640
        %vm3649 = vweird.f32 %v3643
        %vm3650 = vmor %vm3648, %vm3649
        %v3651 = vsel %vm3650, %v3643, %v3647
        %v3652 = vand.u32 2147483647, %v3640
        %vm3653 = vcmp.eq.f32.partialorder %v3652, 8.507059e+37
        %v3654 = vand.u32 %v3640, 2147483648
        %v3655 = vor.u32 1.1754944e-38, %v3654
        %v3656 = vsel %vm3653, %v3655, %v3651
        %v3657 = vmul.f32 1.0, %v3656
        %v3658 = vrcp.pop %v3641
        %v3659 = vmul.f32 %v3641, %v3658
        %v3660 = vsub.f32 1.0, %v3659
        %v3661 = vmul.f32 %v3658, %v3660
        %v3662 = vadd.f32 %v3658, %v3661
        %vm3663 = vweird.f32 %v3641
        %vm3664 = vweird.f32 %v3658
        %vm3665 = vmor %vm3663, %vm3664
        %v3666 = vsel %vm3665, %v3658, %v3662
        %v3667 = vand.u32 2147483647, %v3641
        %vm3668 = vcmp.eq.f32.partialorder %v3667, 8.507059e+37
        %v3669 = vand.u32 %v3641, 2147483648
        %v3670 = vor.u32 1.1754944e-38, %v3669
        %v3671 = vsel %vm3668, %v3670, %v3666
        %v3672 = vmul.f32 1.0, %v3671
        %v3673 = vrcp.pop %v3642
        %v3674 = vmul.f32 %v3642, %v3673
        %v3675 = vsub.f32 1.0, %v3674
        %v3676 = vmul.f32 %v3673, %v3675
        %v3677 = vadd.f32 %v3673, %v3676
        %vm3678 = vweird.f32 %v3642
        %vm3679 = vweird.f32 %v3673
        %vm3680 = vmor %vm3678, %vm3679
        %v3681 = vsel %vm3680, %v3673, %v3677
        %v3682 = vand.u32 2147483647, %v3642
        %vm3683 = vcmp.eq.f32.partialorder %v3682, 8.507059e+37
        %v3684 = vand.u32 %v3642, 2147483648
        %v3685 = vor.u32 1.1754944e-38, %v3684
        %v3686 = vsel %vm3683, %v3685, %v3681
        %v3687 = vmul.f32 1.0, %v3686
        %v3688 = vtanh.pop %v3630
        %v3689 = vmul.f32 %v3672, %v3372
        %v3690 = vmul.f32 %v3657, %v3688
        %v3691 = vadd.f32 %v3689, %v3690
        %v3692 = vtanh.pop %v3691
        %v3693 = vmul.f32 %v3687, %v3692
        %s3694 = sadd.s32 %s403, 7
        %p3695 = scmp.lt.s32.totalorder %s3694, 37
        %s3696 = scalar_select %p3695, 1, 0
        %v3697 = vstv %s3696
        %vm3698 = vcmp.eq.s32.totalorder %v3697, 1
        %v3699 = vsel %vm3698, %v3691, %v3372
        %v3700 = vsel %vm3698, %v3693, %v3373
        %s3701 = smul.u32 %s3694, 8
        %s3702 = scalar_lea.vmem [#allocation2], %s3701
        %3703 = vst [vmem:[%s3702] sm:$0xff] %v3700
        %s3704 = scalar_lea.vmem [#allocation3], 256
        %v3705 = vld [vmem:[%s3704] sm:$0xff]
        %v3706 = vld [vmem:[%s3704 + $0x8] sm:$0xff]
        %v3707 = vld [vmem:[%s3704 + $0x10] sm:$0xff]
        %v3708 = vld [vmem:[%s3704 + $0x18] sm:$0xff]
        %v3709 = vpack.c.bf16 %v3700, %v3700
        %v3710 = vld [vmem:[%s344] sm:$0xff]
        %v3711 = vld [vmem:[%s344 + $0x8] sm:$0xff]
        %v3712 = vld [vmem:[%s344 + $0x10] sm:$0xff]
        %v3713 = vld [vmem:[%s344 + $0x18] sm:$0xff]
        %v3714 = vld [vmem:[%s344 + $0x20] sm:$0xff]
        %v3715 = vld [vmem:[%s344 + $0x28] sm:$0xff]
        %v3716 = vld [vmem:[%s344 + $0x30] sm:$0xff]
        %v3717 = vld [vmem:[%s344 + $0x38] sm:$0xff]
        %v3718 = vld [vmem:[%s344 + $0x40] sm:$0xff]
        %v3719 = vld [vmem:[%s344 + $0x48] sm:$0xff]
        %v3720 = vld [vmem:[%s344 + $0x50] sm:$0xff]
        %v3721 = vld [vmem:[%s344 + $0x58] sm:$0xff]
        %v3722 = vld [vmem:[%s344 + $0x60] sm:$0xff]
        %v3723 = vld [vmem:[%s344 + $0x68] sm:$0xff]
        %v3724 = vld [vmem:[%s344 + $0x70] sm:$0xff]
        %v3725 = vld [vmem:[%s344 + $0x78] sm:$0xff]
        %v3726 = vld [vmem:[%s344 + $0x80] sm:$0xff]
        %v3727 = vld [vmem:[%s344 + $0x88] sm:$0xff]
        %v3728 = vld [vmem:[%s344 + $0x90] sm:$0xff]
        %v3729 = vld [vmem:[%s344 + $0x98] sm:$0xff]
        %v3730 = vld [vmem:[%s344 + $0xa0] sm:$0xff]
        %v3731 = vld [vmem:[%s344 + $0xa8] sm:$0xff]
        %v3732 = vld [vmem:[%s344 + $0xb0] sm:$0xff]
        %v3733 = vld [vmem:[%s344 + $0xb8] sm:$0xff]
        %v3734 = vld [vmem:[%s344 + $0xc0] sm:$0xff]
        %v3735 = vld [vmem:[%s344 + $0xc8] sm:$0xff]
        %v3736 = vld [vmem:[%s344 + $0xd0] sm:$0xff]
        %v3737 = vld [vmem:[%s344 + $0xd8] sm:$0xff]
        %v3738 = vld [vmem:[%s344 + $0xe0] sm:$0xff]
        %v3739 = vld [vmem:[%s344 + $0xe8] sm:$0xff]
        %v3740 = vld [vmem:[%s344 + $0xf0] sm:$0xff]
        %v3741 = vld [vmem:[%s344 + $0xf8] sm:$0xff]
        %v3774 = vunpack.c.l.b16 %v3710
        %v3775 = vunpack.c.h.b16 %v3710
        %v3776 = vunpack.c.l.b16 %v3711
        %v3777 = vunpack.c.h.b16 %v3711
        %v3778 = vunpack.c.l.b16 %v3712
        %v3779 = vunpack.c.h.b16 %v3712
        %v3780 = vunpack.c.l.b16 %v3713
        %v3781 = vunpack.c.h.b16 %v3713
        %v3782 = vunpack.c.l.b16 %v3714
        %v3783 = vunpack.c.h.b16 %v3714
        %v3784 = vunpack.c.l.b16 %v3715
        %v3785 = vunpack.c.h.b16 %v3715
        %v3786 = vunpack.c.l.b16 %v3716
        %v3787 = vunpack.c.h.b16 %v3716
        %v3788 = vunpack.c.l.b16 %v3717
        %v3789 = vunpack.c.h.b16 %v3717
        %v3790 = vunpack.c.l.b16 %v3718
        %v3791 = vunpack.c.h.b16 %v3718
        %v3792 = vunpack.c.l.b16 %v3719
        %v3793 = vunpack.c.h.b16 %v3719
        %v3794 = vunpack.c.l.b16 %v3720
        %v3795 = vunpack.c.h.b16 %v3720
        %v3796 = vunpack.c.l.b16 %v3721
        %v3797 = vunpack.c.h.b16 %v3721
        %v3798 = vunpack.c.l.b16 %v3722
        %v3799 = vunpack.c.h.b16 %v3722
        %v3800 = vunpack.c.l.b16 %v3723
        %v3801 = vunpack.c.h.b16 %v3723
        %v3802 = vunpack.c.l.b16 %v3724
        %v3803 = vunpack.c.h.b16 %v3724
        %v3804 = vunpack.c.l.b16 %v3725
        %v3805 = vunpack.c.h.b16 %v3725
        %v3806 = vunpack.c.l.b16 %v3726
        %v3807 = vunpack.c.h.b16 %v3726
        %v3808 = vunpack.c.l.b16 %v3727
        %v3809 = vunpack.c.h.b16 %v3727
        %v3810 = vunpack.c.l.b16 %v3728
        %v3811 = vunpack.c.h.b16 %v3728
        %v3812 = vunpack.c.l.b16 %v3729
        %v3813 = vunpack.c.h.b16 %v3729
        %v3814 = vunpack.c.l.b16 %v3730
        %v3815 = vunpack.c.h.b16 %v3730
        %v3816 = vunpack.c.l.b16 %v3731
        %v3817 = vunpack.c.h.b16 %v3731
        %v3818 = vunpack.c.l.b16 %v3732
        %v3819 = vunpack.c.h.b16 %v3732
        %v3820 = vunpack.c.l.b16 %v3733
        %v3821 = vunpack.c.h.b16 %v3733
        %v3822 = vunpack.c.l.b16 %v3734
        %v3823 = vunpack.c.h.b16 %v3734
        %v3824 = vunpack.c.l.b16 %v3735
        %v3825 = vunpack.c.h.b16 %v3735
        %v3826 = vunpack.c.l.b16 %v3736
        %v3827 = vunpack.c.h.b16 %v3736
        %v3828 = vunpack.c.l.b16 %v3737
        %v3829 = vunpack.c.h.b16 %v3737
        %v3830 = vunpack.c.l.b16 %v3738
        %v3831 = vunpack.c.h.b16 %v3738
        %v3832 = vunpack.c.l.b16 %v3739
        %v3833 = vunpack.c.h.b16 %v3739
        %v3834 = vunpack.c.l.b16 %v3740
        %v3835 = vunpack.c.h.b16 %v3740
        %v3836 = vunpack.c.l.b16 %v3741
        %v3837 = vunpack.c.h.b16 %v3741
        %v3838 = vpack.c.b16 %v3778, %v3774
        %v3839 = vpack.c.b16 %v3779, %v3775
        %v3840 = vpack.c.b16 %v3780, %v3776
        %v3841 = vpack.c.b16 %v3781, %v3777
        %v3842 = vpack.c.b16 %v3786, %v3782
        %v3843 = vpack.c.b16 %v3787, %v3783
        %v3844 = vpack.c.b16 %v3788, %v3784
        %v3845 = vpack.c.b16 %v3789, %v3785
        %v3846 = vpack.c.b16 %v3794, %v3790
        %v3847 = vpack.c.b16 %v3795, %v3791
        %v3848 = vpack.c.b16 %v3796, %v3792
        %v3849 = vpack.c.b16 %v3797, %v3793
        %v3850 = vpack.c.b16 %v3802, %v3798
        %v3851 = vpack.c.b16 %v3803, %v3799
        %v3852 = vpack.c.b16 %v3804, %v3800
        %v3853 = vpack.c.b16 %v3805, %v3801
        %v3854 = vpack.c.b16 %v3810, %v3806
        %v3855 = vpack.c.b16 %v3811, %v3807
        %v3856 = vpack.c.b16 %v3812, %v3808
        %v3857 = vpack.c.b16 %v3813, %v3809
        %v3858 = vpack.c.b16 %v3818, %v3814
        %v3859 = vpack.c.b16 %v3819, %v3815
        %v3860 = vpack.c.b16 %v3820, %v3816
        %v3861 = vpack.c.b16 %v3821, %v3817
        %v3862 = vpack.c.b16 %v3826, %v3822
        %v3863 = vpack.c.b16 %v3827, %v3823
        %v3864 = vpack.c.b16 %v3828, %v3824
        %v3865 = vpack.c.b16 %v3829, %v3825
        %v3866 = vpack.c.b16 %v3834, %v3830
        %v3867 = vpack.c.b16 %v3835, %v3831
        %v3868 = vpack.c.b16 %v3836, %v3832
        %v3869 = vpack.c.b16 %v3837, %v3833
        %3902 = vmatpush.bf16.msra.mxu0 %v3866
        %3903 = vmatpush.bf16.msra.mxu0 %v3862
        %3904 = vmatpush.bf16.msra.mxu0 %v3858
        %3905 = vmatpush.bf16.msra.mxu0 %v3854
        %3906 = vmatpush.bf16.msra.mxu0 %v3850
        %3907 = vmatpush.bf16.msra.mxu0 %v3846
        %3908 = vmatpush.bf16.msra.mxu0 %v3842
        %3909 = vmatpush.bf16.msra.mxu0 %v3838
        %3910 = vmatmul.bf16.gmra.mxu0 %v3709
        %v3911 = vpop.f32.mrf.mxu0
        %v3912 = vadd.f32 0.0, %v3911
        %v3913 = vpop.f32.mrf.mxu0
        %3914 = vdwg.mxu0
        %3915 = vmatpush.bf16.msra.mxu0 %v3867
        %3916 = vmatpush.bf16.msra.mxu0 %v3863
        %3917 = vmatpush.bf16.msra.mxu0 %v3859
        %3918 = vmatpush.bf16.msra.mxu0 %v3855
        %3919 = vmatpush.bf16.msra.mxu0 %v3851
        %3920 = vmatpush.bf16.msra.mxu0 %v3847
        %3921 = vmatpush.bf16.msra.mxu0 %v3843
        %3922 = vmatpush.bf16.msra.mxu0 %v3839
        %3923 = vmatmul.bf16.gmra.mxu0 %v3709
        %v3924 = vpop.f32.mrf.mxu0
        %v3925 = vadd.f32 0.0, %v3924
        %v3926 = vpop.f32.mrf.mxu0
        %3927 = vdwg.mxu0
        %3928 = vmatpush.bf16.msra.mxu0 %v3868
        %3929 = vmatpush.bf16.msra.mxu0 %v3864
        %3930 = vmatpush.bf16.msra.mxu0 %v3860
        %3931 = vmatpush.bf16.msra.mxu0 %v3856
        %3932 = vmatpush.bf16.msra.mxu0 %v3852
        %3933 = vmatpush.bf16.msra.mxu0 %v3848
        %3934 = vmatpush.bf16.msra.mxu0 %v3844
        %3935 = vmatpush.bf16.msra.mxu0 %v3840
        %3936 = vmatmul.bf16.gmra.mxu0 %v3709
        %v3937 = vpop.f32.mrf.mxu0
        %v3938 = vadd.f32 0.0, %v3937
        %v3939 = vpop.f32.mrf.mxu0
        %3940 = vdwg.mxu0
        %3941 = vmatpush.bf16.msra.mxu0 %v3869
        %3942 = vmatpush.bf16.msra.mxu0 %v3865
        %3943 = vmatpush.bf16.msra.mxu0 %v3861
        %3944 = vmatpush.bf16.msra.mxu0 %v3857
        %3945 = vmatpush.bf16.msra.mxu0 %v3853
        %3946 = vmatpush.bf16.msra.mxu0 %v3849
        %3947 = vmatpush.bf16.msra.mxu0 %v3845
        %3948 = vmatpush.bf16.msra.mxu0 %v3841
        %3949 = vmatmul.bf16.gmra.mxu0 %v3709
        %v3950 = vpop.f32.mrf.mxu0
        %v3951 = vadd.f32 0.0, %v3950
        %v3952 = vpop.f32.mrf.mxu0
        %3953 = vdwg.mxu0
        %v3954 = vadd.f32 %v3705, %v3912
        %v3955 = vadd.f32 %v3706, %v3925
        %v3956 = vadd.f32 %v3707, %v3938
        %v3957 = vadd.f32 %v3708, %v3951
        %v3958 = vxor.u32 %v3954, 2147483648
        %v3959 = vxor.u32 %v3955, 2147483648
        %v3960 = vxor.u32 %v3956, 2147483648
        %v3961 = vmul.f32 %v3958, 1.442695
        %v3962 = vpow.pop %v3961
        %v3963 = vmul.f32 %v3959, 1.442695
        %v3964 = vpow.pop %v3963
        %v3965 = vmul.f32 %v3960, 1.442695
        %v3966 = vpow.pop %v3965
        %v3967 = vadd.f32 %v3962, 1.0
        %v3968 = vadd.f32 %v3964, 1.0
        %v3969 = vadd.f32 %v3966, 1.0
        %v3970 = vrcp.pop %v3967
        %v3971 = vmul.f32 %v3967, %v3970
        %v3972 = vsub.f32 1.0, %v3971
        %v3973 = vmul.f32 %v3970, %v3972
        %v3974 = vadd.f32 %v3970, %v3973
        %vm3975 = vweird.f32 %v3967
        %vm3976 = vweird.f32 %v3970
        %vm3977 = vmor %vm3975, %vm3976
        %v3978 = vsel %vm3977, %v3970, %v3974
        %v3979 = vand.u32 2147483647, %v3967
        %vm3980 = vcmp.eq.f32.partialorder %v3979, 8.507059e+37
        %v3981 = vand.u32 %v3967, 2147483648
        %v3982 = vor.u32 1.1754944e-38, %v3981
        %v3983 = vsel %vm3980, %v3982, %v3978
        %v3984 = vmul.f32 1.0, %v3983
        %v3985 = vrcp.pop %v3968
        %v3986 = vmul.f32 %v3968, %v3985
        %v3987 = vsub.f32 1.0, %v3986
        %v3988 = vmul.f32 %v3985, %v3987
        %v3989 = vadd.f32 %v3985, %v3988
        %vm3990 = vweird.f32 %v3968
        %vm3991 = vweird.f32 %v3985
        %vm3992 = vmor %vm3990, %vm3991
        %v3993 = vsel %vm3992, %v3985, %v3989
        %v3994 = vand.u32 2147483647, %v3968
        %vm3995 = vcmp.eq.f32.partialorder %v3994, 8.507059e+37
        %v3996 = vand.u32 %v3968, 2147483648
        %v3997 = vor.u32 1.1754944e-38, %v3996
        %v3998 = vsel %vm3995, %v3997, %v3993
        %v3999 = vmul.f32 1.0, %v3998
        %v4000 = vrcp.pop %v3969
        %v4001 = vmul.f32 %v3969, %v4000
        %v4002 = vsub.f32 1.0, %v4001
        %v4003 = vmul.f32 %v4000, %v4002
        %v4004 = vadd.f32 %v4000, %v4003
        %vm4005 = vweird.f32 %v3969
        %vm4006 = vweird.f32 %v4000
        %vm4007 = vmor %vm4005, %vm4006
        %v4008 = vsel %vm4007, %v4000, %v4004
        %v4009 = vand.u32 2147483647, %v3969
        %vm4010 = vcmp.eq.f32.partialorder %v4009, 8.507059e+37
        %v4011 = vand.u32 %v3969, 2147483648
        %v4012 = vor.u32 1.1754944e-38, %v4011
        %v4013 = vsel %vm4010, %v4012, %v4008
        %v4014 = vmul.f32 1.0, %v4013
        %v4015 = vtanh.pop %v3957
        %v4016 = vmul.f32 %v3999, %v3699
        %v4017 = vmul.f32 %v3984, %v4015
        %v4018 = vadd.f32 %v4016, %v4017
        %v4019 = vtanh.pop %v4018
        %v4020 = vmul.f32 %v4014, %v4019
        %s4021 = sadd.s32 %s403, 8
        %p4022 = scmp.lt.s32.totalorder %s4021, 37
        %s4023 = scalar_select %p4022, 1, 0
        %v4024 = vstv %s4023
        %vm4025 = vcmp.eq.s32.totalorder %v4024, 1
        %v4026 = vsel %vm4025, %v4018, %v3699
        %v4027 = vsel %vm4025, %v4020, %v3700
        %s4028 = smul.u32 %s4021, 8
        %s4029 = scalar_lea.vmem [#allocation2], %s4028
        %4030 = vst [vmem:[%s4029] sm:$0xff] %v4027
        %s4031 = scalar_lea.vmem [#allocation3], 288
        %v4032 = vld [vmem:[%s4031] sm:$0xff]
        %v4033 = vld [vmem:[%s4031 + $0x8] sm:$0xff]
        %v4034 = vld [vmem:[%s4031 + $0x10] sm:$0xff]
        %v4035 = vld [vmem:[%s4031 + $0x18] sm:$0xff]
        %v4036 = vpack.c.bf16 %v4027, %v4027
        %v4037 = vld [vmem:[%s344] sm:$0xff]
        %v4038 = vld [vmem:[%s344 + $0x8] sm:$0xff]
        %v4039 = vld [vmem:[%s344 + $0x10] sm:$0xff]
        %v4040 = vld [vmem:[%s344 + $0x18] sm:$0xff]
        %v4041 = vld [vmem:[%s344 + $0x20] sm:$0xff]
        %v4042 = vld [vmem:[%s344 + $0x28] sm:$0xff]
        %v4043 = vld [vmem:[%s344 + $0x30] sm:$0xff]
        %v4044 = vld [vmem:[%s344 + $0x38] sm:$0xff]
        %v4045 = vld [vmem:[%s344 + $0x40] sm:$0xff]
        %v4046 = vld [vmem:[%s344 + $0x48] sm:$0xff]
        %v4047 = vld [vmem:[%s344 + $0x50] sm:$0xff]
        %v4048 = vld [vmem:[%s344 + $0x58] sm:$0xff]
        %v4049 = vld [vmem:[%s344 + $0x60] sm:$0xff]
        %v4050 = vld [vmem:[%s344 + $0x68] sm:$0xff]
        %v4051 = vld [vmem:[%s344 + $0x70] sm:$0xff]
        %v4052 = vld [vmem:[%s344 + $0x78] sm:$0xff]
        %v4053 = vld [vmem:[%s344 + $0x80] sm:$0xff]
        %v4054 = vld [vmem:[%s344 + $0x88] sm:$0xff]
        %v4055 = vld [vmem:[%s344 + $0x90] sm:$0xff]
        %v4056 = vld [vmem:[%s344 + $0x98] sm:$0xff]
        %v4057 = vld [vmem:[%s344 + $0xa0] sm:$0xff]
        %v4058 = vld [vmem:[%s344 + $0xa8] sm:$0xff]
        %v4059 = vld [vmem:[%s344 + $0xb0] sm:$0xff]
        %v4060 = vld [vmem:[%s344 + $0xb8] sm:$0xff]
        %v4061 = vld [vmem:[%s344 + $0xc0] sm:$0xff]
        %v4062 = vld [vmem:[%s344 + $0xc8] sm:$0xff]
        %v4063 = vld [vmem:[%s344 + $0xd0] sm:$0xff]
        %v4064 = vld [vmem:[%s344 + $0xd8] sm:$0xff]
        %v4065 = vld [vmem:[%s344 + $0xe0] sm:$0xff]
        %v4066 = vld [vmem:[%s344 + $0xe8] sm:$0xff]
        %v4067 = vld [vmem:[%s344 + $0xf0] sm:$0xff]
        %v4068 = vld [vmem:[%s344 + $0xf8] sm:$0xff]
        %v4101 = vunpack.c.l.b16 %v4037
        %v4102 = vunpack.c.h.b16 %v4037
        %v4103 = vunpack.c.l.b16 %v4038
        %v4104 = vunpack.c.h.b16 %v4038
        %v4105 = vunpack.c.l.b16 %v4039
        %v4106 = vunpack.c.h.b16 %v4039
        %v4107 = vunpack.c.l.b16 %v4040
        %v4108 = vunpack.c.h.b16 %v4040
        %v4109 = vunpack.c.l.b16 %v4041
        %v4110 = vunpack.c.h.b16 %v4041
        %v4111 = vunpack.c.l.b16 %v4042
        %v4112 = vunpack.c.h.b16 %v4042
        %v4113 = vunpack.c.l.b16 %v4043
        %v4114 = vunpack.c.h.b16 %v4043
        %v4115 = vunpack.c.l.b16 %v4044
        %v4116 = vunpack.c.h.b16 %v4044
        %v4117 = vunpack.c.l.b16 %v4045
        %v4118 = vunpack.c.h.b16 %v4045
        %v4119 = vunpack.c.l.b16 %v4046
        %v4120 = vunpack.c.h.b16 %v4046
        %v4121 = vunpack.c.l.b16 %v4047
        %v4122 = vunpack.c.h.b16 %v4047
        %v4123 = vunpack.c.l.b16 %v4048
        %v4124 = vunpack.c.h.b16 %v4048
        %v4125 = vunpack.c.l.b16 %v4049
        %v4126 = vunpack.c.h.b16 %v4049
        %v4127 = vunpack.c.l.b16 %v4050
        %v4128 = vunpack.c.h.b16 %v4050
        %v4129 = vunpack.c.l.b16 %v4051
        %v4130 = vunpack.c.h.b16 %v4051
        %v4131 = vunpack.c.l.b16 %v4052
        %v4132 = vunpack.c.h.b16 %v4052
        %v4133 = vunpack.c.l.b16 %v4053
        %v4134 = vunpack.c.h.b16 %v4053
        %v4135 = vunpack.c.l.b16 %v4054
        %v4136 = vunpack.c.h.b16 %v4054
        %v4137 = vunpack.c.l.b16 %v4055
        %v4138 = vunpack.c.h.b16 %v4055
        %v4139 = vunpack.c.l.b16 %v4056
        %v4140 = vunpack.c.h.b16 %v4056
        %v4141 = vunpack.c.l.b16 %v4057
        %v4142 = vunpack.c.h.b16 %v4057
        %v4143 = vunpack.c.l.b16 %v4058
        %v4144 = vunpack.c.h.b16 %v4058
        %v4145 = vunpack.c.l.b16 %v4059
        %v4146 = vunpack.c.h.b16 %v4059
        %v4147 = vunpack.c.l.b16 %v4060
        %v4148 = vunpack.c.h.b16 %v4060
        %v4149 = vunpack.c.l.b16 %v4061
        %v4150 = vunpack.c.h.b16 %v4061
        %v4151 = vunpack.c.l.b16 %v4062
        %v4152 = vunpack.c.h.b16 %v4062
        %v4153 = vunpack.c.l.b16 %v4063
        %v4154 = vunpack.c.h.b16 %v4063
        %v4155 = vunpack.c.l.b16 %v4064
        %v4156 = vunpack.c.h.b16 %v4064
        %v4157 = vunpack.c.l.b16 %v4065
        %v4158 = vunpack.c.h.b16 %v4065
        %v4159 = vunpack.c.l.b16 %v4066
        %v4160 = vunpack.c.h.b16 %v4066
        %v4161 = vunpack.c.l.b16 %v4067
        %v4162 = vunpack.c.h.b16 %v4067
        %v4163 = vunpack.c.l.b16 %v4068
        %v4164 = vunpack.c.h.b16 %v4068
        %v4165 = vpack.c.b16 %v4105, %v4101
        %v4166 = vpack.c.b16 %v4106, %v4102
        %v4167 = vpack.c.b16 %v4107, %v4103
        %v4168 = vpack.c.b16 %v4108, %v4104
        %v4169 = vpack.c.b16 %v4113, %v4109
        %v4170 = vpack.c.b16 %v4114, %v4110
        %v4171 = vpack.c.b16 %v4115, %v4111
        %v4172 = vpack.c.b16 %v4116, %v4112
        %v4173 = vpack.c.b16 %v4121, %v4117
        %v4174 = vpack.c.b16 %v4122, %v4118
        %v4175 = vpack.c.b16 %v4123, %v4119
        %v4176 = vpack.c.b16 %v4124, %v4120
        %v4177 = vpack.c.b16 %v4129, %v4125
        %v4178 = vpack.c.b16 %v4130, %v4126
        %v4179 = vpack.c.b16 %v4131, %v4127
        %v4180 = vpack.c.b16 %v4132, %v4128
        %v4181 = vpack.c.b16 %v4137, %v4133
        %v4182 = vpack.c.b16 %v4138, %v4134
        %v4183 = vpack.c.b16 %v4139, %v4135
        %v4184 = vpack.c.b16 %v4140, %v4136
        %v4185 = vpack.c.b16 %v4145, %v4141
        %v4186 = vpack.c.b16 %v4146, %v4142
        %v4187 = vpack.c.b16 %v4147, %v4143
        %v4188 = vpack.c.b16 %v4148, %v4144
        %v4189 = vpack.c.b16 %v4153, %v4149
        %v4190 = vpack.c.b16 %v4154, %v4150
        %v4191 = vpack.c.b16 %v4155, %v4151
        %v4192 = vpack.c.b16 %v4156, %v4152
        %v4193 = vpack.c.b16 %v4161, %v4157
        %v4194 = vpack.c.b16 %v4162, %v4158
        %v4195 = vpack.c.b16 %v4163, %v4159
        %v4196 = vpack.c.b16 %v4164, %v4160
        %4229 = vmatpush.bf16.msra.mxu0 %v4193
        %4230 = vmatpush.bf16.msra.mxu0 %v4189
        %4231 = vmatpush.bf16.msra.mxu0 %v4185
        %4232 = vmatpush.bf16.msra.mxu0 %v4181
        %4233 = vmatpush.bf16.msra.mxu0 %v4177
        %4234 = vmatpush.bf16.msra.mxu0 %v4173
        %4235 = vmatpush.bf16.msra.mxu0 %v4169
        %4236 = vmatpush.bf16.msra.mxu0 %v4165
        %4237 = vmatmul.bf16.gmra.mxu0 %v4036
        %v4238 = vpop.f32.mrf.mxu0
        %v4239 = vadd.f32 0.0, %v4238
        %v4240 = vpop.f32.mrf.mxu0
        %4241 = vdwg.mxu0
        %4242 = vmatpush.bf16.msra.mxu0 %v4194
        %4243 = vmatpush.bf16.msra.mxu0 %v4190
        %4244 = vmatpush.bf16.msra.mxu0 %v4186
        %4245 = vmatpush.bf16.msra.mxu0 %v4182
        %4246 = vmatpush.bf16.msra.mxu0 %v4178
        %4247 = vmatpush.bf16.msra.mxu0 %v4174
        %4248 = vmatpush.bf16.msra.mxu0 %v4170
        %4249 = vmatpush.bf16.msra.mxu0 %v4166
        %4250 = vmatmul.bf16.gmra.mxu0 %v4036
        %v4251 = vpop.f32.mrf.mxu0
        %v4252 = vadd.f32 0.0, %v4251
        %v4253 = vpop.f32.mrf.mxu0
        %4254 = vdwg.mxu0
        %4255 = vmatpush.bf16.msra.mxu0 %v4195
        %4256 = vmatpush.bf16.msra.mxu0 %v4191
        %4257 = vmatpush.bf16.msra.mxu0 %v4187
        %4258 = vmatpush.bf16.msra.mxu0 %v4183
        %4259 = vmatpush.bf16.msra.mxu0 %v4179
        %4260 = vmatpush.bf16.msra.mxu0 %v4175
        %4261 = vmatpush.bf16.msra.mxu0 %v4171
        %4262 = vmatpush.bf16.msra.mxu0 %v4167
        %4263 = vmatmul.bf16.gmra.mxu0 %v4036
        %v4264 = vpop.f32.mrf.mxu0
        %v4265 = vadd.f32 0.0, %v4264
        %v4266 = vpop.f32.mrf.mxu0
        %4267 = vdwg.mxu0
        %4268 = vmatpush.bf16.msra.mxu0 %v4196
        %4269 = vmatpush.bf16.msra.mxu0 %v4192
        %4270 = vmatpush.bf16.msra.mxu0 %v4188
        %4271 = vmatpush.bf16.msra.mxu0 %v4184
        %4272 = vmatpush.bf16.msra.mxu0 %v4180
        %4273 = vmatpush.bf16.msra.mxu0 %v4176
        %4274 = vmatpush.bf16.msra.mxu0 %v4172
        %4275 = vmatpush.bf16.msra.mxu0 %v4168
        %4276 = vmatmul.bf16.gmra.mxu0 %v4036
        %v4277 = vpop.f32.mrf.mxu0
        %v4278 = vadd.f32 0.0, %v4277
        %v4279 = vpop.f32.mrf.mxu0
        %4280 = vdwg.mxu0
        %v4281 = vadd.f32 %v4032, %v4239
        %v4282 = vadd.f32 %v4033, %v4252
        %v4283 = vadd.f32 %v4034, %v4265
        %v4284 = vadd.f32 %v4035, %v4278
        %v4285 = vxor.u32 %v4281, 2147483648
        %v4286 = vxor.u32 %v4282, 2147483648
        %v4287 = vxor.u32 %v4283, 2147483648
        %v4288 = vmul.f32 %v4285, 1.442695
        %v4289 = vpow.pop %v4288
        %v4290 = vmul.f32 %v4286, 1.442695
        %v4291 = vpow.pop %v4290
        %v4292 = vmul.f32 %v4287, 1.442695
        %v4293 = vpow.pop %v4292
        %v4294 = vadd.f32 %v4289, 1.0
        %v4295 = vadd.f32 %v4291, 1.0
        %v4296 = vadd.f32 %v4293, 1.0
        %v4297 = vrcp.pop %v4294
        %v4298 = vmul.f32 %v4294, %v4297
        %v4299 = vsub.f32 1.0, %v4298
        %v4300 = vmul.f32 %v4297, %v4299
        %v4301 = vadd.f32 %v4297, %v4300
        %vm4302 = vweird.f32 %v4294
        %vm4303 = vweird.f32 %v4297
        %vm4304 = vmor %vm4302, %vm4303
        %v4305 = vsel %vm4304, %v4297, %v4301
        %v4306 = vand.u32 2147483647, %v4294
        %vm4307 = vcmp.eq.f32.partialorder %v4306, 8.507059e+37
        %v4308 = vand.u32 %v4294, 2147483648
        %v4309 = vor.u32 1.1754944e-38, %v4308
        %v4310 = vsel %vm4307, %v4309, %v4305
        %v4311 = vmul.f32 1.0, %v4310
        %v4312 = vrcp.pop %v4295
        %v4313 = vmul.f32 %v4295, %v4312
        %v4314 = vsub.f32 1.0, %v4313
        %v4315 = vmul.f32 %v4312, %v4314
        %v4316 = vadd.f32 %v4312, %v4315
        %vm4317 = vweird.f32 %v4295
        %vm4318 = vweird.f32 %v4312
        %vm4319 = vmor %vm4317, %vm4318
        %v4320 = vsel %vm4319, %v4312, %v4316
        %v4321 = vand.u32 2147483647, %v4295
        %vm4322 = vcmp.eq.f32.partialorder %v4321, 8.507059e+37
        %v4323 = vand.u32 %v4295, 2147483648
        %v4324 = vor.u32 1.1754944e-38, %v4323
        %v4325 = vsel %vm4322, %v4324, %v4320
        %v4326 = vmul.f32 1.0, %v4325
        %v4327 = vrcp.pop %v4296
        %v4328 = vmul.f32 %v4296, %v4327
        %v4329 = vsub.f32 1.0, %v4328
        %v4330 = vmul.f32 %v4327, %v4329
        %v4331 = vadd.f32 %v4327, %v4330
        %vm4332 = vweird.f32 %v4296
        %vm4333 = vweird.f32 %v4327
        %vm4334 = vmor %vm4332, %vm4333
        %v4335 = vsel %vm4334, %v4327, %v4331
        %v4336 = vand.u32 2147483647, %v4296
        %vm4337 = vcmp.eq.f32.partialorder %v4336, 8.507059e+37
        %v4338 = vand.u32 %v4296, 2147483648
        %v4339 = vor.u32 1.1754944e-38, %v4338
        %v4340 = vsel %vm4337, %v4339, %v4335
        %v4341 = vmul.f32 1.0, %v4340
        %v4342 = vtanh.pop %v4284
        %v4343 = vmul.f32 %v4326, %v4026
        %v4344 = vmul.f32 %v4311, %v4342
        %v4345 = vadd.f32 %v4343, %v4344
        %v4346 = vtanh.pop %v4345
        %v4347 = vmul.f32 %v4341, %v4346
        %s4348 = sadd.s32 %s403, 9
        %p4349 = scmp.lt.s32.totalorder %s4348, 37
        %s4350 = scalar_select %p4349, 1, 0
        %v4351 = vstv %s4350
        %vm4352 = vcmp.eq.s32.totalorder %v4351, 1
        %v4353 = vsel %vm4352, %v4345, %v4026
        %v4354 = vsel %vm4352, %v4347, %v4027
        %s4355 = smul.u32 %s4348, 8
        %s4356 = scalar_lea.vmem [#allocation2], %s4355
        %4357 = vst [vmem:[%s4356] sm:$0xff] %v4354
        %s4358 = scalar_lea.vmem [#allocation3], 320
        %v4359 = vld [vmem:[%s4358] sm:$0xff]
        %v4360 = vld [vmem:[%s4358 + $0x8] sm:$0xff]
        %v4361 = vld [vmem:[%s4358 + $0x10] sm:$0xff]
        %v4362 = vld [vmem:[%s4358 + $0x18] sm:$0xff]
        %v4363 = vpack.c.bf16 %v4354, %v4354
        %v4364 = vld [vmem:[%s344] sm:$0xff]
        %v4365 = vld [vmem:[%s344 + $0x8] sm:$0xff]
        %v4366 = vld [vmem:[%s344 + $0x10] sm:$0xff]
        %v4367 = vld [vmem:[%s344 + $0x18] sm:$0xff]
        %v4368 = vld [vmem:[%s344 + $0x20] sm:$0xff]
        %v4369 = vld [vmem:[%s344 + $0x28] sm:$0xff]
        %v4370 = vld [vmem:[%s344 + $0x30] sm:$0xff]
        %v4371 = vld [vmem:[%s344 + $0x38] sm:$0xff]
        %v4372 = vld [vmem:[%s344 + $0x40] sm:$0xff]
        %v4373 = vld [vmem:[%s344 + $0x48] sm:$0xff]
        %v4374 = vld [vmem:[%s344 + $0x50] sm:$0xff]
        %v4375 = vld [vmem:[%s344 + $0x58] sm:$0xff]
        %v4376 = vld [vmem:[%s344 + $0x60] sm:$0xff]
        %v4377 = vld [vmem:[%s344 + $0x68] sm:$0xff]
        %v4378 = vld [vmem:[%s344 + $0x70] sm:$0xff]
        %v4379 = vld [vmem:[%s344 + $0x78] sm:$0xff]
        %v4380 = vld [vmem:[%s344 + $0x80] sm:$0xff]
        %v4381 = vld [vmem:[%s344 + $0x88] sm:$0xff]
        %v4382 = vld [vmem:[%s344 + $0x90] sm:$0xff]
        %v4383 = vld [vmem:[%s344 + $0x98] sm:$0xff]
        %v4384 = vld [vmem:[%s344 + $0xa0] sm:$0xff]
        %v4385 = vld [vmem:[%s344 + $0xa8] sm:$0xff]
        %v4386 = vld [vmem:[%s344 + $0xb0] sm:$0xff]
        %v4387 = vld [vmem:[%s344 + $0xb8] sm:$0xff]
        %v4388 = vld [vmem:[%s344 + $0xc0] sm:$0xff]
        %v4389 = vld [vmem:[%s344 + $0xc8] sm:$0xff]
        %v4390 = vld [vmem:[%s344 + $0xd0] sm:$0xff]
        %v4391 = vld [vmem:[%s344 + $0xd8] sm:$0xff]
        %v4392 = vld [vmem:[%s344 + $0xe0] sm:$0xff]
        %v4393 = vld [vmem:[%s344 + $0xe8] sm:$0xff]
        %v4394 = vld [vmem:[%s344 + $0xf0] sm:$0xff]
        %v4395 = vld [vmem:[%s344 + $0xf8] sm:$0xff]
        %v4428 = vunpack.c.l.b16 %v4364
        %v4429 = vunpack.c.h.b16 %v4364
        %v4430 = vunpack.c.l.b16 %v4365
        %v4431 = vunpack.c.h.b16 %v4365
        %v4432 = vunpack.c.l.b16 %v4366
        %v4433 = vunpack.c.h.b16 %v4366
        %v4434 = vunpack.c.l.b16 %v4367
        %v4435 = vunpack.c.h.b16 %v4367
        %v4436 = vunpack.c.l.b16 %v4368
        %v4437 = vunpack.c.h.b16 %v4368
        %v4438 = vunpack.c.l.b16 %v4369
        %v4439 = vunpack.c.h.b16 %v4369
        %v4440 = vunpack.c.l.b16 %v4370
        %v4441 = vunpack.c.h.b16 %v4370
        %v4442 = vunpack.c.l.b16 %v4371
        %v4443 = vunpack.c.h.b16 %v4371
        %v4444 = vunpack.c.l.b16 %v4372
        %v4445 = vunpack.c.h.b16 %v4372
        %v4446 = vunpack.c.l.b16 %v4373
        %v4447 = vunpack.c.h.b16 %v4373
        %v4448 = vunpack.c.l.b16 %v4374
        %v4449 = vunpack.c.h.b16 %v4374
        %v4450 = vunpack.c.l.b16 %v4375
        %v4451 = vunpack.c.h.b16 %v4375
        %v4452 = vunpack.c.l.b16 %v4376
        %v4453 = vunpack.c.h.b16 %v4376
        %v4454 = vunpack.c.l.b16 %v4377
        %v4455 = vunpack.c.h.b16 %v4377
        %v4456 = vunpack.c.l.b16 %v4378
        %v4457 = vunpack.c.h.b16 %v4378
        %v4458 = vunpack.c.l.b16 %v4379
        %v4459 = vunpack.c.h.b16 %v4379
        %v4460 = vunpack.c.l.b16 %v4380
        %v4461 = vunpack.c.h.b16 %v4380
        %v4462 = vunpack.c.l.b16 %v4381
        %v4463 = vunpack.c.h.b16 %v4381
        %v4464 = vunpack.c.l.b16 %v4382
        %v4465 = vunpack.c.h.b16 %v4382
        %v4466 = vunpack.c.l.b16 %v4383
        %v4467 = vunpack.c.h.b16 %v4383
        %v4468 = vunpack.c.l.b16 %v4384
        %v4469 = vunpack.c.h.b16 %v4384
        %v4470 = vunpack.c.l.b16 %v4385
        %v4471 = vunpack.c.h.b16 %v4385
        %v4472 = vunpack.c.l.b16 %v4386
        %v4473 = vunpack.c.h.b16 %v4386
        %v4474 = vunpack.c.l.b16 %v4387
        %v4475 = vunpack.c.h.b16 %v4387
        %v4476 = vunpack.c.l.b16 %v4388
        %v4477 = vunpack.c.h.b16 %v4388
        %v4478 = vunpack.c.l.b16 %v4389
        %v4479 = vunpack.c.h.b16 %v4389
        %v4480 = vunpack.c.l.b16 %v4390
        %v4481 = vunpack.c.h.b16 %v4390
        %v4482 = vunpack.c.l.b16 %v4391
        %v4483 = vunpack.c.h.b16 %v4391
        %v4484 = vunpack.c.l.b16 %v4392
        %v4485 = vunpack.c.h.b16 %v4392
        %v4486 = vunpack.c.l.b16 %v4393
        %v4487 = vunpack.c.h.b16 %v4393
        %v4488 = vunpack.c.l.b16 %v4394
        %v4489 = vunpack.c.h.b16 %v4394
        %v4490 = vunpack.c.l.b16 %v4395
        %v4491 = vunpack.c.h.b16 %v4395
        %v4492 = vpack.c.b16 %v4432, %v4428
        %v4493 = vpack.c.b16 %v4433, %v4429
        %v4494 = vpack.c.b16 %v4434, %v4430
        %v4495 = vpack.c.b16 %v4435, %v4431
        %v4496 = vpack.c.b16 %v4440, %v4436
        %v4497 = vpack.c.b16 %v4441, %v4437
        %v4498 = vpack.c.b16 %v4442, %v4438
        %v4499 = vpack.c.b16 %v4443, %v4439
        %v4500 = vpack.c.b16 %v4448, %v4444
        %v4501 = vpack.c.b16 %v4449, %v4445
        %v4502 = vpack.c.b16 %v4450, %v4446
        %v4503 = vpack.c.b16 %v4451, %v4447
        %v4504 = vpack.c.b16 %v4456, %v4452
        %v4505 = vpack.c.b16 %v4457, %v4453
        %v4506 = vpack.c.b16 %v4458, %v4454
        %v4507 = vpack.c.b16 %v4459, %v4455
        %v4508 = vpack.c.b16 %v4464, %v4460
        %v4509 = vpack.c.b16 %v4465, %v4461
        %v4510 = vpack.c.b16 %v4466, %v4462
        %v4511 = vpack.c.b16 %v4467, %v4463
        %v4512 = vpack.c.b16 %v4472, %v4468
        %v4513 = vpack.c.b16 %v4473, %v4469
        %v4514 = vpack.c.b16 %v4474, %v4470
        %v4515 = vpack.c.b16 %v4475, %v4471
        %v4516 = vpack.c.b16 %v4480, %v4476
        %v4517 = vpack.c.b16 %v4481, %v4477
        %v4518 = vpack.c.b16 %v4482, %v4478
        %v4519 = vpack.c.b16 %v4483, %v4479
        %v4520 = vpack.c.b16 %v4488, %v4484
        %v4521 = vpack.c.b16 %v4489, %v4485
        %v4522 = vpack.c.b16 %v4490, %v4486
        %v4523 = vpack.c.b16 %v4491, %v4487
        %4556 = vmatpush.bf16.msra.mxu0 %v4520
        %4557 = vmatpush.bf16.msra.mxu0 %v4516
        %4558 = vmatpush.bf16.msra.mxu0 %v4512
        %4559 = vmatpush.bf16.msra.mxu0 %v4508
        %4560 = vmatpush.bf16.msra.mxu0 %v4504
        %4561 = vmatpush.bf16.msra.mxu0 %v4500
        %4562 = vmatpush.bf16.msra.mxu0 %v4496
        %4563 = vmatpush.bf16.msra.mxu0 %v4492
        %4564 = vmatmul.bf16.gmra.mxu0 %v4363
        %v4565 = vpop.f32.mrf.mxu0
        %v4566 = vadd.f32 0.0, %v4565
        %v4567 = vpop.f32.mrf.mxu0
        %4568 = vdwg.mxu0
        %4569 = vmatpush.bf16.msra.mxu0 %v4521
        %4570 = vmatpush.bf16.msra.mxu0 %v4517
        %4571 = vmatpush.bf16.msra.mxu0 %v4513
        %4572 = vmatpush.bf16.msra.mxu0 %v4509
        %4573 = vmatpush.bf16.msra.mxu0 %v4505
        %4574 = vmatpush.bf16.msra.mxu0 %v4501
        %4575 = vmatpush.bf16.msra.mxu0 %v4497
        %4576 = vmatpush.bf16.msra.mxu0 %v4493
        %4577 = vmatmul.bf16.gmra.mxu0 %v4363
        %v4578 = vpop.f32.mrf.mxu0
        %v4579 = vadd.f32 0.0, %v4578
        %v4580 = vpop.f32.mrf.mxu0
        %4581 = vdwg.mxu0
        %4582 = vmatpush.bf16.msra.mxu0 %v4522
        %4583 = vmatpush.bf16.msra.mxu0 %v4518
        %4584 = vmatpush.bf16.msra.mxu0 %v4514
        %4585 = vmatpush.bf16.msra.mxu0 %v4510
        %4586 = vmatpush.bf16.msra.mxu0 %v4506
        %4587 = vmatpush.bf16.msra.mxu0 %v4502
        %4588 = vmatpush.bf16.msra.mxu0 %v4498
        %4589 = vmatpush.bf16.msra.mxu0 %v4494
        %4590 = vmatmul.bf16.gmra.mxu0 %v4363
        %v4591 = vpop.f32.mrf.mxu0
        %v4592 = vadd.f32 0.0, %v4591
        %v4593 = vpop.f32.mrf.mxu0
        %4594 = vdwg.mxu0
        %4595 = vmatpush.bf16.msra.mxu0 %v4523
        %4596 = vmatpush.bf16.msra.mxu0 %v4519
        %4597 = vmatpush.bf16.msra.mxu0 %v4515
        %4598 = vmatpush.bf16.msra.mxu0 %v4511
        %4599 = vmatpush.bf16.msra.mxu0 %v4507
        %4600 = vmatpush.bf16.msra.mxu0 %v4503
        %4601 = vmatpush.bf16.msra.mxu0 %v4499
        %4602 = vmatpush.bf16.msra.mxu0 %v4495
        %4603 = vmatmul.bf16.gmra.mxu0 %v4363
        %v4604 = vpop.f32.mrf.mxu0
        %v4605 = vadd.f32 0.0, %v4604
        %v4606 = vpop.f32.mrf.mxu0
        %4607 = vdwg.mxu0
        %v4608 = vadd.f32 %v4359, %v4566
        %v4609 = vadd.f32 %v4360, %v4579
        %v4610 = vadd.f32 %v4361, %v4592
        %v4611 = vadd.f32 %v4362, %v4605
        %v4612 = vxor.u32 %v4608, 2147483648
        %v4613 = vxor.u32 %v4609, 2147483648
        %v4614 = vxor.u32 %v4610, 2147483648
        %v4615 = vmul.f32 %v4612, 1.442695
        %v4616 = vpow.pop %v4615
        %v4617 = vmul.f32 %v4613, 1.442695
        %v4618 = vpow.pop %v4617
        %v4619 = vmul.f32 %v4614, 1.442695
        %v4620 = vpow.pop %v4619
        %v4621 = vadd.f32 %v4616, 1.0
        %v4622 = vadd.f32 %v4618, 1.0
        %v4623 = vadd.f32 %v4620, 1.0
        %v4624 = vrcp.pop %v4621
        %v4625 = vmul.f32 %v4621, %v4624
        %v4626 = vsub.f32 1.0, %v4625
        %v4627 = vmul.f32 %v4624, %v4626
        %v4628 = vadd.f32 %v4624, %v4627
        %vm4629 = vweird.f32 %v4621
        %vm4630 = vweird.f32 %v4624
        %vm4631 = vmor %vm4629, %vm4630
        %v4632 = vsel %vm4631, %v4624, %v4628
        %v4633 = vand.u32 2147483647, %v4621
        %vm4634 = vcmp.eq.f32.partialorder %v4633, 8.507059e+37
        %v4635 = vand.u32 %v4621, 2147483648
        %v4636 = vor.u32 1.1754944e-38, %v4635
        %v4637 = vsel %vm4634, %v4636, %v4632
        %v4638 = vmul.f32 1.0, %v4637
        %v4639 = vrcp.pop %v4622
        %v4640 = vmul.f32 %v4622, %v4639
        %v4641 = vsub.f32 1.0, %v4640
        %v4642 = vmul.f32 %v4639, %v4641
        %v4643 = vadd.f32 %v4639, %v4642
        %vm4644 = vweird.f32 %v4622
        %vm4645 = vweird.f32 %v4639
        %vm4646 = vmor %vm4644, %vm4645
        %v4647 = vsel %vm4646, %v4639, %v4643
        %v4648 = vand.u32 2147483647, %v4622
        %vm4649 = vcmp.eq.f32.partialorder %v4648, 8.507059e+37
        %v4650 = vand.u32 %v4622, 2147483648
        %v4651 = vor.u32 1.1754944e-38, %v4650
        %v4652 = vsel %vm4649, %v4651, %v4647
        %v4653 = vmul.f32 1.0, %v4652
        %v4654 = vrcp.pop %v4623
        %v4655 = vmul.f32 %v4623, %v4654
        %v4656 = vsub.f32 1.0, %v4655
        %v4657 = vmul.f32 %v4654, %v4656
        %v4658 = vadd.f32 %v4654, %v4657
        %vm4659 = vweird.f32 %v4623
        %vm4660 = vweird.f32 %v4654
        %vm4661 = vmor %vm4659, %vm4660
        %v4662 = vsel %vm4661, %v4654, %v4658
        %v4663 = vand.u32 2147483647, %v4623
        %vm4664 = vcmp.eq.f32.partialorder %v4663, 8.507059e+37
        %v4665 = vand.u32 %v4623, 2147483648
        %v4666 = vor.u32 1.1754944e-38, %v4665
        %v4667 = vsel %vm4664, %v4666, %v4662
        %v4668 = vmul.f32 1.0, %v4667
        %v4669 = vtanh.pop %v4611
        %v4670 = vmul.f32 %v4653, %v4353
        %v4671 = vmul.f32 %v4638, %v4669
        %v4672 = vadd.f32 %v4670, %v4671
        %v4673 = vtanh.pop %v4672
        %v4674 = vmul.f32 %v4668, %v4673
        %s4675 = sadd.s32 %s403, 10
        %p4676 = scmp.lt.s32.totalorder %s4675, 37
        %s4677 = scalar_select %p4676, 1, 0
        %v4678 = vstv %s4677
        %vm4679 = vcmp.eq.s32.totalorder %v4678, 1
        %v4680 = vsel %vm4679, %v4672, %v4353
        %v4681 = vsel %vm4679, %v4674, %v4354
        %s4682 = smul.u32 %s4675, 8
        %s4683 = scalar_lea.vmem [#allocation2], %s4682
        %4684 = vst [vmem:[%s4683] sm:$0xff] %v4681
        %s4685 = scalar_lea.vmem [#allocation3], 352
        %v4686 = vld [vmem:[%s4685] sm:$0xff]
        %v4687 = vld [vmem:[%s4685 + $0x8] sm:$0xff]
        %v4688 = vld [vmem:[%s4685 + $0x10] sm:$0xff]
        %v4689 = vld [vmem:[%s4685 + $0x18] sm:$0xff]
        %v4690 = vpack.c.bf16 %v4681, %v4681
        %v4691 = vld [vmem:[%s344] sm:$0xff]
        %v4692 = vld [vmem:[%s344 + $0x8] sm:$0xff]
        %v4693 = vld [vmem:[%s344 + $0x10] sm:$0xff]
        %v4694 = vld [vmem:[%s344 + $0x18] sm:$0xff]
        %v4695 = vld [vmem:[%s344 + $0x20] sm:$0xff]
        %v4696 = vld [vmem:[%s344 + $0x28] sm:$0xff]
        %v4697 = vld [vmem:[%s344 + $0x30] sm:$0xff]
        %v4698 = vld [vmem:[%s344 + $0x38] sm:$0xff]
        %v4699 = vld [vmem:[%s344 + $0x40] sm:$0xff]
        %v4700 = vld [vmem:[%s344 + $0x48] sm:$0xff]
        %v4701 = vld [vmem:[%s344 + $0x50] sm:$0xff]
        %v4702 = vld [vmem:[%s344 + $0x58] sm:$0xff]
        %v4703 = vld [vmem:[%s344 + $0x60] sm:$0xff]
        %v4704 = vld [vmem:[%s344 + $0x68] sm:$0xff]
        %v4705 = vld [vmem:[%s344 + $0x70] sm:$0xff]
        %v4706 = vld [vmem:[%s344 + $0x78] sm:$0xff]
        %v4707 = vld [vmem:[%s344 + $0x80] sm:$0xff]
        %v4708 = vld [vmem:[%s344 + $0x88] sm:$0xff]
        %v4709 = vld [vmem:[%s344 + $0x90] sm:$0xff]
        %v4710 = vld [vmem:[%s344 + $0x98] sm:$0xff]
        %v4711 = vld [vmem:[%s344 + $0xa0] sm:$0xff]
        %v4712 = vld [vmem:[%s344 + $0xa8] sm:$0xff]
        %v4713 = vld [vmem:[%s344 + $0xb0] sm:$0xff]
        %v4714 = vld [vmem:[%s344 + $0xb8] sm:$0xff]
        %v4715 = vld [vmem:[%s344 + $0xc0] sm:$0xff]
        %v4716 = vld [vmem:[%s344 + $0xc8] sm:$0xff]
        %v4717 = vld [vmem:[%s344 + $0xd0] sm:$0xff]
        %v4718 = vld [vmem:[%s344 + $0xd8] sm:$0xff]
        %v4719 = vld [vmem:[%s344 + $0xe0] sm:$0xff]
        %v4720 = vld [vmem:[%s344 + $0xe8] sm:$0xff]
        %v4721 = vld [vmem:[%s344 + $0xf0] sm:$0xff]
        %v4722 = vld [vmem:[%s344 + $0xf8] sm:$0xff]
        %v4755 = vunpack.c.l.b16 %v4691
        %v4756 = vunpack.c.h.b16 %v4691
        %v4757 = vunpack.c.l.b16 %v4692
        %v4758 = vunpack.c.h.b16 %v4692
        %v4759 = vunpack.c.l.b16 %v4693
        %v4760 = vunpack.c.h.b16 %v4693
        %v4761 = vunpack.c.l.b16 %v4694
        %v4762 = vunpack.c.h.b16 %v4694
        %v4763 = vunpack.c.l.b16 %v4695
        %v4764 = vunpack.c.h.b16 %v4695
        %v4765 = vunpack.c.l.b16 %v4696
        %v4766 = vunpack.c.h.b16 %v4696
        %v4767 = vunpack.c.l.b16 %v4697
        %v4768 = vunpack.c.h.b16 %v4697
        %v4769 = vunpack.c.l.b16 %v4698
        %v4770 = vunpack.c.h.b16 %v4698
        %v4771 = vunpack.c.l.b16 %v4699
        %v4772 = vunpack.c.h.b16 %v4699
        %v4773 = vunpack.c.l.b16 %v4700
        %v4774 = vunpack.c.h.b16 %v4700
        %v4775 = vunpack.c.l.b16 %v4701
        %v4776 = vunpack.c.h.b16 %v4701
        %v4777 = vunpack.c.l.b16 %v4702
        %v4778 = vunpack.c.h.b16 %v4702
        %v4779 = vunpack.c.l.b16 %v4703
        %v4780 = vunpack.c.h.b16 %v4703
        %v4781 = vunpack.c.l.b16 %v4704
        %v4782 = vunpack.c.h.b16 %v4704
        %v4783 = vunpack.c.l.b16 %v4705
        %v4784 = vunpack.c.h.b16 %v4705
        %v4785 = vunpack.c.l.b16 %v4706
        %v4786 = vunpack.c.h.b16 %v4706
        %v4787 = vunpack.c.l.b16 %v4707
        %v4788 = vunpack.c.h.b16 %v4707
        %v4789 = vunpack.c.l.b16 %v4708
        %v4790 = vunpack.c.h.b16 %v4708
        %v4791 = vunpack.c.l.b16 %v4709
        %v4792 = vunpack.c.h.b16 %v4709
        %v4793 = vunpack.c.l.b16 %v4710
        %v4794 = vunpack.c.h.b16 %v4710
        %v4795 = vunpack.c.l.b16 %v4711
        %v4796 = vunpack.c.h.b16 %v4711
        %v4797 = vunpack.c.l.b16 %v4712
        %v4798 = vunpack.c.h.b16 %v4712
        %v4799 = vunpack.c.l.b16 %v4713
        %v4800 = vunpack.c.h.b16 %v4713
        %v4801 = vunpack.c.l.b16 %v4714
        %v4802 = vunpack.c.h.b16 %v4714
        %v4803 = vunpack.c.l.b16 %v4715
        %v4804 = vunpack.c.h.b16 %v4715
        %v4805 = vunpack.c.l.b16 %v4716
        %v4806 = vunpack.c.h.b16 %v4716
        %v4807 = vunpack.c.l.b16 %v4717
        %v4808 = vunpack.c.h.b16 %v4717
        %v4809 = vunpack.c.l.b16 %v4718
        %v4810 = vunpack.c.h.b16 %v4718
        %v4811 = vunpack.c.l.b16 %v4719
        %v4812 = vunpack.c.h.b16 %v4719
        %v4813 = vunpack.c.l.b16 %v4720
        %v4814 = vunpack.c.h.b16 %v4720
        %v4815 = vunpack.c.l.b16 %v4721
        %v4816 = vunpack.c.h.b16 %v4721
        %v4817 = vunpack.c.l.b16 %v4722
        %v4818 = vunpack.c.h.b16 %v4722
        %v4819 = vpack.c.b16 %v4759, %v4755
        %v4820 = vpack.c.b16 %v4760, %v4756
        %v4821 = vpack.c.b16 %v4761, %v4757
        %v4822 = vpack.c.b16 %v4762, %v4758
        %v4823 = vpack.c.b16 %v4767, %v4763
        %v4824 = vpack.c.b16 %v4768, %v4764
        %v4825 = vpack.c.b16 %v4769, %v4765
        %v4826 = vpack.c.b16 %v4770, %v4766
        %v4827 = vpack.c.b16 %v4775, %v4771
        %v4828 = vpack.c.b16 %v4776, %v4772
        %v4829 = vpack.c.b16 %v4777, %v4773
        %v4830 = vpack.c.b16 %v4778, %v4774
        %v4831 = vpack.c.b16 %v4783, %v4779
        %v4832 = vpack.c.b16 %v4784, %v4780
        %v4833 = vpack.c.b16 %v4785, %v4781
        %v4834 = vpack.c.b16 %v4786, %v4782
        %v4835 = vpack.c.b16 %v4791, %v4787
        %v4836 = vpack.c.b16 %v4792, %v4788
        %v4837 = vpack.c.b16 %v4793, %v4789
        %v4838 = vpack.c.b16 %v4794, %v4790
        %v4839 = vpack.c.b16 %v4799, %v4795
        %v4840 = vpack.c.b16 %v4800, %v4796
        %v4841 = vpack.c.b16 %v4801, %v4797
        %v4842 = vpack.c.b16 %v4802, %v4798
        %v4843 = vpack.c.b16 %v4807, %v4803
        %v4844 = vpack.c.b16 %v4808, %v4804
        %v4845 = vpack.c.b16 %v4809, %v4805
        %v4846 = vpack.c.b16 %v4810, %v4806
        %v4847 = vpack.c.b16 %v4815, %v4811
        %v4848 = vpack.c.b16 %v4816, %v4812
        %v4849 = vpack.c.b16 %v4817, %v4813
        %v4850 = vpack.c.b16 %v4818, %v4814
        %4883 = vmatpush.bf16.msra.mxu0 %v4847
        %4884 = vmatpush.bf16.msra.mxu0 %v4843
        %4885 = vmatpush.bf16.msra.mxu0 %v4839
        %4886 = vmatpush.bf16.msra.mxu0 %v4835
        %4887 = vmatpush.bf16.msra.mxu0 %v4831
        %4888 = vmatpush.bf16.msra.mxu0 %v4827
        %4889 = vmatpush.bf16.msra.mxu0 %v4823
        %4890 = vmatpush.bf16.msra.mxu0 %v4819
        %4891 = vmatmul.bf16.gmra.mxu0 %v4690
        %v4892 = vpop.f32.mrf.mxu0
        %v4893 = vadd.f32 0.0, %v4892
        %v4894 = vpop.f32.mrf.mxu0
        %4895 = vdwg.mxu0
        %4896 = vmatpush.bf16.msra.mxu0 %v4848
        %4897 = vmatpush.bf16.msra.mxu0 %v4844
        %4898 = vmatpush.bf16.msra.mxu0 %v4840
        %4899 = vmatpush.bf16.msra.mxu0 %v4836
        %4900 = vmatpush.bf16.msra.mxu0 %v4832
        %4901 = vmatpush.bf16.msra.mxu0 %v4828
        %4902 = vmatpush.bf16.msra.mxu0 %v4824
        %4903 = vmatpush.bf16.msra.mxu0 %v4820
        %4904 = vmatmul.bf16.gmra.mxu0 %v4690
        %v4905 = vpop.f32.mrf.mxu0
        %v4906 = vadd.f32 0.0, %v4905
        %v4907 = vpop.f32.mrf.mxu0
        %4908 = vdwg.mxu0
        %4909 = vmatpush.bf16.msra.mxu0 %v4849
        %4910 = vmatpush.bf16.msra.mxu0 %v4845
        %4911 = vmatpush.bf16.msra.mxu0 %v4841
        %4912 = vmatpush.bf16.msra.mxu0 %v4837
        %4913 = vmatpush.bf16.msra.mxu0 %v4833
        %4914 = vmatpush.bf16.msra.mxu0 %v4829
        %4915 = vmatpush.bf16.msra.mxu0 %v4825
        %4916 = vmatpush.bf16.msra.mxu0 %v4821
        %4917 = vmatmul.bf16.gmra.mxu0 %v4690
        %v4918 = vpop.f32.mrf.mxu0
        %v4919 = vadd.f32 0.0, %v4918
        %v4920 = vpop.f32.mrf.mxu0
        %4921 = vdwg.mxu0
        %4922 = vmatpush.bf16.msra.mxu0 %v4850
        %4923 = vmatpush.bf16.msra.mxu0 %v4846
        %4924 = vmatpush.bf16.msra.mxu0 %v4842
        %4925 = vmatpush.bf16.msra.mxu0 %v4838
        %4926 = vmatpush.bf16.msra.mxu0 %v4834
        %4927 = vmatpush.bf16.msra.mxu0 %v4830
        %4928 = vmatpush.bf16.msra.mxu0 %v4826
        %4929 = vmatpush.bf16.msra.mxu0 %v4822
        %4930 = vmatmul.bf16.gmra.mxu0 %v4690
        %v4931 = vpop.f32.mrf.mxu0
        %v4932 = vadd.f32 0.0, %v4931
        %v4933 = vpop.f32.mrf.mxu0
        %4934 = vdwg.mxu0
        %v4935 = vadd.f32 %v4686, %v4893
        %v4936 = vadd.f32 %v4687, %v4906
        %v4937 = vadd.f32 %v4688, %v4919
        %v4938 = vadd.f32 %v4689, %v4932
        %v4939 = vxor.u32 %v4935, 2147483648
        %v4940 = vxor.u32 %v4936, 2147483648
        %v4941 = vxor.u32 %v4937, 2147483648
        %v4942 = vmul.f32 %v4939, 1.442695
        %v4943 = vpow.pop %v4942
        %v4944 = vmul.f32 %v4940, 1.442695
        %v4945 = vpow.pop %v4944
        %v4946 = vmul.f32 %v4941, 1.442695
        %v4947 = vpow.pop %v4946
        %v4948 = vadd.f32 %v4943, 1.0
        %v4949 = vadd.f32 %v4945, 1.0
        %v4950 = vadd.f32 %v4947, 1.0
        %v4951 = vrcp.pop %v4948
        %v4952 = vmul.f32 %v4948, %v4951
        %v4953 = vsub.f32 1.0, %v4952
        %v4954 = vmul.f32 %v4951, %v4953
        %v4955 = vadd.f32 %v4951, %v4954
        %vm4956 = vweird.f32 %v4948
        %vm4957 = vweird.f32 %v4951
        %vm4958 = vmor %vm4956, %vm4957
        %v4959 = vsel %vm4958, %v4951, %v4955
        %v4960 = vand.u32 2147483647, %v4948
        %vm4961 = vcmp.eq.f32.partialorder %v4960, 8.507059e+37
        %v4962 = vand.u32 %v4948, 2147483648
        %v4963 = vor.u32 1.1754944e-38, %v4962
        %v4964 = vsel %vm4961, %v4963, %v4959
        %v4965 = vmul.f32 1.0, %v4964
        %v4966 = vrcp.pop %v4949
        %v4967 = vmul.f32 %v4949, %v4966
        %v4968 = vsub.f32 1.0, %v4967
        %v4969 = vmul.f32 %v4966, %v4968
        %v4970 = vadd.f32 %v4966, %v4969
        %vm4971 = vweird.f32 %v4949
        %vm4972 = vweird.f32 %v4966
        %vm4973 = vmor %vm4971, %vm4972
        %v4974 = vsel %vm4973, %v4966, %v4970
        %v4975 = vand.u32 2147483647, %v4949
        %vm4976 = vcmp.eq.f32.partialorder %v4975, 8.507059e+37
        %v4977 = vand.u32 %v4949, 2147483648
        %v4978 = vor.u32 1.1754944e-38, %v4977
        %v4979 = vsel %vm4976, %v4978, %v4974
        %v4980 = vmul.f32 1.0, %v4979
        %v4981 = vrcp.pop %v4950
        %v4982 = vmul.f32 %v4950, %v4981
        %v4983 = vsub.f32 1.0, %v4982
        %v4984 = vmul.f32 %v4981, %v4983
        %v4985 = vadd.f32 %v4981, %v4984
        %vm4986 = vweird.f32 %v4950
        %vm4987 = vweird.f32 %v4981
        %vm4988 = vmor %vm4986, %vm4987
        %v4989 = vsel %vm4988, %v4981, %v4985
        %v4990 = vand.u32 2147483647, %v4950
        %vm4991 = vcmp.eq.f32.partialorder %v4990, 8.507059e+37
        %v4992 = vand.u32 %v4950, 2147483648
        %v4993 = vor.u32 1.1754944e-38, %v4992
        %v4994 = vsel %vm4991, %v4993, %v4989
        %v4995 = vmul.f32 1.0, %v4994
        %v4996 = vtanh.pop %v4938
        %v4997 = vmul.f32 %v4980, %v4680
        %v4998 = vmul.f32 %v4965, %v4996
        %v4999 = vadd.f32 %v4997, %v4998
        %v5000 = vtanh.pop %v4999
        %v5001 = vmul.f32 %v4995, %v5000
        %s5002 = sadd.s32 %s403, 11
        %p5003 = scmp.lt.s32.totalorder %s5002, 37
        %s5004 = scalar_select %p5003, 1, 0
        %v5005 = vstv %s5004
        %vm5006 = vcmp.eq.s32.totalorder %v5005, 1
        %v5007 = vsel %vm5006, %v4999, %v4680
        %v5008 = vsel %vm5006, %v5001, %v4681
        %s5009 = smul.u32 %s5002, 8
        %s5010 = scalar_lea.vmem [#allocation2], %s5009
        %5011 = vst [vmem:[%s5010] sm:$0xff] %v5008
        %s5012 = scalar_lea.vmem [#allocation3], 384
        %v5013 = vld [vmem:[%s5012] sm:$0xff]
        %v5014 = vld [vmem:[%s5012 + $0x8] sm:$0xff]
        %v5015 = vld [vmem:[%s5012 + $0x10] sm:$0xff]
        %v5016 = vld [vmem:[%s5012 + $0x18] sm:$0xff]
        %v5017 = vpack.c.bf16 %v5008, %v5008
        %v5018 = vld [vmem:[%s344] sm:$0xff]
        %v5019 = vld [vmem:[%s344 + $0x8] sm:$0xff]
        %v5020 = vld [vmem:[%s344 + $0x10] sm:$0xff]
        %v5021 = vld [vmem:[%s344 + $0x18] sm:$0xff]
        %v5022 = vld [vmem:[%s344 + $0x20] sm:$0xff]
        %v5023 = vld [vmem:[%s344 + $0x28] sm:$0xff]
        %v5024 = vld [vmem:[%s344 + $0x30] sm:$0xff]
        %v5025 = vld [vmem:[%s344 + $0x38] sm:$0xff]
        %v5026 = vld [vmem:[%s344 + $0x40] sm:$0xff]
        %v5027 = vld [vmem:[%s344 + $0x48] sm:$0xff]
        %v5028 = vld [vmem:[%s344 + $0x50] sm:$0xff]
        %v5029 = vld [vmem:[%s344 + $0x58] sm:$0xff]
        %v5030 = vld [vmem:[%s344 + $0x60] sm:$0xff]
        %v5031 = vld [vmem:[%s344 + $0x68] sm:$0xff]
        %v5032 = vld [vmem:[%s344 + $0x70] sm:$0xff]
        %v5033 = vld [vmem:[%s344 + $0x78] sm:$0xff]
        %v5034 = vld [vmem:[%s344 + $0x80] sm:$0xff]
        %v5035 = vld [vmem:[%s344 + $0x88] sm:$0xff]
        %v5036 = vld [vmem:[%s344 + $0x90] sm:$0xff]
        %v5037 = vld [vmem:[%s344 + $0x98] sm:$0xff]
        %v5038 = vld [vmem:[%s344 + $0xa0] sm:$0xff]
        %v5039 = vld [vmem:[%s344 + $0xa8] sm:$0xff]
        %v5040 = vld [vmem:[%s344 + $0xb0] sm:$0xff]
        %v5041 = vld [vmem:[%s344 + $0xb8] sm:$0xff]
        %v5042 = vld [vmem:[%s344 + $0xc0] sm:$0xff]
        %v5043 = vld [vmem:[%s344 + $0xc8] sm:$0xff]
        %v5044 = vld [vmem:[%s344 + $0xd0] sm:$0xff]
        %v5045 = vld [vmem:[%s344 + $0xd8] sm:$0xff]
        %v5046 = vld [vmem:[%s344 + $0xe0] sm:$0xff]
        %v5047 = vld [vmem:[%s344 + $0xe8] sm:$0xff]
        %v5048 = vld [vmem:[%s344 + $0xf0] sm:$0xff]
        %v5049 = vld [vmem:[%s344 + $0xf8] sm:$0xff]
        %v5082 = vunpack.c.l.b16 %v5018
        %v5083 = vunpack.c.h.b16 %v5018
        %v5084 = vunpack.c.l.b16 %v5019
        %v5085 = vunpack.c.h.b16 %v5019
        %v5086 = vunpack.c.l.b16 %v5020
        %v5087 = vunpack.c.h.b16 %v5020
        %v5088 = vunpack.c.l.b16 %v5021
        %v5089 = vunpack.c.h.b16 %v5021
        %v5090 = vunpack.c.l.b16 %v5022
        %v5091 = vunpack.c.h.b16 %v5022
        %v5092 = vunpack.c.l.b16 %v5023
        %v5093 = vunpack.c.h.b16 %v5023
        %v5094 = vunpack.c.l.b16 %v5024
        %v5095 = vunpack.c.h.b16 %v5024
        %v5096 = vunpack.c.l.b16 %v5025
        %v5097 = vunpack.c.h.b16 %v5025
        %v5098 = vunpack.c.l.b16 %v5026
        %v5099 = vunpack.c.h.b16 %v5026
        %v5100 = vunpack.c.l.b16 %v5027
        %v5101 = vunpack.c.h.b16 %v5027
        %v5102 = vunpack.c.l.b16 %v5028
        %v5103 = vunpack.c.h.b16 %v5028
        %v5104 = vunpack.c.l.b16 %v5029
        %v5105 = vunpack.c.h.b16 %v5029
        %v5106 = vunpack.c.l.b16 %v5030
        %v5107 = vunpack.c.h.b16 %v5030
        %v5108 = vunpack.c.l.b16 %v5031
        %v5109 = vunpack.c.h.b16 %v5031
        %v5110 = vunpack.c.l.b16 %v5032
        %v5111 = vunpack.c.h.b16 %v5032
        %v5112 = vunpack.c.l.b16 %v5033
        %v5113 = vunpack.c.h.b16 %v5033
        %v5114 = vunpack.c.l.b16 %v5034
        %v5115 = vunpack.c.h.b16 %v5034
        %v5116 = vunpack.c.l.b16 %v5035
        %v5117 = vunpack.c.h.b16 %v5035
        %v5118 = vunpack.c.l.b16 %v5036
        %v5119 = vunpack.c.h.b16 %v5036
        %v5120 = vunpack.c.l.b16 %v5037
        %v5121 = vunpack.c.h.b16 %v5037
        %v5122 = vunpack.c.l.b16 %v5038
        %v5123 = vunpack.c.h.b16 %v5038
        %v5124 = vunpack.c.l.b16 %v5039
        %v5125 = vunpack.c.h.b16 %v5039
        %v5126 = vunpack.c.l.b16 %v5040
        %v5127 = vunpack.c.h.b16 %v5040
        %v5128 = vunpack.c.l.b16 %v5041
        %v5129 = vunpack.c.h.b16 %v5041
        %v5130 = vunpack.c.l.b16 %v5042
        %v5131 = vunpack.c.h.b16 %v5042
        %v5132 = vunpack.c.l.b16 %v5043
        %v5133 = vunpack.c.h.b16 %v5043
        %v5134 = vunpack.c.l.b16 %v5044
        %v5135 = vunpack.c.h.b16 %v5044
        %v5136 = vunpack.c.l.b16 %v5045
        %v5137 = vunpack.c.h.b16 %v5045
        %v5138 = vunpack.c.l.b16 %v5046
        %v5139 = vunpack.c.h.b16 %v5046
        %v5140 = vunpack.c.l.b16 %v5047
        %v5141 = vunpack.c.h.b16 %v5047
        %v5142 = vunpack.c.l.b16 %v5048
        %v5143 = vunpack.c.h.b16 %v5048
        %v5144 = vunpack.c.l.b16 %v5049
        %v5145 = vunpack.c.h.b16 %v5049
        %v5146 = vpack.c.b16 %v5086, %v5082
        %v5147 = vpack.c.b16 %v5087, %v5083
        %v5148 = vpack.c.b16 %v5088, %v5084
        %v5149 = vpack.c.b16 %v5089, %v5085
        %v5150 = vpack.c.b16 %v5094, %v5090
        %v5151 = vpack.c.b16 %v5095, %v5091
        %v5152 = vpack.c.b16 %v5096, %v5092
        %v5153 = vpack.c.b16 %v5097, %v5093
        %v5154 = vpack.c.b16 %v5102, %v5098
        %v5155 = vpack.c.b16 %v5103, %v5099
        %v5156 = vpack.c.b16 %v5104, %v5100
        %v5157 = vpack.c.b16 %v5105, %v5101
        %v5158 = vpack.c.b16 %v5110, %v5106
        %v5159 = vpack.c.b16 %v5111, %v5107
        %v5160 = vpack.c.b16 %v5112, %v5108
        %v5161 = vpack.c.b16 %v5113, %v5109
        %v5162 = vpack.c.b16 %v5118, %v5114
        %v5163 = vpack.c.b16 %v5119, %v5115
        %v5164 = vpack.c.b16 %v5120, %v5116
        %v5165 = vpack.c.b16 %v5121, %v5117
        %v5166 = vpack.c.b16 %v5126, %v5122
        %v5167 = vpack.c.b16 %v5127, %v5123
        %v5168 = vpack.c.b16 %v5128, %v5124
        %v5169 = vpack.c.b16 %v5129, %v5125
        %v5170 = vpack.c.b16 %v5134, %v5130
        %v5171 = vpack.c.b16 %v5135, %v5131
        %v5172 = vpack.c.b16 %v5136, %v5132
        %v5173 = vpack.c.b16 %v5137, %v5133
        %v5174 = vpack.c.b16 %v5142, %v5138
        %v5175 = vpack.c.b16 %v5143, %v5139
        %v5176 = vpack.c.b16 %v5144, %v5140
        %v5177 = vpack.c.b16 %v5145, %v5141
        %5210 = vmatpush.bf16.msra.mxu0 %v5174
        %5211 = vmatpush.bf16.msra.mxu0 %v5170
        %5212 = vmatpush.bf16.msra.mxu0 %v5166
        %5213 = vmatpush.bf16.msra.mxu0 %v5162
        %5214 = vmatpush.bf16.msra.mxu0 %v5158
        %5215 = vmatpush.bf16.msra.mxu0 %v5154
        %5216 = vmatpush.bf16.msra.mxu0 %v5150
        %5217 = vmatpush.bf16.msra.mxu0 %v5146
        %5218 = vmatmul.bf16.gmra.mxu0 %v5017
        %v5219 = vpop.f32.mrf.mxu0
        %v5220 = vadd.f32 0.0, %v5219
        %v5221 = vpop.f32.mrf.mxu0
        %5222 = vdwg.mxu0
        %5223 = vmatpush.bf16.msra.mxu0 %v5175
        %5224 = vmatpush.bf16.msra.mxu0 %v5171
        %5225 = vmatpush.bf16.msra.mxu0 %v5167
        %5226 = vmatpush.bf16.msra.mxu0 %v5163
        %5227 = vmatpush.bf16.msra.mxu0 %v5159
        %5228 = vmatpush.bf16.msra.mxu0 %v5155
        %5229 = vmatpush.bf16.msra.mxu0 %v5151
        %5230 = vmatpush.bf16.msra.mxu0 %v5147
        %5231 = vmatmul.bf16.gmra.mxu0 %v5017
        %v5232 = vpop.f32.mrf.mxu0
        %v5233 = vadd.f32 0.0, %v5232
        %v5234 = vpop.f32.mrf.mxu0
        %5235 = vdwg.mxu0
        %5236 = vmatpush.bf16.msra.mxu0 %v5176
        %5237 = vmatpush.bf16.msra.mxu0 %v5172
        %5238 = vmatpush.bf16.msra.mxu0 %v5168
        %5239 = vmatpush.bf16.msra.mxu0 %v5164
        %5240 = vmatpush.bf16.msra.mxu0 %v5160
        %5241 = vmatpush.bf16.msra.mxu0 %v5156
        %5242 = vmatpush.bf16.msra.mxu0 %v5152
        %5243 = vmatpush.bf16.msra.mxu0 %v5148
        %5244 = vmatmul.bf16.gmra.mxu0 %v5017
        %v5245 = vpop.f32.mrf.mxu0
        %v5246 = vadd.f32 0.0, %v5245
        %v5247 = vpop.f32.mrf.mxu0
        %5248 = vdwg.mxu0
        %5249 = vmatpush.bf16.msra.mxu0 %v5177
        %5250 = vmatpush.bf16.msra.mxu0 %v5173
        %5251 = vmatpush.bf16.msra.mxu0 %v5169
        %5252 = vmatpush.bf16.msra.mxu0 %v5165
        %5253 = vmatpush.bf16.msra.mxu0 %v5161
        %5254 = vmatpush.bf16.msra.mxu0 %v5157
        %5255 = vmatpush.bf16.msra.mxu0 %v5153
        %5256 = vmatpush.bf16.msra.mxu0 %v5149
        %5257 = vmatmul.bf16.gmra.mxu0 %v5017
        %v5258 = vpop.f32.mrf.mxu0
        %v5259 = vadd.f32 0.0, %v5258
        %v5260 = vpop.f32.mrf.mxu0
        %5261 = vdwg.mxu0
        %v5262 = vadd.f32 %v5013, %v5220
        %v5263 = vadd.f32 %v5014, %v5233
        %v5264 = vadd.f32 %v5015, %v5246
        %v5265 = vadd.f32 %v5016, %v5259
        %v5266 = vxor.u32 %v5262, 2147483648
        %v5267 = vxor.u32 %v5263, 2147483648
        %v5268 = vxor.u32 %v5264, 2147483648
        %v5269 = vmul.f32 %v5266, 1.442695
        %v5270 = vpow.pop %v5269
        %v5271 = vmul.f32 %v5267, 1.442695
        %v5272 = vpow.pop %v5271
        %v5273 = vmul.f32 %v5268, 1.442695
        %v5274 = vpow.pop %v5273
        %v5275 = vadd.f32 %v5270, 1.0
        %v5276 = vadd.f32 %v5272, 1.0
        %v5277 = vadd.f32 %v5274, 1.0
        %v5278 = vrcp.pop %v5275
        %v5279 = vmul.f32 %v5275, %v5278
        %v5280 = vsub.f32 1.0, %v5279
        %v5281 = vmul.f32 %v5278, %v5280
        %v5282 = vadd.f32 %v5278, %v5281
        %vm5283 = vweird.f32 %v5275
        %vm5284 = vweird.f32 %v5278
        %vm5285 = vmor %vm5283, %vm5284
        %v5286 = vsel %vm5285, %v5278, %v5282
        %v5287 = vand.u32 2147483647, %v5275
        %vm5288 = vcmp.eq.f32.partialorder %v5287, 8.507059e+37
        %v5289 = vand.u32 %v5275, 2147483648
        %v5290 = vor.u32 1.1754944e-38, %v5289
        %v5291 = vsel %vm5288, %v5290, %v5286
        %v5292 = vmul.f32 1.0, %v5291
        %v5293 = vrcp.pop %v5276
        %v5294 = vmul.f32 %v5276, %v5293
        %v5295 = vsub.f32 1.0, %v5294
        %v5296 = vmul.f32 %v5293, %v5295
        %v5297 = vadd.f32 %v5293, %v5296
        %vm5298 = vweird.f32 %v5276
        %vm5299 = vweird.f32 %v5293
        %vm5300 = vmor %vm5298, %vm5299
        %v5301 = vsel %vm5300, %v5293, %v5297
        %v5302 = vand.u32 2147483647, %v5276
        %vm5303 = vcmp.eq.f32.partialorder %v5302, 8.507059e+37
        %v5304 = vand.u32 %v5276, 2147483648
        %v5305 = vor.u32 1.1754944e-38, %v5304
        %v5306 = vsel %vm5303, %v5305, %v5301
        %v5307 = vmul.f32 1.0, %v5306
        %v5308 = vrcp.pop %v5277
        %v5309 = vmul.f32 %v5277, %v5308
        %v5310 = vsub.f32 1.0, %v5309
        %v5311 = vmul.f32 %v5308, %v5310
        %v5312 = vadd.f32 %v5308, %v5311
        %vm5313 = vweird.f32 %v5277
        %vm5314 = vweird.f32 %v5308
        %vm5315 = vmor %vm5313, %vm5314
        %v5316 = vsel %vm5315, %v5308, %v5312
        %v5317 = vand.u32 2147483647, %v5277
        %vm5318 = vcmp.eq.f32.partialorder %v5317, 8.507059e+37
        %v5319 = vand.u32 %v5277, 2147483648
        %v5320 = vor.u32 1.1754944e-38, %v5319
        %v5321 = vsel %vm5318, %v5320, %v5316
        %v5322 = vmul.f32 1.0, %v5321
        %v5323 = vtanh.pop %v5265
        %v5324 = vmul.f32 %v5307, %v5007
        %v5325 = vmul.f32 %v5292, %v5323
        %v5326 = vadd.f32 %v5324, %v5325
        %v5327 = vtanh.pop %v5326
        %v5328 = vmul.f32 %v5322, %v5327
        %s5329 = sadd.s32 %s403, 12
        %p5330 = scmp.lt.s32.totalorder %s5329, 37
        %s5331 = scalar_select %p5330, 1, 0
        %v5332 = vstv %s5331
        %vm5333 = vcmp.eq.s32.totalorder %v5332, 1
        %v5334 = vsel %vm5333, %v5326, %v5007
        %v5335 = vsel %vm5333, %v5328, %v5008
        %s5336 = smul.u32 %s5329, 8
        %s5337 = scalar_lea.vmem [#allocation2], %s5336
        %5338 = vst [vmem:[%s5337] sm:$0xff] %v5335
        %s5339 = scalar_lea.vmem [#allocation3], 416
        %v5340 = vld [vmem:[%s5339] sm:$0xff]
        %v5341 = vld [vmem:[%s5339 + $0x8] sm:$0xff]
        %v5342 = vld [vmem:[%s5339 + $0x10] sm:$0xff]
        %v5343 = vld [vmem:[%s5339 + $0x18] sm:$0xff]
        %v5344 = vpack.c.bf16 %v5335, %v5335
        %v5345 = vld [vmem:[%s344] sm:$0xff]
        %v5346 = vld [vmem:[%s344 + $0x8] sm:$0xff]
        %v5347 = vld [vmem:[%s344 + $0x10] sm:$0xff]
        %v5348 = vld [vmem:[%s344 + $0x18] sm:$0xff]
        %v5349 = vld [vmem:[%s344 + $0x20] sm:$0xff]
        %v5350 = vld [vmem:[%s344 + $0x28] sm:$0xff]
        %v5351 = vld [vmem:[%s344 + $0x30] sm:$0xff]
        %v5352 = vld [vmem:[%s344 + $0x38] sm:$0xff]
        %v5353 = vld [vmem:[%s344 + $0x40] sm:$0xff]
        %v5354 = vld [vmem:[%s344 + $0x48] sm:$0xff]
        %v5355 = vld [vmem:[%s344 + $0x50] sm:$0xff]
        %v5356 = vld [vmem:[%s344 + $0x58] sm:$0xff]
        %v5357 = vld [vmem:[%s344 + $0x60] sm:$0xff]
        %v5358 = vld [vmem:[%s344 + $0x68] sm:$0xff]
        %v5359 = vld [vmem:[%s344 + $0x70] sm:$0xff]
        %v5360 = vld [vmem:[%s344 + $0x78] sm:$0xff]
        %v5361 = vld [vmem:[%s344 + $0x80] sm:$0xff]
        %v5362 = vld [vmem:[%s344 + $0x88] sm:$0xff]
        %v5363 = vld [vmem:[%s344 + $0x90] sm:$0xff]
        %v5364 = vld [vmem:[%s344 + $0x98] sm:$0xff]
        %v5365 = vld [vmem:[%s344 + $0xa0] sm:$0xff]
        %v5366 = vld [vmem:[%s344 + $0xa8] sm:$0xff]
        %v5367 = vld [vmem:[%s344 + $0xb0] sm:$0xff]
        %v5368 = vld [vmem:[%s344 + $0xb8] sm:$0xff]
        %v5369 = vld [vmem:[%s344 + $0xc0] sm:$0xff]
        %v5370 = vld [vmem:[%s344 + $0xc8] sm:$0xff]
        %v5371 = vld [vmem:[%s344 + $0xd0] sm:$0xff]
        %v5372 = vld [vmem:[%s344 + $0xd8] sm:$0xff]
        %v5373 = vld [vmem:[%s344 + $0xe0] sm:$0xff]
        %v5374 = vld [vmem:[%s344 + $0xe8] sm:$0xff]
        %v5375 = vld [vmem:[%s344 + $0xf0] sm:$0xff]
        %v5376 = vld [vmem:[%s344 + $0xf8] sm:$0xff]
        %v5409 = vunpack.c.l.b16 %v5345
        %v5410 = vunpack.c.h.b16 %v5345
        %v5411 = vunpack.c.l.b16 %v5346
        %v5412 = vunpack.c.h.b16 %v5346
        %v5413 = vunpack.c.l.b16 %v5347
        %v5414 = vunpack.c.h.b16 %v5347
        %v5415 = vunpack.c.l.b16 %v5348
        %v5416 = vunpack.c.h.b16 %v5348
        %v5417 = vunpack.c.l.b16 %v5349
        %v5418 = vunpack.c.h.b16 %v5349
        %v5419 = vunpack.c.l.b16 %v5350
        %v5420 = vunpack.c.h.b16 %v5350
        %v5421 = vunpack.c.l.b16 %v5351
        %v5422 = vunpack.c.h.b16 %v5351
        %v5423 = vunpack.c.l.b16 %v5352
        %v5424 = vunpack.c.h.b16 %v5352
        %v5425 = vunpack.c.l.b16 %v5353
        %v5426 = vunpack.c.h.b16 %v5353
        %v5427 = vunpack.c.l.b16 %v5354
        %v5428 = vunpack.c.h.b16 %v5354
        %v5429 = vunpack.c.l.b16 %v5355
        %v5430 = vunpack.c.h.b16 %v5355
        %v5431 = vunpack.c.l.b16 %v5356
        %v5432 = vunpack.c.h.b16 %v5356
        %v5433 = vunpack.c.l.b16 %v5357
        %v5434 = vunpack.c.h.b16 %v5357
        %v5435 = vunpack.c.l.b16 %v5358
        %v5436 = vunpack.c.h.b16 %v5358
        %v5437 = vunpack.c.l.b16 %v5359
        %v5438 = vunpack.c.h.b16 %v5359
        %v5439 = vunpack.c.l.b16 %v5360
        %v5440 = vunpack.c.h.b16 %v5360
        %v5441 = vunpack.c.l.b16 %v5361
        %v5442 = vunpack.c.h.b16 %v5361
        %v5443 = vunpack.c.l.b16 %v5362
        %v5444 = vunpack.c.h.b16 %v5362
        %v5445 = vunpack.c.l.b16 %v5363
        %v5446 = vunpack.c.h.b16 %v5363
        %v5447 = vunpack.c.l.b16 %v5364
        %v5448 = vunpack.c.h.b16 %v5364
        %v5449 = vunpack.c.l.b16 %v5365
        %v5450 = vunpack.c.h.b16 %v5365
        %v5451 = vunpack.c.l.b16 %v5366
        %v5452 = vunpack.c.h.b16 %v5366
        %v5453 = vunpack.c.l.b16 %v5367
        %v5454 = vunpack.c.h.b16 %v5367
        %v5455 = vunpack.c.l.b16 %v5368
        %v5456 = vunpack.c.h.b16 %v5368
        %v5457 = vunpack.c.l.b16 %v5369
        %v5458 = vunpack.c.h.b16 %v5369
        %v5459 = vunpack.c.l.b16 %v5370
        %v5460 = vunpack.c.h.b16 %v5370
        %v5461 = vunpack.c.l.b16 %v5371
        %v5462 = vunpack.c.h.b16 %v5371
        %v5463 = vunpack.c.l.b16 %v5372
        %v5464 = vunpack.c.h.b16 %v5372
        %v5465 = vunpack.c.l.b16 %v5373
        %v5466 = vunpack.c.h.b16 %v5373
        %v5467 = vunpack.c.l.b16 %v5374
        %v5468 = vunpack.c.h.b16 %v5374
        %v5469 = vunpack.c.l.b16 %v5375
        %v5470 = vunpack.c.h.b16 %v5375
        %v5471 = vunpack.c.l.b16 %v5376
        %v5472 = vunpack.c.h.b16 %v5376
        %v5473 = vpack.c.b16 %v5413, %v5409
        %v5474 = vpack.c.b16 %v5414, %v5410
        %v5475 = vpack.c.b16 %v5415, %v5411
        %v5476 = vpack.c.b16 %v5416, %v5412
        %v5477 = vpack.c.b16 %v5421, %v5417
        %v5478 = vpack.c.b16 %v5422, %v5418
        %v5479 = vpack.c.b16 %v5423, %v5419
        %v5480 = vpack.c.b16 %v5424, %v5420
        %v5481 = vpack.c.b16 %v5429, %v5425
        %v5482 = vpack.c.b16 %v5430, %v5426
        %v5483 = vpack.c.b16 %v5431, %v5427
        %v5484 = vpack.c.b16 %v5432, %v5428
        %v5485 = vpack.c.b16 %v5437, %v5433
        %v5486 = vpack.c.b16 %v5438, %v5434
        %v5487 = vpack.c.b16 %v5439, %v5435
        %v5488 = vpack.c.b16 %v5440, %v5436
        %v5489 = vpack.c.b16 %v5445, %v5441
        %v5490 = vpack.c.b16 %v5446, %v5442
        %v5491 = vpack.c.b16 %v5447, %v5443
        %v5492 = vpack.c.b16 %v5448, %v5444
        %v5493 = vpack.c.b16 %v5453, %v5449
        %v5494 = vpack.c.b16 %v5454, %v5450
        %v5495 = vpack.c.b16 %v5455, %v5451
        %v5496 = vpack.c.b16 %v5456, %v5452
        %v5497 = vpack.c.b16 %v5461, %v5457
        %v5498 = vpack.c.b16 %v5462, %v5458
        %v5499 = vpack.c.b16 %v5463, %v5459
        %v5500 = vpack.c.b16 %v5464, %v5460
        %v5501 = vpack.c.b16 %v5469, %v5465
        %v5502 = vpack.c.b16 %v5470, %v5466
        %v5503 = vpack.c.b16 %v5471, %v5467
        %v5504 = vpack.c.b16 %v5472, %v5468
        %5537 = vmatpush.bf16.msra.mxu0 %v5501
        %5538 = vmatpush.bf16.msra.mxu0 %v5497
        %5539 = vmatpush.bf16.msra.mxu0 %v5493
        %5540 = vmatpush.bf16.msra.mxu0 %v5489
        %5541 = vmatpush.bf16.msra.mxu0 %v5485
        %5542 = vmatpush.bf16.msra.mxu0 %v5481
        %5543 = vmatpush.bf16.msra.mxu0 %v5477
        %5544 = vmatpush.bf16.msra.mxu0 %v5473
        %5545 = vmatmul.bf16.gmra.mxu0 %v5344
        %v5546 = vpop.f32.mrf.mxu0
        %v5547 = vadd.f32 0.0, %v5546
        %v5548 = vpop.f32.mrf.mxu0
        %5549 = vdwg.mxu0
        %5550 = vmatpush.bf16.msra.mxu0 %v5502
        %5551 = vmatpush.bf16.msra.mxu0 %v5498
        %5552 = vmatpush.bf16.msra.mxu0 %v5494
        %5553 = vmatpush.bf16.msra.mxu0 %v5490
        %5554 = vmatpush.bf16.msra.mxu0 %v5486
        %5555 = vmatpush.bf16.msra.mxu0 %v5482
        %5556 = vmatpush.bf16.msra.mxu0 %v5478
        %5557 = vmatpush.bf16.msra.mxu0 %v5474
        %5558 = vmatmul.bf16.gmra.mxu0 %v5344
        %v5559 = vpop.f32.mrf.mxu0
        %v5560 = vadd.f32 0.0, %v5559
        %v5561 = vpop.f32.mrf.mxu0
        %5562 = vdwg.mxu0
        %5563 = vmatpush.bf16.msra.mxu0 %v5503
        %5564 = vmatpush.bf16.msra.mxu0 %v5499
        %5565 = vmatpush.bf16.msra.mxu0 %v5495
        %5566 = vmatpush.bf16.msra.mxu0 %v5491
        %5567 = vmatpush.bf16.msra.mxu0 %v5487
        %5568 = vmatpush.bf16.msra.mxu0 %v5483
        %5569 = vmatpush.bf16.msra.mxu0 %v5479
        %5570 = vmatpush.bf16.msra.mxu0 %v5475
        %5571 = vmatmul.bf16.gmra.mxu0 %v5344
        %v5572 = vpop.f32.mrf.mxu0
        %v5573 = vadd.f32 0.0, %v5572
        %v5574 = vpop.f32.mrf.mxu0
        %5575 = vdwg.mxu0
        %5576 = vmatpush.bf16.msra.mxu0 %v5504
        %5577 = vmatpush.bf16.msra.mxu0 %v5500
        %5578 = vmatpush.bf16.msra.mxu0 %v5496
        %5579 = vmatpush.bf16.msra.mxu0 %v5492
        %5580 = vmatpush.bf16.msra.mxu0 %v5488
        %5581 = vmatpush.bf16.msra.mxu0 %v5484
        %5582 = vmatpush.bf16.msra.mxu0 %v5480
        %5583 = vmatpush.bf16.msra.mxu0 %v5476
        %5584 = vmatmul.bf16.gmra.mxu0 %v5344
        %v5585 = vpop.f32.mrf.mxu0
        %v5586 = vadd.f32 0.0, %v5585
        %v5587 = vpop.f32.mrf.mxu0
        %5588 = vdwg.mxu0
        %v5589 = vadd.f32 %v5340, %v5547
        %v5590 = vadd.f32 %v5341, %v5560
        %v5591 = vadd.f32 %v5342, %v5573
        %v5592 = vadd.f32 %v5343, %v5586
        %v5593 = vxor.u32 %v5589, 2147483648
        %v5594 = vxor.u32 %v5590, 2147483648
        %v5595 = vxor.u32 %v5591, 2147483648
        %v5596 = vmul.f32 %v5593, 1.442695
        %v5597 = vpow.pop %v5596
        %v5598 = vmul.f32 %v5594, 1.442695
        %v5599 = vpow.pop %v5598
        %v5600 = vmul.f32 %v5595, 1.442695
        %v5601 = vpow.pop %v5600
        %v5602 = vadd.f32 %v5597, 1.0
        %v5603 = vadd.f32 %v5599, 1.0
        %v5604 = vadd.f32 %v5601, 1.0
        %v5605 = vrcp.pop %v5602
        %v5606 = vmul.f32 %v5602, %v5605
        %v5607 = vsub.f32 1.0, %v5606
        %v5608 = vmul.f32 %v5605, %v5607
        %v5609 = vadd.f32 %v5605, %v5608
        %vm5610 = vweird.f32 %v5602
        %vm5611 = vweird.f32 %v5605
        %vm5612 = vmor %vm5610, %vm5611
        %v5613 = vsel %vm5612, %v5605, %v5609
        %v5614 = vand.u32 2147483647, %v5602
        %vm5615 = vcmp.eq.f32.partialorder %v5614, 8.507059e+37
        %v5616 = vand.u32 %v5602, 2147483648
        %v5617 = vor.u32 1.1754944e-38, %v5616
        %v5618 = vsel %vm5615, %v5617, %v5613
        %v5619 = vmul.f32 1.0, %v5618
        %v5620 = vrcp.pop %v5603
        %v5621 = vmul.f32 %v5603, %v5620
        %v5622 = vsub.f32 1.0, %v5621
        %v5623 = vmul.f32 %v5620, %v5622
        %v5624 = vadd.f32 %v5620, %v5623
        %vm5625 = vweird.f32 %v5603
        %vm5626 = vweird.f32 %v5620
        %vm5627 = vmor %vm5625, %vm5626
        %v5628 = vsel %vm5627, %v5620, %v5624
        %v5629 = vand.u32 2147483647, %v5603
        %vm5630 = vcmp.eq.f32.partialorder %v5629, 8.507059e+37
        %v5631 = vand.u32 %v5603, 2147483648
        %v5632 = vor.u32 1.1754944e-38, %v5631
        %v5633 = vsel %vm5630, %v5632, %v5628
        %v5634 = vmul.f32 1.0, %v5633
        %v5635 = vrcp.pop %v5604
        %v5636 = vmul.f32 %v5604, %v5635
        %v5637 = vsub.f32 1.0, %v5636
        %v5638 = vmul.f32 %v5635, %v5637
        %v5639 = vadd.f32 %v5635, %v5638
        %vm5640 = vweird.f32 %v5604
        %vm5641 = vweird.f32 %v5635
        %vm5642 = vmor %vm5640, %vm5641
        %v5643 = vsel %vm5642, %v5635, %v5639
        %v5644 = vand.u32 2147483647, %v5604
        %vm5645 = vcmp.eq.f32.partialorder %v5644, 8.507059e+37
        %v5646 = vand.u32 %v5604, 2147483648
        %v5647 = vor.u32 1.1754944e-38, %v5646
        %v5648 = vsel %vm5645, %v5647, %v5643
        %v5649 = vmul.f32 1.0, %v5648
        %v5650 = vtanh.pop %v5592
        %v5651 = vmul.f32 %v5634, %v5334
        %v5652 = vmul.f32 %v5619, %v5650
        %v5653 = vadd.f32 %v5651, %v5652
        %v5654 = vtanh.pop %v5653
        %v5655 = vmul.f32 %v5649, %v5654
        %s5656 = sadd.s32 %s403, 13
        %p5657 = scmp.lt.s32.totalorder %s5656, 37
        %s5658 = scalar_select %p5657, 1, 0
        %v5659 = vstv %s5658
        %vm5660 = vcmp.eq.s32.totalorder %v5659, 1
        %v5661 = vsel %vm5660, %v5653, %v5334
        %v5662 = vsel %vm5660, %v5655, %v5335
        %s5663 = smul.u32 %s5656, 8
        %s5664 = scalar_lea.vmem [#allocation2], %s5663
        %5665 = vst [vmem:[%s5664] sm:$0xff] %v5662
        %s5666 = scalar_lea.vmem [#allocation3], 448
        %v5667 = vld [vmem:[%s5666] sm:$0xff]
        %v5668 = vld [vmem:[%s5666 + $0x8] sm:$0xff]
        %v5669 = vld [vmem:[%s5666 + $0x10] sm:$0xff]
        %v5670 = vld [vmem:[%s5666 + $0x18] sm:$0xff]
        %v5671 = vpack.c.bf16 %v5662, %v5662
        %v5672 = vld [vmem:[%s344] sm:$0xff]
        %v5673 = vld [vmem:[%s344 + $0x8] sm:$0xff]
        %v5674 = vld [vmem:[%s344 + $0x10] sm:$0xff]
        %v5675 = vld [vmem:[%s344 + $0x18] sm:$0xff]
        %v5676 = vld [vmem:[%s344 + $0x20] sm:$0xff]
        %v5677 = vld [vmem:[%s344 + $0x28] sm:$0xff]
        %v5678 = vld [vmem:[%s344 + $0x30] sm:$0xff]
        %v5679 = vld [vmem:[%s344 + $0x38] sm:$0xff]
        %v5680 = vld [vmem:[%s344 + $0x40] sm:$0xff]
        %v5681 = vld [vmem:[%s344 + $0x48] sm:$0xff]
        %v5682 = vld [vmem:[%s344 + $0x50] sm:$0xff]
        %v5683 = vld [vmem:[%s344 + $0x58] sm:$0xff]
        %v5684 = vld [vmem:[%s344 + $0x60] sm:$0xff]
        %v5685 = vld [vmem:[%s344 + $0x68] sm:$0xff]
        %v5686 = vld [vmem:[%s344 + $0x70] sm:$0xff]
        %v5687 = vld [vmem:[%s344 + $0x78] sm:$0xff]
        %v5688 = vld [vmem:[%s344 + $0x80] sm:$0xff]
        %v5689 = vld [vmem:[%s344 + $0x88] sm:$0xff]
        %v5690 = vld [vmem:[%s344 + $0x90] sm:$0xff]
        %v5691 = vld [vmem:[%s344 + $0x98] sm:$0xff]
        %v5692 = vld [vmem:[%s344 + $0xa0] sm:$0xff]
        %v5693 = vld [vmem:[%s344 + $0xa8] sm:$0xff]
        %v5694 = vld [vmem:[%s344 + $0xb0] sm:$0xff]
        %v5695 = vld [vmem:[%s344 + $0xb8] sm:$0xff]
        %v5696 = vld [vmem:[%s344 + $0xc0] sm:$0xff]
        %v5697 = vld [vmem:[%s344 + $0xc8] sm:$0xff]
        %v5698 = vld [vmem:[%s344 + $0xd0] sm:$0xff]
        %v5699 = vld [vmem:[%s344 + $0xd8] sm:$0xff]
        %v5700 = vld [vmem:[%s344 + $0xe0] sm:$0xff]
        %v5701 = vld [vmem:[%s344 + $0xe8] sm:$0xff]
        %v5702 = vld [vmem:[%s344 + $0xf0] sm:$0xff]
        %v5703 = vld [vmem:[%s344 + $0xf8] sm:$0xff]
        %v5736 = vunpack.c.l.b16 %v5672
        %v5737 = vunpack.c.h.b16 %v5672
        %v5738 = vunpack.c.l.b16 %v5673
        %v5739 = vunpack.c.h.b16 %v5673
        %v5740 = vunpack.c.l.b16 %v5674
        %v5741 = vunpack.c.h.b16 %v5674
        %v5742 = vunpack.c.l.b16 %v5675
        %v5743 = vunpack.c.h.b16 %v5675
        %v5744 = vunpack.c.l.b16 %v5676
        %v5745 = vunpack.c.h.b16 %v5676
        %v5746 = vunpack.c.l.b16 %v5677
        %v5747 = vunpack.c.h.b16 %v5677
        %v5748 = vunpack.c.l.b16 %v5678
        %v5749 = vunpack.c.h.b16 %v5678
        %v5750 = vunpack.c.l.b16 %v5679
        %v5751 = vunpack.c.h.b16 %v5679
        %v5752 = vunpack.c.l.b16 %v5680
        %v5753 = vunpack.c.h.b16 %v5680
        %v5754 = vunpack.c.l.b16 %v5681
        %v5755 = vunpack.c.h.b16 %v5681
        %v5756 = vunpack.c.l.b16 %v5682
        %v5757 = vunpack.c.h.b16 %v5682
        %v5758 = vunpack.c.l.b16 %v5683
        %v5759 = vunpack.c.h.b16 %v5683
        %v5760 = vunpack.c.l.b16 %v5684
        %v5761 = vunpack.c.h.b16 %v5684
        %v5762 = vunpack.c.l.b16 %v5685
        %v5763 = vunpack.c.h.b16 %v5685
        %v5764 = vunpack.c.l.b16 %v5686
        %v5765 = vunpack.c.h.b16 %v5686
        %v5766 = vunpack.c.l.b16 %v5687
        %v5767 = vunpack.c.h.b16 %v5687
        %v5768 = vunpack.c.l.b16 %v5688
        %v5769 = vunpack.c.h.b16 %v5688
        %v5770 = vunpack.c.l.b16 %v5689
        %v5771 = vunpack.c.h.b16 %v5689
        %v5772 = vunpack.c.l.b16 %v5690
        %v5773 = vunpack.c.h.b16 %v5690
        %v5774 = vunpack.c.l.b16 %v5691
        %v5775 = vunpack.c.h.b16 %v5691
        %v5776 = vunpack.c.l.b16 %v5692
        %v5777 = vunpack.c.h.b16 %v5692
        %v5778 = vunpack.c.l.b16 %v5693
        %v5779 = vunpack.c.h.b16 %v5693
        %v5780 = vunpack.c.l.b16 %v5694
        %v5781 = vunpack.c.h.b16 %v5694
        %v5782 = vunpack.c.l.b16 %v5695
        %v5783 = vunpack.c.h.b16 %v5695
        %v5784 = vunpack.c.l.b16 %v5696
        %v5785 = vunpack.c.h.b16 %v5696
        %v5786 = vunpack.c.l.b16 %v5697
        %v5787 = vunpack.c.h.b16 %v5697
        %v5788 = vunpack.c.l.b16 %v5698
        %v5789 = vunpack.c.h.b16 %v5698
        %v5790 = vunpack.c.l.b16 %v5699
        %v5791 = vunpack.c.h.b16 %v5699
        %v5792 = vunpack.c.l.b16 %v5700
        %v5793 = vunpack.c.h.b16 %v5700
        %v5794 = vunpack.c.l.b16 %v5701
        %v5795 = vunpack.c.h.b16 %v5701
        %v5796 = vunpack.c.l.b16 %v5702
        %v5797 = vunpack.c.h.b16 %v5702
        %v5798 = vunpack.c.l.b16 %v5703
        %v5799 = vunpack.c.h.b16 %v5703
        %v5800 = vpack.c.b16 %v5740, %v5736
        %v5801 = vpack.c.b16 %v5741, %v5737
        %v5802 = vpack.c.b16 %v5742, %v5738
        %v5803 = vpack.c.b16 %v5743, %v5739
        %v5804 = vpack.c.b16 %v5748, %v5744
        %v5805 = vpack.c.b16 %v5749, %v5745
        %v5806 = vpack.c.b16 %v5750, %v5746
        %v5807 = vpack.c.b16 %v5751, %v5747
        %v5808 = vpack.c.b16 %v5756, %v5752
        %v5809 = vpack.c.b16 %v5757, %v5753
        %v5810 = vpack.c.b16 %v5758, %v5754
        %v5811 = vpack.c.b16 %v5759, %v5755
        %v5812 = vpack.c.b16 %v5764, %v5760
        %v5813 = vpack.c.b16 %v5765, %v5761
        %v5814 = vpack.c.b16 %v5766, %v5762
        %v5815 = vpack.c.b16 %v5767, %v5763
        %v5816 = vpack.c.b16 %v5772, %v5768
        %v5817 = vpack.c.b16 %v5773, %v5769
        %v5818 = vpack.c.b16 %v5774, %v5770
        %v5819 = vpack.c.b16 %v5775, %v5771
        %v5820 = vpack.c.b16 %v5780, %v5776
        %v5821 = vpack.c.b16 %v5781, %v5777
        %v5822 = vpack.c.b16 %v5782, %v5778
        %v5823 = vpack.c.b16 %v5783, %v5779
        %v5824 = vpack.c.b16 %v5788, %v5784
        %v5825 = vpack.c.b16 %v5789, %v5785
        %v5826 = vpack.c.b16 %v5790, %v5786
        %v5827 = vpack.c.b16 %v5791, %v5787
        %v5828 = vpack.c.b16 %v5796, %v5792
        %v5829 = vpack.c.b16 %v5797, %v5793
        %v5830 = vpack.c.b16 %v5798, %v5794
        %v5831 = vpack.c.b16 %v5799, %v5795
        %5864 = vmatpush.bf16.msra.mxu0 %v5828
        %5865 = vmatpush.bf16.msra.mxu0 %v5824
        %5866 = vmatpush.bf16.msra.mxu0 %v5820
        %5867 = vmatpush.bf16.msra.mxu0 %v5816
        %5868 = vmatpush.bf16.msra.mxu0 %v5812
        %5869 = vmatpush.bf16.msra.mxu0 %v5808
        %5870 = vmatpush.bf16.msra.mxu0 %v5804
        %5871 = vmatpush.bf16.msra.mxu0 %v5800
        %5872 = vmatmul.bf16.gmra.mxu0 %v5671
        %v5873 = vpop.f32.mrf.mxu0
        %v5874 = vadd.f32 0.0, %v5873
        %v5875 = vpop.f32.mrf.mxu0
        %5876 = vdwg.mxu0
        %5877 = vmatpush.bf16.msra.mxu0 %v5829
        %5878 = vmatpush.bf16.msra.mxu0 %v5825
        %5879 = vmatpush.bf16.msra.mxu0 %v5821
        %5880 = vmatpush.bf16.msra.mxu0 %v5817
        %5881 = vmatpush.bf16.msra.mxu0 %v5813
        %5882 = vmatpush.bf16.msra.mxu0 %v5809
        %5883 = vmatpush.bf16.msra.mxu0 %v5805
        %5884 = vmatpush.bf16.msra.mxu0 %v5801
        %5885 = vmatmul.bf16.gmra.mxu0 %v5671
        %v5886 = vpop.f32.mrf.mxu0
        %v5887 = vadd.f32 0.0, %v5886
        %v5888 = vpop.f32.mrf.mxu0
        %5889 = vdwg.mxu0
        %5890 = vmatpush.bf16.msra.mxu0 %v5830
        %5891 = vmatpush.bf16.msra.mxu0 %v5826
        %5892 = vmatpush.bf16.msra.mxu0 %v5822
        %5893 = vmatpush.bf16.msra.mxu0 %v5818
        %5894 = vmatpush.bf16.msra.mxu0 %v5814
        %5895 = vmatpush.bf16.msra.mxu0 %v5810
        %5896 = vmatpush.bf16.msra.mxu0 %v5806
        %5897 = vmatpush.bf16.msra.mxu0 %v5802
        %5898 = vmatmul.bf16.gmra.mxu0 %v5671
        %v5899 = vpop.f32.mrf.mxu0
        %v5900 = vadd.f32 0.0, %v5899
        %v5901 = vpop.f32.mrf.mxu0
        %5902 = vdwg.mxu0
        %5903 = vmatpush.bf16.msra.mxu0 %v5831
        %5904 = vmatpush.bf16.msra.mxu0 %v5827
        %5905 = vmatpush.bf16.msra.mxu0 %v5823
        %5906 = vmatpush.bf16.msra.mxu0 %v5819
        %5907 = vmatpush.bf16.msra.mxu0 %v5815
        %5908 = vmatpush.bf16.msra.mxu0 %v5811
        %5909 = vmatpush.bf16.msra.mxu0 %v5807
        %5910 = vmatpush.bf16.msra.mxu0 %v5803
        %5911 = vmatmul.bf16.gmra.mxu0 %v5671
        %v5912 = vpop.f32.mrf.mxu0
        %v5913 = vadd.f32 0.0, %v5912
        %v5914 = vpop.f32.mrf.mxu0
        %5915 = vdwg.mxu0
        %v5916 = vadd.f32 %v5667, %v5874
        %v5917 = vadd.f32 %v5668, %v5887
        %v5918 = vadd.f32 %v5669, %v5900
        %v5919 = vadd.f32 %v5670, %v5913
        %v5920 = vxor.u32 %v5916, 2147483648
        %v5921 = vxor.u32 %v5917, 2147483648
        %v5922 = vxor.u32 %v5918, 2147483648
        %v5923 = vmul.f32 %v5920, 1.442695
        %v5924 = vpow.pop %v5923
        %v5925 = vmul.f32 %v5921, 1.442695
        %v5926 = vpow.pop %v5925
        %v5927 = vmul.f32 %v5922, 1.442695
        %v5928 = vpow.pop %v5927
        %v5929 = vadd.f32 %v5924, 1.0
        %v5930 = vadd.f32 %v5926, 1.0
        %v5931 = vadd.f32 %v5928, 1.0
        %v5932 = vrcp.pop %v5929
        %v5933 = vmul.f32 %v5929, %v5932
        %v5934 = vsub.f32 1.0, %v5933
        %v5935 = vmul.f32 %v5932, %v5934
        %v5936 = vadd.f32 %v5932, %v5935
        %vm5937 = vweird.f32 %v5929
        %vm5938 = vweird.f32 %v5932
        %vm5939 = vmor %vm5937, %vm5938
        %v5940 = vsel %vm5939, %v5932, %v5936
        %v5941 = vand.u32 2147483647, %v5929
        %vm5942 = vcmp.eq.f32.partialorder %v5941, 8.507059e+37
        %v5943 = vand.u32 %v5929, 2147483648
        %v5944 = vor.u32 1.1754944e-38, %v5943
        %v5945 = vsel %vm5942, %v5944, %v5940
        %v5946 = vmul.f32 1.0, %v5945
        %v5947 = vrcp.pop %v5930
        %v5948 = vmul.f32 %v5930, %v5947
        %v5949 = vsub.f32 1.0, %v5948
        %v5950 = vmul.f32 %v5947, %v5949
        %v5951 = vadd.f32 %v5947, %v5950
        %vm5952 = vweird.f32 %v5930
        %vm5953 = vweird.f32 %v5947
        %vm5954 = vmor %vm5952, %vm5953
        %v5955 = vsel %vm5954, %v5947, %v5951
        %v5956 = vand.u32 2147483647, %v5930
        %vm5957 = vcmp.eq.f32.partialorder %v5956, 8.507059e+37
        %v5958 = vand.u32 %v5930, 2147483648
        %v5959 = vor.u32 1.1754944e-38, %v5958
        %v5960 = vsel %vm5957, %v5959, %v5955
        %v5961 = vmul.f32 1.0, %v5960
        %v5962 = vrcp.pop %v5931
        %v5963 = vmul.f32 %v5931, %v5962
        %v5964 = vsub.f32 1.0, %v5963
        %v5965 = vmul.f32 %v5962, %v5964
        %v5966 = vadd.f32 %v5962, %v5965
        %vm5967 = vweird.f32 %v5931
        %vm5968 = vweird.f32 %v5962
        %vm5969 = vmor %vm5967, %vm5968
        %v5970 = vsel %vm5969, %v5962, %v5966
        %v5971 = vand.u32 2147483647, %v5931
        %vm5972 = vcmp.eq.f32.partialorder %v5971, 8.507059e+37
        %v5973 = vand.u32 %v5931, 2147483648
        %v5974 = vor.u32 1.1754944e-38, %v5973
        %v5975 = vsel %vm5972, %v5974, %v5970
        %v5976 = vmul.f32 1.0, %v5975
        %v5977 = vtanh.pop %v5919
        %v5978 = vmul.f32 %v5961, %v5661
        %v5979 = vmul.f32 %v5946, %v5977
        %v5980 = vadd.f32 %v5978, %v5979
        %v5981 = vtanh.pop %v5980
        %v5982 = vmul.f32 %v5976, %v5981
        %s5983 = sadd.s32 %s403, 14
        %p5984 = scmp.lt.s32.totalorder %s5983, 37
        %s5985 = scalar_select %p5984, 1, 0
        %v5986 = vstv %s5985
        %vm5987 = vcmp.eq.s32.totalorder %v5986, 1
        %v5988 = vsel %vm5987, %v5980, %v5661
        %v5989 = vsel %vm5987, %v5982, %v5662
        %s5990 = smul.u32 %s5983, 8
        %s5991 = scalar_lea.vmem [#allocation2], %s5990
        %5992 = vst [vmem:[%s5991] sm:$0xff] %v5989
        %s5993 = scalar_lea.vmem [#allocation3], 480
        %v5994 = vld [vmem:[%s5993] sm:$0xff]
        %v5995 = vld [vmem:[%s5993 + $0x8] sm:$0xff]
        %v5996 = vld [vmem:[%s5993 + $0x10] sm:$0xff]
        %v5997 = vld [vmem:[%s5993 + $0x18] sm:$0xff]
        %v5998 = vpack.c.bf16 %v5989, %v5989
        %v5999 = vld [vmem:[%s344] sm:$0xff]
        %v6000 = vld [vmem:[%s344 + $0x8] sm:$0xff]
        %v6001 = vld [vmem:[%s344 + $0x10] sm:$0xff]
        %v6002 = vld [vmem:[%s344 + $0x18] sm:$0xff]
        %v6003 = vld [vmem:[%s344 + $0x20] sm:$0xff]
        %v6004 = vld [vmem:[%s344 + $0x28] sm:$0xff]
        %v6005 = vld [vmem:[%s344 + $0x30] sm:$0xff]
        %v6006 = vld [vmem:[%s344 + $0x38] sm:$0xff]
        %v6007 = vld [vmem:[%s344 + $0x40] sm:$0xff]
        %v6008 = vld [vmem:[%s344 + $0x48] sm:$0xff]
        %v6009 = vld [vmem:[%s344 + $0x50] sm:$0xff]
        %v6010 = vld [vmem:[%s344 + $0x58] sm:$0xff]
        %v6011 = vld [vmem:[%s344 + $0x60] sm:$0xff]
        %v6012 = vld [vmem:[%s344 + $0x68] sm:$0xff]
        %v6013 = vld [vmem:[%s344 + $0x70] sm:$0xff]
        %v6014 = vld [vmem:[%s344 + $0x78] sm:$0xff]
        %v6015 = vld [vmem:[%s344 + $0x80] sm:$0xff]
        %v6016 = vld [vmem:[%s344 + $0x88] sm:$0xff]
        %v6017 = vld [vmem:[%s344 + $0x90] sm:$0xff]
        %v6018 = vld [vmem:[%s344 + $0x98] sm:$0xff]
        %v6019 = vld [vmem:[%s344 + $0xa0] sm:$0xff]
        %v6020 = vld [vmem:[%s344 + $0xa8] sm:$0xff]
        %v6021 = vld [vmem:[%s344 + $0xb0] sm:$0xff]
        %v6022 = vld [vmem:[%s344 + $0xb8] sm:$0xff]
        %v6023 = vld [vmem:[%s344 + $0xc0] sm:$0xff]
        %v6024 = vld [vmem:[%s344 + $0xc8] sm:$0xff]
        %v6025 = vld [vmem:[%s344 + $0xd0] sm:$0xff]
        %v6026 = vld [vmem:[%s344 + $0xd8] sm:$0xff]
        %v6027 = vld [vmem:[%s344 + $0xe0] sm:$0xff]
        %v6028 = vld [vmem:[%s344 + $0xe8] sm:$0xff]
        %v6029 = vld [vmem:[%s344 + $0xf0] sm:$0xff]
        %v6030 = vld [vmem:[%s344 + $0xf8] sm:$0xff]
        %v6063 = vunpack.c.l.b16 %v5999
        %v6064 = vunpack.c.h.b16 %v5999
        %v6065 = vunpack.c.l.b16 %v6000
        %v6066 = vunpack.c.h.b16 %v6000
        %v6067 = vunpack.c.l.b16 %v6001
        %v6068 = vunpack.c.h.b16 %v6001
        %v6069 = vunpack.c.l.b16 %v6002
        %v6070 = vunpack.c.h.b16 %v6002
        %v6071 = vunpack.c.l.b16 %v6003
        %v6072 = vunpack.c.h.b16 %v6003
        %v6073 = vunpack.c.l.b16 %v6004
        %v6074 = vunpack.c.h.b16 %v6004
        %v6075 = vunpack.c.l.b16 %v6005
        %v6076 = vunpack.c.h.b16 %v6005
        %v6077 = vunpack.c.l.b16 %v6006
        %v6078 = vunpack.c.h.b16 %v6006
        %v6079 = vunpack.c.l.b16 %v6007
        %v6080 = vunpack.c.h.b16 %v6007
        %v6081 = vunpack.c.l.b16 %v6008
        %v6082 = vunpack.c.h.b16 %v6008
        %v6083 = vunpack.c.l.b16 %v6009
        %v6084 = vunpack.c.h.b16 %v6009
        %v6085 = vunpack.c.l.b16 %v6010
        %v6086 = vunpack.c.h.b16 %v6010
        %v6087 = vunpack.c.l.b16 %v6011
        %v6088 = vunpack.c.h.b16 %v6011
        %v6089 = vunpack.c.l.b16 %v6012
        %v6090 = vunpack.c.h.b16 %v6012
        %v6091 = vunpack.c.l.b16 %v6013
        %v6092 = vunpack.c.h.b16 %v6013
        %v6093 = vunpack.c.l.b16 %v6014
        %v6094 = vunpack.c.h.b16 %v6014
        %v6095 = vunpack.c.l.b16 %v6015
        %v6096 = vunpack.c.h.b16 %v6015
        %v6097 = vunpack.c.l.b16 %v6016
        %v6098 = vunpack.c.h.b16 %v6016
        %v6099 = vunpack.c.l.b16 %v6017
        %v6100 = vunpack.c.h.b16 %v6017
        %v6101 = vunpack.c.l.b16 %v6018
        %v6102 = vunpack.c.h.b16 %v6018
        %v6103 = vunpack.c.l.b16 %v6019
        %v6104 = vunpack.c.h.b16 %v6019
        %v6105 = vunpack.c.l.b16 %v6020
        %v6106 = vunpack.c.h.b16 %v6020
        %v6107 = vunpack.c.l.b16 %v6021
        %v6108 = vunpack.c.h.b16 %v6021
        %v6109 = vunpack.c.l.b16 %v6022
        %v6110 = vunpack.c.h.b16 %v6022
        %v6111 = vunpack.c.l.b16 %v6023
        %v6112 = vunpack.c.h.b16 %v6023
        %v6113 = vunpack.c.l.b16 %v6024
        %v6114 = vunpack.c.h.b16 %v6024
        %v6115 = vunpack.c.l.b16 %v6025
        %v6116 = vunpack.c.h.b16 %v6025
        %v6117 = vunpack.c.l.b16 %v6026
        %v6118 = vunpack.c.h.b16 %v6026
        %v6119 = vunpack.c.l.b16 %v6027
        %v6120 = vunpack.c.h.b16 %v6027
        %v6121 = vunpack.c.l.b16 %v6028
        %v6122 = vunpack.c.h.b16 %v6028
        %v6123 = vunpack.c.l.b16 %v6029
        %v6124 = vunpack.c.h.b16 %v6029
        %v6125 = vunpack.c.l.b16 %v6030
        %v6126 = vunpack.c.h.b16 %v6030
        %v6127 = vpack.c.b16 %v6067, %v6063
        %v6128 = vpack.c.b16 %v6068, %v6064
        %v6129 = vpack.c.b16 %v6069, %v6065
        %v6130 = vpack.c.b16 %v6070, %v6066
        %v6131 = vpack.c.b16 %v6075, %v6071
        %v6132 = vpack.c.b16 %v6076, %v6072
        %v6133 = vpack.c.b16 %v6077, %v6073
        %v6134 = vpack.c.b16 %v6078, %v6074
        %v6135 = vpack.c.b16 %v6083, %v6079
        %v6136 = vpack.c.b16 %v6084, %v6080
        %v6137 = vpack.c.b16 %v6085, %v6081
        %v6138 = vpack.c.b16 %v6086, %v6082
        %v6139 = vpack.c.b16 %v6091, %v6087
        %v6140 = vpack.c.b16 %v6092, %v6088
        %v6141 = vpack.c.b16 %v6093, %v6089
        %v6142 = vpack.c.b16 %v6094, %v6090
        %v6143 = vpack.c.b16 %v6099, %v6095
        %v6144 = vpack.c.b16 %v6100, %v6096
        %v6145 = vpack.c.b16 %v6101, %v6097
        %v6146 = vpack.c.b16 %v6102, %v6098
        %v6147 = vpack.c.b16 %v6107, %v6103
        %v6148 = vpack.c.b16 %v6108, %v6104
        %v6149 = vpack.c.b16 %v6109, %v6105
        %v6150 = vpack.c.b16 %v6110, %v6106
        %v6151 = vpack.c.b16 %v6115, %v6111
        %v6152 = vpack.c.b16 %v6116, %v6112
        %v6153 = vpack.c.b16 %v6117, %v6113
        %v6154 = vpack.c.b16 %v6118, %v6114
        %v6155 = vpack.c.b16 %v6123, %v6119
        %v6156 = vpack.c.b16 %v6124, %v6120
        %v6157 = vpack.c.b16 %v6125, %v6121
        %v6158 = vpack.c.b16 %v6126, %v6122
        %6191 = vmatpush.bf16.msra.mxu0 %v6155
        %6192 = vmatpush.bf16.msra.mxu0 %v6151
        %6193 = vmatpush.bf16.msra.mxu0 %v6147
        %6194 = vmatpush.bf16.msra.mxu0 %v6143
        %6195 = vmatpush.bf16.msra.mxu0 %v6139
        %6196 = vmatpush.bf16.msra.mxu0 %v6135
        %6197 = vmatpush.bf16.msra.mxu0 %v6131
        %6198 = vmatpush.bf16.msra.mxu0 %v6127
        %6199 = vmatmul.bf16.gmra.mxu0 %v5998
        %v6200 = vpop.f32.mrf.mxu0
        %v6201 = vadd.f32 0.0, %v6200
        %v6202 = vpop.f32.mrf.mxu0
        %6203 = vdwg.mxu0
        %6204 = vmatpush.bf16.msra.mxu0 %v6156
        %6205 = vmatpush.bf16.msra.mxu0 %v6152
        %6206 = vmatpush.bf16.msra.mxu0 %v6148
        %6207 = vmatpush.bf16.msra.mxu0 %v6144
        %6208 = vmatpush.bf16.msra.mxu0 %v6140
        %6209 = vmatpush.bf16.msra.mxu0 %v6136
        %6210 = vmatpush.bf16.msra.mxu0 %v6132
        %6211 = vmatpush.bf16.msra.mxu0 %v6128
        %6212 = vmatmul.bf16.gmra.mxu0 %v5998
        %v6213 = vpop.f32.mrf.mxu0
        %v6214 = vadd.f32 0.0, %v6213
        %v6215 = vpop.f32.mrf.mxu0
        %6216 = vdwg.mxu0
        %6217 = vmatpush.bf16.msra.mxu0 %v6157
        %6218 = vmatpush.bf16.msra.mxu0 %v6153
        %6219 = vmatpush.bf16.msra.mxu0 %v6149
        %6220 = vmatpush.bf16.msra.mxu0 %v6145
        %6221 = vmatpush.bf16.msra.mxu0 %v6141
        %6222 = vmatpush.bf16.msra.mxu0 %v6137
        %6223 = vmatpush.bf16.msra.mxu0 %v6133
        %6224 = vmatpush.bf16.msra.mxu0 %v6129
        %6225 = vmatmul.bf16.gmra.mxu0 %v5998
        %v6226 = vpop.f32.mrf.mxu0
        %v6227 = vadd.f32 0.0, %v6226
        %v6228 = vpop.f32.mrf.mxu0
        %6229 = vdwg.mxu0
        %6230 = vmatpush.bf16.msra.mxu0 %v6158
        %6231 = vmatpush.bf16.msra.mxu0 %v6154
        %6232 = vmatpush.bf16.msra.mxu0 %v6150
        %6233 = vmatpush.bf16.msra.mxu0 %v6146
        %6234 = vmatpush.bf16.msra.mxu0 %v6142
        %6235 = vmatpush.bf16.msra.mxu0 %v6138
        %6236 = vmatpush.bf16.msra.mxu0 %v6134
        %6237 = vmatpush.bf16.msra.mxu0 %v6130
        %6238 = vmatmul.bf16.gmra.mxu0 %v5998
        %v6239 = vpop.f32.mrf.mxu0
        %v6240 = vadd.f32 0.0, %v6239
        %v6241 = vpop.f32.mrf.mxu0
        %6242 = vdwg.mxu0
        %v6243 = vadd.f32 %v5994, %v6201
        %v6244 = vadd.f32 %v5995, %v6214
        %v6245 = vadd.f32 %v5996, %v6227
        %v6246 = vadd.f32 %v5997, %v6240
        %v6247 = vxor.u32 %v6243, 2147483648
        %v6248 = vxor.u32 %v6244, 2147483648
        %v6249 = vxor.u32 %v6245, 2147483648
        %v6250 = vmul.f32 %v6247, 1.442695
        %v6251 = vpow.pop %v6250
        %v6252 = vmul.f32 %v6248, 1.442695
        %v6253 = vpow.pop %v6252
        %v6254 = vmul.f32 %v6249, 1.442695
        %v6255 = vpow.pop %v6254
        %v6256 = vadd.f32 %v6251, 1.0
        %v6257 = vadd.f32 %v6253, 1.0
        %v6258 = vadd.f32 %v6255, 1.0
        %v6259 = vrcp.pop %v6256
        %v6260 = vmul.f32 %v6256, %v6259
        %v6261 = vsub.f32 1.0, %v6260
        %v6262 = vmul.f32 %v6259, %v6261
        %v6263 = vadd.f32 %v6259, %v6262
        %vm6264 = vweird.f32 %v6256
        %vm6265 = vweird.f32 %v6259
        %vm6266 = vmor %vm6264, %vm6265
        %v6267 = vsel %vm6266, %v6259, %v6263
        %v6268 = vand.u32 2147483647, %v6256
        %vm6269 = vcmp.eq.f32.partialorder %v6268, 8.507059e+37
        %v6270 = vand.u32 %v6256, 2147483648
        %v6271 = vor.u32 1.1754944e-38, %v6270
        %v6272 = vsel %vm6269, %v6271, %v6267
        %v6273 = vmul.f32 1.0, %v6272
        %v6274 = vrcp.pop %v6257
        %v6275 = vmul.f32 %v6257, %v6274
        %v6276 = vsub.f32 1.0, %v6275
        %v6277 = vmul.f32 %v6274, %v6276
        %v6278 = vadd.f32 %v6274, %v6277
        %vm6279 = vweird.f32 %v6257
        %vm6280 = vweird.f32 %v6274
        %vm6281 = vmor %vm6279, %vm6280
        %v6282 = vsel %vm6281, %v6274, %v6278
        %v6283 = vand.u32 2147483647, %v6257
        %vm6284 = vcmp.eq.f32.partialorder %v6283, 8.507059e+37
        %v6285 = vand.u32 %v6257, 2147483648
        %v6286 = vor.u32 1.1754944e-38, %v6285
        %v6287 = vsel %vm6284, %v6286, %v6282
        %v6288 = vmul.f32 1.0, %v6287
        %v6289 = vrcp.pop %v6258
        %v6290 = vmul.f32 %v6258, %v6289
        %v6291 = vsub.f32 1.0, %v6290
        %v6292 = vmul.f32 %v6289, %v6291
        %v6293 = vadd.f32 %v6289, %v6292
        %vm6294 = vweird.f32 %v6258
        %vm6295 = vweird.f32 %v6289
        %vm6296 = vmor %vm6294, %vm6295
        %v6297 = vsel %vm6296, %v6289, %v6293
        %v6298 = vand.u32 2147483647, %v6258
        %vm6299 = vcmp.eq.f32.partialorder %v6298, 8.507059e+37
        %v6300 = vand.u32 %v6258, 2147483648
        %v6301 = vor.u32 1.1754944e-38, %v6300
        %v6302 = vsel %vm6299, %v6301, %v6297
        %v6303 = vmul.f32 1.0, %v6302
        %v6304 = vtanh.pop %v6246
        %v6305 = vmul.f32 %v6288, %v5988
        %v6306 = vmul.f32 %v6273, %v6304
        %v6307 = vadd.f32 %v6305, %v6306
        %v6308 = vtanh.pop %v6307
        %v6309 = vmul.f32 %v6303, %v6308
        %s6310 = sadd.s32 %s403, 15
        %p6311 = scmp.lt.s32.totalorder %s6310, 37
        %s6312 = scalar_select %p6311, 1, 0
        %v6313 = vstv %s6312
        %vm6314 = vcmp.eq.s32.totalorder %v6313, 1
        %v6315 = vsel %vm6314, %v6307, %v5988
        %v6316 = vsel %vm6314, %v6309, %v5989
        %s6317 = smul.u32 %s6310, 8
        %s6318 = scalar_lea.vmem [#allocation2], %s6317
        %6319 = vst [vmem:[%s6318] sm:$0xff] %v6316
        %s6320 = scalar_lea.vmem [#allocation3], 512
        %v6321 = vld [vmem:[%s6320] sm:$0xff]
        %v6322 = vld [vmem:[%s6320 + $0x8] sm:$0xff]
        %v6323 = vld [vmem:[%s6320 + $0x10] sm:$0xff]
        %v6324 = vld [vmem:[%s6320 + $0x18] sm:$0xff]
        %v6325 = vpack.c.bf16 %v6316, %v6316
        %v6326 = vld [vmem:[%s344] sm:$0xff]
        %v6327 = vld [vmem:[%s344 + $0x8] sm:$0xff]
        %v6328 = vld [vmem:[%s344 + $0x10] sm:$0xff]
        %v6329 = vld [vmem:[%s344 + $0x18] sm:$0xff]
        %v6330 = vld [vmem:[%s344 + $0x20] sm:$0xff]
        %v6331 = vld [vmem:[%s344 + $0x28] sm:$0xff]
        %v6332 = vld [vmem:[%s344 + $0x30] sm:$0xff]
        %v6333 = vld [vmem:[%s344 + $0x38] sm:$0xff]
        %v6334 = vld [vmem:[%s344 + $0x40] sm:$0xff]
        %v6335 = vld [vmem:[%s344 + $0x48] sm:$0xff]
        %v6336 = vld [vmem:[%s344 + $0x50] sm:$0xff]
        %v6337 = vld [vmem:[%s344 + $0x58] sm:$0xff]
        %v6338 = vld [vmem:[%s344 + $0x60] sm:$0xff]
        %v6339 = vld [vmem:[%s344 + $0x68] sm:$0xff]
        %v6340 = vld [vmem:[%s344 + $0x70] sm:$0xff]
        %v6341 = vld [vmem:[%s344 + $0x78] sm:$0xff]
        %v6342 = vld [vmem:[%s344 + $0x80] sm:$0xff]
        %v6343 = vld [vmem:[%s344 + $0x88] sm:$0xff]
        %v6344 = vld [vmem:[%s344 + $0x90] sm:$0xff]
        %v6345 = vld [vmem:[%s344 + $0x98] sm:$0xff]
        %v6346 = vld [vmem:[%s344 + $0xa0] sm:$0xff]
        %v6347 = vld [vmem:[%s344 + $0xa8] sm:$0xff]
        %v6348 = vld [vmem:[%s344 + $0xb0] sm:$0xff]
        %v6349 = vld [vmem:[%s344 + $0xb8] sm:$0xff]
        %v6350 = vld [vmem:[%s344 + $0xc0] sm:$0xff]
        %v6351 = vld [vmem:[%s344 + $0xc8] sm:$0xff]
        %v6352 = vld [vmem:[%s344 + $0xd0] sm:$0xff]
        %v6353 = vld [vmem:[%s344 + $0xd8] sm:$0xff]
        %v6354 = vld [vmem:[%s344 + $0xe0] sm:$0xff]
        %v6355 = vld [vmem:[%s344 + $0xe8] sm:$0xff]
        %v6356 = vld [vmem:[%s344 + $0xf0] sm:$0xff]
        %v6357 = vld [vmem:[%s344 + $0xf8] sm:$0xff]
        %v6390 = vunpack.c.l.b16 %v6326
        %v6391 = vunpack.c.h.b16 %v6326
        %v6392 = vunpack.c.l.b16 %v6327
        %v6393 = vunpack.c.h.b16 %v6327
        %v6394 = vunpack.c.l.b16 %v6328
        %v6395 = vunpack.c.h.b16 %v6328
        %v6396 = vunpack.c.l.b16 %v6329
        %v6397 = vunpack.c.h.b16 %v6329
        %v6398 = vunpack.c.l.b16 %v6330
        %v6399 = vunpack.c.h.b16 %v6330
        %v6400 = vunpack.c.l.b16 %v6331
        %v6401 = vunpack.c.h.b16 %v6331
        %v6402 = vunpack.c.l.b16 %v6332
        %v6403 = vunpack.c.h.b16 %v6332
        %v6404 = vunpack.c.l.b16 %v6333
        %v6405 = vunpack.c.h.b16 %v6333
        %v6406 = vunpack.c.l.b16 %v6334
        %v6407 = vunpack.c.h.b16 %v6334
        %v6408 = vunpack.c.l.b16 %v6335
        %v6409 = vunpack.c.h.b16 %v6335
        %v6410 = vunpack.c.l.b16 %v6336
        %v6411 = vunpack.c.h.b16 %v6336
        %v6412 = vunpack.c.l.b16 %v6337
        %v6413 = vunpack.c.h.b16 %v6337
        %v6414 = vunpack.c.l.b16 %v6338
        %v6415 = vunpack.c.h.b16 %v6338
        %v6416 = vunpack.c.l.b16 %v6339
        %v6417 = vunpack.c.h.b16 %v6339
        %v6418 = vunpack.c.l.b16 %v6340
        %v6419 = vunpack.c.h.b16 %v6340
        %v6420 = vunpack.c.l.b16 %v6341
        %v6421 = vunpack.c.h.b16 %v6341
        %v6422 = vunpack.c.l.b16 %v6342
        %v6423 = vunpack.c.h.b16 %v6342
        %v6424 = vunpack.c.l.b16 %v6343
        %v6425 = vunpack.c.h.b16 %v6343
        %v6426 = vunpack.c.l.b16 %v6344
        %v6427 = vunpack.c.h.b16 %v6344
        %v6428 = vunpack.c.l.b16 %v6345
        %v6429 = vunpack.c.h.b16 %v6345
        %v6430 = vunpack.c.l.b16 %v6346
        %v6431 = vunpack.c.h.b16 %v6346
        %v6432 = vunpack.c.l.b16 %v6347
        %v6433 = vunpack.c.h.b16 %v6347
        %v6434 = vunpack.c.l.b16 %v6348
        %v6435 = vunpack.c.h.b16 %v6348
        %v6436 = vunpack.c.l.b16 %v6349
        %v6437 = vunpack.c.h.b16 %v6349
        %v6438 = vunpack.c.l.b16 %v6350
        %v6439 = vunpack.c.h.b16 %v6350
        %v6440 = vunpack.c.l.b16 %v6351
        %v6441 = vunpack.c.h.b16 %v6351
        %v6442 = vunpack.c.l.b16 %v6352
        %v6443 = vunpack.c.h.b16 %v6352
        %v6444 = vunpack.c.l.b16 %v6353
        %v6445 = vunpack.c.h.b16 %v6353
        %v6446 = vunpack.c.l.b16 %v6354
        %v6447 = vunpack.c.h.b16 %v6354
        %v6448 = vunpack.c.l.b16 %v6355
        %v6449 = vunpack.c.h.b16 %v6355
        %v6450 = vunpack.c.l.b16 %v6356
        %v6451 = vunpack.c.h.b16 %v6356
        %v6452 = vunpack.c.l.b16 %v6357
        %v6453 = vunpack.c.h.b16 %v6357
        %v6454 = vpack.c.b16 %v6394, %v6390
        %v6455 = vpack.c.b16 %v6395, %v6391
        %v6456 = vpack.c.b16 %v6396, %v6392
        %v6457 = vpack.c.b16 %v6397, %v6393
        %v6458 = vpack.c.b16 %v6402, %v6398
        %v6459 = vpack.c.b16 %v6403, %v6399
        %v6460 = vpack.c.b16 %v6404, %v6400
        %v6461 = vpack.c.b16 %v6405, %v6401
        %v6462 = vpack.c.b16 %v6410, %v6406
        %v6463 = vpack.c.b16 %v6411, %v6407
        %v6464 = vpack.c.b16 %v6412, %v6408
        %v6465 = vpack.c.b16 %v6413, %v6409
        %v6466 = vpack.c.b16 %v6418, %v6414
        %v6467 = vpack.c.b16 %v6419, %v6415
        %v6468 = vpack.c.b16 %v6420, %v6416
        %v6469 = vpack.c.b16 %v6421, %v6417
        %v6470 = vpack.c.b16 %v6426, %v6422
        %v6471 = vpack.c.b16 %v6427, %v6423
        %v6472 = vpack.c.b16 %v6428, %v6424
        %v6473 = vpack.c.b16 %v6429, %v6425
        %v6474 = vpack.c.b16 %v6434, %v6430
        %v6475 = vpack.c.b16 %v6435, %v6431
        %v6476 = vpack.c.b16 %v6436, %v6432
        %v6477 = vpack.c.b16 %v6437, %v6433
        %v6478 = vpack.c.b16 %v6442, %v6438
        %v6479 = vpack.c.b16 %v6443, %v6439
        %v6480 = vpack.c.b16 %v6444, %v6440
        %v6481 = vpack.c.b16 %v6445, %v6441
        %v6482 = vpack.c.b16 %v6450, %v6446
        %v6483 = vpack.c.b16 %v6451, %v6447
        %v6484 = vpack.c.b16 %v6452, %v6448
        %v6485 = vpack.c.b16 %v6453, %v6449
        %6518 = vmatpush.bf16.msra.mxu0 %v6482
        %6519 = vmatpush.bf16.msra.mxu0 %v6478
        %6520 = vmatpush.bf16.msra.mxu0 %v6474
        %6521 = vmatpush.bf16.msra.mxu0 %v6470
        %6522 = vmatpush.bf16.msra.mxu0 %v6466
        %6523 = vmatpush.bf16.msra.mxu0 %v6462
        %6524 = vmatpush.bf16.msra.mxu0 %v6458
        %6525 = vmatpush.bf16.msra.mxu0 %v6454
        %6526 = vmatmul.bf16.gmra.mxu0 %v6325
        %v6527 = vpop.f32.mrf.mxu0
        %v6528 = vadd.f32 0.0, %v6527
        %v6529 = vpop.f32.mrf.mxu0
        %6530 = vdwg.mxu0
        %6531 = vmatpush.bf16.msra.mxu0 %v6483
        %6532 = vmatpush.bf16.msra.mxu0 %v6479
        %6533 = vmatpush.bf16.msra.mxu0 %v6475
        %6534 = vmatpush.bf16.msra.mxu0 %v6471
        %6535 = vmatpush.bf16.msra.mxu0 %v6467
        %6536 = vmatpush.bf16.msra.mxu0 %v6463
        %6537 = vmatpush.bf16.msra.mxu0 %v6459
        %6538 = vmatpush.bf16.msra.mxu0 %v6455
        %6539 = vmatmul.bf16.gmra.mxu0 %v6325
        %v6540 = vpop.f32.mrf.mxu0
        %v6541 = vadd.f32 0.0, %v6540
        %v6542 = vpop.f32.mrf.mxu0
        %6543 = vdwg.mxu0
        %6544 = vmatpush.bf16.msra.mxu0 %v6484
        %6545 = vmatpush.bf16.msra.mxu0 %v6480
        %6546 = vmatpush.bf16.msra.mxu0 %v6476
        %6547 = vmatpush.bf16.msra.mxu0 %v6472
        %6548 = vmatpush.bf16.msra.mxu0 %v6468
        %6549 = vmatpush.bf16.msra.mxu0 %v6464
        %6550 = vmatpush.bf16.msra.mxu0 %v6460
        %6551 = vmatpush.bf16.msra.mxu0 %v6456
        %6552 = vmatmul.bf16.gmra.mxu0 %v6325
        %v6553 = vpop.f32.mrf.mxu0
        %v6554 = vadd.f32 0.0, %v6553
        %v6555 = vpop.f32.mrf.mxu0
        %6556 = vdwg.mxu0
        %6557 = vmatpush.bf16.msra.mxu0 %v6485
        %6558 = vmatpush.bf16.msra.mxu0 %v6481
        %6559 = vmatpush.bf16.msra.mxu0 %v6477
        %6560 = vmatpush.bf16.msra.mxu0 %v6473
        %6561 = vmatpush.bf16.msra.mxu0 %v6469
        %6562 = vmatpush.bf16.msra.mxu0 %v6465
        %6563 = vmatpush.bf16.msra.mxu0 %v6461
        %6564 = vmatpush.bf16.msra.mxu0 %v6457
        %6565 = vmatmul.bf16.gmra.mxu0 %v6325
        %v6566 = vpop.f32.mrf.mxu0
        %v6567 = vadd.f32 0.0, %v6566
        %v6568 = vpop.f32.mrf.mxu0
        %6569 = vdwg.mxu0
        %v6570 = vadd.f32 %v6321, %v6528
        %v6571 = vadd.f32 %v6322, %v6541
        %v6572 = vadd.f32 %v6323, %v6554
        %v6573 = vadd.f32 %v6324, %v6567
        %v6574 = vxor.u32 %v6570, 2147483648
        %v6575 = vxor.u32 %v6571, 2147483648
        %v6576 = vxor.u32 %v6572, 2147483648
        %v6577 = vmul.f32 %v6574, 1.442695
        %v6578 = vpow.pop %v6577
        %v6579 = vmul.f32 %v6575, 1.442695
        %v6580 = vpow.pop %v6579
        %v6581 = vmul.f32 %v6576, 1.442695
        %v6582 = vpow.pop %v6581
        %v6583 = vadd.f32 %v6578, 1.0
        %v6584 = vadd.f32 %v6580, 1.0
        %v6585 = vadd.f32 %v6582, 1.0
        %v6586 = vrcp.pop %v6583
        %v6587 = vmul.f32 %v6583, %v6586
        %v6588 = vsub.f32 1.0, %v6587
        %v6589 = vmul.f32 %v6586, %v6588
        %v6590 = vadd.f32 %v6586, %v6589
        %vm6591 = vweird.f32 %v6583
        %vm6592 = vweird.f32 %v6586
        %vm6593 = vmor %vm6591, %vm6592
        %v6594 = vsel %vm6593, %v6586, %v6590
        %v6595 = vand.u32 2147483647, %v6583
        %vm6596 = vcmp.eq.f32.partialorder %v6595, 8.507059e+37
        %v6597 = vand.u32 %v6583, 2147483648
        %v6598 = vor.u32 1.1754944e-38, %v6597
        %v6599 = vsel %vm6596, %v6598, %v6594
        %v6600 = vmul.f32 1.0, %v6599
        %v6601 = vrcp.pop %v6584
        %v6602 = vmul.f32 %v6584, %v6601
        %v6603 = vsub.f32 1.0, %v6602
        %v6604 = vmul.f32 %v6601, %v6603
        %v6605 = vadd.f32 %v6601, %v6604
        %vm6606 = vweird.f32 %v6584
        %vm6607 = vweird.f32 %v6601
        %vm6608 = vmor %vm6606, %vm6607
        %v6609 = vsel %vm6608, %v6601, %v6605
        %v6610 = vand.u32 2147483647, %v6584
        %vm6611 = vcmp.eq.f32.partialorder %v6610, 8.507059e+37
        %v6612 = vand.u32 %v6584, 2147483648
        %v6613 = vor.u32 1.1754944e-38, %v6612
        %v6614 = vsel %vm6611, %v6613, %v6609
        %v6615 = vmul.f32 1.0, %v6614
        %v6616 = vrcp.pop %v6585
        %v6617 = vmul.f32 %v6585, %v6616
        %v6618 = vsub.f32 1.0, %v6617
        %v6619 = vmul.f32 %v6616, %v6618
        %v6620 = vadd.f32 %v6616, %v6619
        %vm6621 = vweird.f32 %v6585
        %vm6622 = vweird.f32 %v6616
        %vm6623 = vmor %vm6621, %vm6622
        %v6624 = vsel %vm6623, %v6616, %v6620
        %v6625 = vand.u32 2147483647, %v6585
        %vm6626 = vcmp.eq.f32.partialorder %v6625, 8.507059e+37
        %v6627 = vand.u32 %v6585, 2147483648
        %v6628 = vor.u32 1.1754944e-38, %v6627
        %v6629 = vsel %vm6626, %v6628, %v6624
        %v6630 = vmul.f32 1.0, %v6629
        %v6631 = vtanh.pop %v6573
        %v6632 = vmul.f32 %v6615, %v6315
        %v6633 = vmul.f32 %v6600, %v6631
        %v6634 = vadd.f32 %v6632, %v6633
        %v6635 = vtanh.pop %v6634
        %v6636 = vmul.f32 %v6630, %v6635
        %s6637 = sadd.s32 %s403, 16
        %p6638 = scmp.lt.s32.totalorder %s6637, 37
        %s6639 = scalar_select %p6638, 1, 0
        %v6640 = vstv %s6639
        %vm6641 = vcmp.eq.s32.totalorder %v6640, 1
        %v6642 = vsel %vm6641, %v6634, %v6315
        %v6643 = vsel %vm6641, %v6636, %v6316
        %s6644 = smul.u32 %s6637, 8
        %s6645 = scalar_lea.vmem [#allocation2], %s6644
        %6646 = vst [vmem:[%s6645] sm:$0xff] %v6643
        %s6647 = scalar_lea.vmem [#allocation3], 544
        %v6648 = vld [vmem:[%s6647] sm:$0xff]
        %v6649 = vld [vmem:[%s6647 + $0x8] sm:$0xff]
        %v6650 = vld [vmem:[%s6647 + $0x10] sm:$0xff]
        %v6651 = vld [vmem:[%s6647 + $0x18] sm:$0xff]
        %v6652 = vpack.c.bf16 %v6643, %v6643
        %v6653 = vld [vmem:[%s344] sm:$0xff]
        %v6654 = vld [vmem:[%s344 + $0x8] sm:$0xff]
        %v6655 = vld [vmem:[%s344 + $0x10] sm:$0xff]
        %v6656 = vld [vmem:[%s344 + $0x18] sm:$0xff]
        %v6657 = vld [vmem:[%s344 + $0x20] sm:$0xff]
        %v6658 = vld [vmem:[%s344 + $0x28] sm:$0xff]
        %v6659 = vld [vmem:[%s344 + $0x30] sm:$0xff]
        %v6660 = vld [vmem:[%s344 + $0x38] sm:$0xff]
        %v6661 = vld [vmem:[%s344 + $0x40] sm:$0xff]
        %v6662 = vld [vmem:[%s344 + $0x48] sm:$0xff]
        %v6663 = vld [vmem:[%s344 + $0x50] sm:$0xff]
        %v6664 = vld [vmem:[%s344 + $0x58] sm:$0xff]
        %v6665 = vld [vmem:[%s344 + $0x60] sm:$0xff]
        %v6666 = vld [vmem:[%s344 + $0x68] sm:$0xff]
        %v6667 = vld [vmem:[%s344 + $0x70] sm:$0xff]
        %v6668 = vld [vmem:[%s344 + $0x78] sm:$0xff]
        %v6669 = vld [vmem:[%s344 + $0x80] sm:$0xff]
        %v6670 = vld [vmem:[%s344 + $0x88] sm:$0xff]
        %v6671 = vld [vmem:[%s344 + $0x90] sm:$0xff]
        %v6672 = vld [vmem:[%s344 + $0x98] sm:$0xff]
        %v6673 = vld [vmem:[%s344 + $0xa0] sm:$0xff]
        %v6674 = vld [vmem:[%s344 + $0xa8] sm:$0xff]
        %v6675 = vld [vmem:[%s344 + $0xb0] sm:$0xff]
        %v6676 = vld [vmem:[%s344 + $0xb8] sm:$0xff]
        %v6677 = vld [vmem:[%s344 + $0xc0] sm:$0xff]
        %v6678 = vld [vmem:[%s344 + $0xc8] sm:$0xff]
        %v6679 = vld [vmem:[%s344 + $0xd0] sm:$0xff]
        %v6680 = vld [vmem:[%s344 + $0xd8] sm:$0xff]
        %v6681 = vld [vmem:[%s344 + $0xe0] sm:$0xff]
        %v6682 = vld [vmem:[%s344 + $0xe8] sm:$0xff]
        %v6683 = vld [vmem:[%s344 + $0xf0] sm:$0xff]
        %v6684 = vld [vmem:[%s344 + $0xf8] sm:$0xff]
        %v6717 = vunpack.c.l.b16 %v6653
        %v6718 = vunpack.c.h.b16 %v6653
        %v6719 = vunpack.c.l.b16 %v6654
        %v6720 = vunpack.c.h.b16 %v6654
        %v6721 = vunpack.c.l.b16 %v6655
        %v6722 = vunpack.c.h.b16 %v6655
        %v6723 = vunpack.c.l.b16 %v6656
        %v6724 = vunpack.c.h.b16 %v6656
        %v6725 = vunpack.c.l.b16 %v6657
        %v6726 = vunpack.c.h.b16 %v6657
        %v6727 = vunpack.c.l.b16 %v6658
        %v6728 = vunpack.c.h.b16 %v6658
        %v6729 = vunpack.c.l.b16 %v6659
        %v6730 = vunpack.c.h.b16 %v6659
        %v6731 = vunpack.c.l.b16 %v6660
        %v6732 = vunpack.c.h.b16 %v6660
        %v6733 = vunpack.c.l.b16 %v6661
        %v6734 = vunpack.c.h.b16 %v6661
        %v6735 = vunpack.c.l.b16 %v6662
        %v6736 = vunpack.c.h.b16 %v6662
        %v6737 = vunpack.c.l.b16 %v6663
        %v6738 = vunpack.c.h.b16 %v6663
        %v6739 = vunpack.c.l.b16 %v6664
        %v6740 = vunpack.c.h.b16 %v6664
        %v6741 = vunpack.c.l.b16 %v6665
        %v6742 = vunpack.c.h.b16 %v6665
        %v6743 = vunpack.c.l.b16 %v6666
        %v6744 = vunpack.c.h.b16 %v6666
        %v6745 = vunpack.c.l.b16 %v6667
        %v6746 = vunpack.c.h.b16 %v6667
        %v6747 = vunpack.c.l.b16 %v6668
        %v6748 = vunpack.c.h.b16 %v6668
        %v6749 = vunpack.c.l.b16 %v6669
        %v6750 = vunpack.c.h.b16 %v6669
        %v6751 = vunpack.c.l.b16 %v6670
        %v6752 = vunpack.c.h.b16 %v6670
        %v6753 = vunpack.c.l.b16 %v6671
        %v6754 = vunpack.c.h.b16 %v6671
        %v6755 = vunpack.c.l.b16 %v6672
        %v6756 = vunpack.c.h.b16 %v6672
        %v6757 = vunpack.c.l.b16 %v6673
        %v6758 = vunpack.c.h.b16 %v6673
        %v6759 = vunpack.c.l.b16 %v6674
        %v6760 = vunpack.c.h.b16 %v6674
        %v6761 = vunpack.c.l.b16 %v6675
        %v6762 = vunpack.c.h.b16 %v6675
        %v6763 = vunpack.c.l.b16 %v6676
        %v6764 = vunpack.c.h.b16 %v6676
        %v6765 = vunpack.c.l.b16 %v6677
        %v6766 = vunpack.c.h.b16 %v6677
        %v6767 = vunpack.c.l.b16 %v6678
        %v6768 = vunpack.c.h.b16 %v6678
        %v6769 = vunpack.c.l.b16 %v6679
        %v6770 = vunpack.c.h.b16 %v6679
        %v6771 = vunpack.c.l.b16 %v6680
        %v6772 = vunpack.c.h.b16 %v6680
        %v6773 = vunpack.c.l.b16 %v6681
        %v6774 = vunpack.c.h.b16 %v6681
        %v6775 = vunpack.c.l.b16 %v6682
        %v6776 = vunpack.c.h.b16 %v6682
        %v6777 = vunpack.c.l.b16 %v6683
        %v6778 = vunpack.c.h.b16 %v6683
        %v6779 = vunpack.c.l.b16 %v6684
        %v6780 = vunpack.c.h.b16 %v6684
        %v6781 = vpack.c.b16 %v6721, %v6717
        %v6782 = vpack.c.b16 %v6722, %v6718
        %v6783 = vpack.c.b16 %v6723, %v6719
        %v6784 = vpack.c.b16 %v6724, %v6720
        %v6785 = vpack.c.b16 %v6729, %v6725
        %v6786 = vpack.c.b16 %v6730, %v6726
        %v6787 = vpack.c.b16 %v6731, %v6727
        %v6788 = vpack.c.b16 %v6732, %v6728
        %v6789 = vpack.c.b16 %v6737, %v6733
        %v6790 = vpack.c.b16 %v6738, %v6734
        %v6791 = vpack.c.b16 %v6739, %v6735
        %v6792 = vpack.c.b16 %v6740, %v6736
        %v6793 = vpack.c.b16 %v6745, %v6741
        %v6794 = vpack.c.b16 %v6746, %v6742
        %v6795 = vpack.c.b16 %v6747, %v6743
        %v6796 = vpack.c.b16 %v6748, %v6744
        %v6797 = vpack.c.b16 %v6753, %v6749
        %v6798 = vpack.c.b16 %v6754, %v6750
        %v6799 = vpack.c.b16 %v6755, %v6751
        %v6800 = vpack.c.b16 %v6756, %v6752
        %v6801 = vpack.c.b16 %v6761, %v6757
        %v6802 = vpack.c.b16 %v6762, %v6758
        %v6803 = vpack.c.b16 %v6763, %v6759
        %v6804 = vpack.c.b16 %v6764, %v6760
        %v6805 = vpack.c.b16 %v6769, %v6765
        %v6806 = vpack.c.b16 %v6770, %v6766
        %v6807 = vpack.c.b16 %v6771, %v6767
        %v6808 = vpack.c.b16 %v6772, %v6768
        %v6809 = vpack.c.b16 %v6777, %v6773
        %v6810 = vpack.c.b16 %v6778, %v6774
        %v6811 = vpack.c.b16 %v6779, %v6775
        %v6812 = vpack.c.b16 %v6780, %v6776
        %6845 = vmatpush.bf16.msra.mxu0 %v6809
        %6846 = vmatpush.bf16.msra.mxu0 %v6805
        %6847 = vmatpush.bf16.msra.mxu0 %v6801
        %6848 = vmatpush.bf16.msra.mxu0 %v6797
        %6849 = vmatpush.bf16.msra.mxu0 %v6793
        %6850 = vmatpush.bf16.msra.mxu0 %v6789
        %6851 = vmatpush.bf16.msra.mxu0 %v6785
        %6852 = vmatpush.bf16.msra.mxu0 %v6781
        %6853 = vmatmul.bf16.gmra.mxu0 %v6652
        %v6854 = vpop.f32.mrf.mxu0
        %v6855 = vadd.f32 0.0, %v6854
        %v6856 = vpop.f32.mrf.mxu0
        %6857 = vdwg.mxu0
        %6858 = vmatpush.bf16.msra.mxu0 %v6810
        %6859 = vmatpush.bf16.msra.mxu0 %v6806
        %6860 = vmatpush.bf16.msra.mxu0 %v6802
        %6861 = vmatpush.bf16.msra.mxu0 %v6798
        %6862 = vmatpush.bf16.msra.mxu0 %v6794
        %6863 = vmatpush.bf16.msra.mxu0 %v6790
        %6864 = vmatpush.bf16.msra.mxu0 %v6786
        %6865 = vmatpush.bf16.msra.mxu0 %v6782
        %6866 = vmatmul.bf16.gmra.mxu0 %v6652
        %v6867 = vpop.f32.mrf.mxu0
        %v6868 = vadd.f32 0.0, %v6867
        %v6869 = vpop.f32.mrf.mxu0
        %6870 = vdwg.mxu0
        %6871 = vmatpush.bf16.msra.mxu0 %v6811
        %6872 = vmatpush.bf16.msra.mxu0 %v6807
        %6873 = vmatpush.bf16.msra.mxu0 %v6803
        %6874 = vmatpush.bf16.msra.mxu0 %v6799
        %6875 = vmatpush.bf16.msra.mxu0 %v6795
        %6876 = vmatpush.bf16.msra.mxu0 %v6791
        %6877 = vmatpush.bf16.msra.mxu0 %v6787
        %6878 = vmatpush.bf16.msra.mxu0 %v6783
        %6879 = vmatmul.bf16.gmra.mxu0 %v6652
        %v6880 = vpop.f32.mrf.mxu0
        %v6881 = vadd.f32 0.0, %v6880
        %v6882 = vpop.f32.mrf.mxu0
        %6883 = vdwg.mxu0
        %6884 = vmatpush.bf16.msra.mxu0 %v6812
        %6885 = vmatpush.bf16.msra.mxu0 %v6808
        %6886 = vmatpush.bf16.msra.mxu0 %v6804
        %6887 = vmatpush.bf16.msra.mxu0 %v6800
        %6888 = vmatpush.bf16.msra.mxu0 %v6796
        %6889 = vmatpush.bf16.msra.mxu0 %v6792
        %6890 = vmatpush.bf16.msra.mxu0 %v6788
        %6891 = vmatpush.bf16.msra.mxu0 %v6784
        %6892 = vmatmul.bf16.gmra.mxu0 %v6652
        %v6893 = vpop.f32.mrf.mxu0
        %v6894 = vadd.f32 0.0, %v6893
        %v6895 = vpop.f32.mrf.mxu0
        %6896 = vdwg.mxu0
        %v6897 = vadd.f32 %v6648, %v6855
        %v6898 = vadd.f32 %v6649, %v6868
        %v6899 = vadd.f32 %v6650, %v6881
        %v6900 = vadd.f32 %v6651, %v6894
        %v6901 = vxor.u32 %v6897, 2147483648
        %v6902 = vxor.u32 %v6898, 2147483648
        %v6903 = vxor.u32 %v6899, 2147483648
        %v6904 = vmul.f32 %v6901, 1.442695
        %v6905 = vpow.pop %v6904
        %v6906 = vmul.f32 %v6902, 1.442695
        %v6907 = vpow.pop %v6906
        %v6908 = vmul.f32 %v6903, 1.442695
        %v6909 = vpow.pop %v6908
        %v6910 = vadd.f32 %v6905, 1.0
        %v6911 = vadd.f32 %v6907, 1.0
        %v6912 = vadd.f32 %v6909, 1.0
        %v6913 = vrcp.pop %v6910
        %v6914 = vmul.f32 %v6910, %v6913
        %v6915 = vsub.f32 1.0, %v6914
        %v6916 = vmul.f32 %v6913, %v6915
        %v6917 = vadd.f32 %v6913, %v6916
        %vm6918 = vweird.f32 %v6910
        %vm6919 = vweird.f32 %v6913
        %vm6920 = vmor %vm6918, %vm6919
        %v6921 = vsel %vm6920, %v6913, %v6917
        %v6922 = vand.u32 2147483647, %v6910
        %vm6923 = vcmp.eq.f32.partialorder %v6922, 8.507059e+37
        %v6924 = vand.u32 %v6910, 2147483648
        %v6925 = vor.u32 1.1754944e-38, %v6924
        %v6926 = vsel %vm6923, %v6925, %v6921
        %v6927 = vmul.f32 1.0, %v6926
        %v6928 = vrcp.pop %v6911
        %v6929 = vmul.f32 %v6911, %v6928
        %v6930 = vsub.f32 1.0, %v6929
        %v6931 = vmul.f32 %v6928, %v6930
        %v6932 = vadd.f32 %v6928, %v6931
        %vm6933 = vweird.f32 %v6911
        %vm6934 = vweird.f32 %v6928
        %vm6935 = vmor %vm6933, %vm6934
        %v6936 = vsel %vm6935, %v6928, %v6932
        %v6937 = vand.u32 2147483647, %v6911
        %vm6938 = vcmp.eq.f32.partialorder %v6937, 8.507059e+37
        %v6939 = vand.u32 %v6911, 2147483648
        %v6940 = vor.u32 1.1754944e-38, %v6939
        %v6941 = vsel %vm6938, %v6940, %v6936
        %v6942 = vmul.f32 1.0, %v6941
        %v6943 = vrcp.pop %v6912
        %v6944 = vmul.f32 %v6912, %v6943
        %v6945 = vsub.f32 1.0, %v6944
        %v6946 = vmul.f32 %v6943, %v6945
        %v6947 = vadd.f32 %v6943, %v6946
        %vm6948 = vweird.f32 %v6912
        %vm6949 = vweird.f32 %v6943
        %vm6950 = vmor %vm6948, %vm6949
        %v6951 = vsel %vm6950, %v6943, %v6947
        %v6952 = vand.u32 2147483647, %v6912
        %vm6953 = vcmp.eq.f32.partialorder %v6952, 8.507059e+37
        %v6954 = vand.u32 %v6912, 2147483648
        %v6955 = vor.u32 1.1754944e-38, %v6954
        %v6956 = vsel %vm6953, %v6955, %v6951
        %v6957 = vmul.f32 1.0, %v6956
        %v6958 = vtanh.pop %v6900
        %v6959 = vmul.f32 %v6942, %v6642
        %v6960 = vmul.f32 %v6927, %v6958
        %v6961 = vadd.f32 %v6959, %v6960
        %v6962 = vtanh.pop %v6961
        %v6963 = vmul.f32 %v6957, %v6962
        %s6964 = sadd.s32 %s403, 17
        %p6965 = scmp.lt.s32.totalorder %s6964, 37
        %s6966 = scalar_select %p6965, 1, 0
        %v6967 = vstv %s6966
        %vm6968 = vcmp.eq.s32.totalorder %v6967, 1
        %v6969 = vsel %vm6968, %v6961, %v6642
        %v6970 = vsel %vm6968, %v6963, %v6643
        %s6971 = smul.u32 %s6964, 8
        %s6972 = scalar_lea.vmem [#allocation2], %s6971
        %6973 = vst [vmem:[%s6972] sm:$0xff] %v6970
        %s6974 = scalar_lea.vmem [#allocation3], 576
        %v6975 = vld [vmem:[%s6974] sm:$0xff]
        %v6976 = vld [vmem:[%s6974 + $0x8] sm:$0xff]
        %v6977 = vld [vmem:[%s6974 + $0x10] sm:$0xff]
        %v6978 = vld [vmem:[%s6974 + $0x18] sm:$0xff]
        %v6979 = vpack.c.bf16 %v6970, %v6970
        %v6980 = vld [vmem:[%s344] sm:$0xff]
        %v6981 = vld [vmem:[%s344 + $0x8] sm:$0xff]
        %v6982 = vld [vmem:[%s344 + $0x10] sm:$0xff]
        %v6983 = vld [vmem:[%s344 + $0x18] sm:$0xff]
        %v6984 = vld [vmem:[%s344 + $0x20] sm:$0xff]
        %v6985 = vld [vmem:[%s344 + $0x28] sm:$0xff]
        %v6986 = vld [vmem:[%s344 + $0x30] sm:$0xff]
        %v6987 = vld [vmem:[%s344 + $0x38] sm:$0xff]
        %v6988 = vld [vmem:[%s344 + $0x40] sm:$0xff]
        %v6989 = vld [vmem:[%s344 + $0x48] sm:$0xff]
        %v6990 = vld [vmem:[%s344 + $0x50] sm:$0xff]
        %v6991 = vld [vmem:[%s344 + $0x58] sm:$0xff]
        %v6992 = vld [vmem:[%s344 + $0x60] sm:$0xff]
        %v6993 = vld [vmem:[%s344 + $0x68] sm:$0xff]
        %v6994 = vld [vmem:[%s344 + $0x70] sm:$0xff]
        %v6995 = vld [vmem:[%s344 + $0x78] sm:$0xff]
        %v6996 = vld [vmem:[%s344 + $0x80] sm:$0xff]
        %v6997 = vld [vmem:[%s344 + $0x88] sm:$0xff]
        %v6998 = vld [vmem:[%s344 + $0x90] sm:$0xff]
        %v6999 = vld [vmem:[%s344 + $0x98] sm:$0xff]
        %v7000 = vld [vmem:[%s344 + $0xa0] sm:$0xff]
        %v7001 = vld [vmem:[%s344 + $0xa8] sm:$0xff]
        %v7002 = vld [vmem:[%s344 + $0xb0] sm:$0xff]
        %v7003 = vld [vmem:[%s344 + $0xb8] sm:$0xff]
        %v7004 = vld [vmem:[%s344 + $0xc0] sm:$0xff]
        %v7005 = vld [vmem:[%s344 + $0xc8] sm:$0xff]
        %v7006 = vld [vmem:[%s344 + $0xd0] sm:$0xff]
        %v7007 = vld [vmem:[%s344 + $0xd8] sm:$0xff]
        %v7008 = vld [vmem:[%s344 + $0xe0] sm:$0xff]
        %v7009 = vld [vmem:[%s344 + $0xe8] sm:$0xff]
        %v7010 = vld [vmem:[%s344 + $0xf0] sm:$0xff]
        %v7011 = vld [vmem:[%s344 + $0xf8] sm:$0xff]
        %v7044 = vunpack.c.l.b16 %v6980
        %v7045 = vunpack.c.h.b16 %v6980
        %v7046 = vunpack.c.l.b16 %v6981
        %v7047 = vunpack.c.h.b16 %v6981
        %v7048 = vunpack.c.l.b16 %v6982
        %v7049 = vunpack.c.h.b16 %v6982
        %v7050 = vunpack.c.l.b16 %v6983
        %v7051 = vunpack.c.h.b16 %v6983
        %v7052 = vunpack.c.l.b16 %v6984
        %v7053 = vunpack.c.h.b16 %v6984
        %v7054 = vunpack.c.l.b16 %v6985
        %v7055 = vunpack.c.h.b16 %v6985
        %v7056 = vunpack.c.l.b16 %v6986
        %v7057 = vunpack.c.h.b16 %v6986
        %v7058 = vunpack.c.l.b16 %v6987
        %v7059 = vunpack.c.h.b16 %v6987
        %v7060 = vunpack.c.l.b16 %v6988
        %v7061 = vunpack.c.h.b16 %v6988
        %v7062 = vunpack.c.l.b16 %v6989
        %v7063 = vunpack.c.h.b16 %v6989
        %v7064 = vunpack.c.l.b16 %v6990
        %v7065 = vunpack.c.h.b16 %v6990
        %v7066 = vunpack.c.l.b16 %v6991
        %v7067 = vunpack.c.h.b16 %v6991
        %v7068 = vunpack.c.l.b16 %v6992
        %v7069 = vunpack.c.h.b16 %v6992
        %v7070 = vunpack.c.l.b16 %v6993
        %v7071 = vunpack.c.h.b16 %v6993
        %v7072 = vunpack.c.l.b16 %v6994
        %v7073 = vunpack.c.h.b16 %v6994
        %v7074 = vunpack.c.l.b16 %v6995
        %v7075 = vunpack.c.h.b16 %v6995
        %v7076 = vunpack.c.l.b16 %v6996
        %v7077 = vunpack.c.h.b16 %v6996
        %v7078 = vunpack.c.l.b16 %v6997
        %v7079 = vunpack.c.h.b16 %v6997
        %v7080 = vunpack.c.l.b16 %v6998
        %v7081 = vunpack.c.h.b16 %v6998
        %v7082 = vunpack.c.l.b16 %v6999
        %v7083 = vunpack.c.h.b16 %v6999
        %v7084 = vunpack.c.l.b16 %v7000
        %v7085 = vunpack.c.h.b16 %v7000
        %v7086 = vunpack.c.l.b16 %v7001
        %v7087 = vunpack.c.h.b16 %v7001
        %v7088 = vunpack.c.l.b16 %v7002
        %v7089 = vunpack.c.h.b16 %v7002
        %v7090 = vunpack.c.l.b16 %v7003
        %v7091 = vunpack.c.h.b16 %v7003
        %v7092 = vunpack.c.l.b16 %v7004
        %v7093 = vunpack.c.h.b16 %v7004
        %v7094 = vunpack.c.l.b16 %v7005
        %v7095 = vunpack.c.h.b16 %v7005
        %v7096 = vunpack.c.l.b16 %v7006
        %v7097 = vunpack.c.h.b16 %v7006
        %v7098 = vunpack.c.l.b16 %v7007
        %v7099 = vunpack.c.h.b16 %v7007
        %v7100 = vunpack.c.l.b16 %v7008
        %v7101 = vunpack.c.h.b16 %v7008
        %v7102 = vunpack.c.l.b16 %v7009
        %v7103 = vunpack.c.h.b16 %v7009
        %v7104 = vunpack.c.l.b16 %v7010
        %v7105 = vunpack.c.h.b16 %v7010
        %v7106 = vunpack.c.l.b16 %v7011
        %v7107 = vunpack.c.h.b16 %v7011
        %v7108 = vpack.c.b16 %v7048, %v7044
        %v7109 = vpack.c.b16 %v7049, %v7045
        %v7110 = vpack.c.b16 %v7050, %v7046
        %v7111 = vpack.c.b16 %v7051, %v7047
        %v7112 = vpack.c.b16 %v7056, %v7052
        %v7113 = vpack.c.b16 %v7057, %v7053
        %v7114 = vpack.c.b16 %v7058, %v7054
        %v7115 = vpack.c.b16 %v7059, %v7055
        %v7116 = vpack.c.b16 %v7064, %v7060
        %v7117 = vpack.c.b16 %v7065, %v7061
        %v7118 = vpack.c.b16 %v7066, %v7062
        %v7119 = vpack.c.b16 %v7067, %v7063
        %v7120 = vpack.c.b16 %v7072, %v7068
        %v7121 = vpack.c.b16 %v7073, %v7069
        %v7122 = vpack.c.b16 %v7074, %v7070
        %v7123 = vpack.c.b16 %v7075, %v7071
        %v7124 = vpack.c.b16 %v7080, %v7076
        %v7125 = vpack.c.b16 %v7081, %v7077
        %v7126 = vpack.c.b16 %v7082, %v7078
        %v7127 = vpack.c.b16 %v7083, %v7079
        %v7128 = vpack.c.b16 %v7088, %v7084
        %v7129 = vpack.c.b16 %v7089, %v7085
        %v7130 = vpack.c.b16 %v7090, %v7086
        %v7131 = vpack.c.b16 %v7091, %v7087
        %v7132 = vpack.c.b16 %v7096, %v7092
        %v7133 = vpack.c.b16 %v7097, %v7093
        %v7134 = vpack.c.b16 %v7098, %v7094
        %v7135 = vpack.c.b16 %v7099, %v7095
        %v7136 = vpack.c.b16 %v7104, %v7100
        %v7137 = vpack.c.b16 %v7105, %v7101
        %v7138 = vpack.c.b16 %v7106, %v7102
        %v7139 = vpack.c.b16 %v7107, %v7103
        %7172 = vmatpush.bf16.msra.mxu0 %v7136
        %7173 = vmatpush.bf16.msra.mxu0 %v7132
        %7174 = vmatpush.bf16.msra.mxu0 %v7128
        %7175 = vmatpush.bf16.msra.mxu0 %v7124
        %7176 = vmatpush.bf16.msra.mxu0 %v7120
        %7177 = vmatpush.bf16.msra.mxu0 %v7116
        %7178 = vmatpush.bf16.msra.mxu0 %v7112
        %7179 = vmatpush.bf16.msra.mxu0 %v7108
        %7180 = vmatmul.bf16.gmra.mxu0 %v6979
        %v7181 = vpop.f32.mrf.mxu0
        %v7182 = vadd.f32 0.0, %v7181
        %v7183 = vpop.f32.mrf.mxu0
        %7184 = vdwg.mxu0
        %7185 = vmatpush.bf16.msra.mxu0 %v7137
        %7186 = vmatpush.bf16.msra.mxu0 %v7133
        %7187 = vmatpush.bf16.msra.mxu0 %v7129
        %7188 = vmatpush.bf16.msra.mxu0 %v7125
        %7189 = vmatpush.bf16.msra.mxu0 %v7121
        %7190 = vmatpush.bf16.msra.mxu0 %v7117
        %7191 = vmatpush.bf16.msra.mxu0 %v7113
        %7192 = vmatpush.bf16.msra.mxu0 %v7109
        %7193 = vmatmul.bf16.gmra.mxu0 %v6979
        %v7194 = vpop.f32.mrf.mxu0
        %v7195 = vadd.f32 0.0, %v7194
        %v7196 = vpop.f32.mrf.mxu0
        %7197 = vdwg.mxu0
        %7198 = vmatpush.bf16.msra.mxu0 %v7138
        %7199 = vmatpush.bf16.msra.mxu0 %v7134
        %7200 = vmatpush.bf16.msra.mxu0 %v7130
        %7201 = vmatpush.bf16.msra.mxu0 %v7126
        %7202 = vmatpush.bf16.msra.mxu0 %v7122
        %7203 = vmatpush.bf16.msra.mxu0 %v7118
        %7204 = vmatpush.bf16.msra.mxu0 %v7114
        %7205 = vmatpush.bf16.msra.mxu0 %v7110
        %7206 = vmatmul.bf16.gmra.mxu0 %v6979
        %v7207 = vpop.f32.mrf.mxu0
        %v7208 = vadd.f32 0.0, %v7207
        %v7209 = vpop.f32.mrf.mxu0
        %7210 = vdwg.mxu0
        %7211 = vmatpush.bf16.msra.mxu0 %v7139
        %7212 = vmatpush.bf16.msra.mxu0 %v7135
        %7213 = vmatpush.bf16.msra.mxu0 %v7131
        %7214 = vmatpush.bf16.msra.mxu0 %v7127
        %7215 = vmatpush.bf16.msra.mxu0 %v7123
        %7216 = vmatpush.bf16.msra.mxu0 %v7119
        %7217 = vmatpush.bf16.msra.mxu0 %v7115
        %7218 = vmatpush.bf16.msra.mxu0 %v7111
        %7219 = vmatmul.bf16.gmra.mxu0 %v6979
        %v7220 = vpop.f32.mrf.mxu0
        %v7221 = vadd.f32 0.0, %v7220
        %v7222 = vpop.f32.mrf.mxu0
        %7223 = vdwg.mxu0
        %v7224 = vadd.f32 %v6975, %v7182
        %v7225 = vadd.f32 %v6976, %v7195
        %v7226 = vadd.f32 %v6977, %v7208
        %v7227 = vadd.f32 %v6978, %v7221
        %v7228 = vxor.u32 %v7224, 2147483648
        %v7229 = vxor.u32 %v7225, 2147483648
        %v7230 = vxor.u32 %v7226, 2147483648
        %v7231 = vmul.f32 %v7228, 1.442695
        %v7232 = vpow.pop %v7231
        %v7233 = vmul.f32 %v7229, 1.442695
        %v7234 = vpow.pop %v7233
        %v7235 = vmul.f32 %v7230, 1.442695
        %v7236 = vpow.pop %v7235
        %v7237 = vadd.f32 %v7232, 1.0
        %v7238 = vadd.f32 %v7234, 1.0
        %v7239 = vadd.f32 %v7236, 1.0
        %v7240 = vrcp.pop %v7237
        %v7241 = vmul.f32 %v7237, %v7240
        %v7242 = vsub.f32 1.0, %v7241
        %v7243 = vmul.f32 %v7240, %v7242
        %v7244 = vadd.f32 %v7240, %v7243
        %vm7245 = vweird.f32 %v7237
        %vm7246 = vweird.f32 %v7240
        %vm7247 = vmor %vm7245, %vm7246
        %v7248 = vsel %vm7247, %v7240, %v7244
        %v7249 = vand.u32 2147483647, %v7237
        %vm7250 = vcmp.eq.f32.partialorder %v7249, 8.507059e+37
        %v7251 = vand.u32 %v7237, 2147483648
        %v7252 = vor.u32 1.1754944e-38, %v7251
        %v7253 = vsel %vm7250, %v7252, %v7248
        %v7254 = vmul.f32 1.0, %v7253
        %v7255 = vrcp.pop %v7238
        %v7256 = vmul.f32 %v7238, %v7255
        %v7257 = vsub.f32 1.0, %v7256
        %v7258 = vmul.f32 %v7255, %v7257
        %v7259 = vadd.f32 %v7255, %v7258
        %vm7260 = vweird.f32 %v7238
        %vm7261 = vweird.f32 %v7255
        %vm7262 = vmor %vm7260, %vm7261
        %v7263 = vsel %vm7262, %v7255, %v7259
        %v7264 = vand.u32 2147483647, %v7238
        %vm7265 = vcmp.eq.f32.partialorder %v7264, 8.507059e+37
        %v7266 = vand.u32 %v7238, 2147483648
        %v7267 = vor.u32 1.1754944e-38, %v7266
        %v7268 = vsel %vm7265, %v7267, %v7263
        %v7269 = vmul.f32 1.0, %v7268
        %v7270 = vrcp.pop %v7239
        %v7271 = vmul.f32 %v7239, %v7270
        %v7272 = vsub.f32 1.0, %v7271
        %v7273 = vmul.f32 %v7270, %v7272
        %v7274 = vadd.f32 %v7270, %v7273
        %vm7275 = vweird.f32 %v7239
        %vm7276 = vweird.f32 %v7270
        %vm7277 = vmor %vm7275, %vm7276
        %v7278 = vsel %vm7277, %v7270, %v7274
        %v7279 = vand.u32 2147483647, %v7239
        %vm7280 = vcmp.eq.f32.partialorder %v7279, 8.507059e+37
        %v7281 = vand.u32 %v7239, 2147483648
        %v7282 = vor.u32 1.1754944e-38, %v7281
        %v7283 = vsel %vm7280, %v7282, %v7278
        %v7284 = vmul.f32 1.0, %v7283
        %v7285 = vtanh.pop %v7227
        %v7286 = vmul.f32 %v7269, %v6969
        %v7287 = vmul.f32 %v7254, %v7285
        %v7288 = vadd.f32 %v7286, %v7287
        %v7289 = vtanh.pop %v7288
        %v7290 = vmul.f32 %v7284, %v7289
        %s7291 = sadd.s32 %s403, 18
        %p7292 = scmp.lt.s32.totalorder %s7291, 37
        %s7293 = scalar_select %p7292, 1, 0
        %v7294 = vstv %s7293
        %vm7295 = vcmp.eq.s32.totalorder %v7294, 1
        %v7296 = vsel %vm7295, %v7288, %v6969
        %v7297 = vsel %vm7295, %v7290, %v6970
        %s7298 = smul.u32 %s7291, 8
        %s7299 = scalar_lea.vmem [#allocation2], %s7298
        %7300 = vst [vmem:[%s7299] sm:$0xff] %v7297
        %7301 = vst [vmem:[#allocation4] sm:$0xff] %v7297
        %7302 = vst [vmem:[#allocation5] sm:$0xff] %v7296
        %7303 = vst [vmem:[%s394] sm:$0xff] %v7297
        %7304 = vst [vmem:[%s401] sm:$0xff] %v7296
        %s7305 = sand.u32 %s167, 1
        %s7306 = scalar_lea.sflag [#allocation8], %s7305
        %s7307 = sand.u32 %s167, 1
        %s7308 = smul.addr %s7307, 8
        %s7309 = scalar_lea.vmem [#allocation14], %s7308
        %s7310 = sand.u32 %s195, 1
        %s7311 = scalar_lea.sflag [#allocation16], %s7310
        %s7312 = sand.u32 %s195, 1
        %s7313 = smul.addr %s7312, 8
        %s7314 = scalar_lea.vmem [#allocation15], %s7313
        // Predicated region
        $region61: #{tpu_custom_call.1} parent=35 // pred_check
          %p7315 = pneg %p177
        $region62: #{tpu_custom_call.1} parent=35 // pred_check_branch
          %7317 = sbr.rel (%p7315) target = $region64
        $region63: #{tpu_custom_call.1} parent=35 // pred_region
          %7319 = vsyncadd %s7306, 0
          %s7320 = sadd.s32 %s37, %s38
          %s7321 = smul.addr %s7320, 8
          %s7322 = scalar_lea.hbm %s4, %s7321
          %s7324 = sshll.u32 %s7309, 4
          %s7325 = int_to_ptr.vmem [resolvable:$true] %s7324
          %s7326 = sshll.u32 %s7322, 4
          %s7327 = int_to_ptr.hbm [resolvable:$true] %s7326
          %7329 = dma.vmem_to_hbm [thread:$0]  %s7325, 128, %s7327, %s7306
        $region64: #{tpu_custom_call.1} parent=35 // pred_fallthru
          _
        // Predicated region
        $region65: #{tpu_custom_call.1} parent=35 // pred_check
          %p7330 = pneg %p205
        $region66: #{tpu_custom_call.1} parent=35 // pred_check_branch
          %7332 = sbr.rel (%p7330) target = $region68
        $region67: #{tpu_custom_call.1} parent=35 // pred_region
          %7334 = vsyncadd %s7311, 0
          %s7335 = sadd.s32 %s37, %s38
          %s7336 = smul.addr %s7335, 8
          %s7337 = scalar_lea.hbm %s5, %s7336
          %s7339 = sshll.u32 %s7314, 4
          %s7340 = int_to_ptr.vmem [resolvable:$true] %s7339
          %s7341 = sshll.u32 %s7337, 4
          %s7342 = int_to_ptr.hbm [resolvable:$true] %s7341
          %7344 = dma.vmem_to_hbm [thread:$0]  %s7340, 128, %s7342, %s7311
        $region68: #{tpu_custom_call.1} parent=35 // pred_fallthru
          _
      $region36: #{tpu_custom_call.1} parent=5 // pred_fallthru
        _
      %p7345 = scmp.le.s32.totalorder 2, %s27
      // Predicated region
      $region69: #{tpu_custom_call.1} parent=5 // pred_check
        %p7346 = pneg %p7345
      $region70: #{tpu_custom_call.1} parent=5 // pred_check_branch
        %7348 = sbr.rel (%p7346) target = $region72
      $region71: #{tpu_custom_call.1} parent=5 // pred_region
        %s7349 = ssub.s32 %s27, 2
        // Predicated region
        $region73: #{tpu_custom_call.1} parent=71 // pred_check
          %p7350 = pneg %p183
        $region74: #{tpu_custom_call.1} parent=71 // pred_check_branch
          %7352 = sbr.rel (%p7350) target = $region76
        $region75: #{tpu_custom_call.1} parent=71 // pred_region
          %s7353 = sand.u32 %s168, 1
          %s7354 = scalar_lea.sflag [#allocation8], %s7353
          %s7355 = sand.u32 %s168, 1
          %s7356 = smul.addr %s7355, 8
          %s7357 = scalar_lea.vmem [#allocation14], %s7356
          %7359 = dma.done %s7354, 128
        $region76: #{tpu_custom_call.1} parent=71 // pred_fallthru
          _
        // Predicated region
        $region77: #{tpu_custom_call.1} parent=71 // pred_check
          %p7360 = pneg %p211
        $region78: #{tpu_custom_call.1} parent=71 // pred_check_branch
          %7362 = sbr.rel (%p7360) target = $region80
        $region79: #{tpu_custom_call.1} parent=71 // pred_region
          %s7363 = sand.u32 %s196, 1
          %s7364 = scalar_lea.sflag [#allocation16], %s7363
          %s7365 = sand.u32 %s196, 1
          %s7366 = smul.addr %s7365, 8
          %s7367 = scalar_lea.vmem [#allocation15], %s7366
          %7369 = dma.done %s7364, 128
        $region80: #{tpu_custom_call.1} parent=71 // pred_fallthru
          _
      $region72: #{tpu_custom_call.1} parent=5 // pred_fallthru
        _
    $region6: #{tpu_custom_call.1} parent=1 // loop_footer
      %s31 = sadd.s32 1, %s27
    $region7: #{tpu_custom_call.1} parent=1 // loop_footer_branch
      %26 = sbr.rel target = $region3
    $region8: #{tpu_custom_call.1} parent=1 // loop_exit
      _
    %7370 = vsyncpa [#allocation7], 1
    %s7371 = scalar_lea.sflag [#allocation7], 1
    %7372 = vsyncpa %s7371, 1
    %7373 = vsyncpa [#allocation10], 1
    %s7374 = scalar_lea.sflag [#allocation10], 1
    %7375 = vsyncpa %s7374, 1
    %7376 = vsyncpa [#allocation13], 1
    %s7377 = scalar_lea.sflag [#allocation13], 1
    %7378 = vsyncpa %s7377, 1
    %7379 = vsyncpa [#allocation8], 1
    %s7380 = scalar_lea.sflag [#allocation8], 1
    %7381 = vsyncpa %s7380, 1
    %7382 = vsyncpa [#allocation16], 1
    %s7383 = scalar_lea.sflag [#allocation16], 1
    %7384 = vsyncpa %s7383, 1

</llo_original>
